<compile_context>
chip_gen: v6e
topology: v6e:2x2x1
jax: 0.10.0
libtpu: 0.0.40
codegen_flags: <defaults>
</compile_context>

<pallas_src>
import jax
import jax.numpy as jnp
from jax import lax
from jax.experimental import pallas as pl
from jax.experimental.pallas import tpu as pltpu


# ----------------------------- in-kernel helpers -----------------------------

def _zero_halo(pad_ref):
    """Zero only the 1-pixel halo ring of a (N, Hp, Wp, C) VMEM scratch.

    The interior is fully overwritten afterwards, so the full-buffer zero fill
    of the previous version is avoided (4 thin slab stores instead).
    """
    n, hp, wp, c = pad_ref.shape
    dt = pad_ref.dtype
    pad_ref[:, 0:1, :, :] = jnp.zeros((n, 1, wp, c), dt)
    pad_ref[:, hp - 1:hp, :, :] = jnp.zeros((n, 1, wp, c), dt)
    pad_ref[:, :, 0:1, :] = jnp.zeros((n, hp, 1, c), dt)
    pad_ref[:, :, wp - 1:wp, :] = jnp.zeros((n, hp, 1, c), dt)


def _im2col(pad_ref, pat_ref, Ho, Wo, stride):
    """Assemble the 3x3 im2col slab for one conv.

    pad_ref: (N, Hp, Wp, C) zero-halo padded feature map (VMEM, f32)
    pat_ref: (N*Ho*Wo, 9*C) bf16 im2col slab -> ONE MXU matmul with K = 9*C
    Tap slices are read directly off the ref (no full padded array in vregs);
    column order is (kh, kw, c), matching w.reshape(9*C, Co) of HWIO weights.
    """
    N, _, _, C = pad_ref.shape
    rows = N * Ho * Wo
    for kh in range(3):
        for kw in range(3):
            if stride == 1:
                tap = pad_ref[:, kh:kh + Ho, kw:kw + Wo, :]
            else:
                tap = pad_ref[:, pl.ds(kh, Ho, stride), pl.ds(kw, Wo, stride), :]
            c0 = (kh * 3 + kw) * C
            pat_ref[:, c0:c0 + C] = tap.reshape(rows, C).astype(pat_ref.dtype)


def _batchnorm(y, gamma, beta, eps):
    """Training-mode BatchNorm2d on a (rows, C) slab.

    Single-pass batch statistics (sum / sum-of-squares, biased variance),
    accumulated in f32. gamma/beta: (1, C) f32.
    """
    inv_n = 1.0 / y.shape[0]
    mean = jnp.sum(y, axis=0, keepdims=True) * inv_n
    var = jnp.maximum(jnp.sum(y * y, axis=0, keepdims=True) * inv_n - mean * mean, 0.0)
    return (y - mean) * (lax.rsqrt(var + eps) * gamma) + beta


def _make_residual_kernel(stride, use_1x1conv, eps):
    def kernel(*refs):
        if use_1x1conv:
            (x_ref, w1_ref, g1_ref, b1_ref, w2_ref, g2_ref, b2_ref,
             w3_ref, cb3_ref, out_ref, xpad, ypad, pat1, pat2) = refs
        else:
            (x_ref, w1_ref, g1_ref, b1_ref, w2_ref, g2_ref, b2_ref,
             out_ref, xpad, ypad, pat1, pat2) = refs
            w3_ref = cb3_ref = None

        N, H, W, Cin = x_ref.shape
        Cout = w1_ref.shape[-1]
        Ho = (H - 1) // stride + 1
        Wo = (W - 1) // stride + 1
        rows = N * Ho * Wo

        # ---- in-kernel zero padding (halo ring only; interiors overwritten) ----
        # Pads are kept f32 so interior writes at odd sublane offsets stay
        # simple masked stores (no packed-dtype sub-word stores).
        _zero_halo(xpad)
        _zero_halo(ypad)
        xpad[:, 1:H + 1, 1:W + 1, :] = x_ref[...].astype(xpad.dtype)

        # ---- conv1 (3x3, stride=s, pad=1): single im2col matmul, bf16 operands ----
        # No conv1 bias: cancelled exactly by the BN mean subtraction.
        _im2col(xpad, pat1, Ho, Wo, stride)
        y = jnp.dot(pat1[...], w1_ref[...], preferred_element_type=jnp.float32)
        y = _batchnorm(y, g1_ref[...], b1_ref[...], eps)
        y = jnp.maximum(y, 0.0)

        # ---- conv2 (3x3, stride=1, pad=1): pad y, im2col, single matmul, BN2 ----
        ypad[:, 1:Ho + 1, 1:Wo + 1, :] = y.reshape(N, Ho, Wo, Cout)
        _im2col(ypad, pat2, Ho, Wo, 1)
        y = jnp.dot(pat2[...], w2_ref[...], preferred_element_type=jnp.float32)
        y = _batchnorm(y, g2_ref[...], b2_ref[...], eps)

        # ---- skip connection ----
        if use_1x1conv:
            if stride == 1:
                xs = x_ref[...]
            else:
                xs = x_ref[:, pl.ds(0, Ho, stride), pl.ds(0, Wo, stride), :]
            skip = jnp.dot(xs.reshape(rows, Cin), w3_ref[...],
                           preferred_element_type=jnp.float32) + cb3_ref[...]
        else:
            # identity skip (PyTorch module implies stride == 1 and Cin == Cout here)
            skip = x_ref[...].reshape(rows, Cin).astype(jnp.float32)

        out_ref[...] = jnp.maximum(y + skip, 0.0)

    return kernel


# --------------------------------- wrapper -----------------------------------

def residual_pallas(x_nhwc, params, *, strides=1, use_1x1conv=False, eps=1e-5):
    """Fused Residual forward. x_nhwc: (N,H,W,Cin) f32 -> (N,Ho,Wo,Cout) f32."""
    N, H, W, Cin = x_nhwc.shape
    Cout = params["w1"].shape[-1]
    Ho = (H - 1) // strides + 1
    Wo = (W - 1) // strides + 1
    rows = N * Ho * Wo

    # bf16 matmul operands (halves input/weight DMA bytes, MXU-native);
    # BN math, 1x1-skip bias and the output stay f32.
    x_bf = x_nhwc.astype(jnp.bfloat16)
    w1 = params["w1"].reshape(9 * Cin, Cout).astype(jnp.bfloat16)    # (kh,kw,ci) -> im2col K order
    w2 = params["w2"].reshape(9 * Cout, Cout).astype(jnp.bfloat16)
    # NOTE: cb1/cb2 are intentionally NOT passed — training-mode BN cancels them exactly.

    inputs = [x_bf, w1, params["g1"], params["b1"], w2, params["g2"], params["b2"]]
    if use_1x1conv:
        inputs += [params["w3"].astype(jnp.bfloat16), params["cb3"]]

    vmem = pl.BlockSpec(memory_space=pltpu.MemorySpace.VMEM)
    kernel = _make_residual_kernel(strides, use_1x1conv, eps)

    out2d = pl.pallas_call(
        kernel,
        out_shape=jax.ShapeDtypeStruct((rows, Cout), jnp.float32),
        in_specs=[vmem] * len(inputs),
        out_specs=vmem,
        scratch_shapes=[
            pltpu.VMEM((N, H + 2, W + 2, Cin), jnp.float32),     # xpad (zero halo)
            pltpu.VMEM((N, Ho + 2, Wo + 2, Cout), jnp.float32),  # ypad (zero halo)
            pltpu.VMEM((rows, 9 * Cin), jnp.bfloat16),           # conv1 im2col slab
            pltpu.VMEM((rows, 9 * Cout), jnp.bfloat16),          # conv2 im2col slab
        ],
        compiler_params=pltpu.CompilerParams(vmem_limit_bytes=64 * 1024 * 1024),
    )(*inputs)
    return out2d.reshape(N, Ho, Wo, Cout)


# ----------------------------- params & reference ----------------------------

def init_params(key, cin, cout, use_1x1conv):
    ks = jax.random.split(key, 6)
    p = {
        "w1": jax.random.normal(ks[0], (3, 3, cin, cout), jnp.float32) * 0.1,
        "cb1": jax.random.normal(ks[1], (1, cout), jnp.float32) * 0.1,   # used by reference only
        "w2": jax.random.normal(ks[2], (3, 3, cout, cout), jnp.float32) * 0.1,
        "cb2": jax.random.normal(ks[3], (1, cout), jnp.float32) * 0.1,   # used by reference only
        "g1": jnp.ones((1, cout), jnp.float32),
        "b1": jnp.zeros((1, cout), jnp.float32),
        "g2": jnp.ones((1, cout), jnp.float32),
        "b2": jnp.zeros((1, cout), jnp.float32),
    }
    if use_1x1conv:
        p["w3"] = jax.random.normal(ks[4], (cin, cout), jnp.float32) * 0.1
        p["cb3"] = jax.random.normal(ks[5], (1, cout), jnp.float32) * 0.1
    return p


def residual_ref(x, p, strides, use_1x1conv, eps=1e-5, quantize_bf16=False):
    """Pure-JAX reference (PyTorch training-mode semantics, conv biases included).

    quantize_bf16=True rounds the matmul operands to bf16 exactly where the
    kernel does, so the comparison isolates kernel-structure errors from the
    (intentional) bf16 operand quantization.
    """
    q = (lambda a: a.astype(jnp.bfloat16).astype(jnp.float32)) if quantize_bf16 else (lambda a: a)

    def conv(x, w, b, s, pad):
        y = lax.conv_general_dilated(
            x, w, window_strides=(s, s), padding=((pad, pad), (pad, pad)),
            dimension_numbers=("NHWC", "HWIO", "NHWC"),
            precision=lax.Precision.HIGHEST)
        return y + b.reshape(1, 1, 1, -1)

    def bn(y, g, bt):
        m = jnp.mean(y, axis=(0, 1, 2), keepdims=True)
        v = jnp.mean((y - m) ** 2, axis=(0, 1, 2), keepdims=True)
        return (y - m) * lax.rsqrt(v + eps) * g.reshape(1, 1, 1, -1) + bt.reshape(1, 1, 1, -1)

    xq = q(x)
    y = jax.nn.relu(bn(conv(xq, q(p["w1"]), p["cb1"], strides, 1), p["g1"], p["b1"]))
    y = bn(conv(q(y), q(p["w2"]), p["cb2"], 1, 1), p["g2"], p["b2"])
    if use_1x1conv:
        sk = conv(xq, q(p["w3"]).reshape(1, 1, *p["w3"].shape), p["cb3"], strides, 0)
    else:
        sk = xq
    return jax.nn.relu(y + sk)


# ----------------------------------- main ------------------------------------

if __name__ == "__main__":
    key = jax.random.PRNGKey(0)
    kx, kp1, kp2 = jax.random.split(key, 3)

    # PyTorch-style NCHW input, small shapes: batch=2, channels=4, spatial=16
    x_nchw = jax.random.normal(kx, (2, 4, 16, 16), jnp.float32)
    x_nhwc = jnp.transpose(x_nchw, (0, 2, 3, 1))

    # config 1: Residual(4, 4)  (identity skip, stride 1)
    p1 = init_params(kp1, 4, 4, use_1x1conv=False)
    out1 = jax.block_until_ready(residual_pallas(x_nhwc, p1, strides=1, use_1x1conv=False))
    assert out1.shape == (2, 16, 16, 4)
    ref1_q = residual_ref(x_nhwc, p1, 1, False, quantize_bf16=True)    # strict: same bf16 quantization
    ref1_f = residual_ref(x_nhwc, p1, 1, False, quantize_bf16=False)   # sanity: exact f32 module semantics
    assert jnp.allclose(out1, ref1_q, atol=5e-3, rtol=5e-3), \
        f"mismatch config1 (strict): {float(jnp.max(jnp.abs(out1 - ref1_q)))}"
    assert jnp.allclose(out1, ref1_f, atol=1e-1, rtol=1e-1), \
        f"mismatch config1 (f32 sanity): {float(jnp.max(jnp.abs(out1 - ref1_f)))}"

    # config 2: Residual(4, 8, use_1x1conv=True)  (projection skip)
    p2 = init_params(kp2, 4, 8, use_1x1conv=True)
    out2 = jax.block_until_ready(residual_pallas(x_nhwc, p2, strides=1, use_1x1conv=True))
    assert out2.shape == (2, 16, 16, 8)
    ref2_q = residual_ref(x_nhwc, p2, 1, True, quantize_bf16=True)
    ref2_f = residual_ref(x_nhwc, p2, 1, True, quantize_bf16=False)
    assert jnp.allclose(out2, ref2_q, atol=5e-3, rtol=5e-3), \
        f"mismatch config2 (strict): {float(jnp.max(jnp.abs(out2 - ref2_q)))}"
    assert jnp.allclose(out2, ref2_f, atol=1e-1, rtol=1e-1), \
        f"mismatch config2 (f32 sanity): {float(jnp.max(jnp.abs(out2 - ref2_f)))}"

    # back to PyTorch NCHW layout (glue)
    out1_nchw = jnp.transpose(out1, (0, 3, 1, 2))
    out2_nchw = jnp.transpose(out2, (0, 3, 1, 2))
    jax.block_until_ready((out1_nchw, out2_nchw))

    print("KERNEL_OK")
</pallas_src>

<mosaic_0001>
module attributes {stable_mosaic.version = 11 : i64} {
  func.func @kernel(%arg0: memref<2x16x16x4xbf16, #tpu.memory_space<vmem>>, %arg1: memref<36x4xbf16, #tpu.memory_space<vmem>>, %arg2: memref<1x4xf32, #tpu.memory_space<vmem>>, %arg3: memref<1x4xf32, #tpu.memory_space<vmem>>, %arg4: memref<36x4xbf16, #tpu.memory_space<vmem>>, %arg5: memref<1x4xf32, #tpu.memory_space<vmem>>, %arg6: memref<1x4xf32, #tpu.memory_space<vmem>>, %arg7: memref<512x4xf32, #tpu.memory_space<vmem>>, %arg8: memref<2x18x18x4xf32, #tpu.memory_space<vmem>>, %arg9: memref<2x18x18x4xf32, #tpu.memory_space<vmem>>, %arg10: memref<512x36xbf16, #tpu.memory_space<vmem>>, %arg11: memref<512x36xbf16, #tpu.memory_space<vmem>>) attributes {dimension_semantics = [], scalar_prefetch = 0 : i64, scratch_operands = 4 : i64, tpu.core_type = #tpu.core_type<tc>} {
    %cst = arith.constant 0.000000e+00 : f32
    %0 = vector.broadcast %cst : f32 to vector<2x1x18x4xf32>
    %c0 = arith.constant 0 : index
    %c0_0 = arith.constant 0 : index
    %c0_1 = arith.constant 0 : index
    %c0_2 = arith.constant 0 : index
    %1 = vector.load %arg8[%c0, %c0_0, %c0_1, %c0_2] : memref<2x18x18x4xf32, #tpu.memory_space<vmem>>, vector<2x1x18x4xf32>
    tpu.vector_store %arg8[%c0, %c0_0, %c0_1, %c0_2], %0 {strides = array<i32>} : memref<2x18x18x4xf32, #tpu.memory_space<vmem>>, vector<2x1x18x4xf32>,
    %cst_3 = arith.constant 0.000000e+00 : f32
    %2 = vector.broadcast %cst_3 : f32 to vector<2x1x18x4xf32>
    %c0_4 = arith.constant 0 : index
    %c17 = arith.constant 17 : index
    %c0_5 = arith.constant 0 : index
    %c0_6 = arith.constant 0 : index
    %3 = vector.load %arg8[%c0_4, %c17, %c0_5, %c0_6] : memref<2x18x18x4xf32, #tpu.memory_space<vmem>>, vector<2x1x18x4xf32>
    tpu.vector_store %arg8[%c0_4, %c17, %c0_5, %c0_6], %2 {strides = array<i32>} : memref<2x18x18x4xf32, #tpu.memory_space<vmem>>, vector<2x1x18x4xf32>,
    %cst_7 = arith.constant 0.000000e+00 : f32
    %4 = vector.broadcast %cst_7 : f32 to vector<2x18x1x4xf32>
    %c0_8 = arith.constant 0 : index
    %c0_9 = arith.constant 0 : index
    %c0_10 = arith.constant 0 : index
    %c0_11 = arith.constant 0 : index
    %5 = vector.load %arg8[%c0_8, %c0_9, %c0_10, %c0_11] : memref<2x18x18x4xf32, #tpu.memory_space<vmem>>, vector<2x18x1x4xf32>
    tpu.vector_store %arg8[%c0_8, %c0_9, %c0_10, %c0_11], %4 {strides = array<i32>} : memref<2x18x18x4xf32, #tpu.memory_space<vmem>>, vector<2x18x1x4xf32>,
    %cst_12 = arith.constant 0.000000e+00 : f32
    %6 = vector.broadcast %cst_12 : f32 to vector<2x18x1x4xf32>
    %c0_13 = arith.constant 0 : index
    %c0_14 = arith.constant 0 : index
    %c17_15 = arith.constant 17 : index
    %c0_16 = arith.constant 0 : index
    %7 = vector.load %arg8[%c0_13, %c0_14, %c17_15, %c0_16] : memref<2x18x18x4xf32, #tpu.memory_space<vmem>>, vector<2x18x1x4xf32>
    tpu.vector_store %arg8[%c0_13, %c0_14, %c17_15, %c0_16], %6 {strides = array<i32>} : memref<2x18x18x4xf32, #tpu.memory_space<vmem>>, vector<2x18x1x4xf32>,
    %cst_17 = arith.constant 0.000000e+00 : f32
    %8 = vector.broadcast %cst_17 : f32 to vector<2x1x18x4xf32>
    %c0_18 = arith.constant 0 : index
    %c0_19 = arith.constant 0 : index
    %c0_20 = arith.constant 0 : index
    %c0_21 = arith.constant 0 : index
    %9 = vector.load %arg9[%c0_18, %c0_19, %c0_20, %c0_21] : memref<2x18x18x4xf32, #tpu.memory_space<vmem>>, vector<2x1x18x4xf32>
    tpu.vector_store %arg9[%c0_18, %c0_19, %c0_20, %c0_21], %8 {strides = array<i32>} : memref<2x18x18x4xf32, #tpu.memory_space<vmem>>, vector<2x1x18x4xf32>,
    %cst_22 = arith.constant 0.000000e+00 : f32
    %10 = vector.broadcast %cst_22 : f32 to vector<2x1x18x4xf32>
    %c0_23 = arith.constant 0 : index
    %c17_24 = arith.constant 17 : index
    %c0_25 = arith.constant 0 : index
    %c0_26 = arith.constant 0 : index
    %11 = vector.load %arg9[%c0_23, %c17_24, %c0_25, %c0_26] : memref<2x18x18x4xf32, #tpu.memory_space<vmem>>, vector<2x1x18x4xf32>
    tpu.vector_store %arg9[%c0_23, %c17_24, %c0_25, %c0_26], %10 {strides = array<i32>} : memref<2x18x18x4xf32, #tpu.memory_space<vmem>>, vector<2x1x18x4xf32>,
    %cst_27 = arith.constant 0.000000e+00 : f32
    %12 = vector.broadcast %cst_27 : f32 to vector<2x18x1x4xf32>
    %c0_28 = arith.constant 0 : index
    %c0_29 = arith.constant 0 : index
    %c0_30 = arith.constant 0 : index
    %c0_31 = arith.constant 0 : index
    %13 = vector.load %arg9[%c0_28, %c0_29, %c0_30, %c0_31] : memref<2x18x18x4xf32, #tpu.memory_space<vmem>>, vector<2x18x1x4xf32>
    tpu.vector_store %arg9[%c0_28, %c0_29, %c0_30, %c0_31], %12 {strides = array<i32>} : memref<2x18x18x4xf32, #tpu.memory_space<vmem>>, vector<2x18x1x4xf32>,
    %cst_32 = arith.constant 0.000000e+00 : f32
    %14 = vector.broadcast %cst_32 : f32 to vector<2x18x1x4xf32>
    %c0_33 = arith.constant 0 : index
    %c0_34 = arith.constant 0 : index
    %c17_35 = arith.constant 17 : index
    %c0_36 = arith.constant 0 : index
    %15 = vector.load %arg9[%c0_33, %c0_34, %c17_35, %c0_36] : memref<2x18x18x4xf32, #tpu.memory_space<vmem>>, vector<2x18x1x4xf32>
    tpu.vector_store %arg9[%c0_33, %c0_34, %c17_35, %c0_36], %14 {strides = array<i32>} : memref<2x18x18x4xf32, #tpu.memory_space<vmem>>, vector<2x18x1x4xf32>,
    %c0_37 = arith.constant 0 : index
    %c0_38 = arith.constant 0 : index
    %c0_39 = arith.constant 0 : index
    %c0_40 = arith.constant 0 : index
    %16 = vector.load %arg0[%c0_37, %c0_38, %c0_39, %c0_40] : memref<2x16x16x4xbf16, #tpu.memory_space<vmem>>, vector<2x16x16x4xbf16>
    %17 = arith.extf %16 : vector<2x16x16x4xbf16> to vector<2x16x16x4xf32>
    %c0_41 = arith.constant 0 : index
    %c1 = arith.constant 1 : index
    %c1_42 = arith.constant 1 : index
    %c0_43 = arith.constant 0 : index
    %18 = vector.load %arg8[%c0_41, %c1, %c1_42, %c0_43] : memref<2x18x18x4xf32, #tpu.memory_space<vmem>>, vector<2x16x16x4xf32>
    tpu.vector_store %arg8[%c0_41, %c1, %c1_42, %c0_43], %17 {strides = array<i32>} : memref<2x18x18x4xf32, #tpu.memory_space<vmem>>, vector<2x16x16x4xf32>,
    %c0_44 = arith.constant 0 : index
    %c0_45 = arith.constant 0 : index
    %c0_46 = arith.constant 0 : index
    %c0_47 = arith.constant 0 : index
    %19 = vector.load %arg8[%c0_44, %c0_45, %c0_46, %c0_47] : memref<2x18x18x4xf32, #tpu.memory_space<vmem>>, vector<2x16x16x4xf32>
    %20 = vector.shape_cast %19 : vector<2x16x16x4xf32> to vector<512x4xf32>
    %21 = arith.truncf %20 : vector<512x4xf32> to vector<512x4xbf16>
    %c0_48 = arith.constant 0 : index
    %c0_49 = arith.constant 0 : index
    %22 = vector.load %arg10[%c0_48, %c0_49] : memref<512x36xbf16, #tpu.memory_space<vmem>>, vector<512x4xbf16>
    tpu.vector_store %arg10[%c0_48, %c0_49], %21 {strides = array<i32>} : memref<512x36xbf16, #tpu.memory_space<vmem>>, vector<512x4xbf16>,
    %c0_50 = arith.constant 0 : index
    %c0_51 = arith.constant 0 : index
    %c1_52 = arith.constant 1 : index
    %c0_53 = arith.constant 0 : index
    %23 = vector.load %arg8[%c0_50, %c0_51, %c1_52, %c0_53] : memref<2x18x18x4xf32, #tpu.memory_space<vmem>>, vector<2x16x16x4xf32>
    %24 = vector.shape_cast %23 : vector<2x16x16x4xf32> to vector<512x4xf32>
    %25 = arith.truncf %24 : vector<512x4xf32> to vector<512x4xbf16>
    %c0_54 = arith.constant 0 : index
    %c4 = arith.constant 4 : index
    %26 = vector.load %arg10[%c0_54, %c4] : memref<512x36xbf16, #tpu.memory_space<vmem>>, vector<512x4xbf16>
    tpu.vector_store %arg10[%c0_54, %c4], %25 {strides = array<i32>} : memref<512x36xbf16, #tpu.memory_space<vmem>>, vector<512x4xbf16>,
    %c0_55 = arith.constant 0 : index
    %c0_56 = arith.constant 0 : index
    %c2 = arith.constant 2 : index
    %c0_57 = arith.constant 0 : index
    %27 = vector.load %arg8[%c0_55, %c0_56, %c2, %c0_57] : memref<2x18x18x4xf32, #tpu.memory_space<vmem>>, vector<2x16x16x4xf32>
    %28 = vector.shape_cast %27 : vector<2x16x16x4xf32> to vector<512x4xf32>
    %29 = arith.truncf %28 : vector<512x4xf32> to vector<512x4xbf16>
    %c0_58 = arith.constant 0 : index
    %c8 = arith.constant 8 : index
    %30 = vector.load %arg10[%c0_58, %c8] : memref<512x36xbf16, #tpu.memory_space<vmem>>, vector<512x4xbf16>
    tpu.vector_store %arg10[%c0_58, %c8], %29 {strides = array<i32>} : memref<512x36xbf16, #tpu.memory_space<vmem>>, vector<512x4xbf16>,
    %c0_59 = arith.constant 0 : index
    %c1_60 = arith.constant 1 : index
    %c0_61 = arith.constant 0 : index
    %c0_62 = arith.constant 0 : index
    %31 = vector.load %arg8[%c0_59, %c1_60, %c0_61, %c0_62] : memref<2x18x18x4xf32, #tpu.memory_space<vmem>>, vector<2x16x16x4xf32>
    %32 = vector.shape_cast %31 : vector<2x16x16x4xf32> to vector<512x4xf32>
    %33 = arith.truncf %32 : vector<512x4xf32> to vector<512x4xbf16>
    %c0_63 = arith.constant 0 : index
    %c12 = arith.constant 12 : index
    %34 = vector.load %arg10[%c0_63, %c12] : memref<512x36xbf16, #tpu.memory_space<vmem>>, vector<512x4xbf16>
    tpu.vector_store %arg10[%c0_63, %c12], %33 {strides = array<i32>} : memref<512x36xbf16, #tpu.memory_space<vmem>>, vector<512x4xbf16>,
    %c0_64 = arith.constant 0 : index
    %c1_65 = arith.constant 1 : index
    %c1_66 = arith.constant 1 : index
    %c0_67 = arith.constant 0 : index
    %35 = vector.load %arg8[%c0_64, %c1_65, %c1_66, %c0_67] : memref<2x18x18x4xf32, #tpu.memory_space<vmem>>, vector<2x16x16x4xf32>
    %36 = vector.shape_cast %35 : vector<2x16x16x4xf32> to vector<512x4xf32>
    %37 = arith.truncf %36 : vector<512x4xf32> to vector<512x4xbf16>
    %c0_68 = arith.constant 0 : index
    %c16 = arith.constant 16 : index
    %38 = vector.load %arg10[%c0_68, %c16] : memref<512x36xbf16, #tpu.memory_space<vmem>>, vector<512x4xbf16>
    tpu.vector_store %arg10[%c0_68, %c16], %37 {strides = array<i32>} : memref<512x36xbf16, #tpu.memory_space<vmem>>, vector<512x4xbf16>,
    %c0_69 = arith.constant 0 : index
    %c1_70 = arith.constant 1 : index
    %c2_71 = arith.constant 2 : index
    %c0_72 = arith.constant 0 : index
    %39 = vector.load %arg8[%c0_69, %c1_70, %c2_71, %c0_72] : memref<2x18x18x4xf32, #tpu.memory_space<vmem>>, vector<2x16x16x4xf32>
    %40 = vector.shape_cast %39 : vector<2x16x16x4xf32> to vector<512x4xf32>
    %41 = arith.truncf %40 : vector<512x4xf32> to vector<512x4xbf16>
    %c0_73 = arith.constant 0 : index
    %c20 = arith.constant 20 : index
    %42 = vector.load %arg10[%c0_73, %c20] : memref<512x36xbf16, #tpu.memory_space<vmem>>, vector<512x4xbf16>
    tpu.vector_store %arg10[%c0_73, %c20], %41 {strides = array<i32>} : memref<512x36xbf16, #tpu.memory_space<vmem>>, vector<512x4xbf16>,
    %c0_74 = arith.constant 0 : index
    %c2_75 = arith.constant 2 : index
    %c0_76 = arith.constant 0 : index
    %c0_77 = arith.constant 0 : index
    %43 = vector.load %arg8[%c0_74, %c2_75, %c0_76, %c0_77] : memref<2x18x18x4xf32, #tpu.memory_space<vmem>>, vector<2x16x16x4xf32>
    %44 = vector.shape_cast %43 : vector<2x16x16x4xf32> to vector<512x4xf32>
    %45 = arith.truncf %44 : vector<512x4xf32> to vector<512x4xbf16>
    %c0_78 = arith.constant 0 : index
    %c24 = arith.constant 24 : index
    %46 = vector.load %arg10[%c0_78, %c24] : memref<512x36xbf16, #tpu.memory_space<vmem>>, vector<512x4xbf16>
    tpu.vector_store %arg10[%c0_78, %c24], %45 {strides = array<i32>} : memref<512x36xbf16, #tpu.memory_space<vmem>>, vector<512x4xbf16>,
    %c0_79 = arith.constant 0 : index
    %c2_80 = arith.constant 2 : index
    %c1_81 = arith.constant 1 : index
    %c0_82 = arith.constant 0 : index
    %47 = vector.load %arg8[%c0_79, %c2_80, %c1_81, %c0_82] : memref<2x18x18x4xf32, #tpu.memory_space<vmem>>, vector<2x16x16x4xf32>
    %48 = vector.shape_cast %47 : vector<2x16x16x4xf32> to vector<512x4xf32>
    %49 = arith.truncf %48 : vector<512x4xf32> to vector<512x4xbf16>
    %c0_83 = arith.constant 0 : index
    %c28 = arith.constant 28 : index
    %50 = vector.load %arg10[%c0_83, %c28] : memref<512x36xbf16, #tpu.memory_space<vmem>>, vector<512x4xbf16>
    tpu.vector_store %arg10[%c0_83, %c28], %49 {strides = array<i32>} : memref<512x36xbf16, #tpu.memory_space<vmem>>, vector<512x4xbf16>,
    %c0_84 = arith.constant 0 : index
    %c2_85 = arith.constant 2 : index
    %c2_86 = arith.constant 2 : index
    %c0_87 = arith.constant 0 : index
    %51 = vector.load %arg8[%c0_84, %c2_85, %c2_86, %c0_87] : memref<2x18x18x4xf32, #tpu.memory_space<vmem>>, vector<2x16x16x4xf32>
    %52 = vector.shape_cast %51 : vector<2x16x16x4xf32> to vector<512x4xf32>
    %53 = arith.truncf %52 : vector<512x4xf32> to vector<512x4xbf16>
    %c0_88 = arith.constant 0 : index
    %c32 = arith.constant 32 : index
    %54 = vector.load %arg10[%c0_88, %c32] : memref<512x36xbf16, #tpu.memory_space<vmem>>, vector<512x4xbf16>
    tpu.vector_store %arg10[%c0_88, %c32], %53 {strides = array<i32>} : memref<512x36xbf16, #tpu.memory_space<vmem>>, vector<512x4xbf16>,
    %c0_89 = arith.constant 0 : index
    %c0_90 = arith.constant 0 : index
    %55 = vector.load %arg10[%c0_89, %c0_90] : memref<512x36xbf16, #tpu.memory_space<vmem>>, vector<512x36xbf16>
    %c0_91 = arith.constant 0 : index
    %c0_92 = arith.constant 0 : index
    %56 = vector.load %arg1[%c0_91, %c0_92] : memref<36x4xbf16, #tpu.memory_space<vmem>>, vector<36x4xbf16>
    %cst_93 = arith.constant dense<0.000000e+00> : vector<512x4xf32>
    %57 = tpu.matmul %55, %56, %cst_93 {dimension_numbers = #tpu.dot_dimension_numbers<[1], [0], [0], [1], [0, 0, 1, 1], [], []>} : vector<512x36xbf16>, vector<36x4xbf16>, vector<512x4xf32> -> vector<512x4xf32>
    %c0_94 = arith.constant 0 : index
    %c0_95 = arith.constant 0 : index
    %58 = vector.load %arg2[%c0_94, %c0_95] : memref<1x4xf32, #tpu.memory_space<vmem>>, vector<1x4xf32>
    %c0_96 = arith.constant 0 : index
    %c0_97 = arith.constant 0 : index
    %59 = vector.load %arg3[%c0_96, %c0_97] : memref<1x4xf32, #tpu.memory_space<vmem>>, vector<1x4xf32>
    %cst_98 = arith.constant dense<0.000000e+00> : vector<4xf32>
    %60 = vector.multi_reduction <add>, %57, %cst_98 [0] : vector<512x4xf32> to vector<4xf32>
    %61 = vector.shape_cast %60 : vector<4xf32> to vector<1x4xf32>
    %cst_99 = arith.constant 0.001953125 : f32
    %62 = vector.broadcast %cst_99 : f32 to vector<1x4xf32>
    %63 = arith.mulf %61, %62 : vector<1x4xf32>
    %64 = arith.mulf %57, %57 : vector<512x4xf32>
    %cst_100 = arith.constant dense<0.000000e+00> : vector<4xf32>
    %65 = vector.multi_reduction <add>, %64, %cst_100 [0] : vector<512x4xf32> to vector<4xf32>
    %66 = vector.shape_cast %65 : vector<4xf32> to vector<1x4xf32>
    %cst_101 = arith.constant 0.001953125 : f32
    %67 = vector.broadcast %cst_101 : f32 to vector<1x4xf32>
    %68 = arith.mulf %66, %67 : vector<1x4xf32>
    %69 = arith.mulf %63, %63 : vector<1x4xf32>
    %70 = arith.subf %68, %69 : vector<1x4xf32>
    %cst_102 = arith.constant 0.000000e+00 : f32
    %71 = vector.broadcast %cst_102 : f32 to vector<1x4xf32>
    %72 = arith.maximumf %70, %71 : vector<1x4xf32>
    %73 = vector.broadcast %63 : vector<1x4xf32> to vector<512x4xf32>
    %74 = arith.subf %57, %73 : vector<512x4xf32>
    %cst_103 = arith.constant 9.99999974E-6 : f32
    %75 = vector.broadcast %cst_103 : f32 to vector<1x4xf32>
    %76 = arith.addf %72, %75 : vector<1x4xf32>
    %77 = math.rsqrt %76 : vector<1x4xf32>
    %78 = arith.mulf %77, %58 : vector<1x4xf32>
    %79 = vector.broadcast %78 : vector<1x4xf32> to vector<512x4xf32>
    %80 = arith.mulf %74, %79 : vector<512x4xf32>
    %81 = vector.broadcast %59 : vector<1x4xf32> to vector<512x4xf32>
    %82 = arith.addf %80, %81 : vector<512x4xf32>
    %cst_104 = arith.constant 0.000000e+00 : f32
    %83 = vector.broadcast %cst_104 : f32 to vector<512x4xf32>
    %84 = arith.maximumf %82, %83 : vector<512x4xf32>
    %85 = vector.shape_cast %84 : vector<512x4xf32> to vector<2x16x16x4xf32>
    %c0_105 = arith.constant 0 : index
    %c1_106 = arith.constant 1 : index
    %c1_107 = arith.constant 1 : index
    %c0_108 = arith.constant 0 : index
    %86 = vector.load %arg9[%c0_105, %c1_106, %c1_107, %c0_108] : memref<2x18x18x4xf32, #tpu.memory_space<vmem>>, vector<2x16x16x4xf32>
    tpu.vector_store %arg9[%c0_105, %c1_106, %c1_107, %c0_108], %85 {strides = array<i32>} : memref<2x18x18x4xf32, #tpu.memory_space<vmem>>, vector<2x16x16x4xf32>,
    %c0_109 = arith.constant 0 : index
    %c0_110 = arith.constant 0 : index
    %c0_111 = arith.constant 0 : index
    %c0_112 = arith.constant 0 : index
    %87 = vector.load %arg9[%c0_109, %c0_110, %c0_111, %c0_112] : memref<2x18x18x4xf32, #tpu.memory_space<vmem>>, vector<2x16x16x4xf32>
    %88 = vector.shape_cast %87 : vector<2x16x16x4xf32> to vector<512x4xf32>
    %89 = arith.truncf %88 : vector<512x4xf32> to vector<512x4xbf16>
    %c0_113 = arith.constant 0 : index
    %c0_114 = arith.constant 0 : index
    %90 = vector.load %arg11[%c0_113, %c0_114] : memref<512x36xbf16, #tpu.memory_space<vmem>>, vector<512x4xbf16>
    tpu.vector_store %arg11[%c0_113, %c0_114], %89 {strides = array<i32>} : memref<512x36xbf16, #tpu.memory_space<vmem>>, vector<512x4xbf16>,
    %c0_115 = arith.constant 0 : index
    %c0_116 = arith.constant 0 : index
    %c1_117 = arith.constant 1 : index
    %c0_118 = arith.constant 0 : index
    %91 = vector.load %arg9[%c0_115, %c0_116, %c1_117, %c0_118] : memref<2x18x18x4xf32, #tpu.memory_space<vmem>>, vector<2x16x16x4xf32>
    %92 = vector.shape_cast %91 : vector<2x16x16x4xf32> to vector<512x4xf32>
    %93 = arith.truncf %92 : vector<512x4xf32> to vector<512x4xbf16>
    %c0_119 = arith.constant 0 : index
    %c4_120 = arith.constant 4 : index
    %94 = vector.load %arg11[%c0_119, %c4_120] : memref<512x36xbf16, #tpu.memory_space<vmem>>, vector<512x4xbf16>
    tpu.vector_store %arg11[%c0_119, %c4_120], %93 {strides = array<i32>} : memref<512x36xbf16, #tpu.memory_space<vmem>>, vector<512x4xbf16>,
    %c0_121 = arith.constant 0 : index
    %c0_122 = arith.constant 0 : index
    %c2_123 = arith.constant 2 : index
    %c0_124 = arith.constant 0 : index
    %95 = vector.load %arg9[%c0_121, %c0_122, %c2_123, %c0_124] : memref<2x18x18x4xf32, #tpu.memory_space<vmem>>, vector<2x16x16x4xf32>
    %96 = vector.shape_cast %95 : vector<2x16x16x4xf32> to vector<512x4xf32>
    %97 = arith.truncf %96 : vector<512x4xf32> to vector<512x4xbf16>
    %c0_125 = arith.constant 0 : index
    %c8_126 = arith.constant 8 : index
    %98 = vector.load %arg11[%c0_125, %c8_126] : memref<512x36xbf16, #tpu.memory_space<vmem>>, vector<512x4xbf16>
    tpu.vector_store %arg11[%c0_125, %c8_126], %97 {strides = array<i32>} : memref<512x36xbf16, #tpu.memory_space<vmem>>, vector<512x4xbf16>,
    %c0_127 = arith.constant 0 : index
    %c1_128 = arith.constant 1 : index
    %c0_129 = arith.constant 0 : index
    %c0_130 = arith.constant 0 : index
    %99 = vector.load %arg9[%c0_127, %c1_128, %c0_129, %c0_130] : memref<2x18x18x4xf32, #tpu.memory_space<vmem>>, vector<2x16x16x4xf32>
    %100 = vector.shape_cast %99 : vector<2x16x16x4xf32> to vector<512x4xf32>
    %101 = arith.truncf %100 : vector<512x4xf32> to vector<512x4xbf16>
    %c0_131 = arith.constant 0 : index
    %c12_132 = arith.constant 12 : index
    %102 = vector.load %arg11[%c0_131, %c12_132] : memref<512x36xbf16, #tpu.memory_space<vmem>>, vector<512x4xbf16>
    tpu.vector_store %arg11[%c0_131, %c12_132], %101 {strides = array<i32>} : memref<512x36xbf16, #tpu.memory_space<vmem>>, vector<512x4xbf16>,
    %c0_133 = arith.constant 0 : index
    %c1_134 = arith.constant 1 : index
    %c1_135 = arith.constant 1 : index
    %c0_136 = arith.constant 0 : index
    %103 = vector.load %arg9[%c0_133, %c1_134, %c1_135, %c0_136] : memref<2x18x18x4xf32, #tpu.memory_space<vmem>>, vector<2x16x16x4xf32>
    %104 = vector.shape_cast %103 : vector<2x16x16x4xf32> to vector<512x4xf32>
    %105 = arith.truncf %104 : vector<512x4xf32> to vector<512x4xbf16>
    %c0_137 = arith.constant 0 : index
    %c16_138 = arith.constant 16 : index
    %106 = vector.load %arg11[%c0_137, %c16_138] : memref<512x36xbf16, #tpu.memory_space<vmem>>, vector<512x4xbf16>
    tpu.vector_store %arg11[%c0_137, %c16_138], %105 {strides = array<i32>} : memref<512x36xbf16, #tpu.memory_space<vmem>>, vector<512x4xbf16>,
    %c0_139 = arith.constant 0 : index
    %c1_140 = arith.constant 1 : index
    %c2_141 = arith.constant 2 : index
    %c0_142 = arith.constant 0 : index
    %107 = vector.load %arg9[%c0_139, %c1_140, %c2_141, %c0_142] : memref<2x18x18x4xf32, #tpu.memory_space<vmem>>, vector<2x16x16x4xf32>
    %108 = vector.shape_cast %107 : vector<2x16x16x4xf32> to vector<512x4xf32>
    %109 = arith.truncf %108 : vector<512x4xf32> to vector<512x4xbf16>
    %c0_143 = arith.constant 0 : index
    %c20_144 = arith.constant 20 : index
    %110 = vector.load %arg11[%c0_143, %c20_144] : memref<512x36xbf16, #tpu.memory_space<vmem>>, vector<512x4xbf16>
    tpu.vector_store %arg11[%c0_143, %c20_144], %109 {strides = array<i32>} : memref<512x36xbf16, #tpu.memory_space<vmem>>, vector<512x4xbf16>,
    %c0_145 = arith.constant 0 : index
    %c2_146 = arith.constant 2 : index
    %c0_147 = arith.constant 0 : index
    %c0_148 = arith.constant 0 : index
    %111 = vector.load %arg9[%c0_145, %c2_146, %c0_147, %c0_148] : memref<2x18x18x4xf32, #tpu.memory_space<vmem>>, vector<2x16x16x4xf32>
    %112 = vector.shape_cast %111 : vector<2x16x16x4xf32> to vector<512x4xf32>
    %113 = arith.truncf %112 : vector<512x4xf32> to vector<512x4xbf16>
    %c0_149 = arith.constant 0 : index
    %c24_150 = arith.constant 24 : index
    %114 = vector.load %arg11[%c0_149, %c24_150] : memref<512x36xbf16, #tpu.memory_space<vmem>>, vector<512x4xbf16>
    tpu.vector_store %arg11[%c0_149, %c24_150], %113 {strides = array<i32>} : memref<512x36xbf16, #tpu.memory_space<vmem>>, vector<512x4xbf16>,
    %c0_151 = arith.constant 0 : index
    %c2_152 = arith.constant 2 : index
    %c1_153 = arith.constant 1 : index
    %c0_154 = arith.constant 0 : index
    %115 = vector.load %arg9[%c0_151, %c2_152, %c1_153, %c0_154] : memref<2x18x18x4xf32, #tpu.memory_space<vmem>>, vector<2x16x16x4xf32>
    %116 = vector.shape_cast %115 : vector<2x16x16x4xf32> to vector<512x4xf32>
    %117 = arith.truncf %116 : vector<512x4xf32> to vector<512x4xbf16>
    %c0_155 = arith.constant 0 : index
    %c28_156 = arith.constant 28 : index
    %118 = vector.load %arg11[%c0_155, %c28_156] : memref<512x36xbf16, #tpu.memory_space<vmem>>, vector<512x4xbf16>
    tpu.vector_store %arg11[%c0_155, %c28_156], %117 {strides = array<i32>} : memref<512x36xbf16, #tpu.memory_space<vmem>>, vector<512x4xbf16>,
    %c0_157 = arith.constant 0 : index
    %c2_158 = arith.constant 2 : index
    %c2_159 = arith.constant 2 : index
    %c0_160 = arith.constant 0 : index
    %119 = vector.load %arg9[%c0_157, %c2_158, %c2_159, %c0_160] : memref<2x18x18x4xf32, #tpu.memory_space<vmem>>, vector<2x16x16x4xf32>
    %120 = vector.shape_cast %119 : vector<2x16x16x4xf32> to vector<512x4xf32>
    %121 = arith.truncf %120 : vector<512x4xf32> to vector<512x4xbf16>
    %c0_161 = arith.constant 0 : index
    %c32_162 = arith.constant 32 : index
    %122 = vector.load %arg11[%c0_161, %c32_162] : memref<512x36xbf16, #tpu.memory_space<vmem>>, vector<512x4xbf16>
    tpu.vector_store %arg11[%c0_161, %c32_162], %121 {strides = array<i32>} : memref<512x36xbf16, #tpu.memory_space<vmem>>, vector<512x4xbf16>,
    %c0_163 = arith.constant 0 : index
    %c0_164 = arith.constant 0 : index
    %123 = vector.load %arg11[%c0_163, %c0_164] : memref<512x36xbf16, #tpu.memory_space<vmem>>, vector<512x36xbf16>
    %c0_165 = arith.constant 0 : index
    %c0_166 = arith.constant 0 : index
    %124 = vector.load %arg4[%c0_165, %c0_166] : memref<36x4xbf16, #tpu.memory_space<vmem>>, vector<36x4xbf16>
    %cst_167 = arith.constant dense<0.000000e+00> : vector<512x4xf32>
    %125 = tpu.matmul %123, %124, %cst_167 {dimension_numbers = #tpu.dot_dimension_numbers<[1], [0], [0], [1], [0, 0, 1, 1], [], []>} : vector<512x36xbf16>, vector<36x4xbf16>, vector<512x4xf32> -> vector<512x4xf32>
    %c0_168 = arith.constant 0 : index
    %c0_169 = arith.constant 0 : index
    %126 = vector.load %arg5[%c0_168, %c0_169] : memref<1x4xf32, #tpu.memory_space<vmem>>, vector<1x4xf32>
    %c0_170 = arith.constant 0 : index
    %c0_171 = arith.constant 0 : index
    %127 = vector.load %arg6[%c0_170, %c0_171] : memref<1x4xf32, #tpu.memory_space<vmem>>, vector<1x4xf32>
    %cst_172 = arith.constant dense<0.000000e+00> : vector<4xf32>
    %128 = vector.multi_reduction <add>, %125, %cst_172 [0] : vector<512x4xf32> to vector<4xf32>
    %129 = vector.shape_cast %128 : vector<4xf32> to vector<1x4xf32>
    %cst_173 = arith.constant 0.001953125 : f32
    %130 = vector.broadcast %cst_173 : f32 to vector<1x4xf32>
    %131 = arith.mulf %129, %130 : vector<1x4xf32>
    %132 = arith.mulf %125, %125 : vector<512x4xf32>
    %cst_174 = arith.constant dense<0.000000e+00> : vector<4xf32>
    %133 = vector.multi_reduction <add>, %132, %cst_174 [0] : vector<512x4xf32> to vector<4xf32>
    %134 = vector.shape_cast %133 : vector<4xf32> to vector<1x4xf32>
    %cst_175 = arith.constant 0.001953125 : f32
    %135 = vector.broadcast %cst_175 : f32 to vector<1x4xf32>
    %136 = arith.mulf %134, %135 : vector<1x4xf32>
    %137 = arith.mulf %131, %131 : vector<1x4xf32>
    %138 = arith.subf %136, %137 : vector<1x4xf32>
    %cst_176 = arith.constant 0.000000e+00 : f32
    %139 = vector.broadcast %cst_176 : f32 to vector<1x4xf32>
    %140 = arith.maximumf %138, %139 : vector<1x4xf32>
    %141 = vector.broadcast %131 : vector<1x4xf32> to vector<512x4xf32>
    %142 = arith.subf %125, %141 : vector<512x4xf32>
    %cst_177 = arith.constant 9.99999974E-6 : f32
    %143 = vector.broadcast %cst_177 : f32 to vector<1x4xf32>
    %144 = arith.addf %140, %143 : vector<1x4xf32>
    %145 = math.rsqrt %144 : vector<1x4xf32>
    %146 = arith.mulf %145, %126 : vector<1x4xf32>
    %147 = vector.broadcast %146 : vector<1x4xf32> to vector<512x4xf32>
    %148 = arith.mulf %142, %147 : vector<512x4xf32>
    %149 = vector.broadcast %127 : vector<1x4xf32> to vector<512x4xf32>
    %150 = arith.addf %148, %149 : vector<512x4xf32>
    %c0_178 = arith.constant 0 : index
    %c0_179 = arith.constant 0 : index
    %c0_180 = arith.constant 0 : index
    %c0_181 = arith.constant 0 : index
    %151 = vector.load %arg0[%c0_178, %c0_179, %c0_180, %c0_181] : memref<2x16x16x4xbf16, #tpu.memory_space<vmem>>, vector<2x16x16x4xbf16>
    %152 = vector.shape_cast %151 : vector<2x16x16x4xbf16> to vector<512x4xbf16>
    %153 = arith.extf %152 : vector<512x4xbf16> to vector<512x4xf32>
    %154 = arith.addf %150, %153 : vector<512x4xf32>
    %cst_182 = arith.constant 0.000000e+00 : f32
    %155 = vector.broadcast %cst_182 : f32 to vector<512x4xf32>
    %156 = arith.maximumf %154, %155 : vector<512x4xf32>
    %c0_183 = arith.constant 0 : index
    %c0_184 = arith.constant 0 : index
    %157 = vector.load %arg7[%c0_183, %c0_184] : memref<512x4xf32, #tpu.memory_space<vmem>>, vector<512x4xf32>
    tpu.vector_store %arg7[%c0_183, %c0_184], %156 {strides = array<i32>} : memref<512x4xf32, #tpu.memory_space<vmem>>, vector<512x4xf32>,
    return
  }
}

</mosaic_0001>

<llo_original>
// kernel: tpu_custom_call.1
$region0: #{tpu_custom_call.1}
  #allocation0 [shape = 'u32[]', space=smem, size = 0x4, offset = 0x4, fixed_abs, tag = 'smem constant byte address 0x4 - core index']
  #allocation1 [shape = 'u32[144,128]{1,0:T(1,128)}', space=vmem, size = 0x12000, scoped, tag = 'internal scratch']
  #allocation2 [shape = 'f32[2,18,18,4]{3,2,1,0:T(8,128)}', space=vmem, size = 0x6c000, scoped, tag = 'scratch operand']
  #allocation3 [shape = 'f32[2,18,18,4]{3,2,1,0:T(8,128)}', space=vmem, size = 0x6c000, scoped, tag = 'scratch operand']
  #allocation4 [shape = 'bf16[512,36]{1,0:T(8,128)(2,1)}', space=vmem, size = 0x20000, scoped, tag = 'scratch operand']
  #allocation5 [shape = 'bf16[512,36]{1,0:T(8,128)(2,1)}', space=vmem, size = 0x20000, scoped, tag = 'scratch operand']
  %s0 = inlined_call_operand.vmem [shape: bf16[2,16,16,4], index: 0, kind: input, shape index: {}]
  %s1 = inlined_call_operand.vmem [shape: bf16[36,4], index: 1, kind: input, shape index: {}]
  %s2 = inlined_call_operand.vmem [shape: f32[1,4], index: 2, kind: input, shape index: {}]
  %s3 = inlined_call_operand.vmem [shape: f32[1,4], index: 3, kind: input, shape index: {}]
  %s4 = inlined_call_operand.vmem [shape: bf16[36,4], index: 4, kind: input, shape index: {}]
  %s5 = inlined_call_operand.vmem [shape: f32[1,4], index: 5, kind: input, shape index: {}]
  %s6 = inlined_call_operand.vmem [shape: f32[1,4], index: 6, kind: input, shape index: {}]
  %s7 = inlined_call_operand.vmem [shape: f32[512,4], index: 7, kind: output, shape index: {}]
  %s8 = sld [smem:[#allocation0]]
  $region38: #{tpu_custom_call.1} parent=0
    _
  %s10 = ssub.s32 1, %s8
  %s11 = scalar_select 0, %s10, %s8
  // Predicated region
  $region2: #{tpu_custom_call.1} parent=0 // pred_check
    _
  $region3: #{tpu_custom_call.1} parent=0 // pred_check_branch
    %13 = sbr.rel (0) target = $region5
  $region4: #{tpu_custom_call.1} parent=0 // pred_region
    _
  $region5: #{tpu_custom_call.1} parent=0 // pred_fallthru
    _
  // Predicated region
  $region6: #{tpu_custom_call.1} parent=0 // pred_check
    _
  $region7: #{tpu_custom_call.1} parent=0 // pred_check_branch
    %15 = sbr.rel (0) target = $region9
  $region8: #{tpu_custom_call.1} parent=0 // pred_region
    _
  $region9: #{tpu_custom_call.1} parent=0 // pred_fallthru
    _
  // Predicated region
  $region10: #{tpu_custom_call.1} parent=0 // pred_check
    _
  $region11: #{tpu_custom_call.1} parent=0 // pred_check_branch
    %17 = sbr.rel (0) target = $region13
  $region12: #{tpu_custom_call.1} parent=0 // pred_region
    _
  $region13: #{tpu_custom_call.1} parent=0 // pred_fallthru
    _
  // Predicated region
  $region14: #{tpu_custom_call.1} parent=0 // pred_check
    _
  $region15: #{tpu_custom_call.1} parent=0 // pred_check_branch
    %19 = sbr.rel (0) target = $region17
  $region16: #{tpu_custom_call.1} parent=0 // pred_region
    _
  $region17: #{tpu_custom_call.1} parent=0 // pred_fallthru
    _
  // Predicated region
  $region18: #{tpu_custom_call.1} parent=0 // pred_check
    _
  $region19: #{tpu_custom_call.1} parent=0 // pred_check_branch
    %21 = sbr.rel (0) target = $region21
  $region20: #{tpu_custom_call.1} parent=0 // pred_region
    _
  $region21: #{tpu_custom_call.1} parent=0 // pred_fallthru
    _
  // Predicated region
  $region22: #{tpu_custom_call.1} parent=0 // pred_check
    _
  $region23: #{tpu_custom_call.1} parent=0 // pred_check_branch
    %23 = sbr.rel (0) target = $region25
  $region24: #{tpu_custom_call.1} parent=0 // pred_region
    _
  $region25: #{tpu_custom_call.1} parent=0 // pred_fallthru
    _
  // Predicated region
  $region26: #{tpu_custom_call.1} parent=0 // pred_check
    _
  $region27: #{tpu_custom_call.1} parent=0 // pred_check_branch
    %25 = sbr.rel (0) target = $region29
  $region28: #{tpu_custom_call.1} parent=0 // pred_region
    _
  $region29: #{tpu_custom_call.1} parent=0 // pred_fallthru
    _
  %vm27 = vcmask 31744
  %28 = vst.msk [vmem:[#allocation2] sm:$0xff] %vm27, 0.0
  %29 = vst.msk [vmem:[#allocation2 + $0x8] sm:$0xff] %vm27, 0.0
  %vm30 = vcmask 25600
  %31 = vst.msk [vmem:[#allocation2 + $0x10] sm:$0x3] %vm30, 0.0
  %32 = vst.msk [vmem:[#allocation2 + $0x1b0] sm:$0xff] %vm27, 0.0
  %33 = vst.msk [vmem:[#allocation2 + $0x1b8] sm:$0xff] %vm27, 0.0
  %34 = vst.msk [vmem:[#allocation2 + $0x1c0] sm:$0x3] %vm30, 0.0
  %s35 = scalar_lea.vmem [#allocation2], 408
  %36 = vst.msk [vmem:[%s35] sm:$0xff] %vm27, 0.0
  %37 = vst.msk [vmem:[%s35 + $0x8] sm:$0xff] %vm27, 0.0
  %38 = vst.msk [vmem:[%s35 + $0x10] sm:$0x3] %vm30, 0.0
  %39 = vst.msk [vmem:[%s35 + $0x1b0] sm:$0xff] %vm27, 0.0
  %40 = vst.msk [vmem:[%s35 + $0x1b8] sm:$0xff] %vm27, 0.0
  %41 = vst.msk [vmem:[%s35 + $0x1c0] sm:$0x3] %vm30, 0.0
  %vm42 = vcmask 24576
  %43 = vst.msk [vmem:[#allocation2] sm:$0x1] %vm42, 0.0
  %44 = vst.msk [vmem:[#allocation2 + $0x18] sm:$0x1] %vm42, 0.0
  %45 = vst.msk [vmem:[#allocation2 + $0x30] sm:$0x1] %vm42, 0.0
  %46 = vst.msk [vmem:[#allocation2 + $0x48] sm:$0x1] %vm42, 0.0
  %47 = vst.msk [vmem:[#allocation2 + $0x60] sm:$0x1] %vm42, 0.0
  %48 = vst.msk [vmem:[#allocation2 + $0x78] sm:$0x1] %vm42, 0.0
  %49 = vst.msk [vmem:[#allocation2 + $0x90] sm:$0x1] %vm42, 0.0
  %50 = vst.msk [vmem:[#allocation2 + $0xa8] sm:$0x1] %vm42, 0.0
  %51 = vst.msk [vmem:[#allocation2 + $0xc0] sm:$0x1] %vm42, 0.0
  %52 = vst.msk [vmem:[#allocation2 + $0xd8] sm:$0x1] %vm42, 0.0
  %53 = vst.msk [vmem:[#allocation2 + $0xf0] sm:$0x1] %vm42, 0.0
  %54 = vst.msk [vmem:[#allocation2 + $0x108] sm:$0x1] %vm42, 0.0
  %55 = vst.msk [vmem:[#allocation2 + $0x120] sm:$0x1] %vm42, 0.0
  %56 = vst.msk [vmem:[#allocation2 + $0x138] sm:$0x1] %vm42, 0.0
  %57 = vst.msk [vmem:[#allocation2 + $0x150] sm:$0x1] %vm42, 0.0
  %58 = vst.msk [vmem:[#allocation2 + $0x168] sm:$0x1] %vm42, 0.0
  %59 = vst.msk [vmem:[#allocation2 + $0x180] sm:$0x1] %vm42, 0.0
  %60 = vst.msk [vmem:[#allocation2 + $0x198] sm:$0x1] %vm42, 0.0
  %61 = vst.msk [vmem:[#allocation2 + $0x1b0] sm:$0x1] %vm42, 0.0
  %62 = vst.msk [vmem:[#allocation2 + $0x1c8] sm:$0x1] %vm42, 0.0
  %63 = vst.msk [vmem:[#allocation2 + $0x1e0] sm:$0x1] %vm42, 0.0
  %64 = vst.msk [vmem:[#allocation2 + $0x1f8] sm:$0x1] %vm42, 0.0
  %65 = vst.msk [vmem:[#allocation2 + $0x210] sm:$0x1] %vm42, 0.0
  %66 = vst.msk [vmem:[#allocation2 + $0x228] sm:$0x1] %vm42, 0.0
  %67 = vst.msk [vmem:[#allocation2 + $0x240] sm:$0x1] %vm42, 0.0
  %68 = vst.msk [vmem:[#allocation2 + $0x258] sm:$0x1] %vm42, 0.0
  %69 = vst.msk [vmem:[#allocation2 + $0x270] sm:$0x1] %vm42, 0.0
  %70 = vst.msk [vmem:[#allocation2 + $0x288] sm:$0x1] %vm42, 0.0
  %71 = vst.msk [vmem:[#allocation2 + $0x2a0] sm:$0x1] %vm42, 0.0
  %72 = vst.msk [vmem:[#allocation2 + $0x2b8] sm:$0x1] %vm42, 0.0
  %73 = vst.msk [vmem:[#allocation2 + $0x2d0] sm:$0x1] %vm42, 0.0
  %74 = vst.msk [vmem:[#allocation2 + $0x2e8] sm:$0x1] %vm42, 0.0
  %75 = vst.msk [vmem:[#allocation2 + $0x300] sm:$0x1] %vm42, 0.0
  %76 = vst.msk [vmem:[#allocation2 + $0x318] sm:$0x1] %vm42, 0.0
  %77 = vst.msk [vmem:[#allocation2 + $0x330] sm:$0x1] %vm42, 0.0
  %78 = vst.msk [vmem:[#allocation2 + $0x348] sm:$0x1] %vm42, 0.0
  %79 = vst.msk [vmem:[#allocation2 + $0x11] sm:$0x1] %vm42, 0.0
  %80 = vst.msk [vmem:[#allocation2 + $0x29] sm:$0x1] %vm42, 0.0
  %81 = vst.msk [vmem:[#allocation2 + $0x41] sm:$0x1] %vm42, 0.0
  %82 = vst.msk [vmem:[#allocation2 + $0x59] sm:$0x1] %vm42, 0.0
  %83 = vst.msk [vmem:[#allocation2 + $0x71] sm:$0x1] %vm42, 0.0
  %84 = vst.msk [vmem:[#allocation2 + $0x89] sm:$0x1] %vm42, 0.0
  %85 = vst.msk [vmem:[#allocation2 + $0xa1] sm:$0x1] %vm42, 0.0
  %86 = vst.msk [vmem:[#allocation2 + $0xb9] sm:$0x1] %vm42, 0.0
  %87 = vst.msk [vmem:[#allocation2 + $0xd1] sm:$0x1] %vm42, 0.0
  %88 = vst.msk [vmem:[#allocation2 + $0xe9] sm:$0x1] %vm42, 0.0
  %89 = vst.msk [vmem:[#allocation2 + $0x101] sm:$0x1] %vm42, 0.0
  %90 = vst.msk [vmem:[#allocation2 + $0x119] sm:$0x1] %vm42, 0.0
  %91 = vst.msk [vmem:[#allocation2 + $0x131] sm:$0x1] %vm42, 0.0
  %92 = vst.msk [vmem:[#allocation2 + $0x149] sm:$0x1] %vm42, 0.0
  %93 = vst.msk [vmem:[#allocation2 + $0x161] sm:$0x1] %vm42, 0.0
  %94 = vst.msk [vmem:[#allocation2 + $0x179] sm:$0x1] %vm42, 0.0
  %95 = vst.msk [vmem:[#allocation2 + $0x191] sm:$0x1] %vm42, 0.0
  %96 = vst.msk [vmem:[#allocation2 + $0x1a9] sm:$0x1] %vm42, 0.0
  %97 = vst.msk [vmem:[#allocation2 + $0x1c1] sm:$0x1] %vm42, 0.0
  %98 = vst.msk [vmem:[#allocation2 + $0x1d9] sm:$0x1] %vm42, 0.0
  %99 = vst.msk [vmem:[#allocation2 + $0x1f1] sm:$0x1] %vm42, 0.0
  %100 = vst.msk [vmem:[#allocation2 + $0x209] sm:$0x1] %vm42, 0.0
  %101 = vst.msk [vmem:[#allocation2 + $0x221] sm:$0x1] %vm42, 0.0
  %102 = vst.msk [vmem:[#allocation2 + $0x239] sm:$0x1] %vm42, 0.0
  %103 = vst.msk [vmem:[#allocation2 + $0x251] sm:$0x1] %vm42, 0.0
  %104 = vst.msk [vmem:[#allocation2 + $0x269] sm:$0x1] %vm42, 0.0
  %105 = vst.msk [vmem:[#allocation2 + $0x281] sm:$0x1] %vm42, 0.0
  %106 = vst.msk [vmem:[#allocation2 + $0x299] sm:$0x1] %vm42, 0.0
  %107 = vst.msk [vmem:[#allocation2 + $0x2b1] sm:$0x1] %vm42, 0.0
  %108 = vst.msk [vmem:[#allocation2 + $0x2c9] sm:$0x1] %vm42, 0.0
  %109 = vst.msk [vmem:[#allocation2 + $0x2e1] sm:$0x1] %vm42, 0.0
  %110 = vst.msk [vmem:[#allocation2 + $0x2f9] sm:$0x1] %vm42, 0.0
  %111 = vst.msk [vmem:[#allocation2 + $0x311] sm:$0x1] %vm42, 0.0
  %112 = vst.msk [vmem:[#allocation2 + $0x329] sm:$0x1] %vm42, 0.0
  %113 = vst.msk [vmem:[#allocation2 + $0x341] sm:$0x1] %vm42, 0.0
  %114 = vst.msk [vmem:[#allocation2 + $0x359] sm:$0x1] %vm42, 0.0
  %115 = vst.msk [vmem:[#allocation3] sm:$0xff] %vm27, 0.0
  %116 = vst.msk [vmem:[#allocation3 + $0x8] sm:$0xff] %vm27, 0.0
  %117 = vst.msk [vmem:[#allocation3 + $0x10] sm:$0x3] %vm30, 0.0
  %118 = vst.msk [vmem:[#allocation3 + $0x1b0] sm:$0xff] %vm27, 0.0
  %119 = vst.msk [vmem:[#allocation3 + $0x1b8] sm:$0xff] %vm27, 0.0
  %120 = vst.msk [vmem:[#allocation3 + $0x1c0] sm:$0x3] %vm30, 0.0
  %s121 = scalar_lea.vmem [#allocation3], 408
  %122 = vst.msk [vmem:[%s121] sm:$0xff] %vm27, 0.0
  %123 = vst.msk [vmem:[%s121 + $0x8] sm:$0xff] %vm27, 0.0
  %124 = vst.msk [vmem:[%s121 + $0x10] sm:$0x3] %vm30, 0.0
  %125 = vst.msk [vmem:[%s121 + $0x1b0] sm:$0xff] %vm27, 0.0
  %126 = vst.msk [vmem:[%s121 + $0x1b8] sm:$0xff] %vm27, 0.0
  %127 = vst.msk [vmem:[%s121 + $0x1c0] sm:$0x3] %vm30, 0.0
  %128 = vst.msk [vmem:[#allocation3] sm:$0x1] %vm42, 0.0
  %129 = vst.msk [vmem:[#allocation3 + $0x18] sm:$0x1] %vm42, 0.0
  %130 = vst.msk [vmem:[#allocation3 + $0x30] sm:$0x1] %vm42, 0.0
  %131 = vst.msk [vmem:[#allocation3 + $0x48] sm:$0x1] %vm42, 0.0
  %132 = vst.msk [vmem:[#allocation3 + $0x60] sm:$0x1] %vm42, 0.0
  %133 = vst.msk [vmem:[#allocation3 + $0x78] sm:$0x1] %vm42, 0.0
  %134 = vst.msk [vmem:[#allocation3 + $0x90] sm:$0x1] %vm42, 0.0
  %135 = vst.msk [vmem:[#allocation3 + $0xa8] sm:$0x1] %vm42, 0.0
  %136 = vst.msk [vmem:[#allocation3 + $0xc0] sm:$0x1] %vm42, 0.0
  %137 = vst.msk [vmem:[#allocation3 + $0xd8] sm:$0x1] %vm42, 0.0
  %138 = vst.msk [vmem:[#allocation3 + $0xf0] sm:$0x1] %vm42, 0.0
  %139 = vst.msk [vmem:[#allocation3 + $0x108] sm:$0x1] %vm42, 0.0
  %140 = vst.msk [vmem:[#allocation3 + $0x120] sm:$0x1] %vm42, 0.0
  %141 = vst.msk [vmem:[#allocation3 + $0x138] sm:$0x1] %vm42, 0.0
  %142 = vst.msk [vmem:[#allocation3 + $0x150] sm:$0x1] %vm42, 0.0
  %143 = vst.msk [vmem:[#allocation3 + $0x168] sm:$0x1] %vm42, 0.0
  %144 = vst.msk [vmem:[#allocation3 + $0x180] sm:$0x1] %vm42, 0.0
  %145 = vst.msk [vmem:[#allocation3 + $0x198] sm:$0x1] %vm42, 0.0
  %146 = vst.msk [vmem:[#allocation3 + $0x1b0] sm:$0x1] %vm42, 0.0
  %147 = vst.msk [vmem:[#allocation3 + $0x1c8] sm:$0x1] %vm42, 0.0
  %148 = vst.msk [vmem:[#allocation3 + $0x1e0] sm:$0x1] %vm42, 0.0
  %149 = vst.msk [vmem:[#allocation3 + $0x1f8] sm:$0x1] %vm42, 0.0
  %150 = vst.msk [vmem:[#allocation3 + $0x210] sm:$0x1] %vm42, 0.0
  %151 = vst.msk [vmem:[#allocation3 + $0x228] sm:$0x1] %vm42, 0.0
  %152 = vst.msk [vmem:[#allocation3 + $0x240] sm:$0x1] %vm42, 0.0
  %153 = vst.msk [vmem:[#allocation3 + $0x258] sm:$0x1] %vm42, 0.0
  %154 = vst.msk [vmem:[#allocation3 + $0x270] sm:$0x1] %vm42, 0.0
  %155 = vst.msk [vmem:[#allocation3 + $0x288] sm:$0x1] %vm42, 0.0
  %156 = vst.msk [vmem:[#allocation3 + $0x2a0] sm:$0x1] %vm42, 0.0
  %157 = vst.msk [vmem:[#allocation3 + $0x2b8] sm:$0x1] %vm42, 0.0
  %158 = vst.msk [vmem:[#allocation3 + $0x2d0] sm:$0x1] %vm42, 0.0
  %159 = vst.msk [vmem:[#allocation3 + $0x2e8] sm:$0x1] %vm42, 0.0
  %160 = vst.msk [vmem:[#allocation3 + $0x300] sm:$0x1] %vm42, 0.0
  %161 = vst.msk [vmem:[#allocation3 + $0x318] sm:$0x1] %vm42, 0.0
  %162 = vst.msk [vmem:[#allocation3 + $0x330] sm:$0x1] %vm42, 0.0
  %163 = vst.msk [vmem:[#allocation3 + $0x348] sm:$0x1] %vm42, 0.0
  %164 = vst.msk [vmem:[#allocation3 + $0x11] sm:$0x1] %vm42, 0.0
  %165 = vst.msk [vmem:[#allocation3 + $0x29] sm:$0x1] %vm42, 0.0
  %166 = vst.msk [vmem:[#allocation3 + $0x41] sm:$0x1] %vm42, 0.0
  %167 = vst.msk [vmem:[#allocation3 + $0x59] sm:$0x1] %vm42, 0.0
  %168 = vst.msk [vmem:[#allocation3 + $0x71] sm:$0x1] %vm42, 0.0
  %169 = vst.msk [vmem:[#allocation3 + $0x89] sm:$0x1] %vm42, 0.0
  %170 = vst.msk [vmem:[#allocation3 + $0xa1] sm:$0x1] %vm42, 0.0
  %171 = vst.msk [vmem:[#allocation3 + $0xb9] sm:$0x1] %vm42, 0.0
  %172 = vst.msk [vmem:[#allocation3 + $0xd1] sm:$0x1] %vm42, 0.0
  %173 = vst.msk [vmem:[#allocation3 + $0xe9] sm:$0x1] %vm42, 0.0
  %174 = vst.msk [vmem:[#allocation3 + $0x101] sm:$0x1] %vm42, 0.0
  %175 = vst.msk [vmem:[#allocation3 + $0x119] sm:$0x1] %vm42, 0.0
  %176 = vst.msk [vmem:[#allocation3 + $0x131] sm:$0x1] %vm42, 0.0
  %177 = vst.msk [vmem:[#allocation3 + $0x149] sm:$0x1] %vm42, 0.0
  %178 = vst.msk [vmem:[#allocation3 + $0x161] sm:$0x1] %vm42, 0.0
  %179 = vst.msk [vmem:[#allocation3 + $0x179] sm:$0x1] %vm42, 0.0
  %180 = vst.msk [vmem:[#allocation3 + $0x191] sm:$0x1] %vm42, 0.0
  %181 = vst.msk [vmem:[#allocation3 + $0x1a9] sm:$0x1] %vm42, 0.0
  %182 = vst.msk [vmem:[#allocation3 + $0x1c1] sm:$0x1] %vm42, 0.0
  %183 = vst.msk [vmem:[#allocation3 + $0x1d9] sm:$0x1] %vm42, 0.0
  %184 = vst.msk [vmem:[#allocation3 + $0x1f1] sm:$0x1] %vm42, 0.0
  %185 = vst.msk [vmem:[#allocation3 + $0x209] sm:$0x1] %vm42, 0.0
  %186 = vst.msk [vmem:[#allocation3 + $0x221] sm:$0x1] %vm42, 0.0
  %187 = vst.msk [vmem:[#allocation3 + $0x239] sm:$0x1] %vm42, 0.0
  %188 = vst.msk [vmem:[#allocation3 + $0x251] sm:$0x1] %vm42, 0.0
  %189 = vst.msk [vmem:[#allocation3 + $0x269] sm:$0x1] %vm42, 0.0
  %190 = vst.msk [vmem:[#allocation3 + $0x281] sm:$0x1] %vm42, 0.0
  %191 = vst.msk [vmem:[#allocation3 + $0x299] sm:$0x1] %vm42, 0.0
  %192 = vst.msk [vmem:[#allocation3 + $0x2b1] sm:$0x1] %vm42, 0.0
  %193 = vst.msk [vmem:[#allocation3 + $0x2c9] sm:$0x1] %vm42, 0.0
  %194 = vst.msk [vmem:[#allocation3 + $0x2e1] sm:$0x1] %vm42, 0.0
  %195 = vst.msk [vmem:[#allocation3 + $0x2f9] sm:$0x1] %vm42, 0.0
  %196 = vst.msk [vmem:[#allocation3 + $0x311] sm:$0x1] %vm42, 0.0
  %197 = vst.msk [vmem:[#allocation3 + $0x329] sm:$0x1] %vm42, 0.0
  %198 = vst.msk [vmem:[#allocation3 + $0x341] sm:$0x1] %vm42, 0.0
  %199 = vst.msk [vmem:[#allocation3 + $0x359] sm:$0x1] %vm42, 0.0
  %v200 = vld [vmem:[%s0] sm:$0xf]
  %v201 = vld [vmem:[%s0 + $0x4] sm:$0xf]
  %v202 = vld [vmem:[%s0 + $0x8] sm:$0xf]
  %v203 = vld [vmem:[%s0 + $0xc] sm:$0xf]
  %v204 = vld [vmem:[%s0 + $0x10] sm:$0xf]
  %v205 = vld [vmem:[%s0 + $0x14] sm:$0xf]
  %v206 = vld [vmem:[%s0 + $0x18] sm:$0xf]
  %v207 = vld [vmem:[%s0 + $0x1c] sm:$0xf]
  %v208 = vld [vmem:[%s0 + $0x20] sm:$0xf]
  %v209 = vld [vmem:[%s0 + $0x24] sm:$0xf]
  %v210 = vld [vmem:[%s0 + $0x28] sm:$0xf]
  %v211 = vld [vmem:[%s0 + $0x2c] sm:$0xf]
  %v212 = vld [vmem:[%s0 + $0x30] sm:$0xf]
  %v213 = vld [vmem:[%s0 + $0x34] sm:$0xf]
  %v214 = vld [vmem:[%s0 + $0x38] sm:$0xf]
  %v215 = vld [vmem:[%s0 + $0x3c] sm:$0xf]
  %v216 = vld [vmem:[%s0 + $0x40] sm:$0xf]
  %v217 = vld [vmem:[%s0 + $0x44] sm:$0xf]
  %v218 = vld [vmem:[%s0 + $0x48] sm:$0xf]
  %v219 = vld [vmem:[%s0 + $0x4c] sm:$0xf]
  %v220 = vld [vmem:[%s0 + $0x50] sm:$0xf]
  %v221 = vld [vmem:[%s0 + $0x54] sm:$0xf]
  %v222 = vld [vmem:[%s0 + $0x58] sm:$0xf]
  %v223 = vld [vmem:[%s0 + $0x5c] sm:$0xf]
  %v224 = vld [vmem:[%s0 + $0x60] sm:$0xf]
  %v225 = vld [vmem:[%s0 + $0x64] sm:$0xf]
  %v226 = vld [vmem:[%s0 + $0x68] sm:$0xf]
  %v227 = vld [vmem:[%s0 + $0x6c] sm:$0xf]
  %v228 = vld [vmem:[%s0 + $0x70] sm:$0xf]
  %v229 = vld [vmem:[%s0 + $0x74] sm:$0xf]
  %v230 = vld [vmem:[%s0 + $0x78] sm:$0xf]
  %v231 = vld [vmem:[%s0 + $0x7c] sm:$0xf]
  %v232 = vld [vmem:[%s0 + $0x80] sm:$0xf]
  %v233 = vld [vmem:[%s0 + $0x84] sm:$0xf]
  %v234 = vld [vmem:[%s0 + $0x88] sm:$0xf]
  %v235 = vld [vmem:[%s0 + $0x8c] sm:$0xf]
  %v236 = vld [vmem:[%s0 + $0x90] sm:$0xf]
  %v237 = vld [vmem:[%s0 + $0x94] sm:$0xf]
  %v238 = vld [vmem:[%s0 + $0x98] sm:$0xf]
  %v239 = vld [vmem:[%s0 + $0x9c] sm:$0xf]
  %v240 = vld [vmem:[%s0 + $0xa0] sm:$0xf]
  %v241 = vld [vmem:[%s0 + $0xa4] sm:$0xf]
  %v242 = vld [vmem:[%s0 + $0xa8] sm:$0xf]
  %v243 = vld [vmem:[%s0 + $0xac] sm:$0xf]
  %v244 = vld [vmem:[%s0 + $0xb0] sm:$0xf]
  %v245 = vld [vmem:[%s0 + $0xb4] sm:$0xf]
  %v246 = vld [vmem:[%s0 + $0xb8] sm:$0xf]
  %v247 = vld [vmem:[%s0 + $0xbc] sm:$0xf]
  %v248 = vld [vmem:[%s0 + $0xc0] sm:$0xf]
  %v249 = vld [vmem:[%s0 + $0xc4] sm:$0xf]
  %v250 = vld [vmem:[%s0 + $0xc8] sm:$0xf]
  %v251 = vld [vmem:[%s0 + $0xcc] sm:$0xf]
  %v252 = vld [vmem:[%s0 + $0xd0] sm:$0xf]
  %v253 = vld [vmem:[%s0 + $0xd4] sm:$0xf]
  %v254 = vld [vmem:[%s0 + $0xd8] sm:$0xf]
  %v255 = vld [vmem:[%s0 + $0xdc] sm:$0xf]
  %v256 = vld [vmem:[%s0 + $0xe0] sm:$0xf]
  %v257 = vld [vmem:[%s0 + $0xe4] sm:$0xf]
  %v258 = vld [vmem:[%s0 + $0xe8] sm:$0xf]
  %v259 = vld [vmem:[%s0 + $0xec] sm:$0xf]
  %v260 = vld [vmem:[%s0 + $0xf0] sm:$0xf]
  %v261 = vld [vmem:[%s0 + $0xf4] sm:$0xf]
  %v262 = vld [vmem:[%s0 + $0xf8] sm:$0xf]
  %v263 = vld [vmem:[%s0 + $0xfc] sm:$0xf]
  %v264 = vunpack.c.l.bf16 %v200
  %v265 = vunpack.c.l.bf16 %v201
  %v266 = vunpack.c.l.bf16 %v202
  %v267 = vunpack.c.l.bf16 %v203
  %v268 = vunpack.c.l.bf16 %v204
  %v269 = vunpack.c.l.bf16 %v205
  %v270 = vunpack.c.l.bf16 %v206
  %v271 = vunpack.c.l.bf16 %v207
  %v272 = vunpack.c.l.bf16 %v208
  %v273 = vunpack.c.l.bf16 %v209
  %v274 = vunpack.c.l.bf16 %v210
  %v275 = vunpack.c.l.bf16 %v211
  %v276 = vunpack.c.l.bf16 %v212
  %v277 = vunpack.c.l.bf16 %v213
  %v278 = vunpack.c.l.bf16 %v214
  %v279 = vunpack.c.l.bf16 %v215
  %v280 = vunpack.c.l.bf16 %v216
  %v281 = vunpack.c.l.bf16 %v217
  %v282 = vunpack.c.l.bf16 %v218
  %v283 = vunpack.c.l.bf16 %v219
  %v284 = vunpack.c.l.bf16 %v220
  %v285 = vunpack.c.l.bf16 %v221
  %v286 = vunpack.c.l.bf16 %v222
  %v287 = vunpack.c.l.bf16 %v223
  %v288 = vunpack.c.l.bf16 %v224
  %v289 = vunpack.c.l.bf16 %v225
  %v290 = vunpack.c.l.bf16 %v226
  %v291 = vunpack.c.l.bf16 %v227
  %v292 = vunpack.c.l.bf16 %v228
  %v293 = vunpack.c.l.bf16 %v229
  %v294 = vunpack.c.l.bf16 %v230
  %v295 = vunpack.c.l.bf16 %v231
  %v296 = vunpack.c.l.bf16 %v232
  %v297 = vunpack.c.l.bf16 %v233
  %v298 = vunpack.c.l.bf16 %v234
  %v299 = vunpack.c.l.bf16 %v235
  %v300 = vunpack.c.l.bf16 %v236
  %v301 = vunpack.c.l.bf16 %v237
  %v302 = vunpack.c.l.bf16 %v238
  %v303 = vunpack.c.l.bf16 %v239
  %v304 = vunpack.c.l.bf16 %v240
  %v305 = vunpack.c.l.bf16 %v241
  %v306 = vunpack.c.l.bf16 %v242
  %v307 = vunpack.c.l.bf16 %v243
  %v308 = vunpack.c.l.bf16 %v244
  %v309 = vunpack.c.l.bf16 %v245
  %v310 = vunpack.c.l.bf16 %v246
  %v311 = vunpack.c.l.bf16 %v247
  %v312 = vunpack.c.l.bf16 %v248
  %v313 = vunpack.c.l.bf16 %v249
  %v314 = vunpack.c.l.bf16 %v250
  %v315 = vunpack.c.l.bf16 %v251
  %v316 = vunpack.c.l.bf16 %v252
  %v317 = vunpack.c.l.bf16 %v253
  %v318 = vunpack.c.l.bf16 %v254
  %v319 = vunpack.c.l.bf16 %v255
  %v320 = vunpack.c.l.bf16 %v256
  %v321 = vunpack.c.l.bf16 %v257
  %v322 = vunpack.c.l.bf16 %v258
  %v323 = vunpack.c.l.bf16 %v259
  %v324 = vunpack.c.l.bf16 %v260
  %v325 = vunpack.c.l.bf16 %v261
  %v326 = vunpack.c.l.bf16 %v262
  %v327 = vunpack.c.l.bf16 %v263
  %s328 = scalar_lea.vmem [#allocation2], 24
  %329 = vst.msk [vmem:[%s328 + $0x1] sm:$0xff] %vm27, %v264
  %330 = vst.msk [vmem:[%s328 + $0x9] sm:$0xff] %vm27, %v265
  %331 = vst.msk [vmem:[%s328 + $0x19] sm:$0xff] %vm27, %v266
  %332 = vst.msk [vmem:[%s328 + $0x21] sm:$0xff] %vm27, %v267
  %333 = vst.msk [vmem:[%s328 + $0x31] sm:$0xff] %vm27, %v268
  %334 = vst.msk [vmem:[%s328 + $0x39] sm:$0xff] %vm27, %v269
  %335 = vst.msk [vmem:[%s328 + $0x49] sm:$0xff] %vm27, %v270
  %336 = vst.msk [vmem:[%s328 + $0x51] sm:$0xff] %vm27, %v271
  %337 = vst.msk [vmem:[%s328 + $0x61] sm:$0xff] %vm27, %v272
  %338 = vst.msk [vmem:[%s328 + $0x69] sm:$0xff] %vm27, %v273
  %339 = vst.msk [vmem:[%s328 + $0x79] sm:$0xff] %vm27, %v274
  %340 = vst.msk [vmem:[%s328 + $0x81] sm:$0xff] %vm27, %v275
  %341 = vst.msk [vmem:[%s328 + $0x91] sm:$0xff] %vm27, %v276
  %342 = vst.msk [vmem:[%s328 + $0x99] sm:$0xff] %vm27, %v277
  %343 = vst.msk [vmem:[%s328 + $0xa9] sm:$0xff] %vm27, %v278
  %344 = vst.msk [vmem:[%s328 + $0xb1] sm:$0xff] %vm27, %v279
  %345 = vst.msk [vmem:[%s328 + $0xc1] sm:$0xff] %vm27, %v280
  %346 = vst.msk [vmem:[%s328 + $0xc9] sm:$0xff] %vm27, %v281
  %347 = vst.msk [vmem:[%s328 + $0xd9] sm:$0xff] %vm27, %v282
  %348 = vst.msk [vmem:[%s328 + $0xe1] sm:$0xff] %vm27, %v283
  %349 = vst.msk [vmem:[%s328 + $0xf1] sm:$0xff] %vm27, %v284
  %350 = vst.msk [vmem:[%s328 + $0xf9] sm:$0xff] %vm27, %v285
  %351 = vst.msk [vmem:[%s328 + $0x109] sm:$0xff] %vm27, %v286
  %352 = vst.msk [vmem:[%s328 + $0x111] sm:$0xff] %vm27, %v287
  %353 = vst.msk [vmem:[%s328 + $0x121] sm:$0xff] %vm27, %v288
  %354 = vst.msk [vmem:[%s328 + $0x129] sm:$0xff] %vm27, %v289
  %355 = vst.msk [vmem:[%s328 + $0x139] sm:$0xff] %vm27, %v290
  %356 = vst.msk [vmem:[%s328 + $0x141] sm:$0xff] %vm27, %v291
  %357 = vst.msk [vmem:[%s328 + $0x151] sm:$0xff] %vm27, %v292
  %358 = vst.msk [vmem:[%s328 + $0x159] sm:$0xff] %vm27, %v293
  %359 = vst.msk [vmem:[%s328 + $0x169] sm:$0xff] %vm27, %v294
  %360 = vst.msk [vmem:[%s328 + $0x171] sm:$0xff] %vm27, %v295
  %361 = vst.msk [vmem:[%s328 + $0x1b1] sm:$0xff] %vm27, %v296
  %362 = vst.msk [vmem:[%s328 + $0x1b9] sm:$0xff] %vm27, %v297
  %363 = vst.msk [vmem:[%s328 + $0x1c9] sm:$0xff] %vm27, %v298
  %364 = vst.msk [vmem:[%s328 + $0x1d1] sm:$0xff] %vm27, %v299
  %365 = vst.msk [vmem:[%s328 + $0x1e1] sm:$0xff] %vm27, %v300
  %366 = vst.msk [vmem:[%s328 + $0x1e9] sm:$0xff] %vm27, %v301
  %367 = vst.msk [vmem:[%s328 + $0x1f9] sm:$0xff] %vm27, %v302
  %368 = vst.msk [vmem:[%s328 + $0x201] sm:$0xff] %vm27, %v303
  %369 = vst.msk [vmem:[%s328 + $0x211] sm:$0xff] %vm27, %v304
  %370 = vst.msk [vmem:[%s328 + $0x219] sm:$0xff] %vm27, %v305
  %371 = vst.msk [vmem:[%s328 + $0x229] sm:$0xff] %vm27, %v306
  %372 = vst.msk [vmem:[%s328 + $0x231] sm:$0xff] %vm27, %v307
  %373 = vst.msk [vmem:[%s328 + $0x241] sm:$0xff] %vm27, %v308
  %374 = vst.msk [vmem:[%s328 + $0x249] sm:$0xff] %vm27, %v309
  %375 = vst.msk [vmem:[%s328 + $0x259] sm:$0xff] %vm27, %v310
  %376 = vst.msk [vmem:[%s328 + $0x261] sm:$0xff] %vm27, %v311
  %377 = vst.msk [vmem:[%s328 + $0x271] sm:$0xff] %vm27, %v312
  %378 = vst.msk [vmem:[%s328 + $0x279] sm:$0xff] %vm27, %v313
  %379 = vst.msk [vmem:[%s328 + $0x289] sm:$0xff] %vm27, %v314
  %380 = vst.msk [vmem:[%s328 + $0x291] sm:$0xff] %vm27, %v315
  %381 = vst.msk [vmem:[%s328 + $0x2a1] sm:$0xff] %vm27, %v316
  %382 = vst.msk [vmem:[%s328 + $0x2a9] sm:$0xff] %vm27, %v317
  %383 = vst.msk [vmem:[%s328 + $0x2b9] sm:$0xff] %vm27, %v318
  %384 = vst.msk [vmem:[%s328 + $0x2c1] sm:$0xff] %vm27, %v319
  %385 = vst.msk [vmem:[%s328 + $0x2d1] sm:$0xff] %vm27, %v320
  %386 = vst.msk [vmem:[%s328 + $0x2d9] sm:$0xff] %vm27, %v321
  %387 = vst.msk [vmem:[%s328 + $0x2e9] sm:$0xff] %vm27, %v322
  %388 = vst.msk [vmem:[%s328 + $0x2f1] sm:$0xff] %vm27, %v323
  %389 = vst.msk [vmem:[%s328 + $0x301] sm:$0xff] %vm27, %v324
  %390 = vst.msk [vmem:[%s328 + $0x309] sm:$0xff] %vm27, %v325
  %391 = vst.msk [vmem:[%s328 + $0x319] sm:$0xff] %vm27, %v326
  %392 = vst.msk [vmem:[%s328 + $0x321] sm:$0xff] %vm27, %v327
  %v393 = vld [vmem:[#allocation2] sm:$0xff]
  %v394 = vld [vmem:[#allocation2 + $0x8] sm:$0xff]
  %v395 = vld [vmem:[#allocation2 + $0x18] sm:$0xff]
  %v396 = vld [vmem:[#allocation2 + $0x20] sm:$0xff]
  %v397 = vld [vmem:[#allocation2 + $0x30] sm:$0xff]
  %v398 = vld [vmem:[#allocation2 + $0x38] sm:$0xff]
  %v399 = vld [vmem:[#allocation2 + $0x48] sm:$0xff]
  %v400 = vld [vmem:[#allocation2 + $0x50] sm:$0xff]
  %v401 = vld [vmem:[#allocation2 + $0x60] sm:$0xff]
  %v402 = vld [vmem:[#allocation2 + $0x68] sm:$0xff]
  %v403 = vld [vmem:[#allocation2 + $0x78] sm:$0xff]
  %v404 = vld [vmem:[#allocation2 + $0x80] sm:$0xff]
  %v405 = vld [vmem:[#allocation2 + $0x90] sm:$0xff]
  %v406 = vld [vmem:[#allocation2 + $0x98] sm:$0xff]
  %v407 = vld [vmem:[#allocation2 + $0xa8] sm:$0xff]
  %v408 = vld [vmem:[#allocation2 + $0xb0] sm:$0xff]
  %v409 = vld [vmem:[#allocation2 + $0xc0] sm:$0xff]
  %v410 = vld [vmem:[#allocation2 + $0xc8] sm:$0xff]
  %v411 = vld [vmem:[#allocation2 + $0xd8] sm:$0xff]
  %v412 = vld [vmem:[#allocation2 + $0xe0] sm:$0xff]
  %v413 = vld [vmem:[#allocation2 + $0xf0] sm:$0xff]
  %v414 = vld [vmem:[#allocation2 + $0xf8] sm:$0xff]
  %v415 = vld [vmem:[#allocation2 + $0x108] sm:$0xff]
  %v416 = vld [vmem:[#allocation2 + $0x110] sm:$0xff]
  %v417 = vld [vmem:[#allocation2 + $0x120] sm:$0xff]
  %v418 = vld [vmem:[#allocation2 + $0x128] sm:$0xff]
  %v419 = vld [vmem:[#allocation2 + $0x138] sm:$0xff]
  %v420 = vld [vmem:[#allocation2 + $0x140] sm:$0xff]
  %v421 = vld [vmem:[#allocation2 + $0x150] sm:$0xff]
  %v422 = vld [vmem:[#allocation2 + $0x158] sm:$0xff]
  %v423 = vld [vmem:[#allocation2 + $0x168] sm:$0xff]
  %v424 = vld [vmem:[#allocation2 + $0x170] sm:$0xff]
  %v425 = vld [vmem:[#allocation2 + $0x1b0] sm:$0xff]
  %v426 = vld [vmem:[#allocation2 + $0x1b8] sm:$0xff]
  %v427 = vld [vmem:[#allocation2 + $0x1c8] sm:$0xff]
  %v428 = vld [vmem:[#allocation2 + $0x1d0] sm:$0xff]
  %v429 = vld [vmem:[#allocation2 + $0x1e0] sm:$0xff]
  %v430 = vld [vmem:[#allocation2 + $0x1e8] sm:$0xff]
  %v431 = vld [vmem:[#allocation2 + $0x1f8] sm:$0xff]
  %v432 = vld [vmem:[#allocation2 + $0x200] sm:$0xff]
  %v433 = vld [vmem:[#allocation2 + $0x210] sm:$0xff]
  %v434 = vld [vmem:[#allocation2 + $0x218] sm:$0xff]
  %v435 = vld [vmem:[#allocation2 + $0x228] sm:$0xff]
  %v436 = vld [vmem:[#allocation2 + $0x230] sm:$0xff]
  %v437 = vld [vmem:[#allocation2 + $0x240] sm:$0xff]
  %v438 = vld [vmem:[#allocation2 + $0x248] sm:$0xff]
  %v439 = vld [vmem:[#allocation2 + $0x258] sm:$0xff]
  %v440 = vld [vmem:[#allocation2 + $0x260] sm:$0xff]
  %v441 = vld [vmem:[#allocation2 + $0x270] sm:$0xff]
  %v442 = vld [vmem:[#allocation2 + $0x278] sm:$0xff]
  %v443 = vld [vmem:[#allocation2 + $0x288] sm:$0xff]
  %v444 = vld [vmem:[#allocation2 + $0x290] sm:$0xff]
  %v445 = vld [vmem:[#allocation2 + $0x2a0] sm:$0xff]
  %v446 = vld [vmem:[#allocation2 + $0x2a8] sm:$0xff]
  %v447 = vld [vmem:[#allocation2 + $0x2b8] sm:$0xff]
  %v448 = vld [vmem:[#allocation2 + $0x2c0] sm:$0xff]
  %v449 = vld [vmem:[#allocation2 + $0x2d0] sm:$0xff]
  %v450 = vld [vmem:[#allocation2 + $0x2d8] sm:$0xff]
  %v451 = vld [vmem:[#allocation2 + $0x2e8] sm:$0xff]
  %v452 = vld [vmem:[#allocation2 + $0x2f0] sm:$0xff]
  %v453 = vld [vmem:[#allocation2 + $0x300] sm:$0xff]
  %v454 = vld [vmem:[#allocation2 + $0x308] sm:$0xff]
  %v455 = vld [vmem:[#allocation2 + $0x318] sm:$0xff]
  %v456 = vld [vmem:[#allocation2 + $0x320] sm:$0xff]
  %v457 = vpack.c.bf16 %v394, %v393
  %v458 = vpack.c.bf16 %v396, %v395
  %v459 = vpack.c.bf16 %v398, %v397
  %v460 = vpack.c.bf16 %v400, %v399
  %v461 = vpack.c.bf16 %v402, %v401
  %v462 = vpack.c.bf16 %v404, %v403
  %v463 = vpack.c.bf16 %v406, %v405
  %v464 = vpack.c.bf16 %v408, %v407
  %v465 = vpack.c.bf16 %v410, %v409
  %v466 = vpack.c.bf16 %v412, %v411
  %v467 = vpack.c.bf16 %v414, %v413
  %v468 = vpack.c.bf16 %v416, %v415
  %v469 = vpack.c.bf16 %v418, %v417
  %v470 = vpack.c.bf16 %v420, %v419
  %v471 = vpack.c.bf16 %v422, %v421
  %v472 = vpack.c.bf16 %v424, %v423
  %v473 = vpack.c.bf16 %v426, %v425
  %v474 = vpack.c.bf16 %v428, %v427
  %v475 = vpack.c.bf16 %v430, %v429
  %v476 = vpack.c.bf16 %v432, %v431
  %v477 = vpack.c.bf16 %v434, %v433
  %v478 = vpack.c.bf16 %v436, %v435
  %v479 = vpack.c.bf16 %v438, %v437
  %v480 = vpack.c.bf16 %v440, %v439
  %v481 = vpack.c.bf16 %v442, %v441
  %v482 = vpack.c.bf16 %v444, %v443
  %v483 = vpack.c.bf16 %v446, %v445
  %v484 = vpack.c.bf16 %v448, %v447
  %v485 = vpack.c.bf16 %v450, %v449
  %v486 = vpack.c.bf16 %v452, %v451
  %v487 = vpack.c.bf16 %v454, %v453
  %v488 = vpack.c.bf16 %v456, %v455
  %v521 = vunpack.c.l.b16 %v457
  %v522 = vunpack.c.h.b16 %v457
  %v523 = vunpack.c.l.b16 %v458
  %v524 = vunpack.c.h.b16 %v458
  %v525 = vunpack.c.l.b16 %v459
  %v526 = vunpack.c.h.b16 %v459
  %v527 = vunpack.c.l.b16 %v460
  %v528 = vunpack.c.h.b16 %v460
  %v529 = vunpack.c.l.b16 %v461
  %v530 = vunpack.c.h.b16 %v461
  %v531 = vunpack.c.l.b16 %v462
  %v532 = vunpack.c.h.b16 %v462
  %v533 = vunpack.c.l.b16 %v463
  %v534 = vunpack.c.h.b16 %v463
  %v535 = vunpack.c.l.b16 %v464
  %v536 = vunpack.c.h.b16 %v464
  %v537 = vunpack.c.l.b16 %v465
  %v538 = vunpack.c.h.b16 %v465
  %v539 = vunpack.c.l.b16 %v466
  %v540 = vunpack.c.h.b16 %v466
  %v541 = vunpack.c.l.b16 %v467
  %v542 = vunpack.c.h.b16 %v467
  %v543 = vunpack.c.l.b16 %v468
  %v544 = vunpack.c.h.b16 %v468
  %v545 = vunpack.c.l.b16 %v469
  %v546 = vunpack.c.h.b16 %v469
  %v547 = vunpack.c.l.b16 %v470
  %v548 = vunpack.c.h.b16 %v470
  %v549 = vunpack.c.l.b16 %v471
  %v550 = vunpack.c.h.b16 %v471
  %v551 = vunpack.c.l.b16 %v472
  %v552 = vunpack.c.h.b16 %v472
  %v553 = vunpack.c.l.b16 %v473
  %v554 = vunpack.c.h.b16 %v473
  %v555 = vunpack.c.l.b16 %v474
  %v556 = vunpack.c.h.b16 %v474
  %v557 = vunpack.c.l.b16 %v475
  %v558 = vunpack.c.h.b16 %v475
  %v559 = vunpack.c.l.b16 %v476
  %v560 = vunpack.c.h.b16 %v476
  %v561 = vunpack.c.l.b16 %v477
  %v562 = vunpack.c.h.b16 %v477
  %v563 = vunpack.c.l.b16 %v478
  %v564 = vunpack.c.h.b16 %v478
  %v565 = vunpack.c.l.b16 %v479
  %v566 = vunpack.c.h.b16 %v479
  %v567 = vunpack.c.l.b16 %v480
  %v568 = vunpack.c.h.b16 %v480
  %v569 = vunpack.c.l.b16 %v481
  %v570 = vunpack.c.h.b16 %v481
  %v571 = vunpack.c.l.b16 %v482
  %v572 = vunpack.c.h.b16 %v482
  %v573 = vunpack.c.l.b16 %v483
  %v574 = vunpack.c.h.b16 %v483
  %v575 = vunpack.c.l.b16 %v484
  %v576 = vunpack.c.h.b16 %v484
  %v577 = vunpack.c.l.b16 %v485
  %v578 = vunpack.c.h.b16 %v485
  %v579 = vunpack.c.l.b16 %v486
  %v580 = vunpack.c.h.b16 %v486
  %v581 = vunpack.c.l.b16 %v487
  %v582 = vunpack.c.h.b16 %v487
  %v583 = vunpack.c.l.b16 %v488
  %v584 = vunpack.c.h.b16 %v488
  %v585 = vpack.c.b16 %v521, %v521
  %v586 = vpack.c.b16 %v522, %v522
  %v587 = vpack.c.b16 %v523, %v523
  %v588 = vpack.c.b16 %v524, %v524
  %v589 = vpack.c.b16 %v525, %v525
  %v590 = vpack.c.b16 %v526, %v526
  %v591 = vpack.c.b16 %v527, %v527
  %v592 = vpack.c.b16 %v528, %v528
  %v593 = vpack.c.b16 %v529, %v529
  %v594 = vpack.c.b16 %v530, %v530
  %v595 = vpack.c.b16 %v531, %v531
  %v596 = vpack.c.b16 %v532, %v532
  %v597 = vpack.c.b16 %v533, %v533
  %v598 = vpack.c.b16 %v534, %v534
  %v599 = vpack.c.b16 %v535, %v535
  %v600 = vpack.c.b16 %v536, %v536
  %v601 = vpack.c.b16 %v537, %v537
  %v602 = vpack.c.b16 %v538, %v538
  %v603 = vpack.c.b16 %v539, %v539
  %v604 = vpack.c.b16 %v540, %v540
  %v605 = vpack.c.b16 %v541, %v541
  %v606 = vpack.c.b16 %v542, %v542
  %v607 = vpack.c.b16 %v543, %v543
  %v608 = vpack.c.b16 %v544, %v544
  %v609 = vpack.c.b16 %v545, %v545
  %v610 = vpack.c.b16 %v546, %v546
  %v611 = vpack.c.b16 %v547, %v547
  %v612 = vpack.c.b16 %v548, %v548
  %v613 = vpack.c.b16 %v549, %v549
  %v614 = vpack.c.b16 %v550, %v550
  %v615 = vpack.c.b16 %v551, %v551
  %v616 = vpack.c.b16 %v552, %v552
  %v617 = vpack.c.b16 %v553, %v553
  %v618 = vpack.c.b16 %v554, %v554
  %v619 = vpack.c.b16 %v555, %v555
  %v620 = vpack.c.b16 %v556, %v556
  %v621 = vpack.c.b16 %v557, %v557
  %v622 = vpack.c.b16 %v558, %v558
  %v623 = vpack.c.b16 %v559, %v559
  %v624 = vpack.c.b16 %v560, %v560
  %v625 = vpack.c.b16 %v561, %v561
  %v626 = vpack.c.b16 %v562, %v562
  %v627 = vpack.c.b16 %v563, %v563
  %v628 = vpack.c.b16 %v564, %v564
  %v629 = vpack.c.b16 %v565, %v565
  %v630 = vpack.c.b16 %v566, %v566
  %v631 = vpack.c.b16 %v567, %v567
  %v632 = vpack.c.b16 %v568, %v568
  %v633 = vpack.c.b16 %v569, %v569
  %v634 = vpack.c.b16 %v570, %v570
  %v635 = vpack.c.b16 %v571, %v571
  %v636 = vpack.c.b16 %v572, %v572
  %v637 = vpack.c.b16 %v573, %v573
  %v638 = vpack.c.b16 %v574, %v574
  %v639 = vpack.c.b16 %v575, %v575
  %v640 = vpack.c.b16 %v576, %v576
  %v641 = vpack.c.b16 %v577, %v577
  %v642 = vpack.c.b16 %v578, %v578
  %v643 = vpack.c.b16 %v579, %v579
  %v644 = vpack.c.b16 %v580, %v580
  %v645 = vpack.c.b16 %v581, %v581
  %v646 = vpack.c.b16 %v582, %v582
  %v647 = vpack.c.b16 %v583, %v583
  %v648 = vpack.c.b16 %v584, %v584
  %vm713 = vcmask 27648
  %714 = vst.msk [vmem:[#allocation4] sm:$0xf] %vm713, %v585
  %715 = vst.msk [vmem:[#allocation4 + $0x4] sm:$0xf] %vm713, %v586
  %716 = vst.msk [vmem:[#allocation4 + $0x8] sm:$0xf] %vm713, %v587
  %717 = vst.msk [vmem:[#allocation4 + $0xc] sm:$0xf] %vm713, %v588
  %718 = vst.msk [vmem:[#allocation4 + $0x10] sm:$0xf] %vm713, %v589
  %719 = vst.msk [vmem:[#allocation4 + $0x14] sm:$0xf] %vm713, %v590
  %720 = vst.msk [vmem:[#allocation4 + $0x18] sm:$0xf] %vm713, %v591
  %721 = vst.msk [vmem:[#allocation4 + $0x1c] sm:$0xf] %vm713, %v592
  %722 = vst.msk [vmem:[#allocation4 + $0x20] sm:$0xf] %vm713, %v593
  %723 = vst.msk [vmem:[#allocation4 + $0x24] sm:$0xf] %vm713, %v594
  %724 = vst.msk [vmem:[#allocation4 + $0x28] sm:$0xf] %vm713, %v595
  %725 = vst.msk [vmem:[#allocation4 + $0x2c] sm:$0xf] %vm713, %v596
  %726 = vst.msk [vmem:[#allocation4 + $0x30] sm:$0xf] %vm713, %v597
  %727 = vst.msk [vmem:[#allocation4 + $0x34] sm:$0xf] %vm713, %v598
  %728 = vst.msk [vmem:[#allocation4 + $0x38] sm:$0xf] %vm713, %v599
  %729 = vst.msk [vmem:[#allocation4 + $0x3c] sm:$0xf] %vm713, %v600
  %730 = vst.msk [vmem:[#allocation4 + $0x40] sm:$0xf] %vm713, %v601
  %731 = vst.msk [vmem:[#allocation4 + $0x44] sm:$0xf] %vm713, %v602
  %732 = vst.msk [vmem:[#allocation4 + $0x48] sm:$0xf] %vm713, %v603
  %733 = vst.msk [vmem:[#allocation4 + $0x4c] sm:$0xf] %vm713, %v604
  %734 = vst.msk [vmem:[#allocation4 + $0x50] sm:$0xf] %vm713, %v605
  %735 = vst.msk [vmem:[#allocation4 + $0x54] sm:$0xf] %vm713, %v606
  %736 = vst.msk [vmem:[#allocation4 + $0x58] sm:$0xf] %vm713, %v607
  %737 = vst.msk [vmem:[#allocation4 + $0x5c] sm:$0xf] %vm713, %v608
  %738 = vst.msk [vmem:[#allocation4 + $0x60] sm:$0xf] %vm713, %v609
  %739 = vst.msk [vmem:[#allocation4 + $0x64] sm:$0xf] %vm713, %v610
  %740 = vst.msk [vmem:[#allocation4 + $0x68] sm:$0xf] %vm713, %v611
  %741 = vst.msk [vmem:[#allocation4 + $0x6c] sm:$0xf] %vm713, %v612
  %742 = vst.msk [vmem:[#allocation4 + $0x70] sm:$0xf] %vm713, %v613
  %743 = vst.msk [vmem:[#allocation4 + $0x74] sm:$0xf] %vm713, %v614
  %744 = vst.msk [vmem:[#allocation4 + $0x78] sm:$0xf] %vm713, %v615
  %745 = vst.msk [vmem:[#allocation4 + $0x7c] sm:$0xf] %vm713, %v616
  %746 = vst.msk [vmem:[#allocation4 + $0x80] sm:$0xf] %vm713, %v617
  %747 = vst.msk [vmem:[#allocation4 + $0x84] sm:$0xf] %vm713, %v618
  %748 = vst.msk [vmem:[#allocation4 + $0x88] sm:$0xf] %vm713, %v619
  %749 = vst.msk [vmem:[#allocation4 + $0x8c] sm:$0xf] %vm713, %v620
  %750 = vst.msk [vmem:[#allocation4 + $0x90] sm:$0xf] %vm713, %v621
  %751 = vst.msk [vmem:[#allocation4 + $0x94] sm:$0xf] %vm713, %v622
  %752 = vst.msk [vmem:[#allocation4 + $0x98] sm:$0xf] %vm713, %v623
  %753 = vst.msk [vmem:[#allocation4 + $0x9c] sm:$0xf] %vm713, %v624
  %754 = vst.msk [vmem:[#allocation4 + $0xa0] sm:$0xf] %vm713, %v625
  %755 = vst.msk [vmem:[#allocation4 + $0xa4] sm:$0xf] %vm713, %v626
  %756 = vst.msk [vmem:[#allocation4 + $0xa8] sm:$0xf] %vm713, %v627
  %757 = vst.msk [vmem:[#allocation4 + $0xac] sm:$0xf] %vm713, %v628
  %758 = vst.msk [vmem:[#allocation4 + $0xb0] sm:$0xf] %vm713, %v629
  %759 = vst.msk [vmem:[#allocation4 + $0xb4] sm:$0xf] %vm713, %v630
  %760 = vst.msk [vmem:[#allocation4 + $0xb8] sm:$0xf] %vm713, %v631
  %761 = vst.msk [vmem:[#allocation4 + $0xbc] sm:$0xf] %vm713, %v632
  %762 = vst.msk [vmem:[#allocation4 + $0xc0] sm:$0xf] %vm713, %v633
  %763 = vst.msk [vmem:[#allocation4 + $0xc4] sm:$0xf] %vm713, %v634
  %764 = vst.msk [vmem:[#allocation4 + $0xc8] sm:$0xf] %vm713, %v635
  %765 = vst.msk [vmem:[#allocation4 + $0xcc] sm:$0xf] %vm713, %v636
  %766 = vst.msk [vmem:[#allocation4 + $0xd0] sm:$0xf] %vm713, %v637
  %767 = vst.msk [vmem:[#allocation4 + $0xd4] sm:$0xf] %vm713, %v638
  %768 = vst.msk [vmem:[#allocation4 + $0xd8] sm:$0xf] %vm713, %v639
  %769 = vst.msk [vmem:[#allocation4 + $0xdc] sm:$0xf] %vm713, %v640
  %770 = vst.msk [vmem:[#allocation4 + $0xe0] sm:$0xf] %vm713, %v641
  %771 = vst.msk [vmem:[#allocation4 + $0xe4] sm:$0xf] %vm713, %v642
  %772 = vst.msk [vmem:[#allocation4 + $0xe8] sm:$0xf] %vm713, %v643
  %773 = vst.msk [vmem:[#allocation4 + $0xec] sm:$0xf] %vm713, %v644
  %774 = vst.msk [vmem:[#allocation4 + $0xf0] sm:$0xf] %vm713, %v645
  %775 = vst.msk [vmem:[#allocation4 + $0xf4] sm:$0xf] %vm713, %v646
  %776 = vst.msk [vmem:[#allocation4 + $0xf8] sm:$0xf] %vm713, %v647
  %777 = vst.msk [vmem:[#allocation4 + $0xfc] sm:$0xf] %vm713, %v648
  %v778 = vld [vmem:[#allocation2 + $0x1] sm:$0xff]
  %v779 = vld [vmem:[#allocation2 + $0x9] sm:$0xff]
  %v780 = vld [vmem:[#allocation2 + $0x19] sm:$0xff]
  %v781 = vld [vmem:[#allocation2 + $0x21] sm:$0xff]
  %v782 = vld [vmem:[#allocation2 + $0x31] sm:$0xff]
  %v783 = vld [vmem:[#allocation2 + $0x39] sm:$0xff]
  %v784 = vld [vmem:[#allocation2 + $0x49] sm:$0xff]
  %v785 = vld [vmem:[#allocation2 + $0x51] sm:$0xff]
  %v786 = vld [vmem:[#allocation2 + $0x61] sm:$0xff]
  %v787 = vld [vmem:[#allocation2 + $0x69] sm:$0xff]
  %v788 = vld [vmem:[#allocation2 + $0x79] sm:$0xff]
  %v789 = vld [vmem:[#allocation2 + $0x81] sm:$0xff]
  %v790 = vld [vmem:[#allocation2 + $0x91] sm:$0xff]
  %v791 = vld [vmem:[#allocation2 + $0x99] sm:$0xff]
  %v792 = vld [vmem:[#allocation2 + $0xa9] sm:$0xff]
  %v793 = vld [vmem:[#allocation2 + $0xb1] sm:$0xff]
  %v794 = vld [vmem:[#allocation2 + $0xc1] sm:$0xff]
  %v795 = vld [vmem:[#allocation2 + $0xc9] sm:$0xff]
  %v796 = vld [vmem:[#allocation2 + $0xd9] sm:$0xff]
  %v797 = vld [vmem:[#allocation2 + $0xe1] sm:$0xff]
  %v798 = vld [vmem:[#allocation2 + $0xf1] sm:$0xff]
  %v799 = vld [vmem:[#allocation2 + $0xf9] sm:$0xff]
  %v800 = vld [vmem:[#allocation2 + $0x109] sm:$0xff]
  %v801 = vld [vmem:[#allocation2 + $0x111] sm:$0xff]
  %v802 = vld [vmem:[#allocation2 + $0x121] sm:$0xff]
  %v803 = vld [vmem:[#allocation2 + $0x129] sm:$0xff]
  %v804 = vld [vmem:[#allocation2 + $0x139] sm:$0xff]
  %v805 = vld [vmem:[#allocation2 + $0x141] sm:$0xff]
  %v806 = vld [vmem:[#allocation2 + $0x151] sm:$0xff]
  %v807 = vld [vmem:[#allocation2 + $0x159] sm:$0xff]
  %v808 = vld [vmem:[#allocation2 + $0x169] sm:$0xff]
  %v809 = vld [vmem:[#allocation2 + $0x171] sm:$0xff]
  %v810 = vld [vmem:[#allocation2 + $0x1b1] sm:$0xff]
  %v811 = vld [vmem:[#allocation2 + $0x1b9] sm:$0xff]
  %v812 = vld [vmem:[#allocation2 + $0x1c9] sm:$0xff]
  %v813 = vld [vmem:[#allocation2 + $0x1d1] sm:$0xff]
  %v814 = vld [vmem:[#allocation2 + $0x1e1] sm:$0xff]
  %v815 = vld [vmem:[#allocation2 + $0x1e9] sm:$0xff]
  %v816 = vld [vmem:[#allocation2 + $0x1f9] sm:$0xff]
  %v817 = vld [vmem:[#allocation2 + $0x201] sm:$0xff]
  %v818 = vld [vmem:[#allocation2 + $0x211] sm:$0xff]
  %v819 = vld [vmem:[#allocation2 + $0x219] sm:$0xff]
  %v820 = vld [vmem:[#allocation2 + $0x229] sm:$0xff]
  %v821 = vld [vmem:[#allocation2 + $0x231] sm:$0xff]
  %v822 = vld [vmem:[#allocation2 + $0x241] sm:$0xff]
  %v823 = vld [vmem:[#allocation2 + $0x249] sm:$0xff]
  %v824 = vld [vmem:[#allocation2 + $0x259] sm:$0xff]
  %v825 = vld [vmem:[#allocation2 + $0x261] sm:$0xff]
  %v826 = vld [vmem:[#allocation2 + $0x271] sm:$0xff]
  %v827 = vld [vmem:[#allocation2 + $0x279] sm:$0xff]
  %v828 = vld [vmem:[#allocation2 + $0x289] sm:$0xff]
  %v829 = vld [vmem:[#allocation2 + $0x291] sm:$0xff]
  %v830 = vld [vmem:[#allocation2 + $0x2a1] sm:$0xff]
  %v831 = vld [vmem:[#allocation2 + $0x2a9] sm:$0xff]
  %v832 = vld [vmem:[#allocation2 + $0x2b9] sm:$0xff]
  %v833 = vld [vmem:[#allocation2 + $0x2c1] sm:$0xff]
  %v834 = vld [vmem:[#allocation2 + $0x2d1] sm:$0xff]
  %v835 = vld [vmem:[#allocation2 + $0x2d9] sm:$0xff]
  %v836 = vld [vmem:[#allocation2 + $0x2e9] sm:$0xff]
  %v837 = vld [vmem:[#allocation2 + $0x2f1] sm:$0xff]
  %v838 = vld [vmem:[#allocation2 + $0x301] sm:$0xff]
  %v839 = vld [vmem:[#allocation2 + $0x309] sm:$0xff]
  %v840 = vld [vmem:[#allocation2 + $0x319] sm:$0xff]
  %v841 = vld [vmem:[#allocation2 + $0x321] sm:$0xff]
  %v842 = vpack.c.bf16 %v779, %v778
  %v843 = vpack.c.bf16 %v781, %v780
  %v844 = vpack.c.bf16 %v783, %v782
  %v845 = vpack.c.bf16 %v785, %v784
  %v846 = vpack.c.bf16 %v787, %v786
  %v847 = vpack.c.bf16 %v789, %v788
  %v848 = vpack.c.bf16 %v791, %v790
  %v849 = vpack.c.bf16 %v793, %v792
  %v850 = vpack.c.bf16 %v795, %v794
  %v851 = vpack.c.bf16 %v797, %v796
  %v852 = vpack.c.bf16 %v799, %v798
  %v853 = vpack.c.bf16 %v801, %v800
  %v854 = vpack.c.bf16 %v803, %v802
  %v855 = vpack.c.bf16 %v805, %v804
  %v856 = vpack.c.bf16 %v807, %v806
  %v857 = vpack.c.bf16 %v809, %v808
  %v858 = vpack.c.bf16 %v811, %v810
  %v859 = vpack.c.bf16 %v813, %v812
  %v860 = vpack.c.bf16 %v815, %v814
  %v861 = vpack.c.bf16 %v817, %v816
  %v862 = vpack.c.bf16 %v819, %v818
  %v863 = vpack.c.bf16 %v821, %v820
  %v864 = vpack.c.bf16 %v823, %v822
  %v865 = vpack.c.bf16 %v825, %v824
  %v866 = vpack.c.bf16 %v827, %v826
  %v867 = vpack.c.bf16 %v829, %v828
  %v868 = vpack.c.bf16 %v831, %v830
  %v869 = vpack.c.bf16 %v833, %v832
  %v870 = vpack.c.bf16 %v835, %v834
  %v871 = vpack.c.bf16 %v837, %v836
  %v872 = vpack.c.bf16 %v839, %v838
  %v873 = vpack.c.bf16 %v841, %v840
  %v906 = vunpack.c.l.b16 %v842
  %v907 = vunpack.c.h.b16 %v842
  %v908 = vunpack.c.l.b16 %v843
  %v909 = vunpack.c.h.b16 %v843
  %v910 = vunpack.c.l.b16 %v844
  %v911 = vunpack.c.h.b16 %v844
  %v912 = vunpack.c.l.b16 %v845
  %v913 = vunpack.c.h.b16 %v845
  %v914 = vunpack.c.l.b16 %v846
  %v915 = vunpack.c.h.b16 %v846
  %v916 = vunpack.c.l.b16 %v847
  %v917 = vunpack.c.h.b16 %v847
  %v918 = vunpack.c.l.b16 %v848
  %v919 = vunpack.c.h.b16 %v848
  %v920 = vunpack.c.l.b16 %v849
  %v921 = vunpack.c.h.b16 %v849
  %v922 = vunpack.c.l.b16 %v850
  %v923 = vunpack.c.h.b16 %v850
  %v924 = vunpack.c.l.b16 %v851
  %v925 = vunpack.c.h.b16 %v851
  %v926 = vunpack.c.l.b16 %v852
  %v927 = vunpack.c.h.b16 %v852
  %v928 = vunpack.c.l.b16 %v853
  %v929 = vunpack.c.h.b16 %v853
  %v930 = vunpack.c.l.b16 %v854
  %v931 = vunpack.c.h.b16 %v854
  %v932 = vunpack.c.l.b16 %v855
  %v933 = vunpack.c.h.b16 %v855
  %v934 = vunpack.c.l.b16 %v856
  %v935 = vunpack.c.h.b16 %v856
  %v936 = vunpack.c.l.b16 %v857
  %v937 = vunpack.c.h.b16 %v857
  %v938 = vunpack.c.l.b16 %v858
  %v939 = vunpack.c.h.b16 %v858
  %v940 = vunpack.c.l.b16 %v859
  %v941 = vunpack.c.h.b16 %v859
  %v942 = vunpack.c.l.b16 %v860
  %v943 = vunpack.c.h.b16 %v860
  %v944 = vunpack.c.l.b16 %v861
  %v945 = vunpack.c.h.b16 %v861
  %v946 = vunpack.c.l.b16 %v862
  %v947 = vunpack.c.h.b16 %v862
  %v948 = vunpack.c.l.b16 %v863
  %v949 = vunpack.c.h.b16 %v863
  %v950 = vunpack.c.l.b16 %v864
  %v951 = vunpack.c.h.b16 %v864
  %v952 = vunpack.c.l.b16 %v865
  %v953 = vunpack.c.h.b16 %v865
  %v954 = vunpack.c.l.b16 %v866
  %v955 = vunpack.c.h.b16 %v866
  %v956 = vunpack.c.l.b16 %v867
  %v957 = vunpack.c.h.b16 %v867
  %v958 = vunpack.c.l.b16 %v868
  %v959 = vunpack.c.h.b16 %v868
  %v960 = vunpack.c.l.b16 %v869
  %v961 = vunpack.c.h.b16 %v869
  %v962 = vunpack.c.l.b16 %v870
  %v963 = vunpack.c.h.b16 %v870
  %v964 = vunpack.c.l.b16 %v871
  %v965 = vunpack.c.h.b16 %v871
  %v966 = vunpack.c.l.b16 %v872
  %v967 = vunpack.c.h.b16 %v872
  %v968 = vunpack.c.l.b16 %v873
  %v969 = vunpack.c.h.b16 %v873
  %v970 = vpack.c.b16 %v906, %v906
  %v971 = vpack.c.b16 %v907, %v907
  %v972 = vpack.c.b16 %v908, %v908
  %v973 = vpack.c.b16 %v909, %v909
  %v974 = vpack.c.b16 %v910, %v910
  %v975 = vpack.c.b16 %v911, %v911
  %v976 = vpack.c.b16 %v912, %v912
  %v977 = vpack.c.b16 %v913, %v913
  %v978 = vpack.c.b16 %v914, %v914
  %v979 = vpack.c.b16 %v915, %v915
  %v980 = vpack.c.b16 %v916, %v916
  %v981 = vpack.c.b16 %v917, %v917
  %v982 = vpack.c.b16 %v918, %v918
  %v983 = vpack.c.b16 %v919, %v919
  %v984 = vpack.c.b16 %v920, %v920
  %v985 = vpack.c.b16 %v921, %v921
  %v986 = vpack.c.b16 %v922, %v922
  %v987 = vpack.c.b16 %v923, %v923
  %v988 = vpack.c.b16 %v924, %v924
  %v989 = vpack.c.b16 %v925, %v925
  %v990 = vpack.c.b16 %v926, %v926
  %v991 = vpack.c.b16 %v927, %v927
  %v992 = vpack.c.b16 %v928, %v928
  %v993 = vpack.c.b16 %v929, %v929
  %v994 = vpack.c.b16 %v930, %v930
  %v995 = vpack.c.b16 %v931, %v931
  %v996 = vpack.c.b16 %v932, %v932
  %v997 = vpack.c.b16 %v933, %v933
  %v998 = vpack.c.b16 %v934, %v934
  %v999 = vpack.c.b16 %v935, %v935
  %v1000 = vpack.c.b16 %v936, %v936
  %v1001 = vpack.c.b16 %v937, %v937
  %v1002 = vpack.c.b16 %v938, %v938
  %v1003 = vpack.c.b16 %v939, %v939
  %v1004 = vpack.c.b16 %v940, %v940
  %v1005 = vpack.c.b16 %v941, %v941
  %v1006 = vpack.c.b16 %v942, %v942
  %v1007 = vpack.c.b16 %v943, %v943
  %v1008 = vpack.c.b16 %v944, %v944
  %v1009 = vpack.c.b16 %v945, %v945
  %v1010 = vpack.c.b16 %v946, %v946
  %v1011 = vpack.c.b16 %v947, %v947
  %v1012 = vpack.c.b16 %v948, %v948
  %v1013 = vpack.c.b16 %v949, %v949
  %v1014 = vpack.c.b16 %v950, %v950
  %v1015 = vpack.c.b16 %v951, %v951
  %v1016 = vpack.c.b16 %v952, %v952
  %v1017 = vpack.c.b16 %v953, %v953
  %v1018 = vpack.c.b16 %v954, %v954
  %v1019 = vpack.c.b16 %v955, %v955
  %v1020 = vpack.c.b16 %v956, %v956
  %v1021 = vpack.c.b16 %v957, %v957
  %v1022 = vpack.c.b16 %v958, %v958
  %v1023 = vpack.c.b16 %v959, %v959
  %v1024 = vpack.c.b16 %v960, %v960
  %v1025 = vpack.c.b16 %v961, %v961
  %v1026 = vpack.c.b16 %v962, %v962
  %v1027 = vpack.c.b16 %v963, %v963
  %v1028 = vpack.c.b16 %v964, %v964
  %v1029 = vpack.c.b16 %v965, %v965
  %v1030 = vpack.c.b16 %v966, %v966
  %v1031 = vpack.c.b16 %v967, %v967
  %v1032 = vpack.c.b16 %v968, %v968
  %v1033 = vpack.c.b16 %v969, %v969
  %1034 = vrot.lane.b32.xlu0 %v970, 4
  %v1035 = vpop.permute.xlu0 %1034
  %1036 = vrot.lane.b32.xlu0 %v971, 4
  %v1037 = vpop.permute.xlu0 %1036
  %1038 = vrot.lane.b32.xlu0 %v972, 4
  %v1039 = vpop.permute.xlu0 %1038
  %1040 = vrot.lane.b32.xlu0 %v973, 4
  %v1041 = vpop.permute.xlu0 %1040
  %1042 = vrot.lane.b32.xlu0 %v974, 4
  %v1043 = vpop.permute.xlu0 %1042
  %1044 = vrot.lane.b32.xlu0 %v975, 4
  %v1045 = vpop.permute.xlu0 %1044
  %1046 = vrot.lane.b32.xlu0 %v976, 4
  %v1047 = vpop.permute.xlu0 %1046
  %1048 = vrot.lane.b32.xlu0 %v977, 4
  %v1049 = vpop.permute.xlu0 %1048
  %1050 = vrot.lane.b32.xlu0 %v978, 4
  %v1051 = vpop.permute.xlu0 %1050
  %1052 = vrot.lane.b32.xlu0 %v979, 4
  %v1053 = vpop.permute.xlu0 %1052
  %1054 = vrot.lane.b32.xlu0 %v980, 4
  %v1055 = vpop.permute.xlu0 %1054
  %1056 = vrot.lane.b32.xlu0 %v981, 4
  %v1057 = vpop.permute.xlu0 %1056
  %1058 = vrot.lane.b32.xlu0 %v982, 4
  %v1059 = vpop.permute.xlu0 %1058
  %1060 = vrot.lane.b32.xlu0 %v983, 4
  %v1061 = vpop.permute.xlu0 %1060
  %1062 = vrot.lane.b32.xlu0 %v984, 4
  %v1063 = vpop.permute.xlu0 %1062
  %1064 = vrot.lane.b32.xlu0 %v985, 4
  %v1065 = vpop.permute.xlu0 %1064
  %1066 = vrot.lane.b32.xlu0 %v986, 4
  %v1067 = vpop.permute.xlu0 %1066
  %1068 = vrot.lane.b32.xlu0 %v987, 4
  %v1069 = vpop.permute.xlu0 %1068
  %1070 = vrot.lane.b32.xlu0 %v988, 4
  %v1071 = vpop.permute.xlu0 %1070
  %1072 = vrot.lane.b32.xlu0 %v989, 4
  %v1073 = vpop.permute.xlu0 %1072
  %1074 = vrot.lane.b32.xlu0 %v990, 4
  %v1075 = vpop.permute.xlu0 %1074
  %1076 = vrot.lane.b32.xlu0 %v991, 4
  %v1077 = vpop.permute.xlu0 %1076
  %1078 = vrot.lane.b32.xlu0 %v992, 4
  %v1079 = vpop.permute.xlu0 %1078
  %1080 = vrot.lane.b32.xlu0 %v993, 4
  %v1081 = vpop.permute.xlu0 %1080
  %1082 = vrot.lane.b32.xlu0 %v994, 4
  %v1083 = vpop.permute.xlu0 %1082
  %1084 = vrot.lane.b32.xlu0 %v995, 4
  %v1085 = vpop.permute.xlu0 %1084
  %1086 = vrot.lane.b32.xlu0 %v996, 4
  %v1087 = vpop.permute.xlu0 %1086
  %1088 = vrot.lane.b32.xlu0 %v997, 4
  %v1089 = vpop.permute.xlu0 %1088
  %1090 = vrot.lane.b32.xlu0 %v998, 4
  %v1091 = vpop.permute.xlu0 %1090
  %1092 = vrot.lane.b32.xlu0 %v999, 4
  %v1093 = vpop.permute.xlu0 %1092
  %1094 = vrot.lane.b32.xlu0 %v1000, 4
  %v1095 = vpop.permute.xlu0 %1094
  %1096 = vrot.lane.b32.xlu0 %v1001, 4
  %v1097 = vpop.permute.xlu0 %1096
  %1098 = vrot.lane.b32.xlu0 %v1002, 4
  %v1099 = vpop.permute.xlu0 %1098
  %1100 = vrot.lane.b32.xlu0 %v1003, 4
  %v1101 = vpop.permute.xlu0 %1100
  %1102 = vrot.lane.b32.xlu0 %v1004, 4
  %v1103 = vpop.permute.xlu0 %1102
  %1104 = vrot.lane.b32.xlu0 %v1005, 4
  %v1105 = vpop.permute.xlu0 %1104
  %1106 = vrot.lane.b32.xlu0 %v1006, 4
  %v1107 = vpop.permute.xlu0 %1106
  %1108 = vrot.lane.b32.xlu0 %v1007, 4
  %v1109 = vpop.permute.xlu0 %1108
  %1110 = vrot.lane.b32.xlu0 %v1008, 4
  %v1111 = vpop.permute.xlu0 %1110
  %1112 = vrot.lane.b32.xlu0 %v1009, 4
  %v1113 = vpop.permute.xlu0 %1112
  %1114 = vrot.lane.b32.xlu0 %v1010, 4
  %v1115 = vpop.permute.xlu0 %1114
  %1116 = vrot.lane.b32.xlu0 %v1011, 4
  %v1117 = vpop.permute.xlu0 %1116
  %1118 = vrot.lane.b32.xlu0 %v1012, 4
  %v1119 = vpop.permute.xlu0 %1118
  %1120 = vrot.lane.b32.xlu0 %v1013, 4
  %v1121 = vpop.permute.xlu0 %1120
  %1122 = vrot.lane.b32.xlu0 %v1014, 4
  %v1123 = vpop.permute.xlu0 %1122
  %1124 = vrot.lane.b32.xlu0 %v1015, 4
  %v1125 = vpop.permute.xlu0 %1124
  %1126 = vrot.lane.b32.xlu0 %v1016, 4
  %v1127 = vpop.permute.xlu0 %1126
  %1128 = vrot.lane.b32.xlu0 %v1017, 4
  %v1129 = vpop.permute.xlu0 %1128
  %1130 = vrot.lane.b32.xlu0 %v1018, 4
  %v1131 = vpop.permute.xlu0 %1130
  %1132 = vrot.lane.b32.xlu0 %v1019, 4
  %v1133 = vpop.permute.xlu0 %1132
  %1134 = vrot.lane.b32.xlu0 %v1020, 4
  %v1135 = vpop.permute.xlu0 %1134
  %1136 = vrot.lane.b32.xlu0 %v1021, 4
  %v1137 = vpop.permute.xlu0 %1136
  %1138 = vrot.lane.b32.xlu0 %v1022, 4
  %v1139 = vpop.permute.xlu0 %1138
  %1140 = vrot.lane.b32.xlu0 %v1023, 4
  %v1141 = vpop.permute.xlu0 %1140
  %1142 = vrot.lane.b32.xlu0 %v1024, 4
  %v1143 = vpop.permute.xlu0 %1142
  %1144 = vrot.lane.b32.xlu0 %v1025, 4
  %v1145 = vpop.permute.xlu0 %1144
  %1146 = vrot.lane.b32.xlu0 %v1026, 4
  %v1147 = vpop.permute.xlu0 %1146
  %1148 = vrot.lane.b32.xlu0 %v1027, 4
  %v1149 = vpop.permute.xlu0 %1148
  %1150 = vrot.lane.b32.xlu0 %v1028, 4
  %v1151 = vpop.permute.xlu0 %1150
  %1152 = vrot.lane.b32.xlu0 %v1029, 4
  %v1153 = vpop.permute.xlu0 %1152
  %1154 = vrot.lane.b32.xlu0 %v1030, 4
  %v1155 = vpop.permute.xlu0 %1154
  %1156 = vrot.lane.b32.xlu0 %v1031, 4
  %v1157 = vpop.permute.xlu0 %1156
  %1158 = vrot.lane.b32.xlu0 %v1032, 4
  %v1159 = vpop.permute.xlu0 %1158
  %1160 = vrot.lane.b32.xlu0 %v1033, 4
  %v1161 = vpop.permute.xlu0 %1160
  %vm1226 = vcmask 60448
  %1227 = vst.msk [vmem:[#allocation4] sm:$0xf] %vm1226, %v1035
  %1228 = vst.msk [vmem:[#allocation4 + $0x4] sm:$0xf] %vm1226, %v1037
  %1229 = vst.msk [vmem:[#allocation4 + $0x8] sm:$0xf] %vm1226, %v1039
  %1230 = vst.msk [vmem:[#allocation4 + $0xc] sm:$0xf] %vm1226, %v1041
  %1231 = vst.msk [vmem:[#allocation4 + $0x10] sm:$0xf] %vm1226, %v1043
  %1232 = vst.msk [vmem:[#allocation4 + $0x14] sm:$0xf] %vm1226, %v1045
  %1233 = vst.msk [vmem:[#allocation4 + $0x18] sm:$0xf] %vm1226, %v1047
  %1234 = vst.msk [vmem:[#allocation4 + $0x1c] sm:$0xf] %vm1226, %v1049
  %1235 = vst.msk [vmem:[#allocation4 + $0x20] sm:$0xf] %vm1226, %v1051
  %1236 = vst.msk [vmem:[#allocation4 + $0x24] sm:$0xf] %vm1226, %v1053
  %1237 = vst.msk [vmem:[#allocation4 + $0x28] sm:$0xf] %vm1226, %v1055
  %1238 = vst.msk [vmem:[#allocation4 + $0x2c] sm:$0xf] %vm1226, %v1057
  %1239 = vst.msk [vmem:[#allocation4 + $0x30] sm:$0xf] %vm1226, %v1059
  %1240 = vst.msk [vmem:[#allocation4 + $0x34] sm:$0xf] %vm1226, %v1061
  %1241 = vst.msk [vmem:[#allocation4 + $0x38] sm:$0xf] %vm1226, %v1063
  %1242 = vst.msk [vmem:[#allocation4 + $0x3c] sm:$0xf] %vm1226, %v1065
  %1243 = vst.msk [vmem:[#allocation4 + $0x40] sm:$0xf] %vm1226, %v1067
  %1244 = vst.msk [vmem:[#allocation4 + $0x44] sm:$0xf] %vm1226, %v1069
  %1245 = vst.msk [vmem:[#allocation4 + $0x48] sm:$0xf] %vm1226, %v1071
  %1246 = vst.msk [vmem:[#allocation4 + $0x4c] sm:$0xf] %vm1226, %v1073
  %1247 = vst.msk [vmem:[#allocation4 + $0x50] sm:$0xf] %vm1226, %v1075
  %1248 = vst.msk [vmem:[#allocation4 + $0x54] sm:$0xf] %vm1226, %v1077
  %1249 = vst.msk [vmem:[#allocation4 + $0x58] sm:$0xf] %vm1226, %v1079
  %1250 = vst.msk [vmem:[#allocation4 + $0x5c] sm:$0xf] %vm1226, %v1081
  %1251 = vst.msk [vmem:[#allocation4 + $0x60] sm:$0xf] %vm1226, %v1083
  %1252 = vst.msk [vmem:[#allocation4 + $0x64] sm:$0xf] %vm1226, %v1085
  %1253 = vst.msk [vmem:[#allocation4 + $0x68] sm:$0xf] %vm1226, %v1087
  %1254 = vst.msk [vmem:[#allocation4 + $0x6c] sm:$0xf] %vm1226, %v1089
  %1255 = vst.msk [vmem:[#allocation4 + $0x70] sm:$0xf] %vm1226, %v1091
  %1256 = vst.msk [vmem:[#allocation4 + $0x74] sm:$0xf] %vm1226, %v1093
  %1257 = vst.msk [vmem:[#allocation4 + $0x78] sm:$0xf] %vm1226, %v1095
  %1258 = vst.msk [vmem:[#allocation4 + $0x7c] sm:$0xf] %vm1226, %v1097
  %1259 = vst.msk [vmem:[#allocation4 + $0x80] sm:$0xf] %vm1226, %v1099
  %1260 = vst.msk [vmem:[#allocation4 + $0x84] sm:$0xf] %vm1226, %v1101
  %1261 = vst.msk [vmem:[#allocation4 + $0x88] sm:$0xf] %vm1226, %v1103
  %1262 = vst.msk [vmem:[#allocation4 + $0x8c] sm:$0xf] %vm1226, %v1105
  %1263 = vst.msk [vmem:[#allocation4 + $0x90] sm:$0xf] %vm1226, %v1107
  %1264 = vst.msk [vmem:[#allocation4 + $0x94] sm:$0xf] %vm1226, %v1109
  %1265 = vst.msk [vmem:[#allocation4 + $0x98] sm:$0xf] %vm1226, %v1111
  %1266 = vst.msk [vmem:[#allocation4 + $0x9c] sm:$0xf] %vm1226, %v1113
  %1267 = vst.msk [vmem:[#allocation4 + $0xa0] sm:$0xf] %vm1226, %v1115
  %1268 = vst.msk [vmem:[#allocation4 + $0xa4] sm:$0xf] %vm1226, %v1117
  %1269 = vst.msk [vmem:[#allocation4 + $0xa8] sm:$0xf] %vm1226, %v1119
  %1270 = vst.msk [vmem:[#allocation4 + $0xac] sm:$0xf] %vm1226, %v1121
  %1271 = vst.msk [vmem:[#allocation4 + $0xb0] sm:$0xf] %vm1226, %v1123
  %1272 = vst.msk [vmem:[#allocation4 + $0xb4] sm:$0xf] %vm1226, %v1125
  %1273 = vst.msk [vmem:[#allocation4 + $0xb8] sm:$0xf] %vm1226, %v1127
  %1274 = vst.msk [vmem:[#allocation4 + $0xbc] sm:$0xf] %vm1226, %v1129
  %1275 = vst.msk [vmem:[#allocation4 + $0xc0] sm:$0xf] %vm1226, %v1131
  %1276 = vst.msk [vmem:[#allocation4 + $0xc4] sm:$0xf] %vm1226, %v1133
  %1277 = vst.msk [vmem:[#allocation4 + $0xc8] sm:$0xf] %vm1226, %v1135
  %1278 = vst.msk [vmem:[#allocation4 + $0xcc] sm:$0xf] %vm1226, %v1137
  %1279 = vst.msk [vmem:[#allocation4 + $0xd0] sm:$0xf] %vm1226, %v1139
  %1280 = vst.msk [vmem:[#allocation4 + $0xd4] sm:$0xf] %vm1226, %v1141
  %1281 = vst.msk [vmem:[#allocation4 + $0xd8] sm:$0xf] %vm1226, %v1143
  %1282 = vst.msk [vmem:[#allocation4 + $0xdc] sm:$0xf] %vm1226, %v1145
  %1283 = vst.msk [vmem:[#allocation4 + $0xe0] sm:$0xf] %vm1226, %v1147
  %1284 = vst.msk [vmem:[#allocation4 + $0xe4] sm:$0xf] %vm1226, %v1149
  %1285 = vst.msk [vmem:[#allocation4 + $0xe8] sm:$0xf] %vm1226, %v1151
  %1286 = vst.msk [vmem:[#allocation4 + $0xec] sm:$0xf] %vm1226, %v1153
  %1287 = vst.msk [vmem:[#allocation4 + $0xf0] sm:$0xf] %vm1226, %v1155
  %1288 = vst.msk [vmem:[#allocation4 + $0xf4] sm:$0xf] %vm1226, %v1157
  %1289 = vst.msk [vmem:[#allocation4 + $0xf8] sm:$0xf] %vm1226, %v1159
  %1290 = vst.msk [vmem:[#allocation4 + $0xfc] sm:$0xf] %vm1226, %v1161
  %v1291 = vld [vmem:[#allocation2 + $0x2] sm:$0xff]
  %v1292 = vld [vmem:[#allocation2 + $0xa] sm:$0xff]
  %v1293 = vld [vmem:[#allocation2 + $0x1a] sm:$0xff]
  %v1294 = vld [vmem:[#allocation2 + $0x22] sm:$0xff]
  %v1295 = vld [vmem:[#allocation2 + $0x32] sm:$0xff]
  %v1296 = vld [vmem:[#allocation2 + $0x3a] sm:$0xff]
  %v1297 = vld [vmem:[#allocation2 + $0x4a] sm:$0xff]
  %v1298 = vld [vmem:[#allocation2 + $0x52] sm:$0xff]
  %v1299 = vld [vmem:[#allocation2 + $0x62] sm:$0xff]
  %v1300 = vld [vmem:[#allocation2 + $0x6a] sm:$0xff]
  %v1301 = vld [vmem:[#allocation2 + $0x7a] sm:$0xff]
  %v1302 = vld [vmem:[#allocation2 + $0x82] sm:$0xff]
  %v1303 = vld [vmem:[#allocation2 + $0x92] sm:$0xff]
  %v1304 = vld [vmem:[#allocation2 + $0x9a] sm:$0xff]
  %v1305 = vld [vmem:[#allocation2 + $0xaa] sm:$0xff]
  %v1306 = vld [vmem:[#allocation2 + $0xb2] sm:$0xff]
  %v1307 = vld [vmem:[#allocation2 + $0xc2] sm:$0xff]
  %v1308 = vld [vmem:[#allocation2 + $0xca] sm:$0xff]
  %v1309 = vld [vmem:[#allocation2 + $0xda] sm:$0xff]
  %v1310 = vld [vmem:[#allocation2 + $0xe2] sm:$0xff]
  %v1311 = vld [vmem:[#allocation2 + $0xf2] sm:$0xff]
  %v1312 = vld [vmem:[#allocation2 + $0xfa] sm:$0xff]
  %v1313 = vld [vmem:[#allocation2 + $0x10a] sm:$0xff]
  %v1314 = vld [vmem:[#allocation2 + $0x112] sm:$0xff]
  %v1315 = vld [vmem:[#allocation2 + $0x122] sm:$0xff]
  %v1316 = vld [vmem:[#allocation2 + $0x12a] sm:$0xff]
  %v1317 = vld [vmem:[#allocation2 + $0x13a] sm:$0xff]
  %v1318 = vld [vmem:[#allocation2 + $0x142] sm:$0xff]
  %v1319 = vld [vmem:[#allocation2 + $0x152] sm:$0xff]
  %v1320 = vld [vmem:[#allocation2 + $0x15a] sm:$0xff]
  %v1321 = vld [vmem:[#allocation2 + $0x16a] sm:$0xff]
  %v1322 = vld [vmem:[#allocation2 + $0x172] sm:$0xff]
  %v1323 = vld [vmem:[#allocation2 + $0x1b2] sm:$0xff]
  %v1324 = vld [vmem:[#allocation2 + $0x1ba] sm:$0xff]
  %v1325 = vld [vmem:[#allocation2 + $0x1ca] sm:$0xff]
  %v1326 = vld [vmem:[#allocation2 + $0x1d2] sm:$0xff]
  %v1327 = vld [vmem:[#allocation2 + $0x1e2] sm:$0xff]
  %v1328 = vld [vmem:[#allocation2 + $0x1ea] sm:$0xff]
  %v1329 = vld [vmem:[#allocation2 + $0x1fa] sm:$0xff]
  %v1330 = vld [vmem:[#allocation2 + $0x202] sm:$0xff]
  %v1331 = vld [vmem:[#allocation2 + $0x212] sm:$0xff]
  %v1332 = vld [vmem:[#allocation2 + $0x21a] sm:$0xff]
  %v1333 = vld [vmem:[#allocation2 + $0x22a] sm:$0xff]
  %v1334 = vld [vmem:[#allocation2 + $0x232] sm:$0xff]
  %v1335 = vld [vmem:[#allocation2 + $0x242] sm:$0xff]
  %v1336 = vld [vmem:[#allocation2 + $0x24a] sm:$0xff]
  %v1337 = vld [vmem:[#allocation2 + $0x25a] sm:$0xff]
  %v1338 = vld [vmem:[#allocation2 + $0x262] sm:$0xff]
  %v1339 = vld [vmem:[#allocation2 + $0x272] sm:$0xff]
  %v1340 = vld [vmem:[#allocation2 + $0x27a] sm:$0xff]
  %v1341 = vld [vmem:[#allocation2 + $0x28a] sm:$0xff]
  %v1342 = vld [vmem:[#allocation2 + $0x292] sm:$0xff]
  %v1343 = vld [vmem:[#allocation2 + $0x2a2] sm:$0xff]
  %v1344 = vld [vmem:[#allocation2 + $0x2aa] sm:$0xff]
  %v1345 = vld [vmem:[#allocation2 + $0x2ba] sm:$0xff]
  %v1346 = vld [vmem:[#allocation2 + $0x2c2] sm:$0xff]
  %v1347 = vld [vmem:[#allocation2 + $0x2d2] sm:$0xff]
  %v1348 = vld [vmem:[#allocation2 + $0x2da] sm:$0xff]
  %v1349 = vld [vmem:[#allocation2 + $0x2ea] sm:$0xff]
  %v1350 = vld [vmem:[#allocation2 + $0x2f2] sm:$0xff]
  %v1351 = vld [vmem:[#allocation2 + $0x302] sm:$0xff]
  %v1352 = vld [vmem:[#allocation2 + $0x30a] sm:$0xff]
  %v1353 = vld [vmem:[#allocation2 + $0x31a] sm:$0xff]
  %v1354 = vld [vmem:[#allocation2 + $0x322] sm:$0xff]
  %v1355 = vpack.c.bf16 %v1292, %v1291
  %v1356 = vpack.c.bf16 %v1294, %v1293
  %v1357 = vpack.c.bf16 %v1296, %v1295
  %v1358 = vpack.c.bf16 %v1298, %v1297
  %v1359 = vpack.c.bf16 %v1300, %v1299
  %v1360 = vpack.c.bf16 %v1302, %v1301
  %v1361 = vpack.c.bf16 %v1304, %v1303
  %v1362 = vpack.c.bf16 %v1306, %v1305
  %v1363 = vpack.c.bf16 %v1308, %v1307
  %v1364 = vpack.c.bf16 %v1310, %v1309
  %v1365 = vpack.c.bf16 %v1312, %v1311
  %v1366 = vpack.c.bf16 %v1314, %v1313
  %v1367 = vpack.c.bf16 %v1316, %v1315
  %v1368 = vpack.c.bf16 %v1318, %v1317
  %v1369 = vpack.c.bf16 %v1320, %v1319
  %v1370 = vpack.c.bf16 %v1322, %v1321
  %v1371 = vpack.c.bf16 %v1324, %v1323
  %v1372 = vpack.c.bf16 %v1326, %v1325
  %v1373 = vpack.c.bf16 %v1328, %v1327
  %v1374 = vpack.c.bf16 %v1330, %v1329
  %v1375 = vpack.c.bf16 %v1332, %v1331
  %v1376 = vpack.c.bf16 %v1334, %v1333
  %v1377 = vpack.c.bf16 %v1336, %v1335
  %v1378 = vpack.c.bf16 %v1338, %v1337
  %v1379 = vpack.c.bf16 %v1340, %v1339
  %v1380 = vpack.c.bf16 %v1342, %v1341
  %v1381 = vpack.c.bf16 %v1344, %v1343
  %v1382 = vpack.c.bf16 %v1346, %v1345
  %v1383 = vpack.c.bf16 %v1348, %v1347
  %v1384 = vpack.c.bf16 %v1350, %v1349
  %v1385 = vpack.c.bf16 %v1352, %v1351
  %v1386 = vpack.c.bf16 %v1354, %v1353
  %v1419 = vunpack.c.l.b16 %v1355
  %v1420 = vunpack.c.h.b16 %v1355
  %v1421 = vunpack.c.l.b16 %v1356
  %v1422 = vunpack.c.h.b16 %v1356
  %v1423 = vunpack.c.l.b16 %v1357
  %v1424 = vunpack.c.h.b16 %v1357
  %v1425 = vunpack.c.l.b16 %v1358
  %v1426 = vunpack.c.h.b16 %v1358
  %v1427 = vunpack.c.l.b16 %v1359
  %v1428 = vunpack.c.h.b16 %v1359
  %v1429 = vunpack.c.l.b16 %v1360
  %v1430 = vunpack.c.h.b16 %v1360
  %v1431 = vunpack.c.l.b16 %v1361
  %v1432 = vunpack.c.h.b16 %v1361
  %v1433 = vunpack.c.l.b16 %v1362
  %v1434 = vunpack.c.h.b16 %v1362
  %v1435 = vunpack.c.l.b16 %v1363
  %v1436 = vunpack.c.h.b16 %v1363
  %v1437 = vunpack.c.l.b16 %v1364
  %v1438 = vunpack.c.h.b16 %v1364
  %v1439 = vunpack.c.l.b16 %v1365
  %v1440 = vunpack.c.h.b16 %v1365
  %v1441 = vunpack.c.l.b16 %v1366
  %v1442 = vunpack.c.h.b16 %v1366
  %v1443 = vunpack.c.l.b16 %v1367
  %v1444 = vunpack.c.h.b16 %v1367
  %v1445 = vunpack.c.l.b16 %v1368
  %v1446 = vunpack.c.h.b16 %v1368
  %v1447 = vunpack.c.l.b16 %v1369
  %v1448 = vunpack.c.h.b16 %v1369
  %v1449 = vunpack.c.l.b16 %v1370
  %v1450 = vunpack.c.h.b16 %v1370
  %v1451 = vunpack.c.l.b16 %v1371
  %v1452 = vunpack.c.h.b16 %v1371
  %v1453 = vunpack.c.l.b16 %v1372
  %v1454 = vunpack.c.h.b16 %v1372
  %v1455 = vunpack.c.l.b16 %v1373
  %v1456 = vunpack.c.h.b16 %v1373
  %v1457 = vunpack.c.l.b16 %v1374
  %v1458 = vunpack.c.h.b16 %v1374
  %v1459 = vunpack.c.l.b16 %v1375
  %v1460 = vunpack.c.h.b16 %v1375
  %v1461 = vunpack.c.l.b16 %v1376
  %v1462 = vunpack.c.h.b16 %v1376
  %v1463 = vunpack.c.l.b16 %v1377
  %v1464 = vunpack.c.h.b16 %v1377
  %v1465 = vunpack.c.l.b16 %v1378
  %v1466 = vunpack.c.h.b16 %v1378
  %v1467 = vunpack.c.l.b16 %v1379
  %v1468 = vunpack.c.h.b16 %v1379
  %v1469 = vunpack.c.l.b16 %v1380
  %v1470 = vunpack.c.h.b16 %v1380
  %v1471 = vunpack.c.l.b16 %v1381
  %v1472 = vunpack.c.h.b16 %v1381
  %v1473 = vunpack.c.l.b16 %v1382
  %v1474 = vunpack.c.h.b16 %v1382
  %v1475 = vunpack.c.l.b16 %v1383
  %v1476 = vunpack.c.h.b16 %v1383
  %v1477 = vunpack.c.l.b16 %v1384
  %v1478 = vunpack.c.h.b16 %v1384
  %v1479 = vunpack.c.l.b16 %v1385
  %v1480 = vunpack.c.h.b16 %v1385
  %v1481 = vunpack.c.l.b16 %v1386
  %v1482 = vunpack.c.h.b16 %v1386
  %v1483 = vpack.c.b16 %v1419, %v1419
  %v1484 = vpack.c.b16 %v1420, %v1420
  %v1485 = vpack.c.b16 %v1421, %v1421
  %v1486 = vpack.c.b16 %v1422, %v1422
  %v1487 = vpack.c.b16 %v1423, %v1423
  %v1488 = vpack.c.b16 %v1424, %v1424
  %v1489 = vpack.c.b16 %v1425, %v1425
  %v1490 = vpack.c.b16 %v1426, %v1426
  %v1491 = vpack.c.b16 %v1427, %v1427
  %v1492 = vpack.c.b16 %v1428, %v1428
  %v1493 = vpack.c.b16 %v1429, %v1429
  %v1494 = vpack.c.b16 %v1430, %v1430
  %v1495 = vpack.c.b16 %v1431, %v1431
  %v1496 = vpack.c.b16 %v1432, %v1432
  %v1497 = vpack.c.b16 %v1433, %v1433
  %v1498 = vpack.c.b16 %v1434, %v1434
  %v1499 = vpack.c.b16 %v1435, %v1435
  %v1500 = vpack.c.b16 %v1436, %v1436
  %v1501 = vpack.c.b16 %v1437, %v1437
  %v1502 = vpack.c.b16 %v1438, %v1438
  %v1503 = vpack.c.b16 %v1439, %v1439
  %v1504 = vpack.c.b16 %v1440, %v1440
  %v1505 = vpack.c.b16 %v1441, %v1441
  %v1506 = vpack.c.b16 %v1442, %v1442
  %v1507 = vpack.c.b16 %v1443, %v1443
  %v1508 = vpack.c.b16 %v1444, %v1444
  %v1509 = vpack.c.b16 %v1445, %v1445
  %v1510 = vpack.c.b16 %v1446, %v1446
  %v1511 = vpack.c.b16 %v1447, %v1447
  %v1512 = vpack.c.b16 %v1448, %v1448
  %v1513 = vpack.c.b16 %v1449, %v1449
  %v1514 = vpack.c.b16 %v1450, %v1450
  %v1515 = vpack.c.b16 %v1451, %v1451
  %v1516 = vpack.c.b16 %v1452, %v1452
  %v1517 = vpack.c.b16 %v1453, %v1453
  %v1518 = vpack.c.b16 %v1454, %v1454
  %v1519 = vpack.c.b16 %v1455, %v1455
  %v1520 = vpack.c.b16 %v1456, %v1456
  %v1521 = vpack.c.b16 %v1457, %v1457
  %v1522 = vpack.c.b16 %v1458, %v1458
  %v1523 = vpack.c.b16 %v1459, %v1459
  %v1524 = vpack.c.b16 %v1460, %v1460
  %v1525 = vpack.c.b16 %v1461, %v1461
  %v1526 = vpack.c.b16 %v1462, %v1462
  %v1527 = vpack.c.b16 %v1463, %v1463
  %v1528 = vpack.c.b16 %v1464, %v1464
  %v1529 = vpack.c.b16 %v1465, %v1465
  %v1530 = vpack.c.b16 %v1466, %v1466
  %v1531 = vpack.c.b16 %v1467, %v1467
  %v1532 = vpack.c.b16 %v1468, %v1468
  %v1533 = vpack.c.b16 %v1469, %v1469
  %v1534 = vpack.c.b16 %v1470, %v1470
  %v1535 = vpack.c.b16 %v1471, %v1471
  %v1536 = vpack.c.b16 %v1472, %v1472
  %v1537 = vpack.c.b16 %v1473, %v1473
  %v1538 = vpack.c.b16 %v1474, %v1474
  %v1539 = vpack.c.b16 %v1475, %v1475
  %v1540 = vpack.c.b16 %v1476, %v1476
  %v1541 = vpack.c.b16 %v1477, %v1477
  %v1542 = vpack.c.b16 %v1478, %v1478
  %v1543 = vpack.c.b16 %v1479, %v1479
  %v1544 = vpack.c.b16 %v1480, %v1480
  %v1545 = vpack.c.b16 %v1481, %v1481
  %v1546 = vpack.c.b16 %v1482, %v1482
  %1547 = vrot.lane.b32.xlu0 %v1483, 8
  %v1548 = vpop.permute.xlu0 %1547
  %1549 = vrot.lane.b32.xlu0 %v1484, 8
  %v1550 = vpop.permute.xlu0 %1549
  %1551 = vrot.lane.b32.xlu0 %v1485, 8
  %v1552 = vpop.permute.xlu0 %1551
  %1553 = vrot.lane.b32.xlu0 %v1486, 8
  %v1554 = vpop.permute.xlu0 %1553
  %1555 = vrot.lane.b32.xlu0 %v1487, 8
  %v1556 = vpop.permute.xlu0 %1555
  %1557 = vrot.lane.b32.xlu0 %v1488, 8
  %v1558 = vpop.permute.xlu0 %1557
  %1559 = vrot.lane.b32.xlu0 %v1489, 8
  %v1560 = vpop.permute.xlu0 %1559
  %1561 = vrot.lane.b32.xlu0 %v1490, 8
  %v1562 = vpop.permute.xlu0 %1561
  %1563 = vrot.lane.b32.xlu0 %v1491, 8
  %v1564 = vpop.permute.xlu0 %1563
  %1565 = vrot.lane.b32.xlu0 %v1492, 8
  %v1566 = vpop.permute.xlu0 %1565
  %1567 = vrot.lane.b32.xlu0 %v1493, 8
  %v1568 = vpop.permute.xlu0 %1567
  %1569 = vrot.lane.b32.xlu0 %v1494, 8
  %v1570 = vpop.permute.xlu0 %1569
  %1571 = vrot.lane.b32.xlu0 %v1495, 8
  %v1572 = vpop.permute.xlu0 %1571
  %1573 = vrot.lane.b32.xlu0 %v1496, 8
  %v1574 = vpop.permute.xlu0 %1573
  %1575 = vrot.lane.b32.xlu0 %v1497, 8
  %v1576 = vpop.permute.xlu0 %1575
  %1577 = vrot.lane.b32.xlu0 %v1498, 8
  %v1578 = vpop.permute.xlu0 %1577
  %1579 = vrot.lane.b32.xlu0 %v1499, 8
  %v1580 = vpop.permute.xlu0 %1579
  %1581 = vrot.lane.b32.xlu0 %v1500, 8
  %v1582 = vpop.permute.xlu0 %1581
  %1583 = vrot.lane.b32.xlu0 %v1501, 8
  %v1584 = vpop.permute.xlu0 %1583
  %1585 = vrot.lane.b32.xlu0 %v1502, 8
  %v1586 = vpop.permute.xlu0 %1585
  %1587 = vrot.lane.b32.xlu0 %v1503, 8
  %v1588 = vpop.permute.xlu0 %1587
  %1589 = vrot.lane.b32.xlu0 %v1504, 8
  %v1590 = vpop.permute.xlu0 %1589
  %1591 = vrot.lane.b32.xlu0 %v1505, 8
  %v1592 = vpop.permute.xlu0 %1591
  %1593 = vrot.lane.b32.xlu0 %v1506, 8
  %v1594 = vpop.permute.xlu0 %1593
  %1595 = vrot.lane.b32.xlu0 %v1507, 8
  %v1596 = vpop.permute.xlu0 %1595
  %1597 = vrot.lane.b32.xlu0 %v1508, 8
  %v1598 = vpop.permute.xlu0 %1597
  %1599 = vrot.lane.b32.xlu0 %v1509, 8
  %v1600 = vpop.permute.xlu0 %1599
  %1601 = vrot.lane.b32.xlu0 %v1510, 8
  %v1602 = vpop.permute.xlu0 %1601
  %1603 = vrot.lane.b32.xlu0 %v1511, 8
  %v1604 = vpop.permute.xlu0 %1603
  %1605 = vrot.lane.b32.xlu0 %v1512, 8
  %v1606 = vpop.permute.xlu0 %1605
  %1607 = vrot.lane.b32.xlu0 %v1513, 8
  %v1608 = vpop.permute.xlu0 %1607
  %1609 = vrot.lane.b32.xlu0 %v1514, 8
  %v1610 = vpop.permute.xlu0 %1609
  %1611 = vrot.lane.b32.xlu0 %v1515, 8
  %v1612 = vpop.permute.xlu0 %1611
  %1613 = vrot.lane.b32.xlu0 %v1516, 8
  %v1614 = vpop.permute.xlu0 %1613
  %1615 = vrot.lane.b32.xlu0 %v1517, 8
  %v1616 = vpop.permute.xlu0 %1615
  %1617 = vrot.lane.b32.xlu0 %v1518, 8
  %v1618 = vpop.permute.xlu0 %1617
  %1619 = vrot.lane.b32.xlu0 %v1519, 8
  %v1620 = vpop.permute.xlu0 %1619
  %1621 = vrot.lane.b32.xlu0 %v1520, 8
  %v1622 = vpop.permute.xlu0 %1621
  %1623 = vrot.lane.b32.xlu0 %v1521, 8
  %v1624 = vpop.permute.xlu0 %1623
  %1625 = vrot.lane.b32.xlu0 %v1522, 8
  %v1626 = vpop.permute.xlu0 %1625
  %1627 = vrot.lane.b32.xlu0 %v1523, 8
  %v1628 = vpop.permute.xlu0 %1627
  %1629 = vrot.lane.b32.xlu0 %v1524, 8
  %v1630 = vpop.permute.xlu0 %1629
  %1631 = vrot.lane.b32.xlu0 %v1525, 8
  %v1632 = vpop.permute.xlu0 %1631
  %1633 = vrot.lane.b32.xlu0 %v1526, 8
  %v1634 = vpop.permute.xlu0 %1633
  %1635 = vrot.lane.b32.xlu0 %v1527, 8
  %v1636 = vpop.permute.xlu0 %1635
  %1637 = vrot.lane.b32.xlu0 %v1528, 8
  %v1638 = vpop.permute.xlu0 %1637
  %1639 = vrot.lane.b32.xlu0 %v1529, 8
  %v1640 = vpop.permute.xlu0 %1639
  %1641 = vrot.lane.b32.xlu0 %v1530, 8
  %v1642 = vpop.permute.xlu0 %1641
  %1643 = vrot.lane.b32.xlu0 %v1531, 8
  %v1644 = vpop.permute.xlu0 %1643
  %1645 = vrot.lane.b32.xlu0 %v1532, 8
  %v1646 = vpop.permute.xlu0 %1645
  %1647 = vrot.lane.b32.xlu0 %v1533, 8
  %v1648 = vpop.permute.xlu0 %1647
  %1649 = vrot.lane.b32.xlu0 %v1534, 8
  %v1650 = vpop.permute.xlu0 %1649
  %1651 = vrot.lane.b32.xlu0 %v1535, 8
  %v1652 = vpop.permute.xlu0 %1651
  %1653 = vrot.lane.b32.xlu0 %v1536, 8
  %v1654 = vpop.permute.xlu0 %1653
  %1655 = vrot.lane.b32.xlu0 %v1537, 8
  %v1656 = vpop.permute.xlu0 %1655
  %1657 = vrot.lane.b32.xlu0 %v1538, 8
  %v1658 = vpop.permute.xlu0 %1657
  %1659 = vrot.lane.b32.xlu0 %v1539, 8
  %v1660 = vpop.permute.xlu0 %1659
  %1661 = vrot.lane.b32.xlu0 %v1540, 8
  %v1662 = vpop.permute.xlu0 %1661
  %1663 = vrot.lane.b32.xlu0 %v1541, 8
  %v1664 = vpop.permute.xlu0 %1663
  %1665 = vrot.lane.b32.xlu0 %v1542, 8
  %v1666 = vpop.permute.xlu0 %1665
  %1667 = vrot.lane.b32.xlu0 %v1543, 8
  %v1668 = vpop.permute.xlu0 %1667
  %1669 = vrot.lane.b32.xlu0 %v1544, 8
  %v1670 = vpop.permute.xlu0 %1669
  %1671 = vrot.lane.b32.xlu0 %v1545, 8
  %v1672 = vpop.permute.xlu0 %1671
  %1673 = vrot.lane.b32.xlu0 %v1546, 8
  %v1674 = vpop.permute.xlu0 %1673
  %vm1739 = vcmask 93248
  %1740 = vst.msk [vmem:[#allocation4] sm:$0xf] %vm1739, %v1548
  %1741 = vst.msk [vmem:[#allocation4 + $0x4] sm:$0xf] %vm1739, %v1550
  %1742 = vst.msk [vmem:[#allocation4 + $0x8] sm:$0xf] %vm1739, %v1552
  %1743 = vst.msk [vmem:[#allocation4 + $0xc] sm:$0xf] %vm1739, %v1554
  %1744 = vst.msk [vmem:[#allocation4 + $0x10] sm:$0xf] %vm1739, %v1556
  %1745 = vst.msk [vmem:[#allocation4 + $0x14] sm:$0xf] %vm1739, %v1558
  %1746 = vst.msk [vmem:[#allocation4 + $0x18] sm:$0xf] %vm1739, %v1560
  %1747 = vst.msk [vmem:[#allocation4 + $0x1c] sm:$0xf] %vm1739, %v1562
  %1748 = vst.msk [vmem:[#allocation4 + $0x20] sm:$0xf] %vm1739, %v1564
  %1749 = vst.msk [vmem:[#allocation4 + $0x24] sm:$0xf] %vm1739, %v1566
  %1750 = vst.msk [vmem:[#allocation4 + $0x28] sm:$0xf] %vm1739, %v1568
  %1751 = vst.msk [vmem:[#allocation4 + $0x2c] sm:$0xf] %vm1739, %v1570
  %1752 = vst.msk [vmem:[#allocation4 + $0x30] sm:$0xf] %vm1739, %v1572
  %1753 = vst.msk [vmem:[#allocation4 + $0x34] sm:$0xf] %vm1739, %v1574
  %1754 = vst.msk [vmem:[#allocation4 + $0x38] sm:$0xf] %vm1739, %v1576
  %1755 = vst.msk [vmem:[#allocation4 + $0x3c] sm:$0xf] %vm1739, %v1578
  %1756 = vst.msk [vmem:[#allocation4 + $0x40] sm:$0xf] %vm1739, %v1580
  %1757 = vst.msk [vmem:[#allocation4 + $0x44] sm:$0xf] %vm1739, %v1582
  %1758 = vst.msk [vmem:[#allocation4 + $0x48] sm:$0xf] %vm1739, %v1584
  %1759 = vst.msk [vmem:[#allocation4 + $0x4c] sm:$0xf] %vm1739, %v1586
  %1760 = vst.msk [vmem:[#allocation4 + $0x50] sm:$0xf] %vm1739, %v1588
  %1761 = vst.msk [vmem:[#allocation4 + $0x54] sm:$0xf] %vm1739, %v1590
  %1762 = vst.msk [vmem:[#allocation4 + $0x58] sm:$0xf] %vm1739, %v1592
  %1763 = vst.msk [vmem:[#allocation4 + $0x5c] sm:$0xf] %vm1739, %v1594
  %1764 = vst.msk [vmem:[#allocation4 + $0x60] sm:$0xf] %vm1739, %v1596
  %1765 = vst.msk [vmem:[#allocation4 + $0x64] sm:$0xf] %vm1739, %v1598
  %1766 = vst.msk [vmem:[#allocation4 + $0x68] sm:$0xf] %vm1739, %v1600
  %1767 = vst.msk [vmem:[#allocation4 + $0x6c] sm:$0xf] %vm1739, %v1602
  %1768 = vst.msk [vmem:[#allocation4 + $0x70] sm:$0xf] %vm1739, %v1604
  %1769 = vst.msk [vmem:[#allocation4 + $0x74] sm:$0xf] %vm1739, %v1606
  %1770 = vst.msk [vmem:[#allocation4 + $0x78] sm:$0xf] %vm1739, %v1608
  %1771 = vst.msk [vmem:[#allocation4 + $0x7c] sm:$0xf] %vm1739, %v1610
  %1772 = vst.msk [vmem:[#allocation4 + $0x80] sm:$0xf] %vm1739, %v1612
  %1773 = vst.msk [vmem:[#allocation4 + $0x84] sm:$0xf] %vm1739, %v1614
  %1774 = vst.msk [vmem:[#allocation4 + $0x88] sm:$0xf] %vm1739, %v1616
  %1775 = vst.msk [vmem:[#allocation4 + $0x8c] sm:$0xf] %vm1739, %v1618
  %1776 = vst.msk [vmem:[#allocation4 + $0x90] sm:$0xf] %vm1739, %v1620
  %1777 = vst.msk [vmem:[#allocation4 + $0x94] sm:$0xf] %vm1739, %v1622
  %1778 = vst.msk [vmem:[#allocation4 + $0x98] sm:$0xf] %vm1739, %v1624
  %1779 = vst.msk [vmem:[#allocation4 + $0x9c] sm:$0xf] %vm1739, %v1626
  %1780 = vst.msk [vmem:[#allocation4 + $0xa0] sm:$0xf] %vm1739, %v1628
  %1781 = vst.msk [vmem:[#allocation4 + $0xa4] sm:$0xf] %vm1739, %v1630
  %1782 = vst.msk [vmem:[#allocation4 + $0xa8] sm:$0xf] %vm1739, %v1632
  %1783 = vst.msk [vmem:[#allocation4 + $0xac] sm:$0xf] %vm1739, %v1634
  %1784 = vst.msk [vmem:[#allocation4 + $0xb0] sm:$0xf] %vm1739, %v1636
  %1785 = vst.msk [vmem:[#allocation4 + $0xb4] sm:$0xf] %vm1739, %v1638
  %1786 = vst.msk [vmem:[#allocation4 + $0xb8] sm:$0xf] %vm1739, %v1640
  %1787 = vst.msk [vmem:[#allocation4 + $0xbc] sm:$0xf] %vm1739, %v1642
  %1788 = vst.msk [vmem:[#allocation4 + $0xc0] sm:$0xf] %vm1739, %v1644
  %1789 = vst.msk [vmem:[#allocation4 + $0xc4] sm:$0xf] %vm1739, %v1646
  %1790 = vst.msk [vmem:[#allocation4 + $0xc8] sm:$0xf] %vm1739, %v1648
  %1791 = vst.msk [vmem:[#allocation4 + $0xcc] sm:$0xf] %vm1739, %v1650
  %1792 = vst.msk [vmem:[#allocation4 + $0xd0] sm:$0xf] %vm1739, %v1652
  %1793 = vst.msk [vmem:[#allocation4 + $0xd4] sm:$0xf] %vm1739, %v1654
  %1794 = vst.msk [vmem:[#allocation4 + $0xd8] sm:$0xf] %vm1739, %v1656
  %1795 = vst.msk [vmem:[#allocation4 + $0xdc] sm:$0xf] %vm1739, %v1658
  %1796 = vst.msk [vmem:[#allocation4 + $0xe0] sm:$0xf] %vm1739, %v1660
  %1797 = vst.msk [vmem:[#allocation4 + $0xe4] sm:$0xf] %vm1739, %v1662
  %1798 = vst.msk [vmem:[#allocation4 + $0xe8] sm:$0xf] %vm1739, %v1664
  %1799 = vst.msk [vmem:[#allocation4 + $0xec] sm:$0xf] %vm1739, %v1666
  %1800 = vst.msk [vmem:[#allocation4 + $0xf0] sm:$0xf] %vm1739, %v1668
  %1801 = vst.msk [vmem:[#allocation4 + $0xf4] sm:$0xf] %vm1739, %v1670
  %1802 = vst.msk [vmem:[#allocation4 + $0xf8] sm:$0xf] %vm1739, %v1672
  %1803 = vst.msk [vmem:[#allocation4 + $0xfc] sm:$0xf] %vm1739, %v1674
  %v1804 = vld [vmem:[%s328] sm:$0xff]
  %v1805 = vld [vmem:[%s328 + $0x8] sm:$0xff]
  %v1806 = vld [vmem:[%s328 + $0x18] sm:$0xff]
  %v1807 = vld [vmem:[%s328 + $0x20] sm:$0xff]
  %v1808 = vld [vmem:[%s328 + $0x30] sm:$0xff]
  %v1809 = vld [vmem:[%s328 + $0x38] sm:$0xff]
  %v1810 = vld [vmem:[%s328 + $0x48] sm:$0xff]
  %v1811 = vld [vmem:[%s328 + $0x50] sm:$0xff]
  %v1812 = vld [vmem:[%s328 + $0x60] sm:$0xff]
  %v1813 = vld [vmem:[%s328 + $0x68] sm:$0xff]
  %v1814 = vld [vmem:[%s328 + $0x78] sm:$0xff]
  %v1815 = vld [vmem:[%s328 + $0x80] sm:$0xff]
  %v1816 = vld [vmem:[%s328 + $0x90] sm:$0xff]
  %v1817 = vld [vmem:[%s328 + $0x98] sm:$0xff]
  %v1818 = vld [vmem:[%s328 + $0xa8] sm:$0xff]
  %v1819 = vld [vmem:[%s328 + $0xb0] sm:$0xff]
  %v1820 = vld [vmem:[%s328 + $0xc0] sm:$0xff]
  %v1821 = vld [vmem:[%s328 + $0xc8] sm:$0xff]
  %v1822 = vld [vmem:[%s328 + $0xd8] sm:$0xff]
  %v1823 = vld [vmem:[%s328 + $0xe0] sm:$0xff]
  %v1824 = vld [vmem:[%s328 + $0xf0] sm:$0xff]
  %v1825 = vld [vmem:[%s328 + $0xf8] sm:$0xff]
  %v1826 = vld [vmem:[%s328 + $0x108] sm:$0xff]
  %v1827 = vld [vmem:[%s328 + $0x110] sm:$0xff]
  %v1828 = vld [vmem:[%s328 + $0x120] sm:$0xff]
  %v1829 = vld [vmem:[%s328 + $0x128] sm:$0xff]
  %v1830 = vld [vmem:[%s328 + $0x138] sm:$0xff]
  %v1831 = vld [vmem:[%s328 + $0x140] sm:$0xff]
  %v1832 = vld [vmem:[%s328 + $0x150] sm:$0xff]
  %v1833 = vld [vmem:[%s328 + $0x158] sm:$0xff]
  %v1834 = vld [vmem:[%s328 + $0x168] sm:$0xff]
  %v1835 = vld [vmem:[%s328 + $0x170] sm:$0xff]
  %v1836 = vld [vmem:[%s328 + $0x1b0] sm:$0xff]
  %v1837 = vld [vmem:[%s328 + $0x1b8] sm:$0xff]
  %v1838 = vld [vmem:[%s328 + $0x1c8] sm:$0xff]
  %v1839 = vld [vmem:[%s328 + $0x1d0] sm:$0xff]
  %v1840 = vld [vmem:[%s328 + $0x1e0] sm:$0xff]
  %v1841 = vld [vmem:[%s328 + $0x1e8] sm:$0xff]
  %v1842 = vld [vmem:[%s328 + $0x1f8] sm:$0xff]
  %v1843 = vld [vmem:[%s328 + $0x200] sm:$0xff]
  %v1844 = vld [vmem:[%s328 + $0x210] sm:$0xff]
  %v1845 = vld [vmem:[%s328 + $0x218] sm:$0xff]
  %v1846 = vld [vmem:[%s328 + $0x228] sm:$0xff]
  %v1847 = vld [vmem:[%s328 + $0x230] sm:$0xff]
  %v1848 = vld [vmem:[%s328 + $0x240] sm:$0xff]
  %v1849 = vld [vmem:[%s328 + $0x248] sm:$0xff]
  %v1850 = vld [vmem:[%s328 + $0x258] sm:$0xff]
  %v1851 = vld [vmem:[%s328 + $0x260] sm:$0xff]
  %v1852 = vld [vmem:[%s328 + $0x270] sm:$0xff]
  %v1853 = vld [vmem:[%s328 + $0x278] sm:$0xff]
  %v1854 = vld [vmem:[%s328 + $0x288] sm:$0xff]
  %v1855 = vld [vmem:[%s328 + $0x290] sm:$0xff]
  %v1856 = vld [vmem:[%s328 + $0x2a0] sm:$0xff]
  %v1857 = vld [vmem:[%s328 + $0x2a8] sm:$0xff]
  %v1858 = vld [vmem:[%s328 + $0x2b8] sm:$0xff]
  %v1859 = vld [vmem:[%s328 + $0x2c0] sm:$0xff]
  %v1860 = vld [vmem:[%s328 + $0x2d0] sm:$0xff]
  %v1861 = vld [vmem:[%s328 + $0x2d8] sm:$0xff]
  %v1862 = vld [vmem:[%s328 + $0x2e8] sm:$0xff]
  %v1863 = vld [vmem:[%s328 + $0x2f0] sm:$0xff]
  %v1864 = vld [vmem:[%s328 + $0x300] sm:$0xff]
  %v1865 = vld [vmem:[%s328 + $0x308] sm:$0xff]
  %v1866 = vld [vmem:[%s328 + $0x318] sm:$0xff]
  %v1867 = vld [vmem:[%s328 + $0x320] sm:$0xff]
  %v1868 = vpack.c.bf16 %v1805, %v1804
  %v1869 = vpack.c.bf16 %v1807, %v1806
  %v1870 = vpack.c.bf16 %v1809, %v1808
  %v1871 = vpack.c.bf16 %v1811, %v1810
  %v1872 = vpack.c.bf16 %v1813, %v1812
  %v1873 = vpack.c.bf16 %v1815, %v1814
  %v1874 = vpack.c.bf16 %v1817, %v1816
  %v1875 = vpack.c.bf16 %v1819, %v1818
  %v1876 = vpack.c.bf16 %v1821, %v1820
  %v1877 = vpack.c.bf16 %v1823, %v1822
  %v1878 = vpack.c.bf16 %v1825, %v1824
  %v1879 = vpack.c.bf16 %v1827, %v1826
  %v1880 = vpack.c.bf16 %v1829, %v1828
  %v1881 = vpack.c.bf16 %v1831, %v1830
  %v1882 = vpack.c.bf16 %v1833, %v1832
  %v1883 = vpack.c.bf16 %v1835, %v1834
  %v1884 = vpack.c.bf16 %v1837, %v1836
  %v1885 = vpack.c.bf16 %v1839, %v1838
  %v1886 = vpack.c.bf16 %v1841, %v1840
  %v1887 = vpack.c.bf16 %v1843, %v1842
  %v1888 = vpack.c.bf16 %v1845, %v1844
  %v1889 = vpack.c.bf16 %v1847, %v1846
  %v1890 = vpack.c.bf16 %v1849, %v1848
  %v1891 = vpack.c.bf16 %v1851, %v1850
  %v1892 = vpack.c.bf16 %v1853, %v1852
  %v1893 = vpack.c.bf16 %v1855, %v1854
  %v1894 = vpack.c.bf16 %v1857, %v1856
  %v1895 = vpack.c.bf16 %v1859, %v1858
  %v1896 = vpack.c.bf16 %v1861, %v1860
  %v1897 = vpack.c.bf16 %v1863, %v1862
  %v1898 = vpack.c.bf16 %v1865, %v1864
  %v1899 = vpack.c.bf16 %v1867, %v1866
  %v1932 = vunpack.c.l.b16 %v1868
  %v1933 = vunpack.c.h.b16 %v1868
  %v1934 = vunpack.c.l.b16 %v1869
  %v1935 = vunpack.c.h.b16 %v1869
  %v1936 = vunpack.c.l.b16 %v1870
  %v1937 = vunpack.c.h.b16 %v1870
  %v1938 = vunpack.c.l.b16 %v1871
  %v1939 = vunpack.c.h.b16 %v1871
  %v1940 = vunpack.c.l.b16 %v1872
  %v1941 = vunpack.c.h.b16 %v1872
  %v1942 = vunpack.c.l.b16 %v1873
  %v1943 = vunpack.c.h.b16 %v1873
  %v1944 = vunpack.c.l.b16 %v1874
  %v1945 = vunpack.c.h.b16 %v1874
  %v1946 = vunpack.c.l.b16 %v1875
  %v1947 = vunpack.c.h.b16 %v1875
  %v1948 = vunpack.c.l.b16 %v1876
  %v1949 = vunpack.c.h.b16 %v1876
  %v1950 = vunpack.c.l.b16 %v1877
  %v1951 = vunpack.c.h.b16 %v1877
  %v1952 = vunpack.c.l.b16 %v1878
  %v1953 = vunpack.c.h.b16 %v1878
  %v1954 = vunpack.c.l.b16 %v1879
  %v1955 = vunpack.c.h.b16 %v1879
  %v1956 = vunpack.c.l.b16 %v1880
  %v1957 = vunpack.c.h.b16 %v1880
  %v1958 = vunpack.c.l.b16 %v1881
  %v1959 = vunpack.c.h.b16 %v1881
  %v1960 = vunpack.c.l.b16 %v1882
  %v1961 = vunpack.c.h.b16 %v1882
  %v1962 = vunpack.c.l.b16 %v1883
  %v1963 = vunpack.c.h.b16 %v1883
  %v1964 = vunpack.c.l.b16 %v1884
  %v1965 = vunpack.c.h.b16 %v1884
  %v1966 = vunpack.c.l.b16 %v1885
  %v1967 = vunpack.c.h.b16 %v1885
  %v1968 = vunpack.c.l.b16 %v1886
  %v1969 = vunpack.c.h.b16 %v1886
  %v1970 = vunpack.c.l.b16 %v1887
  %v1971 = vunpack.c.h.b16 %v1887
  %v1972 = vunpack.c.l.b16 %v1888
  %v1973 = vunpack.c.h.b16 %v1888
  %v1974 = vunpack.c.l.b16 %v1889
  %v1975 = vunpack.c.h.b16 %v1889
  %v1976 = vunpack.c.l.b16 %v1890
  %v1977 = vunpack.c.h.b16 %v1890
  %v1978 = vunpack.c.l.b16 %v1891
  %v1979 = vunpack.c.h.b16 %v1891
  %v1980 = vunpack.c.l.b16 %v1892
  %v1981 = vunpack.c.h.b16 %v1892
  %v1982 = vunpack.c.l.b16 %v1893
  %v1983 = vunpack.c.h.b16 %v1893
  %v1984 = vunpack.c.l.b16 %v1894
  %v1985 = vunpack.c.h.b16 %v1894
  %v1986 = vunpack.c.l.b16 %v1895
  %v1987 = vunpack.c.h.b16 %v1895
  %v1988 = vunpack.c.l.b16 %v1896
  %v1989 = vunpack.c.h.b16 %v1896
  %v1990 = vunpack.c.l.b16 %v1897
  %v1991 = vunpack.c.h.b16 %v1897
  %v1992 = vunpack.c.l.b16 %v1898
  %v1993 = vunpack.c.h.b16 %v1898
  %v1994 = vunpack.c.l.b16 %v1899
  %v1995 = vunpack.c.h.b16 %v1899
  %v1996 = vpack.c.b16 %v1932, %v1932
  %v1997 = vpack.c.b16 %v1933, %v1933
  %v1998 = vpack.c.b16 %v1934, %v1934
  %v1999 = vpack.c.b16 %v1935, %v1935
  %v2000 = vpack.c.b16 %v1936, %v1936
  %v2001 = vpack.c.b16 %v1937, %v1937
  %v2002 = vpack.c.b16 %v1938, %v1938
  %v2003 = vpack.c.b16 %v1939, %v1939
  %v2004 = vpack.c.b16 %v1940, %v1940
  %v2005 = vpack.c.b16 %v1941, %v1941
  %v2006 = vpack.c.b16 %v1942, %v1942
  %v2007 = vpack.c.b16 %v1943, %v1943
  %v2008 = vpack.c.b16 %v1944, %v1944
  %v2009 = vpack.c.b16 %v1945, %v1945
  %v2010 = vpack.c.b16 %v1946, %v1946
  %v2011 = vpack.c.b16 %v1947, %v1947
  %v2012 = vpack.c.b16 %v1948, %v1948
  %v2013 = vpack.c.b16 %v1949, %v1949
  %v2014 = vpack.c.b16 %v1950, %v1950
  %v2015 = vpack.c.b16 %v1951, %v1951
  %v2016 = vpack.c.b16 %v1952, %v1952
  %v2017 = vpack.c.b16 %v1953, %v1953
  %v2018 = vpack.c.b16 %v1954, %v1954
  %v2019 = vpack.c.b16 %v1955, %v1955
  %v2020 = vpack.c.b16 %v1956, %v1956
  %v2021 = vpack.c.b16 %v1957, %v1957
  %v2022 = vpack.c.b16 %v1958, %v1958
  %v2023 = vpack.c.b16 %v1959, %v1959
  %v2024 = vpack.c.b16 %v1960, %v1960
  %v2025 = vpack.c.b16 %v1961, %v1961
  %v2026 = vpack.c.b16 %v1962, %v1962
  %v2027 = vpack.c.b16 %v1963, %v1963
  %v2028 = vpack.c.b16 %v1964, %v1964
  %v2029 = vpack.c.b16 %v1965, %v1965
  %v2030 = vpack.c.b16 %v1966, %v1966
  %v2031 = vpack.c.b16 %v1967, %v1967
  %v2032 = vpack.c.b16 %v1968, %v1968
  %v2033 = vpack.c.b16 %v1969, %v1969
  %v2034 = vpack.c.b16 %v1970, %v1970
  %v2035 = vpack.c.b16 %v1971, %v1971
  %v2036 = vpack.c.b16 %v1972, %v1972
  %v2037 = vpack.c.b16 %v1973, %v1973
  %v2038 = vpack.c.b16 %v1974, %v1974
  %v2039 = vpack.c.b16 %v1975, %v1975
  %v2040 = vpack.c.b16 %v1976, %v1976
  %v2041 = vpack.c.b16 %v1977, %v1977
  %v2042 = vpack.c.b16 %v1978, %v1978
  %v2043 = vpack.c.b16 %v1979, %v1979
  %v2044 = vpack.c.b16 %v1980, %v1980
  %v2045 = vpack.c.b16 %v1981, %v1981
  %v2046 = vpack.c.b16 %v1982, %v1982
  %v2047 = vpack.c.b16 %v1983, %v1983
  %v2048 = vpack.c.b16 %v1984, %v1984
  %v2049 = vpack.c.b16 %v1985, %v1985
  %v2050 = vpack.c.b16 %v1986, %v1986
  %v2051 = vpack.c.b16 %v1987, %v1987
  %v2052 = vpack.c.b16 %v1988, %v1988
  %v2053 = vpack.c.b16 %v1989, %v1989
  %v2054 = vpack.c.b16 %v1990, %v1990
  %v2055 = vpack.c.b16 %v1991, %v1991
  %v2056 = vpack.c.b16 %v1992, %v1992
  %v2057 = vpack.c.b16 %v1993, %v1993
  %v2058 = vpack.c.b16 %v1994, %v1994
  %v2059 = vpack.c.b16 %v1995, %v1995
  %2060 = vrot.lane.b32.xlu0 %v1996, 12
  %v2061 = vpop.permute.xlu0 %2060
  %2062 = vrot.lane.b32.xlu0 %v1997, 12
  %v2063 = vpop.permute.xlu0 %2062
  %2064 = vrot.lane.b32.xlu0 %v1998, 12
  %v2065 = vpop.permute.xlu0 %2064
  %2066 = vrot.lane.b32.xlu0 %v1999, 12
  %v2067 = vpop.permute.xlu0 %2066
  %2068 = vrot.lane.b32.xlu0 %v2000, 12
  %v2069 = vpop.permute.xlu0 %2068
  %2070 = vrot.lane.b32.xlu0 %v2001, 12
  %v2071 = vpop.permute.xlu0 %2070
  %2072 = vrot.lane.b32.xlu0 %v2002, 12
  %v2073 = vpop.permute.xlu0 %2072
  %2074 = vrot.lane.b32.xlu0 %v2003, 12
  %v2075 = vpop.permute.xlu0 %2074
  %2076 = vrot.lane.b32.xlu0 %v2004, 12
  %v2077 = vpop.permute.xlu0 %2076
  %2078 = vrot.lane.b32.xlu0 %v2005, 12
  %v2079 = vpop.permute.xlu0 %2078
  %2080 = vrot.lane.b32.xlu0 %v2006, 12
  %v2081 = vpop.permute.xlu0 %2080
  %2082 = vrot.lane.b32.xlu0 %v2007, 12
  %v2083 = vpop.permute.xlu0 %2082
  %2084 = vrot.lane.b32.xlu0 %v2008, 12
  %v2085 = vpop.permute.xlu0 %2084
  %2086 = vrot.lane.b32.xlu0 %v2009, 12
  %v2087 = vpop.permute.xlu0 %2086
  %2088 = vrot.lane.b32.xlu0 %v2010, 12
  %v2089 = vpop.permute.xlu0 %2088
  %2090 = vrot.lane.b32.xlu0 %v2011, 12
  %v2091 = vpop.permute.xlu0 %2090
  %2092 = vrot.lane.b32.xlu0 %v2012, 12
  %v2093 = vpop.permute.xlu0 %2092
  %2094 = vrot.lane.b32.xlu0 %v2013, 12
  %v2095 = vpop.permute.xlu0 %2094
  %2096 = vrot.lane.b32.xlu0 %v2014, 12
  %v2097 = vpop.permute.xlu0 %2096
  %2098 = vrot.lane.b32.xlu0 %v2015, 12
  %v2099 = vpop.permute.xlu0 %2098
  %2100 = vrot.lane.b32.xlu0 %v2016, 12
  %v2101 = vpop.permute.xlu0 %2100
  %2102 = vrot.lane.b32.xlu0 %v2017, 12
  %v2103 = vpop.permute.xlu0 %2102
  %2104 = vrot.lane.b32.xlu0 %v2018, 12
  %v2105 = vpop.permute.xlu0 %2104
  %2106 = vrot.lane.b32.xlu0 %v2019, 12
  %v2107 = vpop.permute.xlu0 %2106
  %2108 = vrot.lane.b32.xlu0 %v2020, 12
  %v2109 = vpop.permute.xlu0 %2108
  %2110 = vrot.lane.b32.xlu0 %v2021, 12
  %v2111 = vpop.permute.xlu0 %2110
  %2112 = vrot.lane.b32.xlu0 %v2022, 12
  %v2113 = vpop.permute.xlu0 %2112
  %2114 = vrot.lane.b32.xlu0 %v2023, 12
  %v2115 = vpop.permute.xlu0 %2114
  %2116 = vrot.lane.b32.xlu0 %v2024, 12
  %v2117 = vpop.permute.xlu0 %2116
  %2118 = vrot.lane.b32.xlu0 %v2025, 12
  %v2119 = vpop.permute.xlu0 %2118
  %2120 = vrot.lane.b32.xlu0 %v2026, 12
  %v2121 = vpop.permute.xlu0 %2120
  %2122 = vrot.lane.b32.xlu0 %v2027, 12
  %v2123 = vpop.permute.xlu0 %2122
  %2124 = vrot.lane.b32.xlu0 %v2028, 12
  %v2125 = vpop.permute.xlu0 %2124
  %2126 = vrot.lane.b32.xlu0 %v2029, 12
  %v2127 = vpop.permute.xlu0 %2126
  %2128 = vrot.lane.b32.xlu0 %v2030, 12
  %v2129 = vpop.permute.xlu0 %2128
  %2130 = vrot.lane.b32.xlu0 %v2031, 12
  %v2131 = vpop.permute.xlu0 %2130
  %2132 = vrot.lane.b32.xlu0 %v2032, 12
  %v2133 = vpop.permute.xlu0 %2132
  %2134 = vrot.lane.b32.xlu0 %v2033, 12
  %v2135 = vpop.permute.xlu0 %2134
  %2136 = vrot.lane.b32.xlu0 %v2034, 12
  %v2137 = vpop.permute.xlu0 %2136
  %2138 = vrot.lane.b32.xlu0 %v2035, 12
  %v2139 = vpop.permute.xlu0 %2138
  %2140 = vrot.lane.b32.xlu0 %v2036, 12
  %v2141 = vpop.permute.xlu0 %2140
  %2142 = vrot.lane.b32.xlu0 %v2037, 12
  %v2143 = vpop.permute.xlu0 %2142
  %2144 = vrot.lane.b32.xlu0 %v2038, 12
  %v2145 = vpop.permute.xlu0 %2144
  %2146 = vrot.lane.b32.xlu0 %v2039, 12
  %v2147 = vpop.permute.xlu0 %2146
  %2148 = vrot.lane.b32.xlu0 %v2040, 12
  %v2149 = vpop.permute.xlu0 %2148
  %2150 = vrot.lane.b32.xlu0 %v2041, 12
  %v2151 = vpop.permute.xlu0 %2150
  %2152 = vrot.lane.b32.xlu0 %v2042, 12
  %v2153 = vpop.permute.xlu0 %2152
  %2154 = vrot.lane.b32.xlu0 %v2043, 12
  %v2155 = vpop.permute.xlu0 %2154
  %2156 = vrot.lane.b32.xlu0 %v2044, 12
  %v2157 = vpop.permute.xlu0 %2156
  %2158 = vrot.lane.b32.xlu0 %v2045, 12
  %v2159 = vpop.permute.xlu0 %2158
  %2160 = vrot.lane.b32.xlu0 %v2046, 12
  %v2161 = vpop.permute.xlu0 %2160
  %2162 = vrot.lane.b32.xlu0 %v2047, 12
  %v2163 = vpop.permute.xlu0 %2162
  %2164 = vrot.lane.b32.xlu0 %v2048, 12
  %v2165 = vpop.permute.xlu0 %2164
  %2166 = vrot.lane.b32.xlu0 %v2049, 12
  %v2167 = vpop.permute.xlu0 %2166
  %2168 = vrot.lane.b32.xlu0 %v2050, 12
  %v2169 = vpop.permute.xlu0 %2168
  %2170 = vrot.lane.b32.xlu0 %v2051, 12
  %v2171 = vpop.permute.xlu0 %2170
  %2172 = vrot.lane.b32.xlu0 %v2052, 12
  %v2173 = vpop.permute.xlu0 %2172
  %2174 = vrot.lane.b32.xlu0 %v2053, 12
  %v2175 = vpop.permute.xlu0 %2174
  %2176 = vrot.lane.b32.xlu0 %v2054, 12
  %v2177 = vpop.permute.xlu0 %2176
  %2178 = vrot.lane.b32.xlu0 %v2055, 12
  %v2179 = vpop.permute.xlu0 %2178
  %2180 = vrot.lane.b32.xlu0 %v2056, 12
  %v2181 = vpop.permute.xlu0 %2180
  %2182 = vrot.lane.b32.xlu0 %v2057, 12
  %v2183 = vpop.permute.xlu0 %2182
  %2184 = vrot.lane.b32.xlu0 %v2058, 12
  %v2185 = vpop.permute.xlu0 %2184
  %2186 = vrot.lane.b32.xlu0 %v2059, 12
  %v2187 = vpop.permute.xlu0 %2186
  %vm2252 = vcmask 126048
  %2253 = vst.msk [vmem:[#allocation4] sm:$0xf] %vm2252, %v2061
  %2254 = vst.msk [vmem:[#allocation4 + $0x4] sm:$0xf] %vm2252, %v2063
  %2255 = vst.msk [vmem:[#allocation4 + $0x8] sm:$0xf] %vm2252, %v2065
  %2256 = vst.msk [vmem:[#allocation4 + $0xc] sm:$0xf] %vm2252, %v2067
  %2257 = vst.msk [vmem:[#allocation4 + $0x10] sm:$0xf] %vm2252, %v2069
  %2258 = vst.msk [vmem:[#allocation4 + $0x14] sm:$0xf] %vm2252, %v2071
  %2259 = vst.msk [vmem:[#allocation4 + $0x18] sm:$0xf] %vm2252, %v2073
  %2260 = vst.msk [vmem:[#allocation4 + $0x1c] sm:$0xf] %vm2252, %v2075
  %2261 = vst.msk [vmem:[#allocation4 + $0x20] sm:$0xf] %vm2252, %v2077
  %2262 = vst.msk [vmem:[#allocation4 + $0x24] sm:$0xf] %vm2252, %v2079
  %2263 = vst.msk [vmem:[#allocation4 + $0x28] sm:$0xf] %vm2252, %v2081
  %2264 = vst.msk [vmem:[#allocation4 + $0x2c] sm:$0xf] %vm2252, %v2083
  %2265 = vst.msk [vmem:[#allocation4 + $0x30] sm:$0xf] %vm2252, %v2085
  %2266 = vst.msk [vmem:[#allocation4 + $0x34] sm:$0xf] %vm2252, %v2087
  %2267 = vst.msk [vmem:[#allocation4 + $0x38] sm:$0xf] %vm2252, %v2089
  %2268 = vst.msk [vmem:[#allocation4 + $0x3c] sm:$0xf] %vm2252, %v2091
  %2269 = vst.msk [vmem:[#allocation4 + $0x40] sm:$0xf] %vm2252, %v2093
  %2270 = vst.msk [vmem:[#allocation4 + $0x44] sm:$0xf] %vm2252, %v2095
  %2271 = vst.msk [vmem:[#allocation4 + $0x48] sm:$0xf] %vm2252, %v2097
  %2272 = vst.msk [vmem:[#allocation4 + $0x4c] sm:$0xf] %vm2252, %v2099
  %2273 = vst.msk [vmem:[#allocation4 + $0x50] sm:$0xf] %vm2252, %v2101
  %2274 = vst.msk [vmem:[#allocation4 + $0x54] sm:$0xf] %vm2252, %v2103
  %2275 = vst.msk [vmem:[#allocation4 + $0x58] sm:$0xf] %vm2252, %v2105
  %2276 = vst.msk [vmem:[#allocation4 + $0x5c] sm:$0xf] %vm2252, %v2107
  %2277 = vst.msk [vmem:[#allocation4 + $0x60] sm:$0xf] %vm2252, %v2109
  %2278 = vst.msk [vmem:[#allocation4 + $0x64] sm:$0xf] %vm2252, %v2111
  %2279 = vst.msk [vmem:[#allocation4 + $0x68] sm:$0xf] %vm2252, %v2113
  %2280 = vst.msk [vmem:[#allocation4 + $0x6c] sm:$0xf] %vm2252, %v2115
  %2281 = vst.msk [vmem:[#allocation4 + $0x70] sm:$0xf] %vm2252, %v2117
  %2282 = vst.msk [vmem:[#allocation4 + $0x74] sm:$0xf] %vm2252, %v2119
  %2283 = vst.msk [vmem:[#allocation4 + $0x78] sm:$0xf] %vm2252, %v2121
  %2284 = vst.msk [vmem:[#allocation4 + $0x7c] sm:$0xf] %vm2252, %v2123
  %2285 = vst.msk [vmem:[#allocation4 + $0x80] sm:$0xf] %vm2252, %v2125
  %2286 = vst.msk [vmem:[#allocation4 + $0x84] sm:$0xf] %vm2252, %v2127
  %2287 = vst.msk [vmem:[#allocation4 + $0x88] sm:$0xf] %vm2252, %v2129
  %2288 = vst.msk [vmem:[#allocation4 + $0x8c] sm:$0xf] %vm2252, %v2131
  %2289 = vst.msk [vmem:[#allocation4 + $0x90] sm:$0xf] %vm2252, %v2133
  %2290 = vst.msk [vmem:[#allocation4 + $0x94] sm:$0xf] %vm2252, %v2135
  %2291 = vst.msk [vmem:[#allocation4 + $0x98] sm:$0xf] %vm2252, %v2137
  %2292 = vst.msk [vmem:[#allocation4 + $0x9c] sm:$0xf] %vm2252, %v2139
  %2293 = vst.msk [vmem:[#allocation4 + $0xa0] sm:$0xf] %vm2252, %v2141
  %2294 = vst.msk [vmem:[#allocation4 + $0xa4] sm:$0xf] %vm2252, %v2143
  %2295 = vst.msk [vmem:[#allocation4 + $0xa8] sm:$0xf] %vm2252, %v2145
  %2296 = vst.msk [vmem:[#allocation4 + $0xac] sm:$0xf] %vm2252, %v2147
  %2297 = vst.msk [vmem:[#allocation4 + $0xb0] sm:$0xf] %vm2252, %v2149
  %2298 = vst.msk [vmem:[#allocation4 + $0xb4] sm:$0xf] %vm2252, %v2151
  %2299 = vst.msk [vmem:[#allocation4 + $0xb8] sm:$0xf] %vm2252, %v2153
  %2300 = vst.msk [vmem:[#allocation4 + $0xbc] sm:$0xf] %vm2252, %v2155
  %2301 = vst.msk [vmem:[#allocation4 + $0xc0] sm:$0xf] %vm2252, %v2157
  %2302 = vst.msk [vmem:[#allocation4 + $0xc4] sm:$0xf] %vm2252, %v2159
  %2303 = vst.msk [vmem:[#allocation4 + $0xc8] sm:$0xf] %vm2252, %v2161
  %2304 = vst.msk [vmem:[#allocation4 + $0xcc] sm:$0xf] %vm2252, %v2163
  %2305 = vst.msk [vmem:[#allocation4 + $0xd0] sm:$0xf] %vm2252, %v2165
  %2306 = vst.msk [vmem:[#allocation4 + $0xd4] sm:$0xf] %vm2252, %v2167
  %2307 = vst.msk [vmem:[#allocation4 + $0xd8] sm:$0xf] %vm2252, %v2169
  %2308 = vst.msk [vmem:[#allocation4 + $0xdc] sm:$0xf] %vm2252, %v2171
  %2309 = vst.msk [vmem:[#allocation4 + $0xe0] sm:$0xf] %vm2252, %v2173
  %2310 = vst.msk [vmem:[#allocation4 + $0xe4] sm:$0xf] %vm2252, %v2175
  %2311 = vst.msk [vmem:[#allocation4 + $0xe8] sm:$0xf] %vm2252, %v2177
  %2312 = vst.msk [vmem:[#allocation4 + $0xec] sm:$0xf] %vm2252, %v2179
  %2313 = vst.msk [vmem:[#allocation4 + $0xf0] sm:$0xf] %vm2252, %v2181
  %2314 = vst.msk [vmem:[#allocation4 + $0xf4] sm:$0xf] %vm2252, %v2183
  %2315 = vst.msk [vmem:[#allocation4 + $0xf8] sm:$0xf] %vm2252, %v2185
  %2316 = vst.msk [vmem:[#allocation4 + $0xfc] sm:$0xf] %vm2252, %v2187
  %v2317 = vld [vmem:[%s328 + $0x1] sm:$0xff]
  %v2318 = vld [vmem:[%s328 + $0x9] sm:$0xff]
  %v2319 = vld [vmem:[%s328 + $0x19] sm:$0xff]
  %v2320 = vld [vmem:[%s328 + $0x21] sm:$0xff]
  %v2321 = vld [vmem:[%s328 + $0x31] sm:$0xff]
  %v2322 = vld [vmem:[%s328 + $0x39] sm:$0xff]
  %v2323 = vld [vmem:[%s328 + $0x49] sm:$0xff]
  %v2324 = vld [vmem:[%s328 + $0x51] sm:$0xff]
  %v2325 = vld [vmem:[%s328 + $0x61] sm:$0xff]
  %v2326 = vld [vmem:[%s328 + $0x69] sm:$0xff]
  %v2327 = vld [vmem:[%s328 + $0x79] sm:$0xff]
  %v2328 = vld [vmem:[%s328 + $0x81] sm:$0xff]
  %v2329 = vld [vmem:[%s328 + $0x91] sm:$0xff]
  %v2330 = vld [vmem:[%s328 + $0x99] sm:$0xff]
  %v2331 = vld [vmem:[%s328 + $0xa9] sm:$0xff]
  %v2332 = vld [vmem:[%s328 + $0xb1] sm:$0xff]
  %v2333 = vld [vmem:[%s328 + $0xc1] sm:$0xff]
  %v2334 = vld [vmem:[%s328 + $0xc9] sm:$0xff]
  %v2335 = vld [vmem:[%s328 + $0xd9] sm:$0xff]
  %v2336 = vld [vmem:[%s328 + $0xe1] sm:$0xff]
  %v2337 = vld [vmem:[%s328 + $0xf1] sm:$0xff]
  %v2338 = vld [vmem:[%s328 + $0xf9] sm:$0xff]
  %v2339 = vld [vmem:[%s328 + $0x109] sm:$0xff]
  %v2340 = vld [vmem:[%s328 + $0x111] sm:$0xff]
  %v2341 = vld [vmem:[%s328 + $0x121] sm:$0xff]
  %v2342 = vld [vmem:[%s328 + $0x129] sm:$0xff]
  %v2343 = vld [vmem:[%s328 + $0x139] sm:$0xff]
  %v2344 = vld [vmem:[%s328 + $0x141] sm:$0xff]
  %v2345 = vld [vmem:[%s328 + $0x151] sm:$0xff]
  %v2346 = vld [vmem:[%s328 + $0x159] sm:$0xff]
  %v2347 = vld [vmem:[%s328 + $0x169] sm:$0xff]
  %v2348 = vld [vmem:[%s328 + $0x171] sm:$0xff]
  %v2349 = vld [vmem:[%s328 + $0x1b1] sm:$0xff]
  %v2350 = vld [vmem:[%s328 + $0x1b9] sm:$0xff]
  %v2351 = vld [vmem:[%s328 + $0x1c9] sm:$0xff]
  %v2352 = vld [vmem:[%s328 + $0x1d1] sm:$0xff]
  %v2353 = vld [vmem:[%s328 + $0x1e1] sm:$0xff]
  %v2354 = vld [vmem:[%s328 + $0x1e9] sm:$0xff]
  %v2355 = vld [vmem:[%s328 + $0x1f9] sm:$0xff]
  %v2356 = vld [vmem:[%s328 + $0x201] sm:$0xff]
  %v2357 = vld [vmem:[%s328 + $0x211] sm:$0xff]
  %v2358 = vld [vmem:[%s328 + $0x219] sm:$0xff]
  %v2359 = vld [vmem:[%s328 + $0x229] sm:$0xff]
  %v2360 = vld [vmem:[%s328 + $0x231] sm:$0xff]
  %v2361 = vld [vmem:[%s328 + $0x241] sm:$0xff]
  %v2362 = vld [vmem:[%s328 + $0x249] sm:$0xff]
  %v2363 = vld [vmem:[%s328 + $0x259] sm:$0xff]
  %v2364 = vld [vmem:[%s328 + $0x261] sm:$0xff]
  %v2365 = vld [vmem:[%s328 + $0x271] sm:$0xff]
  %v2366 = vld [vmem:[%s328 + $0x279] sm:$0xff]
  %v2367 = vld [vmem:[%s328 + $0x289] sm:$0xff]
  %v2368 = vld [vmem:[%s328 + $0x291] sm:$0xff]
  %v2369 = vld [vmem:[%s328 + $0x2a1] sm:$0xff]
  %v2370 = vld [vmem:[%s328 + $0x2a9] sm:$0xff]
  %v2371 = vld [vmem:[%s328 + $0x2b9] sm:$0xff]
  %v2372 = vld [vmem:[%s328 + $0x2c1] sm:$0xff]
  %v2373 = vld [vmem:[%s328 + $0x2d1] sm:$0xff]
  %v2374 = vld [vmem:[%s328 + $0x2d9] sm:$0xff]
  %v2375 = vld [vmem:[%s328 + $0x2e9] sm:$0xff]
  %v2376 = vld [vmem:[%s328 + $0x2f1] sm:$0xff]
  %v2377 = vld [vmem:[%s328 + $0x301] sm:$0xff]
  %v2378 = vld [vmem:[%s328 + $0x309] sm:$0xff]
  %v2379 = vld [vmem:[%s328 + $0x319] sm:$0xff]
  %v2380 = vld [vmem:[%s328 + $0x321] sm:$0xff]
  %v2381 = vpack.c.bf16 %v2318, %v2317
  %v2382 = vpack.c.bf16 %v2320, %v2319
  %v2383 = vpack.c.bf16 %v2322, %v2321
  %v2384 = vpack.c.bf16 %v2324, %v2323
  %v2385 = vpack.c.bf16 %v2326, %v2325
  %v2386 = vpack.c.bf16 %v2328, %v2327
  %v2387 = vpack.c.bf16 %v2330, %v2329
  %v2388 = vpack.c.bf16 %v2332, %v2331
  %v2389 = vpack.c.bf16 %v2334, %v2333
  %v2390 = vpack.c.bf16 %v2336, %v2335
  %v2391 = vpack.c.bf16 %v2338, %v2337
  %v2392 = vpack.c.bf16 %v2340, %v2339
  %v2393 = vpack.c.bf16 %v2342, %v2341
  %v2394 = vpack.c.bf16 %v2344, %v2343
  %v2395 = vpack.c.bf16 %v2346, %v2345
  %v2396 = vpack.c.bf16 %v2348, %v2347
  %v2397 = vpack.c.bf16 %v2350, %v2349
  %v2398 = vpack.c.bf16 %v2352, %v2351
  %v2399 = vpack.c.bf16 %v2354, %v2353
  %v2400 = vpack.c.bf16 %v2356, %v2355
  %v2401 = vpack.c.bf16 %v2358, %v2357
  %v2402 = vpack.c.bf16 %v2360, %v2359
  %v2403 = vpack.c.bf16 %v2362, %v2361
  %v2404 = vpack.c.bf16 %v2364, %v2363
  %v2405 = vpack.c.bf16 %v2366, %v2365
  %v2406 = vpack.c.bf16 %v2368, %v2367
  %v2407 = vpack.c.bf16 %v2370, %v2369
  %v2408 = vpack.c.bf16 %v2372, %v2371
  %v2409 = vpack.c.bf16 %v2374, %v2373
  %v2410 = vpack.c.bf16 %v2376, %v2375
  %v2411 = vpack.c.bf16 %v2378, %v2377
  %v2412 = vpack.c.bf16 %v2380, %v2379
  %v2445 = vunpack.c.l.b16 %v2381
  %v2446 = vunpack.c.h.b16 %v2381
  %v2447 = vunpack.c.l.b16 %v2382
  %v2448 = vunpack.c.h.b16 %v2382
  %v2449 = vunpack.c.l.b16 %v2383
  %v2450 = vunpack.c.h.b16 %v2383
  %v2451 = vunpack.c.l.b16 %v2384
  %v2452 = vunpack.c.h.b16 %v2384
  %v2453 = vunpack.c.l.b16 %v2385
  %v2454 = vunpack.c.h.b16 %v2385
  %v2455 = vunpack.c.l.b16 %v2386
  %v2456 = vunpack.c.h.b16 %v2386
  %v2457 = vunpack.c.l.b16 %v2387
  %v2458 = vunpack.c.h.b16 %v2387
  %v2459 = vunpack.c.l.b16 %v2388
  %v2460 = vunpack.c.h.b16 %v2388
  %v2461 = vunpack.c.l.b16 %v2389
  %v2462 = vunpack.c.h.b16 %v2389
  %v2463 = vunpack.c.l.b16 %v2390
  %v2464 = vunpack.c.h.b16 %v2390
  %v2465 = vunpack.c.l.b16 %v2391
  %v2466 = vunpack.c.h.b16 %v2391
  %v2467 = vunpack.c.l.b16 %v2392
  %v2468 = vunpack.c.h.b16 %v2392
  %v2469 = vunpack.c.l.b16 %v2393
  %v2470 = vunpack.c.h.b16 %v2393
  %v2471 = vunpack.c.l.b16 %v2394
  %v2472 = vunpack.c.h.b16 %v2394
  %v2473 = vunpack.c.l.b16 %v2395
  %v2474 = vunpack.c.h.b16 %v2395
  %v2475 = vunpack.c.l.b16 %v2396
  %v2476 = vunpack.c.h.b16 %v2396
  %v2477 = vunpack.c.l.b16 %v2397
  %v2478 = vunpack.c.h.b16 %v2397
  %v2479 = vunpack.c.l.b16 %v2398
  %v2480 = vunpack.c.h.b16 %v2398
  %v2481 = vunpack.c.l.b16 %v2399
  %v2482 = vunpack.c.h.b16 %v2399
  %v2483 = vunpack.c.l.b16 %v2400
  %v2484 = vunpack.c.h.b16 %v2400
  %v2485 = vunpack.c.l.b16 %v2401
  %v2486 = vunpack.c.h.b16 %v2401
  %v2487 = vunpack.c.l.b16 %v2402
  %v2488 = vunpack.c.h.b16 %v2402
  %v2489 = vunpack.c.l.b16 %v2403
  %v2490 = vunpack.c.h.b16 %v2403
  %v2491 = vunpack.c.l.b16 %v2404
  %v2492 = vunpack.c.h.b16 %v2404
  %v2493 = vunpack.c.l.b16 %v2405
  %v2494 = vunpack.c.h.b16 %v2405
  %v2495 = vunpack.c.l.b16 %v2406
  %v2496 = vunpack.c.h.b16 %v2406
  %v2497 = vunpack.c.l.b16 %v2407
  %v2498 = vunpack.c.h.b16 %v2407
  %v2499 = vunpack.c.l.b16 %v2408
  %v2500 = vunpack.c.h.b16 %v2408
  %v2501 = vunpack.c.l.b16 %v2409
  %v2502 = vunpack.c.h.b16 %v2409
  %v2503 = vunpack.c.l.b16 %v2410
  %v2504 = vunpack.c.h.b16 %v2410
  %v2505 = vunpack.c.l.b16 %v2411
  %v2506 = vunpack.c.h.b16 %v2411
  %v2507 = vunpack.c.l.b16 %v2412
  %v2508 = vunpack.c.h.b16 %v2412
  %v2509 = vpack.c.b16 %v2445, %v2445
  %v2510 = vpack.c.b16 %v2446, %v2446
  %v2511 = vpack.c.b16 %v2447, %v2447
  %v2512 = vpack.c.b16 %v2448, %v2448
  %v2513 = vpack.c.b16 %v2449, %v2449
  %v2514 = vpack.c.b16 %v2450, %v2450
  %v2515 = vpack.c.b16 %v2451, %v2451
  %v2516 = vpack.c.b16 %v2452, %v2452
  %v2517 = vpack.c.b16 %v2453, %v2453
  %v2518 = vpack.c.b16 %v2454, %v2454
  %v2519 = vpack.c.b16 %v2455, %v2455
  %v2520 = vpack.c.b16 %v2456, %v2456
  %v2521 = vpack.c.b16 %v2457, %v2457
  %v2522 = vpack.c.b16 %v2458, %v2458
  %v2523 = vpack.c.b16 %v2459, %v2459
  %v2524 = vpack.c.b16 %v2460, %v2460
  %v2525 = vpack.c.b16 %v2461, %v2461
  %v2526 = vpack.c.b16 %v2462, %v2462
  %v2527 = vpack.c.b16 %v2463, %v2463
  %v2528 = vpack.c.b16 %v2464, %v2464
  %v2529 = vpack.c.b16 %v2465, %v2465
  %v2530 = vpack.c.b16 %v2466, %v2466
  %v2531 = vpack.c.b16 %v2467, %v2467
  %v2532 = vpack.c.b16 %v2468, %v2468
  %v2533 = vpack.c.b16 %v2469, %v2469
  %v2534 = vpack.c.b16 %v2470, %v2470
  %v2535 = vpack.c.b16 %v2471, %v2471
  %v2536 = vpack.c.b16 %v2472, %v2472
  %v2537 = vpack.c.b16 %v2473, %v2473
  %v2538 = vpack.c.b16 %v2474, %v2474
  %v2539 = vpack.c.b16 %v2475, %v2475
  %v2540 = vpack.c.b16 %v2476, %v2476
  %v2541 = vpack.c.b16 %v2477, %v2477
  %v2542 = vpack.c.b16 %v2478, %v2478
  %v2543 = vpack.c.b16 %v2479, %v2479
  %v2544 = vpack.c.b16 %v2480, %v2480
  %v2545 = vpack.c.b16 %v2481, %v2481
  %v2546 = vpack.c.b16 %v2482, %v2482
  %v2547 = vpack.c.b16 %v2483, %v2483
  %v2548 = vpack.c.b16 %v2484, %v2484
  %v2549 = vpack.c.b16 %v2485, %v2485
  %v2550 = vpack.c.b16 %v2486, %v2486
  %v2551 = vpack.c.b16 %v2487, %v2487
  %v2552 = vpack.c.b16 %v2488, %v2488
  %v2553 = vpack.c.b16 %v2489, %v2489
  %v2554 = vpack.c.b16 %v2490, %v2490
  %v2555 = vpack.c.b16 %v2491, %v2491
  %v2556 = vpack.c.b16 %v2492, %v2492
  %v2557 = vpack.c.b16 %v2493, %v2493
  %v2558 = vpack.c.b16 %v2494, %v2494
  %v2559 = vpack.c.b16 %v2495, %v2495
  %v2560 = vpack.c.b16 %v2496, %v2496
  %v2561 = vpack.c.b16 %v2497, %v2497
  %v2562 = vpack.c.b16 %v2498, %v2498
  %v2563 = vpack.c.b16 %v2499, %v2499
  %v2564 = vpack.c.b16 %v2500, %v2500
  %v2565 = vpack.c.b16 %v2501, %v2501
  %v2566 = vpack.c.b16 %v2502, %v2502
  %v2567 = vpack.c.b16 %v2503, %v2503
  %v2568 = vpack.c.b16 %v2504, %v2504
  %v2569 = vpack.c.b16 %v2505, %v2505
  %v2570 = vpack.c.b16 %v2506, %v2506
  %v2571 = vpack.c.b16 %v2507, %v2507
  %v2572 = vpack.c.b16 %v2508, %v2508
  %2573 = vrot.lane.b32.xlu0 %v2509, 16
  %v2574 = vpop.permute.xlu0 %2573
  %2575 = vrot.lane.b32.xlu0 %v2510, 16
  %v2576 = vpop.permute.xlu0 %2575
  %2577 = vrot.lane.b32.xlu0 %v2511, 16
  %v2578 = vpop.permute.xlu0 %2577
  %2579 = vrot.lane.b32.xlu0 %v2512, 16
  %v2580 = vpop.permute.xlu0 %2579
  %2581 = vrot.lane.b32.xlu0 %v2513, 16
  %v2582 = vpop.permute.xlu0 %2581
  %2583 = vrot.lane.b32.xlu0 %v2514, 16
  %v2584 = vpop.permute.xlu0 %2583
  %2585 = vrot.lane.b32.xlu0 %v2515, 16
  %v2586 = vpop.permute.xlu0 %2585
  %2587 = vrot.lane.b32.xlu0 %v2516, 16
  %v2588 = vpop.permute.xlu0 %2587
  %2589 = vrot.lane.b32.xlu0 %v2517, 16
  %v2590 = vpop.permute.xlu0 %2589
  %2591 = vrot.lane.b32.xlu0 %v2518, 16
  %v2592 = vpop.permute.xlu0 %2591
  %2593 = vrot.lane.b32.xlu0 %v2519, 16
  %v2594 = vpop.permute.xlu0 %2593
  %2595 = vrot.lane.b32.xlu0 %v2520, 16
  %v2596 = vpop.permute.xlu0 %2595
  %2597 = vrot.lane.b32.xlu0 %v2521, 16
  %v2598 = vpop.permute.xlu0 %2597
  %2599 = vrot.lane.b32.xlu0 %v2522, 16
  %v2600 = vpop.permute.xlu0 %2599
  %2601 = vrot.lane.b32.xlu0 %v2523, 16
  %v2602 = vpop.permute.xlu0 %2601
  %2603 = vrot.lane.b32.xlu0 %v2524, 16
  %v2604 = vpop.permute.xlu0 %2603
  %2605 = vrot.lane.b32.xlu0 %v2525, 16
  %v2606 = vpop.permute.xlu0 %2605
  %2607 = vrot.lane.b32.xlu0 %v2526, 16
  %v2608 = vpop.permute.xlu0 %2607
  %2609 = vrot.lane.b32.xlu0 %v2527, 16
  %v2610 = vpop.permute.xlu0 %2609
  %2611 = vrot.lane.b32.xlu0 %v2528, 16
  %v2612 = vpop.permute.xlu0 %2611
  %2613 = vrot.lane.b32.xlu0 %v2529, 16
  %v2614 = vpop.permute.xlu0 %2613
  %2615 = vrot.lane.b32.xlu0 %v2530, 16
  %v2616 = vpop.permute.xlu0 %2615
  %2617 = vrot.lane.b32.xlu0 %v2531, 16
  %v2618 = vpop.permute.xlu0 %2617
  %2619 = vrot.lane.b32.xlu0 %v2532, 16
  %v2620 = vpop.permute.xlu0 %2619
  %2621 = vrot.lane.b32.xlu0 %v2533, 16
  %v2622 = vpop.permute.xlu0 %2621
  %2623 = vrot.lane.b32.xlu0 %v2534, 16
  %v2624 = vpop.permute.xlu0 %2623
  %2625 = vrot.lane.b32.xlu0 %v2535, 16
  %v2626 = vpop.permute.xlu0 %2625
  %2627 = vrot.lane.b32.xlu0 %v2536, 16
  %v2628 = vpop.permute.xlu0 %2627
  %2629 = vrot.lane.b32.xlu0 %v2537, 16
  %v2630 = vpop.permute.xlu0 %2629
  %2631 = vrot.lane.b32.xlu0 %v2538, 16
  %v2632 = vpop.permute.xlu0 %2631
  %2633 = vrot.lane.b32.xlu0 %v2539, 16
  %v2634 = vpop.permute.xlu0 %2633
  %2635 = vrot.lane.b32.xlu0 %v2540, 16
  %v2636 = vpop.permute.xlu0 %2635
  %2637 = vrot.lane.b32.xlu0 %v2541, 16
  %v2638 = vpop.permute.xlu0 %2637
  %2639 = vrot.lane.b32.xlu0 %v2542, 16
  %v2640 = vpop.permute.xlu0 %2639
  %2641 = vrot.lane.b32.xlu0 %v2543, 16
  %v2642 = vpop.permute.xlu0 %2641
  %2643 = vrot.lane.b32.xlu0 %v2544, 16
  %v2644 = vpop.permute.xlu0 %2643
  %2645 = vrot.lane.b32.xlu0 %v2545, 16
  %v2646 = vpop.permute.xlu0 %2645
  %2647 = vrot.lane.b32.xlu0 %v2546, 16
  %v2648 = vpop.permute.xlu0 %2647
  %2649 = vrot.lane.b32.xlu0 %v2547, 16
  %v2650 = vpop.permute.xlu0 %2649
  %2651 = vrot.lane.b32.xlu0 %v2548, 16
  %v2652 = vpop.permute.xlu0 %2651
  %2653 = vrot.lane.b32.xlu0 %v2549, 16
  %v2654 = vpop.permute.xlu0 %2653
  %2655 = vrot.lane.b32.xlu0 %v2550, 16
  %v2656 = vpop.permute.xlu0 %2655
  %2657 = vrot.lane.b32.xlu0 %v2551, 16
  %v2658 = vpop.permute.xlu0 %2657
  %2659 = vrot.lane.b32.xlu0 %v2552, 16
  %v2660 = vpop.permute.xlu0 %2659
  %2661 = vrot.lane.b32.xlu0 %v2553, 16
  %v2662 = vpop.permute.xlu0 %2661
  %2663 = vrot.lane.b32.xlu0 %v2554, 16
  %v2664 = vpop.permute.xlu0 %2663
  %2665 = vrot.lane.b32.xlu0 %v2555, 16
  %v2666 = vpop.permute.xlu0 %2665
  %2667 = vrot.lane.b32.xlu0 %v2556, 16
  %v2668 = vpop.permute.xlu0 %2667
  %2669 = vrot.lane.b32.xlu0 %v2557, 16
  %v2670 = vpop.permute.xlu0 %2669
  %2671 = vrot.lane.b32.xlu0 %v2558, 16
  %v2672 = vpop.permute.xlu0 %2671
  %2673 = vrot.lane.b32.xlu0 %v2559, 16
  %v2674 = vpop.permute.xlu0 %2673
  %2675 = vrot.lane.b32.xlu0 %v2560, 16
  %v2676 = vpop.permute.xlu0 %2675
  %2677 = vrot.lane.b32.xlu0 %v2561, 16
  %v2678 = vpop.permute.xlu0 %2677
  %2679 = vrot.lane.b32.xlu0 %v2562, 16
  %v2680 = vpop.permute.xlu0 %2679
  %2681 = vrot.lane.b32.xlu0 %v2563, 16
  %v2682 = vpop.permute.xlu0 %2681
  %2683 = vrot.lane.b32.xlu0 %v2564, 16
  %v2684 = vpop.permute.xlu0 %2683
  %2685 = vrot.lane.b32.xlu0 %v2565, 16
  %v2686 = vpop.permute.xlu0 %2685
  %2687 = vrot.lane.b32.xlu0 %v2566, 16
  %v2688 = vpop.permute.xlu0 %2687
  %2689 = vrot.lane.b32.xlu0 %v2567, 16
  %v2690 = vpop.permute.xlu0 %2689
  %2691 = vrot.lane.b32.xlu0 %v2568, 16
  %v2692 = vpop.permute.xlu0 %2691
  %2693 = vrot.lane.b32.xlu0 %v2569, 16
  %v2694 = vpop.permute.xlu0 %2693
  %2695 = vrot.lane.b32.xlu0 %v2570, 16
  %v2696 = vpop.permute.xlu0 %2695
  %2697 = vrot.lane.b32.xlu0 %v2571, 16
  %v2698 = vpop.permute.xlu0 %2697
  %2699 = vrot.lane.b32.xlu0 %v2572, 16
  %v2700 = vpop.permute.xlu0 %2699
  %vm2765 = vcmask 158848
  %2766 = vst.msk [vmem:[#allocation4] sm:$0xf] %vm2765, %v2574
  %2767 = vst.msk [vmem:[#allocation4 + $0x4] sm:$0xf] %vm2765, %v2576
  %2768 = vst.msk [vmem:[#allocation4 + $0x8] sm:$0xf] %vm2765, %v2578
  %2769 = vst.msk [vmem:[#allocation4 + $0xc] sm:$0xf] %vm2765, %v2580
  %2770 = vst.msk [vmem:[#allocation4 + $0x10] sm:$0xf] %vm2765, %v2582
  %2771 = vst.msk [vmem:[#allocation4 + $0x14] sm:$0xf] %vm2765, %v2584
  %2772 = vst.msk [vmem:[#allocation4 + $0x18] sm:$0xf] %vm2765, %v2586
  %2773 = vst.msk [vmem:[#allocation4 + $0x1c] sm:$0xf] %vm2765, %v2588
  %2774 = vst.msk [vmem:[#allocation4 + $0x20] sm:$0xf] %vm2765, %v2590
  %2775 = vst.msk [vmem:[#allocation4 + $0x24] sm:$0xf] %vm2765, %v2592
  %2776 = vst.msk [vmem:[#allocation4 + $0x28] sm:$0xf] %vm2765, %v2594
  %2777 = vst.msk [vmem:[#allocation4 + $0x2c] sm:$0xf] %vm2765, %v2596
  %2778 = vst.msk [vmem:[#allocation4 + $0x30] sm:$0xf] %vm2765, %v2598
  %2779 = vst.msk [vmem:[#allocation4 + $0x34] sm:$0xf] %vm2765, %v2600
  %2780 = vst.msk [vmem:[#allocation4 + $0x38] sm:$0xf] %vm2765, %v2602
  %2781 = vst.msk [vmem:[#allocation4 + $0x3c] sm:$0xf] %vm2765, %v2604
  %2782 = vst.msk [vmem:[#allocation4 + $0x40] sm:$0xf] %vm2765, %v2606
  %2783 = vst.msk [vmem:[#allocation4 + $0x44] sm:$0xf] %vm2765, %v2608
  %2784 = vst.msk [vmem:[#allocation4 + $0x48] sm:$0xf] %vm2765, %v2610
  %2785 = vst.msk [vmem:[#allocation4 + $0x4c] sm:$0xf] %vm2765, %v2612
  %2786 = vst.msk [vmem:[#allocation4 + $0x50] sm:$0xf] %vm2765, %v2614
  %2787 = vst.msk [vmem:[#allocation4 + $0x54] sm:$0xf] %vm2765, %v2616
  %2788 = vst.msk [vmem:[#allocation4 + $0x58] sm:$0xf] %vm2765, %v2618
  %2789 = vst.msk [vmem:[#allocation4 + $0x5c] sm:$0xf] %vm2765, %v2620
  %2790 = vst.msk [vmem:[#allocation4 + $0x60] sm:$0xf] %vm2765, %v2622
  %2791 = vst.msk [vmem:[#allocation4 + $0x64] sm:$0xf] %vm2765, %v2624
  %2792 = vst.msk [vmem:[#allocation4 + $0x68] sm:$0xf] %vm2765, %v2626
  %2793 = vst.msk [vmem:[#allocation4 + $0x6c] sm:$0xf] %vm2765, %v2628
  %2794 = vst.msk [vmem:[#allocation4 + $0x70] sm:$0xf] %vm2765, %v2630
  %2795 = vst.msk [vmem:[#allocation4 + $0x74] sm:$0xf] %vm2765, %v2632
  %2796 = vst.msk [vmem:[#allocation4 + $0x78] sm:$0xf] %vm2765, %v2634
  %2797 = vst.msk [vmem:[#allocation4 + $0x7c] sm:$0xf] %vm2765, %v2636
  %2798 = vst.msk [vmem:[#allocation4 + $0x80] sm:$0xf] %vm2765, %v2638
  %2799 = vst.msk [vmem:[#allocation4 + $0x84] sm:$0xf] %vm2765, %v2640
  %2800 = vst.msk [vmem:[#allocation4 + $0x88] sm:$0xf] %vm2765, %v2642
  %2801 = vst.msk [vmem:[#allocation4 + $0x8c] sm:$0xf] %vm2765, %v2644
  %2802 = vst.msk [vmem:[#allocation4 + $0x90] sm:$0xf] %vm2765, %v2646
  %2803 = vst.msk [vmem:[#allocation4 + $0x94] sm:$0xf] %vm2765, %v2648
  %2804 = vst.msk [vmem:[#allocation4 + $0x98] sm:$0xf] %vm2765, %v2650
  %2805 = vst.msk [vmem:[#allocation4 + $0x9c] sm:$0xf] %vm2765, %v2652
  %2806 = vst.msk [vmem:[#allocation4 + $0xa0] sm:$0xf] %vm2765, %v2654
  %2807 = vst.msk [vmem:[#allocation4 + $0xa4] sm:$0xf] %vm2765, %v2656
  %2808 = vst.msk [vmem:[#allocation4 + $0xa8] sm:$0xf] %vm2765, %v2658
  %2809 = vst.msk [vmem:[#allocation4 + $0xac] sm:$0xf] %vm2765, %v2660
  %2810 = vst.msk [vmem:[#allocation4 + $0xb0] sm:$0xf] %vm2765, %v2662
  %2811 = vst.msk [vmem:[#allocation4 + $0xb4] sm:$0xf] %vm2765, %v2664
  %2812 = vst.msk [vmem:[#allocation4 + $0xb8] sm:$0xf] %vm2765, %v2666
  %2813 = vst.msk [vmem:[#allocation4 + $0xbc] sm:$0xf] %vm2765, %v2668
  %2814 = vst.msk [vmem:[#allocation4 + $0xc0] sm:$0xf] %vm2765, %v2670
  %2815 = vst.msk [vmem:[#allocation4 + $0xc4] sm:$0xf] %vm2765, %v2672
  %2816 = vst.msk [vmem:[#allocation4 + $0xc8] sm:$0xf] %vm2765, %v2674
  %2817 = vst.msk [vmem:[#allocation4 + $0xcc] sm:$0xf] %vm2765, %v2676
  %2818 = vst.msk [vmem:[#allocation4 + $0xd0] sm:$0xf] %vm2765, %v2678
  %2819 = vst.msk [vmem:[#allocation4 + $0xd4] sm:$0xf] %vm2765, %v2680
  %2820 = vst.msk [vmem:[#allocation4 + $0xd8] sm:$0xf] %vm2765, %v2682
  %2821 = vst.msk [vmem:[#allocation4 + $0xdc] sm:$0xf] %vm2765, %v2684
  %2822 = vst.msk [vmem:[#allocation4 + $0xe0] sm:$0xf] %vm2765, %v2686
  %2823 = vst.msk [vmem:[#allocation4 + $0xe4] sm:$0xf] %vm2765, %v2688
  %2824 = vst.msk [vmem:[#allocation4 + $0xe8] sm:$0xf] %vm2765, %v2690
  %2825 = vst.msk [vmem:[#allocation4 + $0xec] sm:$0xf] %vm2765, %v2692
  %2826 = vst.msk [vmem:[#allocation4 + $0xf0] sm:$0xf] %vm2765, %v2694
  %2827 = vst.msk [vmem:[#allocation4 + $0xf4] sm:$0xf] %vm2765, %v2696
  %2828 = vst.msk [vmem:[#allocation4 + $0xf8] sm:$0xf] %vm2765, %v2698
  %2829 = vst.msk [vmem:[#allocation4 + $0xfc] sm:$0xf] %vm2765, %v2700
  %v2830 = vld [vmem:[%s328 + $0x2] sm:$0xff]
  %v2831 = vld [vmem:[%s328 + $0xa] sm:$0xff]
  %v2832 = vld [vmem:[%s328 + $0x1a] sm:$0xff]
  %v2833 = vld [vmem:[%s328 + $0x22] sm:$0xff]
  %v2834 = vld [vmem:[%s328 + $0x32] sm:$0xff]
  %v2835 = vld [vmem:[%s328 + $0x3a] sm:$0xff]
  %v2836 = vld [vmem:[%s328 + $0x4a] sm:$0xff]
  %v2837 = vld [vmem:[%s328 + $0x52] sm:$0xff]
  %v2838 = vld [vmem:[%s328 + $0x62] sm:$0xff]
  %v2839 = vld [vmem:[%s328 + $0x6a] sm:$0xff]
  %v2840 = vld [vmem:[%s328 + $0x7a] sm:$0xff]
  %v2841 = vld [vmem:[%s328 + $0x82] sm:$0xff]
  %v2842 = vld [vmem:[%s328 + $0x92] sm:$0xff]
  %v2843 = vld [vmem:[%s328 + $0x9a] sm:$0xff]
  %v2844 = vld [vmem:[%s328 + $0xaa] sm:$0xff]
  %v2845 = vld [vmem:[%s328 + $0xb2] sm:$0xff]
  %v2846 = vld [vmem:[%s328 + $0xc2] sm:$0xff]
  %v2847 = vld [vmem:[%s328 + $0xca] sm:$0xff]
  %v2848 = vld [vmem:[%s328 + $0xda] sm:$0xff]
  %v2849 = vld [vmem:[%s328 + $0xe2] sm:$0xff]
  %v2850 = vld [vmem:[%s328 + $0xf2] sm:$0xff]
  %v2851 = vld [vmem:[%s328 + $0xfa] sm:$0xff]
  %v2852 = vld [vmem:[%s328 + $0x10a] sm:$0xff]
  %v2853 = vld [vmem:[%s328 + $0x112] sm:$0xff]
  %v2854 = vld [vmem:[%s328 + $0x122] sm:$0xff]
  %v2855 = vld [vmem:[%s328 + $0x12a] sm:$0xff]
  %v2856 = vld [vmem:[%s328 + $0x13a] sm:$0xff]
  %v2857 = vld [vmem:[%s328 + $0x142] sm:$0xff]
  %v2858 = vld [vmem:[%s328 + $0x152] sm:$0xff]
  %v2859 = vld [vmem:[%s328 + $0x15a] sm:$0xff]
  %v2860 = vld [vmem:[%s328 + $0x16a] sm:$0xff]
  %v2861 = vld [vmem:[%s328 + $0x172] sm:$0xff]
  %v2862 = vld [vmem:[%s328 + $0x1b2] sm:$0xff]
  %v2863 = vld [vmem:[%s328 + $0x1ba] sm:$0xff]
  %v2864 = vld [vmem:[%s328 + $0x1ca] sm:$0xff]
  %v2865 = vld [vmem:[%s328 + $0x1d2] sm:$0xff]
  %v2866 = vld [vmem:[%s328 + $0x1e2] sm:$0xff]
  %v2867 = vld [vmem:[%s328 + $0x1ea] sm:$0xff]
  %v2868 = vld [vmem:[%s328 + $0x1fa] sm:$0xff]
  %v2869 = vld [vmem:[%s328 + $0x202] sm:$0xff]
  %v2870 = vld [vmem:[%s328 + $0x212] sm:$0xff]
  %v2871 = vld [vmem:[%s328 + $0x21a] sm:$0xff]
  %v2872 = vld [vmem:[%s328 + $0x22a] sm:$0xff]
  %v2873 = vld [vmem:[%s328 + $0x232] sm:$0xff]
  %v2874 = vld [vmem:[%s328 + $0x242] sm:$0xff]
  %v2875 = vld [vmem:[%s328 + $0x24a] sm:$0xff]
  %v2876 = vld [vmem:[%s328 + $0x25a] sm:$0xff]
  %v2877 = vld [vmem:[%s328 + $0x262] sm:$0xff]
  %v2878 = vld [vmem:[%s328 + $0x272] sm:$0xff]
  %v2879 = vld [vmem:[%s328 + $0x27a] sm:$0xff]
  %v2880 = vld [vmem:[%s328 + $0x28a] sm:$0xff]
  %v2881 = vld [vmem:[%s328 + $0x292] sm:$0xff]
  %v2882 = vld [vmem:[%s328 + $0x2a2] sm:$0xff]
  %v2883 = vld [vmem:[%s328 + $0x2aa] sm:$0xff]
  %v2884 = vld [vmem:[%s328 + $0x2ba] sm:$0xff]
  %v2885 = vld [vmem:[%s328 + $0x2c2] sm:$0xff]
  %v2886 = vld [vmem:[%s328 + $0x2d2] sm:$0xff]
  %v2887 = vld [vmem:[%s328 + $0x2da] sm:$0xff]
  %v2888 = vld [vmem:[%s328 + $0x2ea] sm:$0xff]
  %v2889 = vld [vmem:[%s328 + $0x2f2] sm:$0xff]
  %v2890 = vld [vmem:[%s328 + $0x302] sm:$0xff]
  %v2891 = vld [vmem:[%s328 + $0x30a] sm:$0xff]
  %v2892 = vld [vmem:[%s328 + $0x31a] sm:$0xff]
  %v2893 = vld [vmem:[%s328 + $0x322] sm:$0xff]
  %v2894 = vpack.c.bf16 %v2831, %v2830
  %v2895 = vpack.c.bf16 %v2833, %v2832
  %v2896 = vpack.c.bf16 %v2835, %v2834
  %v2897 = vpack.c.bf16 %v2837, %v2836
  %v2898 = vpack.c.bf16 %v2839, %v2838
  %v2899 = vpack.c.bf16 %v2841, %v2840
  %v2900 = vpack.c.bf16 %v2843, %v2842
  %v2901 = vpack.c.bf16 %v2845, %v2844
  %v2902 = vpack.c.bf16 %v2847, %v2846
  %v2903 = vpack.c.bf16 %v2849, %v2848
  %v2904 = vpack.c.bf16 %v2851, %v2850
  %v2905 = vpack.c.bf16 %v2853, %v2852
  %v2906 = vpack.c.bf16 %v2855, %v2854
  %v2907 = vpack.c.bf16 %v2857, %v2856
  %v2908 = vpack.c.bf16 %v2859, %v2858
  %v2909 = vpack.c.bf16 %v2861, %v2860
  %v2910 = vpack.c.bf16 %v2863, %v2862
  %v2911 = vpack.c.bf16 %v2865, %v2864
  %v2912 = vpack.c.bf16 %v2867, %v2866
  %v2913 = vpack.c.bf16 %v2869, %v2868
  %v2914 = vpack.c.bf16 %v2871, %v2870
  %v2915 = vpack.c.bf16 %v2873, %v2872
  %v2916 = vpack.c.bf16 %v2875, %v2874
  %v2917 = vpack.c.bf16 %v2877, %v2876
  %v2918 = vpack.c.bf16 %v2879, %v2878
  %v2919 = vpack.c.bf16 %v2881, %v2880
  %v2920 = vpack.c.bf16 %v2883, %v2882
  %v2921 = vpack.c.bf16 %v2885, %v2884
  %v2922 = vpack.c.bf16 %v2887, %v2886
  %v2923 = vpack.c.bf16 %v2889, %v2888
  %v2924 = vpack.c.bf16 %v2891, %v2890
  %v2925 = vpack.c.bf16 %v2893, %v2892
  %v2958 = vunpack.c.l.b16 %v2894
  %v2959 = vunpack.c.h.b16 %v2894
  %v2960 = vunpack.c.l.b16 %v2895
  %v2961 = vunpack.c.h.b16 %v2895
  %v2962 = vunpack.c.l.b16 %v2896
  %v2963 = vunpack.c.h.b16 %v2896
  %v2964 = vunpack.c.l.b16 %v2897
  %v2965 = vunpack.c.h.b16 %v2897
  %v2966 = vunpack.c.l.b16 %v2898
  %v2967 = vunpack.c.h.b16 %v2898
  %v2968 = vunpack.c.l.b16 %v2899
  %v2969 = vunpack.c.h.b16 %v2899
  %v2970 = vunpack.c.l.b16 %v2900
  %v2971 = vunpack.c.h.b16 %v2900
  %v2972 = vunpack.c.l.b16 %v2901
  %v2973 = vunpack.c.h.b16 %v2901
  %v2974 = vunpack.c.l.b16 %v2902
  %v2975 = vunpack.c.h.b16 %v2902
  %v2976 = vunpack.c.l.b16 %v2903
  %v2977 = vunpack.c.h.b16 %v2903
  %v2978 = vunpack.c.l.b16 %v2904
  %v2979 = vunpack.c.h.b16 %v2904
  %v2980 = vunpack.c.l.b16 %v2905
  %v2981 = vunpack.c.h.b16 %v2905
  %v2982 = vunpack.c.l.b16 %v2906
  %v2983 = vunpack.c.h.b16 %v2906
  %v2984 = vunpack.c.l.b16 %v2907
  %v2985 = vunpack.c.h.b16 %v2907
  %v2986 = vunpack.c.l.b16 %v2908
  %v2987 = vunpack.c.h.b16 %v2908
  %v2988 = vunpack.c.l.b16 %v2909
  %v2989 = vunpack.c.h.b16 %v2909
  %v2990 = vunpack.c.l.b16 %v2910
  %v2991 = vunpack.c.h.b16 %v2910
  %v2992 = vunpack.c.l.b16 %v2911
  %v2993 = vunpack.c.h.b16 %v2911
  %v2994 = vunpack.c.l.b16 %v2912
  %v2995 = vunpack.c.h.b16 %v2912
  %v2996 = vunpack.c.l.b16 %v2913
  %v2997 = vunpack.c.h.b16 %v2913
  %v2998 = vunpack.c.l.b16 %v2914
  %v2999 = vunpack.c.h.b16 %v2914
  %v3000 = vunpack.c.l.b16 %v2915
  %v3001 = vunpack.c.h.b16 %v2915
  %v3002 = vunpack.c.l.b16 %v2916
  %v3003 = vunpack.c.h.b16 %v2916
  %v3004 = vunpack.c.l.b16 %v2917
  %v3005 = vunpack.c.h.b16 %v2917
  %v3006 = vunpack.c.l.b16 %v2918
  %v3007 = vunpack.c.h.b16 %v2918
  %v3008 = vunpack.c.l.b16 %v2919
  %v3009 = vunpack.c.h.b16 %v2919
  %v3010 = vunpack.c.l.b16 %v2920
  %v3011 = vunpack.c.h.b16 %v2920
  %v3012 = vunpack.c.l.b16 %v2921
  %v3013 = vunpack.c.h.b16 %v2921
  %v3014 = vunpack.c.l.b16 %v2922
  %v3015 = vunpack.c.h.b16 %v2922
  %v3016 = vunpack.c.l.b16 %v2923
  %v3017 = vunpack.c.h.b16 %v2923
  %v3018 = vunpack.c.l.b16 %v2924
  %v3019 = vunpack.c.h.b16 %v2924
  %v3020 = vunpack.c.l.b16 %v2925
  %v3021 = vunpack.c.h.b16 %v2925
  %v3022 = vpack.c.b16 %v2958, %v2958
  %v3023 = vpack.c.b16 %v2959, %v2959
  %v3024 = vpack.c.b16 %v2960, %v2960
  %v3025 = vpack.c.b16 %v2961, %v2961
  %v3026 = vpack.c.b16 %v2962, %v2962
  %v3027 = vpack.c.b16 %v2963, %v2963
  %v3028 = vpack.c.b16 %v2964, %v2964
  %v3029 = vpack.c.b16 %v2965, %v2965
  %v3030 = vpack.c.b16 %v2966, %v2966
  %v3031 = vpack.c.b16 %v2967, %v2967
  %v3032 = vpack.c.b16 %v2968, %v2968
  %v3033 = vpack.c.b16 %v2969, %v2969
  %v3034 = vpack.c.b16 %v2970, %v2970
  %v3035 = vpack.c.b16 %v2971, %v2971
  %v3036 = vpack.c.b16 %v2972, %v2972
  %v3037 = vpack.c.b16 %v2973, %v2973
  %v3038 = vpack.c.b16 %v2974, %v2974
  %v3039 = vpack.c.b16 %v2975, %v2975
  %v3040 = vpack.c.b16 %v2976, %v2976
  %v3041 = vpack.c.b16 %v2977, %v2977
  %v3042 = vpack.c.b16 %v2978, %v2978
  %v3043 = vpack.c.b16 %v2979, %v2979
  %v3044 = vpack.c.b16 %v2980, %v2980
  %v3045 = vpack.c.b16 %v2981, %v2981
  %v3046 = vpack.c.b16 %v2982, %v2982
  %v3047 = vpack.c.b16 %v2983, %v2983
  %v3048 = vpack.c.b16 %v2984, %v2984
  %v3049 = vpack.c.b16 %v2985, %v2985
  %v3050 = vpack.c.b16 %v2986, %v2986
  %v3051 = vpack.c.b16 %v2987, %v2987
  %v3052 = vpack.c.b16 %v2988, %v2988
  %v3053 = vpack.c.b16 %v2989, %v2989
  %v3054 = vpack.c.b16 %v2990, %v2990
  %v3055 = vpack.c.b16 %v2991, %v2991
  %v3056 = vpack.c.b16 %v2992, %v2992
  %v3057 = vpack.c.b16 %v2993, %v2993
  %v3058 = vpack.c.b16 %v2994, %v2994
  %v3059 = vpack.c.b16 %v2995, %v2995
  %v3060 = vpack.c.b16 %v2996, %v2996
  %v3061 = vpack.c.b16 %v2997, %v2997
  %v3062 = vpack.c.b16 %v2998, %v2998
  %v3063 = vpack.c.b16 %v2999, %v2999
  %v3064 = vpack.c.b16 %v3000, %v3000
  %v3065 = vpack.c.b16 %v3001, %v3001
  %v3066 = vpack.c.b16 %v3002, %v3002
  %v3067 = vpack.c.b16 %v3003, %v3003
  %v3068 = vpack.c.b16 %v3004, %v3004
  %v3069 = vpack.c.b16 %v3005, %v3005
  %v3070 = vpack.c.b16 %v3006, %v3006
  %v3071 = vpack.c.b16 %v3007, %v3007
  %v3072 = vpack.c.b16 %v3008, %v3008
  %v3073 = vpack.c.b16 %v3009, %v3009
  %v3074 = vpack.c.b16 %v3010, %v3010
  %v3075 = vpack.c.b16 %v3011, %v3011
  %v3076 = vpack.c.b16 %v3012, %v3012
  %v3077 = vpack.c.b16 %v3013, %v3013
  %v3078 = vpack.c.b16 %v3014, %v3014
  %v3079 = vpack.c.b16 %v3015, %v3015
  %v3080 = vpack.c.b16 %v3016, %v3016
  %v3081 = vpack.c.b16 %v3017, %v3017
  %v3082 = vpack.c.b16 %v3018, %v3018
  %v3083 = vpack.c.b16 %v3019, %v3019
  %v3084 = vpack.c.b16 %v3020, %v3020
  %v3085 = vpack.c.b16 %v3021, %v3021
  %3086 = vrot.lane.b32.xlu0 %v3022, 20
  %v3087 = vpop.permute.xlu0 %3086
  %3088 = vrot.lane.b32.xlu0 %v3023, 20
  %v3089 = vpop.permute.xlu0 %3088
  %3090 = vrot.lane.b32.xlu0 %v3024, 20
  %v3091 = vpop.permute.xlu0 %3090
  %3092 = vrot.lane.b32.xlu0 %v3025, 20
  %v3093 = vpop.permute.xlu0 %3092
  %3094 = vrot.lane.b32.xlu0 %v3026, 20
  %v3095 = vpop.permute.xlu0 %3094
  %3096 = vrot.lane.b32.xlu0 %v3027, 20
  %v3097 = vpop.permute.xlu0 %3096
  %3098 = vrot.lane.b32.xlu0 %v3028, 20
  %v3099 = vpop.permute.xlu0 %3098
  %3100 = vrot.lane.b32.xlu0 %v3029, 20
  %v3101 = vpop.permute.xlu0 %3100
  %3102 = vrot.lane.b32.xlu0 %v3030, 20
  %v3103 = vpop.permute.xlu0 %3102
  %3104 = vrot.lane.b32.xlu0 %v3031, 20
  %v3105 = vpop.permute.xlu0 %3104
  %3106 = vrot.lane.b32.xlu0 %v3032, 20
  %v3107 = vpop.permute.xlu0 %3106
  %3108 = vrot.lane.b32.xlu0 %v3033, 20
  %v3109 = vpop.permute.xlu0 %3108
  %3110 = vrot.lane.b32.xlu0 %v3034, 20
  %v3111 = vpop.permute.xlu0 %3110
  %3112 = vrot.lane.b32.xlu0 %v3035, 20
  %v3113 = vpop.permute.xlu0 %3112
  %3114 = vrot.lane.b32.xlu0 %v3036, 20
  %v3115 = vpop.permute.xlu0 %3114
  %3116 = vrot.lane.b32.xlu0 %v3037, 20
  %v3117 = vpop.permute.xlu0 %3116
  %3118 = vrot.lane.b32.xlu0 %v3038, 20
  %v3119 = vpop.permute.xlu0 %3118
  %3120 = vrot.lane.b32.xlu0 %v3039, 20
  %v3121 = vpop.permute.xlu0 %3120
  %3122 = vrot.lane.b32.xlu0 %v3040, 20
  %v3123 = vpop.permute.xlu0 %3122
  %3124 = vrot.lane.b32.xlu0 %v3041, 20
  %v3125 = vpop.permute.xlu0 %3124
  %3126 = vrot.lane.b32.xlu0 %v3042, 20
  %v3127 = vpop.permute.xlu0 %3126
  %3128 = vrot.lane.b32.xlu0 %v3043, 20
  %v3129 = vpop.permute.xlu0 %3128
  %3130 = vrot.lane.b32.xlu0 %v3044, 20
  %v3131 = vpop.permute.xlu0 %3130
  %3132 = vrot.lane.b32.xlu0 %v3045, 20
  %v3133 = vpop.permute.xlu0 %3132
  %3134 = vrot.lane.b32.xlu0 %v3046, 20
  %v3135 = vpop.permute.xlu0 %3134
  %3136 = vrot.lane.b32.xlu0 %v3047, 20
  %v3137 = vpop.permute.xlu0 %3136
  %3138 = vrot.lane.b32.xlu0 %v3048, 20
  %v3139 = vpop.permute.xlu0 %3138
  %3140 = vrot.lane.b32.xlu0 %v3049, 20
  %v3141 = vpop.permute.xlu0 %3140
  %3142 = vrot.lane.b32.xlu0 %v3050, 20
  %v3143 = vpop.permute.xlu0 %3142
  %3144 = vrot.lane.b32.xlu0 %v3051, 20
  %v3145 = vpop.permute.xlu0 %3144
  %3146 = vrot.lane.b32.xlu0 %v3052, 20
  %v3147 = vpop.permute.xlu0 %3146
  %3148 = vrot.lane.b32.xlu0 %v3053, 20
  %v3149 = vpop.permute.xlu0 %3148
  %3150 = vrot.lane.b32.xlu0 %v3054, 20
  %v3151 = vpop.permute.xlu0 %3150
  %3152 = vrot.lane.b32.xlu0 %v3055, 20
  %v3153 = vpop.permute.xlu0 %3152
  %3154 = vrot.lane.b32.xlu0 %v3056, 20
  %v3155 = vpop.permute.xlu0 %3154
  %3156 = vrot.lane.b32.xlu0 %v3057, 20
  %v3157 = vpop.permute.xlu0 %3156
  %3158 = vrot.lane.b32.xlu0 %v3058, 20
  %v3159 = vpop.permute.xlu0 %3158
  %3160 = vrot.lane.b32.xlu0 %v3059, 20
  %v3161 = vpop.permute.xlu0 %3160
  %3162 = vrot.lane.b32.xlu0 %v3060, 20
  %v3163 = vpop.permute.xlu0 %3162
  %3164 = vrot.lane.b32.xlu0 %v3061, 20
  %v3165 = vpop.permute.xlu0 %3164
  %3166 = vrot.lane.b32.xlu0 %v3062, 20
  %v3167 = vpop.permute.xlu0 %3166
  %3168 = vrot.lane.b32.xlu0 %v3063, 20
  %v3169 = vpop.permute.xlu0 %3168
  %3170 = vrot.lane.b32.xlu0 %v3064, 20
  %v3171 = vpop.permute.xlu0 %3170
  %3172 = vrot.lane.b32.xlu0 %v3065, 20
  %v3173 = vpop.permute.xlu0 %3172
  %3174 = vrot.lane.b32.xlu0 %v3066, 20
  %v3175 = vpop.permute.xlu0 %3174
  %3176 = vrot.lane.b32.xlu0 %v3067, 20
  %v3177 = vpop.permute.xlu0 %3176
  %3178 = vrot.lane.b32.xlu0 %v3068, 20
  %v3179 = vpop.permute.xlu0 %3178
  %3180 = vrot.lane.b32.xlu0 %v3069, 20
  %v3181 = vpop.permute.xlu0 %3180
  %3182 = vrot.lane.b32.xlu0 %v3070, 20
  %v3183 = vpop.permute.xlu0 %3182
  %3184 = vrot.lane.b32.xlu0 %v3071, 20
  %v3185 = vpop.permute.xlu0 %3184
  %3186 = vrot.lane.b32.xlu0 %v3072, 20
  %v3187 = vpop.permute.xlu0 %3186
  %3188 = vrot.lane.b32.xlu0 %v3073, 20
  %v3189 = vpop.permute.xlu0 %3188
  %3190 = vrot.lane.b32.xlu0 %v3074, 20
  %v3191 = vpop.permute.xlu0 %3190
  %3192 = vrot.lane.b32.xlu0 %v3075, 20
  %v3193 = vpop.permute.xlu0 %3192
  %3194 = vrot.lane.b32.xlu0 %v3076, 20
  %v3195 = vpop.permute.xlu0 %3194
  %3196 = vrot.lane.b32.xlu0 %v3077, 20
  %v3197 = vpop.permute.xlu0 %3196
  %3198 = vrot.lane.b32.xlu0 %v3078, 20
  %v3199 = vpop.permute.xlu0 %3198
  %3200 = vrot.lane.b32.xlu0 %v3079, 20
  %v3201 = vpop.permute.xlu0 %3200
  %3202 = vrot.lane.b32.xlu0 %v3080, 20
  %v3203 = vpop.permute.xlu0 %3202
  %3204 = vrot.lane.b32.xlu0 %v3081, 20
  %v3205 = vpop.permute.xlu0 %3204
  %3206 = vrot.lane.b32.xlu0 %v3082, 20
  %v3207 = vpop.permute.xlu0 %3206
  %3208 = vrot.lane.b32.xlu0 %v3083, 20
  %v3209 = vpop.permute.xlu0 %3208
  %3210 = vrot.lane.b32.xlu0 %v3084, 20
  %v3211 = vpop.permute.xlu0 %3210
  %3212 = vrot.lane.b32.xlu0 %v3085, 20
  %v3213 = vpop.permute.xlu0 %3212
  %vm3278 = vcmask 191648
  %3279 = vst.msk [vmem:[#allocation4] sm:$0xf] %vm3278, %v3087
  %3280 = vst.msk [vmem:[#allocation4 + $0x4] sm:$0xf] %vm3278, %v3089
  %3281 = vst.msk [vmem:[#allocation4 + $0x8] sm:$0xf] %vm3278, %v3091
  %3282 = vst.msk [vmem:[#allocation4 + $0xc] sm:$0xf] %vm3278, %v3093
  %3283 = vst.msk [vmem:[#allocation4 + $0x10] sm:$0xf] %vm3278, %v3095
  %3284 = vst.msk [vmem:[#allocation4 + $0x14] sm:$0xf] %vm3278, %v3097
  %3285 = vst.msk [vmem:[#allocation4 + $0x18] sm:$0xf] %vm3278, %v3099
  %3286 = vst.msk [vmem:[#allocation4 + $0x1c] sm:$0xf] %vm3278, %v3101
  %3287 = vst.msk [vmem:[#allocation4 + $0x20] sm:$0xf] %vm3278, %v3103
  %3288 = vst.msk [vmem:[#allocation4 + $0x24] sm:$0xf] %vm3278, %v3105
  %3289 = vst.msk [vmem:[#allocation4 + $0x28] sm:$0xf] %vm3278, %v3107
  %3290 = vst.msk [vmem:[#allocation4 + $0x2c] sm:$0xf] %vm3278, %v3109
  %3291 = vst.msk [vmem:[#allocation4 + $0x30] sm:$0xf] %vm3278, %v3111
  %3292 = vst.msk [vmem:[#allocation4 + $0x34] sm:$0xf] %vm3278, %v3113
  %3293 = vst.msk [vmem:[#allocation4 + $0x38] sm:$0xf] %vm3278, %v3115
  %3294 = vst.msk [vmem:[#allocation4 + $0x3c] sm:$0xf] %vm3278, %v3117
  %3295 = vst.msk [vmem:[#allocation4 + $0x40] sm:$0xf] %vm3278, %v3119
  %3296 = vst.msk [vmem:[#allocation4 + $0x44] sm:$0xf] %vm3278, %v3121
  %3297 = vst.msk [vmem:[#allocation4 + $0x48] sm:$0xf] %vm3278, %v3123
  %3298 = vst.msk [vmem:[#allocation4 + $0x4c] sm:$0xf] %vm3278, %v3125
  %3299 = vst.msk [vmem:[#allocation4 + $0x50] sm:$0xf] %vm3278, %v3127
  %3300 = vst.msk [vmem:[#allocation4 + $0x54] sm:$0xf] %vm3278, %v3129
  %3301 = vst.msk [vmem:[#allocation4 + $0x58] sm:$0xf] %vm3278, %v3131
  %3302 = vst.msk [vmem:[#allocation4 + $0x5c] sm:$0xf] %vm3278, %v3133
  %3303 = vst.msk [vmem:[#allocation4 + $0x60] sm:$0xf] %vm3278, %v3135
  %3304 = vst.msk [vmem:[#allocation4 + $0x64] sm:$0xf] %vm3278, %v3137
  %3305 = vst.msk [vmem:[#allocation4 + $0x68] sm:$0xf] %vm3278, %v3139
  %3306 = vst.msk [vmem:[#allocation4 + $0x6c] sm:$0xf] %vm3278, %v3141
  %3307 = vst.msk [vmem:[#allocation4 + $0x70] sm:$0xf] %vm3278, %v3143
  %3308 = vst.msk [vmem:[#allocation4 + $0x74] sm:$0xf] %vm3278, %v3145
  %3309 = vst.msk [vmem:[#allocation4 + $0x78] sm:$0xf] %vm3278, %v3147
  %3310 = vst.msk [vmem:[#allocation4 + $0x7c] sm:$0xf] %vm3278, %v3149
  %3311 = vst.msk [vmem:[#allocation4 + $0x80] sm:$0xf] %vm3278, %v3151
  %3312 = vst.msk [vmem:[#allocation4 + $0x84] sm:$0xf] %vm3278, %v3153
  %3313 = vst.msk [vmem:[#allocation4 + $0x88] sm:$0xf] %vm3278, %v3155
  %3314 = vst.msk [vmem:[#allocation4 + $0x8c] sm:$0xf] %vm3278, %v3157
  %3315 = vst.msk [vmem:[#allocation4 + $0x90] sm:$0xf] %vm3278, %v3159
  %3316 = vst.msk [vmem:[#allocation4 + $0x94] sm:$0xf] %vm3278, %v3161
  %3317 = vst.msk [vmem:[#allocation4 + $0x98] sm:$0xf] %vm3278, %v3163
  %3318 = vst.msk [vmem:[#allocation4 + $0x9c] sm:$0xf] %vm3278, %v3165
  %3319 = vst.msk [vmem:[#allocation4 + $0xa0] sm:$0xf] %vm3278, %v3167
  %3320 = vst.msk [vmem:[#allocation4 + $0xa4] sm:$0xf] %vm3278, %v3169
  %3321 = vst.msk [vmem:[#allocation4 + $0xa8] sm:$0xf] %vm3278, %v3171
  %3322 = vst.msk [vmem:[#allocation4 + $0xac] sm:$0xf] %vm3278, %v3173
  %3323 = vst.msk [vmem:[#allocation4 + $0xb0] sm:$0xf] %vm3278, %v3175
  %3324 = vst.msk [vmem:[#allocation4 + $0xb4] sm:$0xf] %vm3278, %v3177
  %3325 = vst.msk [vmem:[#allocation4 + $0xb8] sm:$0xf] %vm3278, %v3179
  %3326 = vst.msk [vmem:[#allocation4 + $0xbc] sm:$0xf] %vm3278, %v3181
  %3327 = vst.msk [vmem:[#allocation4 + $0xc0] sm:$0xf] %vm3278, %v3183
  %3328 = vst.msk [vmem:[#allocation4 + $0xc4] sm:$0xf] %vm3278, %v3185
  %3329 = vst.msk [vmem:[#allocation4 + $0xc8] sm:$0xf] %vm3278, %v3187
  %3330 = vst.msk [vmem:[#allocation4 + $0xcc] sm:$0xf] %vm3278, %v3189
  %3331 = vst.msk [vmem:[#allocation4 + $0xd0] sm:$0xf] %vm3278, %v3191
  %3332 = vst.msk [vmem:[#allocation4 + $0xd4] sm:$0xf] %vm3278, %v3193
  %3333 = vst.msk [vmem:[#allocation4 + $0xd8] sm:$0xf] %vm3278, %v3195
  %3334 = vst.msk [vmem:[#allocation4 + $0xdc] sm:$0xf] %vm3278, %v3197
  %3335 = vst.msk [vmem:[#allocation4 + $0xe0] sm:$0xf] %vm3278, %v3199
  %3336 = vst.msk [vmem:[#allocation4 + $0xe4] sm:$0xf] %vm3278, %v3201
  %3337 = vst.msk [vmem:[#allocation4 + $0xe8] sm:$0xf] %vm3278, %v3203
  %3338 = vst.msk [vmem:[#allocation4 + $0xec] sm:$0xf] %vm3278, %v3205
  %3339 = vst.msk [vmem:[#allocation4 + $0xf0] sm:$0xf] %vm3278, %v3207
  %3340 = vst.msk [vmem:[#allocation4 + $0xf4] sm:$0xf] %vm3278, %v3209
  %3341 = vst.msk [vmem:[#allocation4 + $0xf8] sm:$0xf] %vm3278, %v3211
  %3342 = vst.msk [vmem:[#allocation4 + $0xfc] sm:$0xf] %vm3278, %v3213
  %s3343 = scalar_lea.vmem [#allocation2], 48
  %v3344 = vld [vmem:[%s3343] sm:$0xff]
  %v3345 = vld [vmem:[%s3343 + $0x8] sm:$0xff]
  %v3346 = vld [vmem:[%s3343 + $0x18] sm:$0xff]
  %v3347 = vld [vmem:[%s3343 + $0x20] sm:$0xff]
  %v3348 = vld [vmem:[%s3343 + $0x30] sm:$0xff]
  %v3349 = vld [vmem:[%s3343 + $0x38] sm:$0xff]
  %v3350 = vld [vmem:[%s3343 + $0x48] sm:$0xff]
  %v3351 = vld [vmem:[%s3343 + $0x50] sm:$0xff]
  %v3352 = vld [vmem:[%s3343 + $0x60] sm:$0xff]
  %v3353 = vld [vmem:[%s3343 + $0x68] sm:$0xff]
  %v3354 = vld [vmem:[%s3343 + $0x78] sm:$0xff]
  %v3355 = vld [vmem:[%s3343 + $0x80] sm:$0xff]
  %v3356 = vld [vmem:[%s3343 + $0x90] sm:$0xff]
  %v3357 = vld [vmem:[%s3343 + $0x98] sm:$0xff]
  %v3358 = vld [vmem:[%s3343 + $0xa8] sm:$0xff]
  %v3359 = vld [vmem:[%s3343 + $0xb0] sm:$0xff]
  %v3360 = vld [vmem:[%s3343 + $0xc0] sm:$0xff]
  %v3361 = vld [vmem:[%s3343 + $0xc8] sm:$0xff]
  %v3362 = vld [vmem:[%s3343 + $0xd8] sm:$0xff]
  %v3363 = vld [vmem:[%s3343 + $0xe0] sm:$0xff]
  %v3364 = vld [vmem:[%s3343 + $0xf0] sm:$0xff]
  %v3365 = vld [vmem:[%s3343 + $0xf8] sm:$0xff]
  %v3366 = vld [vmem:[%s3343 + $0x108] sm:$0xff]
  %v3367 = vld [vmem:[%s3343 + $0x110] sm:$0xff]
  %v3368 = vld [vmem:[%s3343 + $0x120] sm:$0xff]
  %v3369 = vld [vmem:[%s3343 + $0x128] sm:$0xff]
  %v3370 = vld [vmem:[%s3343 + $0x138] sm:$0xff]
  %v3371 = vld [vmem:[%s3343 + $0x140] sm:$0xff]
  %v3372 = vld [vmem:[%s3343 + $0x150] sm:$0xff]
  %v3373 = vld [vmem:[%s3343 + $0x158] sm:$0xff]
  %v3374 = vld [vmem:[%s3343 + $0x168] sm:$0xff]
  %v3375 = vld [vmem:[%s3343 + $0x170] sm:$0xff]
  %v3376 = vld [vmem:[%s3343 + $0x1b0] sm:$0xff]
  %v3377 = vld [vmem:[%s3343 + $0x1b8] sm:$0xff]
  %v3378 = vld [vmem:[%s3343 + $0x1c8] sm:$0xff]
  %v3379 = vld [vmem:[%s3343 + $0x1d0] sm:$0xff]
  %v3380 = vld [vmem:[%s3343 + $0x1e0] sm:$0xff]
  %v3381 = vld [vmem:[%s3343 + $0x1e8] sm:$0xff]
  %v3382 = vld [vmem:[%s3343 + $0x1f8] sm:$0xff]
  %v3383 = vld [vmem:[%s3343 + $0x200] sm:$0xff]
  %v3384 = vld [vmem:[%s3343 + $0x210] sm:$0xff]
  %v3385 = vld [vmem:[%s3343 + $0x218] sm:$0xff]
  %v3386 = vld [vmem:[%s3343 + $0x228] sm:$0xff]
  %v3387 = vld [vmem:[%s3343 + $0x230] sm:$0xff]
  %v3388 = vld [vmem:[%s3343 + $0x240] sm:$0xff]
  %v3389 = vld [vmem:[%s3343 + $0x248] sm:$0xff]
  %v3390 = vld [vmem:[%s3343 + $0x258] sm:$0xff]
  %v3391 = vld [vmem:[%s3343 + $0x260] sm:$0xff]
  %v3392 = vld [vmem:[%s3343 + $0x270] sm:$0xff]
  %v3393 = vld [vmem:[%s3343 + $0x278] sm:$0xff]
  %v3394 = vld [vmem:[%s3343 + $0x288] sm:$0xff]
  %v3395 = vld [vmem:[%s3343 + $0x290] sm:$0xff]
  %v3396 = vld [vmem:[%s3343 + $0x2a0] sm:$0xff]
  %v3397 = vld [vmem:[%s3343 + $0x2a8] sm:$0xff]
  %v3398 = vld [vmem:[%s3343 + $0x2b8] sm:$0xff]
  %v3399 = vld [vmem:[%s3343 + $0x2c0] sm:$0xff]
  %v3400 = vld [vmem:[%s3343 + $0x2d0] sm:$0xff]
  %v3401 = vld [vmem:[%s3343 + $0x2d8] sm:$0xff]
  %v3402 = vld [vmem:[%s3343 + $0x2e8] sm:$0xff]
  %v3403 = vld [vmem:[%s3343 + $0x2f0] sm:$0xff]
  %v3404 = vld [vmem:[%s3343 + $0x300] sm:$0xff]
  %v3405 = vld [vmem:[%s3343 + $0x308] sm:$0xff]
  %v3406 = vld [vmem:[%s3343 + $0x318] sm:$0xff]
  %v3407 = vld [vmem:[%s3343 + $0x320] sm:$0xff]
  %v3408 = vpack.c.bf16 %v3345, %v3344
  %v3409 = vpack.c.bf16 %v3347, %v3346
  %v3410 = vpack.c.bf16 %v3349, %v3348
  %v3411 = vpack.c.bf16 %v3351, %v3350
  %v3412 = vpack.c.bf16 %v3353, %v3352
  %v3413 = vpack.c.bf16 %v3355, %v3354
  %v3414 = vpack.c.bf16 %v3357, %v3356
  %v3415 = vpack.c.bf16 %v3359, %v3358
  %v3416 = vpack.c.bf16 %v3361, %v3360
  %v3417 = vpack.c.bf16 %v3363, %v3362
  %v3418 = vpack.c.bf16 %v3365, %v3364
  %v3419 = vpack.c.bf16 %v3367, %v3366
  %v3420 = vpack.c.bf16 %v3369, %v3368
  %v3421 = vpack.c.bf16 %v3371, %v3370
  %v3422 = vpack.c.bf16 %v3373, %v3372
  %v3423 = vpack.c.bf16 %v3375, %v3374
  %v3424 = vpack.c.bf16 %v3377, %v3376
  %v3425 = vpack.c.bf16 %v3379, %v3378
  %v3426 = vpack.c.bf16 %v3381, %v3380
  %v3427 = vpack.c.bf16 %v3383, %v3382
  %v3428 = vpack.c.bf16 %v3385, %v3384
  %v3429 = vpack.c.bf16 %v3387, %v3386
  %v3430 = vpack.c.bf16 %v3389, %v3388
  %v3431 = vpack.c.bf16 %v3391, %v3390
  %v3432 = vpack.c.bf16 %v3393, %v3392
  %v3433 = vpack.c.bf16 %v3395, %v3394
  %v3434 = vpack.c.bf16 %v3397, %v3396
  %v3435 = vpack.c.bf16 %v3399, %v3398
  %v3436 = vpack.c.bf16 %v3401, %v3400
  %v3437 = vpack.c.bf16 %v3403, %v3402
  %v3438 = vpack.c.bf16 %v3405, %v3404
  %v3439 = vpack.c.bf16 %v3407, %v3406
  %v3472 = vunpack.c.l.b16 %v3408
  %v3473 = vunpack.c.h.b16 %v3408
  %v3474 = vunpack.c.l.b16 %v3409
  %v3475 = vunpack.c.h.b16 %v3409
  %v3476 = vunpack.c.l.b16 %v3410
  %v3477 = vunpack.c.h.b16 %v3410
  %v3478 = vunpack.c.l.b16 %v3411
  %v3479 = vunpack.c.h.b16 %v3411
  %v3480 = vunpack.c.l.b16 %v3412
  %v3481 = vunpack.c.h.b16 %v3412
  %v3482 = vunpack.c.l.b16 %v3413
  %v3483 = vunpack.c.h.b16 %v3413
  %v3484 = vunpack.c.l.b16 %v3414
  %v3485 = vunpack.c.h.b16 %v3414
  %v3486 = vunpack.c.l.b16 %v3415
  %v3487 = vunpack.c.h.b16 %v3415
  %v3488 = vunpack.c.l.b16 %v3416
  %v3489 = vunpack.c.h.b16 %v3416
  %v3490 = vunpack.c.l.b16 %v3417
  %v3491 = vunpack.c.h.b16 %v3417
  %v3492 = vunpack.c.l.b16 %v3418
  %v3493 = vunpack.c.h.b16 %v3418
  %v3494 = vunpack.c.l.b16 %v3419
  %v3495 = vunpack.c.h.b16 %v3419
  %v3496 = vunpack.c.l.b16 %v3420
  %v3497 = vunpack.c.h.b16 %v3420
  %v3498 = vunpack.c.l.b16 %v3421
  %v3499 = vunpack.c.h.b16 %v3421
  %v3500 = vunpack.c.l.b16 %v3422
  %v3501 = vunpack.c.h.b16 %v3422
  %v3502 = vunpack.c.l.b16 %v3423
  %v3503 = vunpack.c.h.b16 %v3423
  %v3504 = vunpack.c.l.b16 %v3424
  %v3505 = vunpack.c.h.b16 %v3424
  %v3506 = vunpack.c.l.b16 %v3425
  %v3507 = vunpack.c.h.b16 %v3425
  %v3508 = vunpack.c.l.b16 %v3426
  %v3509 = vunpack.c.h.b16 %v3426
  %v3510 = vunpack.c.l.b16 %v3427
  %v3511 = vunpack.c.h.b16 %v3427
  %v3512 = vunpack.c.l.b16 %v3428
  %v3513 = vunpack.c.h.b16 %v3428
  %v3514 = vunpack.c.l.b16 %v3429
  %v3515 = vunpack.c.h.b16 %v3429
  %v3516 = vunpack.c.l.b16 %v3430
  %v3517 = vunpack.c.h.b16 %v3430
  %v3518 = vunpack.c.l.b16 %v3431
  %v3519 = vunpack.c.h.b16 %v3431
  %v3520 = vunpack.c.l.b16 %v3432
  %v3521 = vunpack.c.h.b16 %v3432
  %v3522 = vunpack.c.l.b16 %v3433
  %v3523 = vunpack.c.h.b16 %v3433
  %v3524 = vunpack.c.l.b16 %v3434
  %v3525 = vunpack.c.h.b16 %v3434
  %v3526 = vunpack.c.l.b16 %v3435
  %v3527 = vunpack.c.h.b16 %v3435
  %v3528 = vunpack.c.l.b16 %v3436
  %v3529 = vunpack.c.h.b16 %v3436
  %v3530 = vunpack.c.l.b16 %v3437
  %v3531 = vunpack.c.h.b16 %v3437
  %v3532 = vunpack.c.l.b16 %v3438
  %v3533 = vunpack.c.h.b16 %v3438
  %v3534 = vunpack.c.l.b16 %v3439
  %v3535 = vunpack.c.h.b16 %v3439
  %v3536 = vpack.c.b16 %v3472, %v3472
  %v3537 = vpack.c.b16 %v3473, %v3473
  %v3538 = vpack.c.b16 %v3474, %v3474
  %v3539 = vpack.c.b16 %v3475, %v3475
  %v3540 = vpack.c.b16 %v3476, %v3476
  %v3541 = vpack.c.b16 %v3477, %v3477
  %v3542 = vpack.c.b16 %v3478, %v3478
  %v3543 = vpack.c.b16 %v3479, %v3479
  %v3544 = vpack.c.b16 %v3480, %v3480
  %v3545 = vpack.c.b16 %v3481, %v3481
  %v3546 = vpack.c.b16 %v3482, %v3482
  %v3547 = vpack.c.b16 %v3483, %v3483
  %v3548 = vpack.c.b16 %v3484, %v3484
  %v3549 = vpack.c.b16 %v3485, %v3485
  %v3550 = vpack.c.b16 %v3486, %v3486
  %v3551 = vpack.c.b16 %v3487, %v3487
  %v3552 = vpack.c.b16 %v3488, %v3488
  %v3553 = vpack.c.b16 %v3489, %v3489
  %v3554 = vpack.c.b16 %v3490, %v3490
  %v3555 = vpack.c.b16 %v3491, %v3491
  %v3556 = vpack.c.b16 %v3492, %v3492
  %v3557 = vpack.c.b16 %v3493, %v3493
  %v3558 = vpack.c.b16 %v3494, %v3494
  %v3559 = vpack.c.b16 %v3495, %v3495
  %v3560 = vpack.c.b16 %v3496, %v3496
  %v3561 = vpack.c.b16 %v3497, %v3497
  %v3562 = vpack.c.b16 %v3498, %v3498
  %v3563 = vpack.c.b16 %v3499, %v3499
  %v3564 = vpack.c.b16 %v3500, %v3500
  %v3565 = vpack.c.b16 %v3501, %v3501
  %v3566 = vpack.c.b16 %v3502, %v3502
  %v3567 = vpack.c.b16 %v3503, %v3503
  %v3568 = vpack.c.b16 %v3504, %v3504
  %v3569 = vpack.c.b16 %v3505, %v3505
  %v3570 = vpack.c.b16 %v3506, %v3506
  %v3571 = vpack.c.b16 %v3507, %v3507
  %v3572 = vpack.c.b16 %v3508, %v3508
  %v3573 = vpack.c.b16 %v3509, %v3509
  %v3574 = vpack.c.b16 %v3510, %v3510
  %v3575 = vpack.c.b16 %v3511, %v3511
  %v3576 = vpack.c.b16 %v3512, %v3512
  %v3577 = vpack.c.b16 %v3513, %v3513
  %v3578 = vpack.c.b16 %v3514, %v3514
  %v3579 = vpack.c.b16 %v3515, %v3515
  %v3580 = vpack.c.b16 %v3516, %v3516
  %v3581 = vpack.c.b16 %v3517, %v3517
  %v3582 = vpack.c.b16 %v3518, %v3518
  %v3583 = vpack.c.b16 %v3519, %v3519
  %v3584 = vpack.c.b16 %v3520, %v3520
  %v3585 = vpack.c.b16 %v3521, %v3521
  %v3586 = vpack.c.b16 %v3522, %v3522
  %v3587 = vpack.c.b16 %v3523, %v3523
  %v3588 = vpack.c.b16 %v3524, %v3524
  %v3589 = vpack.c.b16 %v3525, %v3525
  %v3590 = vpack.c.b16 %v3526, %v3526
  %v3591 = vpack.c.b16 %v3527, %v3527
  %v3592 = vpack.c.b16 %v3528, %v3528
  %v3593 = vpack.c.b16 %v3529, %v3529
  %v3594 = vpack.c.b16 %v3530, %v3530
  %v3595 = vpack.c.b16 %v3531, %v3531
  %v3596 = vpack.c.b16 %v3532, %v3532
  %v3597 = vpack.c.b16 %v3533, %v3533
  %v3598 = vpack.c.b16 %v3534, %v3534
  %v3599 = vpack.c.b16 %v3535, %v3535
  %3600 = vrot.lane.b32.xlu0 %v3536, 24
  %v3601 = vpop.permute.xlu0 %3600
  %3602 = vrot.lane.b32.xlu0 %v3537, 24
  %v3603 = vpop.permute.xlu0 %3602
  %3604 = vrot.lane.b32.xlu0 %v3538, 24
  %v3605 = vpop.permute.xlu0 %3604
  %3606 = vrot.lane.b32.xlu0 %v3539, 24
  %v3607 = vpop.permute.xlu0 %3606
  %3608 = vrot.lane.b32.xlu0 %v3540, 24
  %v3609 = vpop.permute.xlu0 %3608
  %3610 = vrot.lane.b32.xlu0 %v3541, 24
  %v3611 = vpop.permute.xlu0 %3610
  %3612 = vrot.lane.b32.xlu0 %v3542, 24
  %v3613 = vpop.permute.xlu0 %3612
  %3614 = vrot.lane.b32.xlu0 %v3543, 24
  %v3615 = vpop.permute.xlu0 %3614
  %3616 = vrot.lane.b32.xlu0 %v3544, 24
  %v3617 = vpop.permute.xlu0 %3616
  %3618 = vrot.lane.b32.xlu0 %v3545, 24
  %v3619 = vpop.permute.xlu0 %3618
  %3620 = vrot.lane.b32.xlu0 %v3546, 24
  %v3621 = vpop.permute.xlu0 %3620
  %3622 = vrot.lane.b32.xlu0 %v3547, 24
  %v3623 = vpop.permute.xlu0 %3622
  %3624 = vrot.lane.b32.xlu0 %v3548, 24
  %v3625 = vpop.permute.xlu0 %3624
  %3626 = vrot.lane.b32.xlu0 %v3549, 24
  %v3627 = vpop.permute.xlu0 %3626
  %3628 = vrot.lane.b32.xlu0 %v3550, 24
  %v3629 = vpop.permute.xlu0 %3628
  %3630 = vrot.lane.b32.xlu0 %v3551, 24
  %v3631 = vpop.permute.xlu0 %3630
  %3632 = vrot.lane.b32.xlu0 %v3552, 24
  %v3633 = vpop.permute.xlu0 %3632
  %3634 = vrot.lane.b32.xlu0 %v3553, 24
  %v3635 = vpop.permute.xlu0 %3634
  %3636 = vrot.lane.b32.xlu0 %v3554, 24
  %v3637 = vpop.permute.xlu0 %3636
  %3638 = vrot.lane.b32.xlu0 %v3555, 24
  %v3639 = vpop.permute.xlu0 %3638
  %3640 = vrot.lane.b32.xlu0 %v3556, 24
  %v3641 = vpop.permute.xlu0 %3640
  %3642 = vrot.lane.b32.xlu0 %v3557, 24
  %v3643 = vpop.permute.xlu0 %3642
  %3644 = vrot.lane.b32.xlu0 %v3558, 24
  %v3645 = vpop.permute.xlu0 %3644
  %3646 = vrot.lane.b32.xlu0 %v3559, 24
  %v3647 = vpop.permute.xlu0 %3646
  %3648 = vrot.lane.b32.xlu0 %v3560, 24
  %v3649 = vpop.permute.xlu0 %3648
  %3650 = vrot.lane.b32.xlu0 %v3561, 24
  %v3651 = vpop.permute.xlu0 %3650
  %3652 = vrot.lane.b32.xlu0 %v3562, 24
  %v3653 = vpop.permute.xlu0 %3652
  %3654 = vrot.lane.b32.xlu0 %v3563, 24
  %v3655 = vpop.permute.xlu0 %3654
  %3656 = vrot.lane.b32.xlu0 %v3564, 24
  %v3657 = vpop.permute.xlu0 %3656
  %3658 = vrot.lane.b32.xlu0 %v3565, 24
  %v3659 = vpop.permute.xlu0 %3658
  %3660 = vrot.lane.b32.xlu0 %v3566, 24
  %v3661 = vpop.permute.xlu0 %3660
  %3662 = vrot.lane.b32.xlu0 %v3567, 24
  %v3663 = vpop.permute.xlu0 %3662
  %3664 = vrot.lane.b32.xlu0 %v3568, 24
  %v3665 = vpop.permute.xlu0 %3664
  %3666 = vrot.lane.b32.xlu0 %v3569, 24
  %v3667 = vpop.permute.xlu0 %3666
  %3668 = vrot.lane.b32.xlu0 %v3570, 24
  %v3669 = vpop.permute.xlu0 %3668
  %3670 = vrot.lane.b32.xlu0 %v3571, 24
  %v3671 = vpop.permute.xlu0 %3670
  %3672 = vrot.lane.b32.xlu0 %v3572, 24
  %v3673 = vpop.permute.xlu0 %3672
  %3674 = vrot.lane.b32.xlu0 %v3573, 24
  %v3675 = vpop.permute.xlu0 %3674
  %3676 = vrot.lane.b32.xlu0 %v3574, 24
  %v3677 = vpop.permute.xlu0 %3676
  %3678 = vrot.lane.b32.xlu0 %v3575, 24
  %v3679 = vpop.permute.xlu0 %3678
  %3680 = vrot.lane.b32.xlu0 %v3576, 24
  %v3681 = vpop.permute.xlu0 %3680
  %3682 = vrot.lane.b32.xlu0 %v3577, 24
  %v3683 = vpop.permute.xlu0 %3682
  %3684 = vrot.lane.b32.xlu0 %v3578, 24
  %v3685 = vpop.permute.xlu0 %3684
  %3686 = vrot.lane.b32.xlu0 %v3579, 24
  %v3687 = vpop.permute.xlu0 %3686
  %3688 = vrot.lane.b32.xlu0 %v3580, 24
  %v3689 = vpop.permute.xlu0 %3688
  %3690 = vrot.lane.b32.xlu0 %v3581, 24
  %v3691 = vpop.permute.xlu0 %3690
  %3692 = vrot.lane.b32.xlu0 %v3582, 24
  %v3693 = vpop.permute.xlu0 %3692
  %3694 = vrot.lane.b32.xlu0 %v3583, 24
  %v3695 = vpop.permute.xlu0 %3694
  %3696 = vrot.lane.b32.xlu0 %v3584, 24
  %v3697 = vpop.permute.xlu0 %3696
  %3698 = vrot.lane.b32.xlu0 %v3585, 24
  %v3699 = vpop.permute.xlu0 %3698
  %3700 = vrot.lane.b32.xlu0 %v3586, 24
  %v3701 = vpop.permute.xlu0 %3700
  %3702 = vrot.lane.b32.xlu0 %v3587, 24
  %v3703 = vpop.permute.xlu0 %3702
  %3704 = vrot.lane.b32.xlu0 %v3588, 24
  %v3705 = vpop.permute.xlu0 %3704
  %3706 = vrot.lane.b32.xlu0 %v3589, 24
  %v3707 = vpop.permute.xlu0 %3706
  %3708 = vrot.lane.b32.xlu0 %v3590, 24
  %v3709 = vpop.permute.xlu0 %3708
  %3710 = vrot.lane.b32.xlu0 %v3591, 24
  %v3711 = vpop.permute.xlu0 %3710
  %3712 = vrot.lane.b32.xlu0 %v3592, 24
  %v3713 = vpop.permute.xlu0 %3712
  %3714 = vrot.lane.b32.xlu0 %v3593, 24
  %v3715 = vpop.permute.xlu0 %3714
  %3716 = vrot.lane.b32.xlu0 %v3594, 24
  %v3717 = vpop.permute.xlu0 %3716
  %3718 = vrot.lane.b32.xlu0 %v3595, 24
  %v3719 = vpop.permute.xlu0 %3718
  %3720 = vrot.lane.b32.xlu0 %v3596, 24
  %v3721 = vpop.permute.xlu0 %3720
  %3722 = vrot.lane.b32.xlu0 %v3597, 24
  %v3723 = vpop.permute.xlu0 %3722
  %3724 = vrot.lane.b32.xlu0 %v3598, 24
  %v3725 = vpop.permute.xlu0 %3724
  %3726 = vrot.lane.b32.xlu0 %v3599, 24
  %v3727 = vpop.permute.xlu0 %3726
  %vm3792 = vcmask 224448
  %3793 = vst.msk [vmem:[#allocation4] sm:$0xf] %vm3792, %v3601
  %3794 = vst.msk [vmem:[#allocation4 + $0x4] sm:$0xf] %vm3792, %v3603
  %3795 = vst.msk [vmem:[#allocation4 + $0x8] sm:$0xf] %vm3792, %v3605
  %3796 = vst.msk [vmem:[#allocation4 + $0xc] sm:$0xf] %vm3792, %v3607
  %3797 = vst.msk [vmem:[#allocation4 + $0x10] sm:$0xf] %vm3792, %v3609
  %3798 = vst.msk [vmem:[#allocation4 + $0x14] sm:$0xf] %vm3792, %v3611
  %3799 = vst.msk [vmem:[#allocation4 + $0x18] sm:$0xf] %vm3792, %v3613
  %3800 = vst.msk [vmem:[#allocation4 + $0x1c] sm:$0xf] %vm3792, %v3615
  %3801 = vst.msk [vmem:[#allocation4 + $0x20] sm:$0xf] %vm3792, %v3617
  %3802 = vst.msk [vmem:[#allocation4 + $0x24] sm:$0xf] %vm3792, %v3619
  %3803 = vst.msk [vmem:[#allocation4 + $0x28] sm:$0xf] %vm3792, %v3621
  %3804 = vst.msk [vmem:[#allocation4 + $0x2c] sm:$0xf] %vm3792, %v3623
  %3805 = vst.msk [vmem:[#allocation4 + $0x30] sm:$0xf] %vm3792, %v3625
  %3806 = vst.msk [vmem:[#allocation4 + $0x34] sm:$0xf] %vm3792, %v3627
  %3807 = vst.msk [vmem:[#allocation4 + $0x38] sm:$0xf] %vm3792, %v3629
  %3808 = vst.msk [vmem:[#allocation4 + $0x3c] sm:$0xf] %vm3792, %v3631
  %3809 = vst.msk [vmem:[#allocation4 + $0x40] sm:$0xf] %vm3792, %v3633
  %3810 = vst.msk [vmem:[#allocation4 + $0x44] sm:$0xf] %vm3792, %v3635
  %3811 = vst.msk [vmem:[#allocation4 + $0x48] sm:$0xf] %vm3792, %v3637
  %3812 = vst.msk [vmem:[#allocation4 + $0x4c] sm:$0xf] %vm3792, %v3639
  %3813 = vst.msk [vmem:[#allocation4 + $0x50] sm:$0xf] %vm3792, %v3641
  %3814 = vst.msk [vmem:[#allocation4 + $0x54] sm:$0xf] %vm3792, %v3643
  %3815 = vst.msk [vmem:[#allocation4 + $0x58] sm:$0xf] %vm3792, %v3645
  %3816 = vst.msk [vmem:[#allocation4 + $0x5c] sm:$0xf] %vm3792, %v3647
  %3817 = vst.msk [vmem:[#allocation4 + $0x60] sm:$0xf] %vm3792, %v3649
  %3818 = vst.msk [vmem:[#allocation4 + $0x64] sm:$0xf] %vm3792, %v3651
  %3819 = vst.msk [vmem:[#allocation4 + $0x68] sm:$0xf] %vm3792, %v3653
  %3820 = vst.msk [vmem:[#allocation4 + $0x6c] sm:$0xf] %vm3792, %v3655
  %3821 = vst.msk [vmem:[#allocation4 + $0x70] sm:$0xf] %vm3792, %v3657
  %3822 = vst.msk [vmem:[#allocation4 + $0x74] sm:$0xf] %vm3792, %v3659
  %3823 = vst.msk [vmem:[#allocation4 + $0x78] sm:$0xf] %vm3792, %v3661
  %3824 = vst.msk [vmem:[#allocation4 + $0x7c] sm:$0xf] %vm3792, %v3663
  %3825 = vst.msk [vmem:[#allocation4 + $0x80] sm:$0xf] %vm3792, %v3665
  %3826 = vst.msk [vmem:[#allocation4 + $0x84] sm:$0xf] %vm3792, %v3667
  %3827 = vst.msk [vmem:[#allocation4 + $0x88] sm:$0xf] %vm3792, %v3669
  %3828 = vst.msk [vmem:[#allocation4 + $0x8c] sm:$0xf] %vm3792, %v3671
  %3829 = vst.msk [vmem:[#allocation4 + $0x90] sm:$0xf] %vm3792, %v3673
  %3830 = vst.msk [vmem:[#allocation4 + $0x94] sm:$0xf] %vm3792, %v3675
  %3831 = vst.msk [vmem:[#allocation4 + $0x98] sm:$0xf] %vm3792, %v3677
  %3832 = vst.msk [vmem:[#allocation4 + $0x9c] sm:$0xf] %vm3792, %v3679
  %3833 = vst.msk [vmem:[#allocation4 + $0xa0] sm:$0xf] %vm3792, %v3681
  %3834 = vst.msk [vmem:[#allocation4 + $0xa4] sm:$0xf] %vm3792, %v3683
  %3835 = vst.msk [vmem:[#allocation4 + $0xa8] sm:$0xf] %vm3792, %v3685
  %3836 = vst.msk [vmem:[#allocation4 + $0xac] sm:$0xf] %vm3792, %v3687
  %3837 = vst.msk [vmem:[#allocation4 + $0xb0] sm:$0xf] %vm3792, %v3689
  %3838 = vst.msk [vmem:[#allocation4 + $0xb4] sm:$0xf] %vm3792, %v3691
  %3839 = vst.msk [vmem:[#allocation4 + $0xb8] sm:$0xf] %vm3792, %v3693
  %3840 = vst.msk [vmem:[#allocation4 + $0xbc] sm:$0xf] %vm3792, %v3695
  %3841 = vst.msk [vmem:[#allocation4 + $0xc0] sm:$0xf] %vm3792, %v3697
  %3842 = vst.msk [vmem:[#allocation4 + $0xc4] sm:$0xf] %vm3792, %v3699
  %3843 = vst.msk [vmem:[#allocation4 + $0xc8] sm:$0xf] %vm3792, %v3701
  %3844 = vst.msk [vmem:[#allocation4 + $0xcc] sm:$0xf] %vm3792, %v3703
  %3845 = vst.msk [vmem:[#allocation4 + $0xd0] sm:$0xf] %vm3792, %v3705
  %3846 = vst.msk [vmem:[#allocation4 + $0xd4] sm:$0xf] %vm3792, %v3707
  %3847 = vst.msk [vmem:[#allocation4 + $0xd8] sm:$0xf] %vm3792, %v3709
  %3848 = vst.msk [vmem:[#allocation4 + $0xdc] sm:$0xf] %vm3792, %v3711
  %3849 = vst.msk [vmem:[#allocation4 + $0xe0] sm:$0xf] %vm3792, %v3713
  %3850 = vst.msk [vmem:[#allocation4 + $0xe4] sm:$0xf] %vm3792, %v3715
  %3851 = vst.msk [vmem:[#allocation4 + $0xe8] sm:$0xf] %vm3792, %v3717
  %3852 = vst.msk [vmem:[#allocation4 + $0xec] sm:$0xf] %vm3792, %v3719
  %3853 = vst.msk [vmem:[#allocation4 + $0xf0] sm:$0xf] %vm3792, %v3721
  %3854 = vst.msk [vmem:[#allocation4 + $0xf4] sm:$0xf] %vm3792, %v3723
  %3855 = vst.msk [vmem:[#allocation4 + $0xf8] sm:$0xf] %vm3792, %v3725
  %3856 = vst.msk [vmem:[#allocation4 + $0xfc] sm:$0xf] %vm3792, %v3727
  %v3857 = vld [vmem:[%s3343 + $0x1] sm:$0xff]
  %v3858 = vld [vmem:[%s3343 + $0x9] sm:$0xff]
  %v3859 = vld [vmem:[%s3343 + $0x19] sm:$0xff]
  %v3860 = vld [vmem:[%s3343 + $0x21] sm:$0xff]
  %v3861 = vld [vmem:[%s3343 + $0x31] sm:$0xff]
  %v3862 = vld [vmem:[%s3343 + $0x39] sm:$0xff]
  %v3863 = vld [vmem:[%s3343 + $0x49] sm:$0xff]
  %v3864 = vld [vmem:[%s3343 + $0x51] sm:$0xff]
  %v3865 = vld [vmem:[%s3343 + $0x61] sm:$0xff]
  %v3866 = vld [vmem:[%s3343 + $0x69] sm:$0xff]
  %v3867 = vld [vmem:[%s3343 + $0x79] sm:$0xff]
  %v3868 = vld [vmem:[%s3343 + $0x81] sm:$0xff]
  %v3869 = vld [vmem:[%s3343 + $0x91] sm:$0xff]
  %v3870 = vld [vmem:[%s3343 + $0x99] sm:$0xff]
  %v3871 = vld [vmem:[%s3343 + $0xa9] sm:$0xff]
  %v3872 = vld [vmem:[%s3343 + $0xb1] sm:$0xff]
  %v3873 = vld [vmem:[%s3343 + $0xc1] sm:$0xff]
  %v3874 = vld [vmem:[%s3343 + $0xc9] sm:$0xff]
  %v3875 = vld [vmem:[%s3343 + $0xd9] sm:$0xff]
  %v3876 = vld [vmem:[%s3343 + $0xe1] sm:$0xff]
  %v3877 = vld [vmem:[%s3343 + $0xf1] sm:$0xff]
  %v3878 = vld [vmem:[%s3343 + $0xf9] sm:$0xff]
  %v3879 = vld [vmem:[%s3343 + $0x109] sm:$0xff]
  %v3880 = vld [vmem:[%s3343 + $0x111] sm:$0xff]
  %v3881 = vld [vmem:[%s3343 + $0x121] sm:$0xff]
  %v3882 = vld [vmem:[%s3343 + $0x129] sm:$0xff]
  %v3883 = vld [vmem:[%s3343 + $0x139] sm:$0xff]
  %v3884 = vld [vmem:[%s3343 + $0x141] sm:$0xff]
  %v3885 = vld [vmem:[%s3343 + $0x151] sm:$0xff]
  %v3886 = vld [vmem:[%s3343 + $0x159] sm:$0xff]
  %v3887 = vld [vmem:[%s3343 + $0x169] sm:$0xff]
  %v3888 = vld [vmem:[%s3343 + $0x171] sm:$0xff]
  %v3889 = vld [vmem:[%s3343 + $0x1b1] sm:$0xff]
  %v3890 = vld [vmem:[%s3343 + $0x1b9] sm:$0xff]
  %v3891 = vld [vmem:[%s3343 + $0x1c9] sm:$0xff]
  %v3892 = vld [vmem:[%s3343 + $0x1d1] sm:$0xff]
  %v3893 = vld [vmem:[%s3343 + $0x1e1] sm:$0xff]
  %v3894 = vld [vmem:[%s3343 + $0x1e9] sm:$0xff]
  %v3895 = vld [vmem:[%s3343 + $0x1f9] sm:$0xff]
  %v3896 = vld [vmem:[%s3343 + $0x201] sm:$0xff]
  %v3897 = vld [vmem:[%s3343 + $0x211] sm:$0xff]
  %v3898 = vld [vmem:[%s3343 + $0x219] sm:$0xff]
  %v3899 = vld [vmem:[%s3343 + $0x229] sm:$0xff]
  %v3900 = vld [vmem:[%s3343 + $0x231] sm:$0xff]
  %v3901 = vld [vmem:[%s3343 + $0x241] sm:$0xff]
  %v3902 = vld [vmem:[%s3343 + $0x249] sm:$0xff]
  %v3903 = vld [vmem:[%s3343 + $0x259] sm:$0xff]
  %v3904 = vld [vmem:[%s3343 + $0x261] sm:$0xff]
  %v3905 = vld [vmem:[%s3343 + $0x271] sm:$0xff]
  %v3906 = vld [vmem:[%s3343 + $0x279] sm:$0xff]
  %v3907 = vld [vmem:[%s3343 + $0x289] sm:$0xff]
  %v3908 = vld [vmem:[%s3343 + $0x291] sm:$0xff]
  %v3909 = vld [vmem:[%s3343 + $0x2a1] sm:$0xff]
  %v3910 = vld [vmem:[%s3343 + $0x2a9] sm:$0xff]
  %v3911 = vld [vmem:[%s3343 + $0x2b9] sm:$0xff]
  %v3912 = vld [vmem:[%s3343 + $0x2c1] sm:$0xff]
  %v3913 = vld [vmem:[%s3343 + $0x2d1] sm:$0xff]
  %v3914 = vld [vmem:[%s3343 + $0x2d9] sm:$0xff]
  %v3915 = vld [vmem:[%s3343 + $0x2e9] sm:$0xff]
  %v3916 = vld [vmem:[%s3343 + $0x2f1] sm:$0xff]
  %v3917 = vld [vmem:[%s3343 + $0x301] sm:$0xff]
  %v3918 = vld [vmem:[%s3343 + $0x309] sm:$0xff]
  %v3919 = vld [vmem:[%s3343 + $0x319] sm:$0xff]
  %v3920 = vld [vmem:[%s3343 + $0x321] sm:$0xff]
  %v3921 = vpack.c.bf16 %v3858, %v3857
  %v3922 = vpack.c.bf16 %v3860, %v3859
  %v3923 = vpack.c.bf16 %v3862, %v3861
  %v3924 = vpack.c.bf16 %v3864, %v3863
  %v3925 = vpack.c.bf16 %v3866, %v3865
  %v3926 = vpack.c.bf16 %v3868, %v3867
  %v3927 = vpack.c.bf16 %v3870, %v3869
  %v3928 = vpack.c.bf16 %v3872, %v3871
  %v3929 = vpack.c.bf16 %v3874, %v3873
  %v3930 = vpack.c.bf16 %v3876, %v3875
  %v3931 = vpack.c.bf16 %v3878, %v3877
  %v3932 = vpack.c.bf16 %v3880, %v3879
  %v3933 = vpack.c.bf16 %v3882, %v3881
  %v3934 = vpack.c.bf16 %v3884, %v3883
  %v3935 = vpack.c.bf16 %v3886, %v3885
  %v3936 = vpack.c.bf16 %v3888, %v3887
  %v3937 = vpack.c.bf16 %v3890, %v3889
  %v3938 = vpack.c.bf16 %v3892, %v3891
  %v3939 = vpack.c.bf16 %v3894, %v3893
  %v3940 = vpack.c.bf16 %v3896, %v3895
  %v3941 = vpack.c.bf16 %v3898, %v3897
  %v3942 = vpack.c.bf16 %v3900, %v3899
  %v3943 = vpack.c.bf16 %v3902, %v3901
  %v3944 = vpack.c.bf16 %v3904, %v3903
  %v3945 = vpack.c.bf16 %v3906, %v3905
  %v3946 = vpack.c.bf16 %v3908, %v3907
  %v3947 = vpack.c.bf16 %v3910, %v3909
  %v3948 = vpack.c.bf16 %v3912, %v3911
  %v3949 = vpack.c.bf16 %v3914, %v3913
  %v3950 = vpack.c.bf16 %v3916, %v3915
  %v3951 = vpack.c.bf16 %v3918, %v3917
  %v3952 = vpack.c.bf16 %v3920, %v3919
  %v3985 = vunpack.c.l.b16 %v3921
  %v3986 = vunpack.c.h.b16 %v3921
  %v3987 = vunpack.c.l.b16 %v3922
  %v3988 = vunpack.c.h.b16 %v3922
  %v3989 = vunpack.c.l.b16 %v3923
  %v3990 = vunpack.c.h.b16 %v3923
  %v3991 = vunpack.c.l.b16 %v3924
  %v3992 = vunpack.c.h.b16 %v3924
  %v3993 = vunpack.c.l.b16 %v3925
  %v3994 = vunpack.c.h.b16 %v3925
  %v3995 = vunpack.c.l.b16 %v3926
  %v3996 = vunpack.c.h.b16 %v3926
  %v3997 = vunpack.c.l.b16 %v3927
  %v3998 = vunpack.c.h.b16 %v3927
  %v3999 = vunpack.c.l.b16 %v3928
  %v4000 = vunpack.c.h.b16 %v3928
  %v4001 = vunpack.c.l.b16 %v3929
  %v4002 = vunpack.c.h.b16 %v3929
  %v4003 = vunpack.c.l.b16 %v3930
  %v4004 = vunpack.c.h.b16 %v3930
  %v4005 = vunpack.c.l.b16 %v3931
  %v4006 = vunpack.c.h.b16 %v3931
  %v4007 = vunpack.c.l.b16 %v3932
  %v4008 = vunpack.c.h.b16 %v3932
  %v4009 = vunpack.c.l.b16 %v3933
  %v4010 = vunpack.c.h.b16 %v3933
  %v4011 = vunpack.c.l.b16 %v3934
  %v4012 = vunpack.c.h.b16 %v3934
  %v4013 = vunpack.c.l.b16 %v3935
  %v4014 = vunpack.c.h.b16 %v3935
  %v4015 = vunpack.c.l.b16 %v3936
  %v4016 = vunpack.c.h.b16 %v3936
  %v4017 = vunpack.c.l.b16 %v3937
  %v4018 = vunpack.c.h.b16 %v3937
  %v4019 = vunpack.c.l.b16 %v3938
  %v4020 = vunpack.c.h.b16 %v3938
  %v4021 = vunpack.c.l.b16 %v3939
  %v4022 = vunpack.c.h.b16 %v3939
  %v4023 = vunpack.c.l.b16 %v3940
  %v4024 = vunpack.c.h.b16 %v3940
  %v4025 = vunpack.c.l.b16 %v3941
  %v4026 = vunpack.c.h.b16 %v3941
  %v4027 = vunpack.c.l.b16 %v3942
  %v4028 = vunpack.c.h.b16 %v3942
  %v4029 = vunpack.c.l.b16 %v3943
  %v4030 = vunpack.c.h.b16 %v3943
  %v4031 = vunpack.c.l.b16 %v3944
  %v4032 = vunpack.c.h.b16 %v3944
  %v4033 = vunpack.c.l.b16 %v3945
  %v4034 = vunpack.c.h.b16 %v3945
  %v4035 = vunpack.c.l.b16 %v3946
  %v4036 = vunpack.c.h.b16 %v3946
  %v4037 = vunpack.c.l.b16 %v3947
  %v4038 = vunpack.c.h.b16 %v3947
  %v4039 = vunpack.c.l.b16 %v3948
  %v4040 = vunpack.c.h.b16 %v3948
  %v4041 = vunpack.c.l.b16 %v3949
  %v4042 = vunpack.c.h.b16 %v3949
  %v4043 = vunpack.c.l.b16 %v3950
  %v4044 = vunpack.c.h.b16 %v3950
  %v4045 = vunpack.c.l.b16 %v3951
  %v4046 = vunpack.c.h.b16 %v3951
  %v4047 = vunpack.c.l.b16 %v3952
  %v4048 = vunpack.c.h.b16 %v3952
  %v4049 = vpack.c.b16 %v3985, %v3985
  %v4050 = vpack.c.b16 %v3986, %v3986
  %v4051 = vpack.c.b16 %v3987, %v3987
  %v4052 = vpack.c.b16 %v3988, %v3988
  %v4053 = vpack.c.b16 %v3989, %v3989
  %v4054 = vpack.c.b16 %v3990, %v3990
  %v4055 = vpack.c.b16 %v3991, %v3991
  %v4056 = vpack.c.b16 %v3992, %v3992
  %v4057 = vpack.c.b16 %v3993, %v3993
  %v4058 = vpack.c.b16 %v3994, %v3994
  %v4059 = vpack.c.b16 %v3995, %v3995
  %v4060 = vpack.c.b16 %v3996, %v3996
  %v4061 = vpack.c.b16 %v3997, %v3997
  %v4062 = vpack.c.b16 %v3998, %v3998
  %v4063 = vpack.c.b16 %v3999, %v3999
  %v4064 = vpack.c.b16 %v4000, %v4000
  %v4065 = vpack.c.b16 %v4001, %v4001
  %v4066 = vpack.c.b16 %v4002, %v4002
  %v4067 = vpack.c.b16 %v4003, %v4003
  %v4068 = vpack.c.b16 %v4004, %v4004
  %v4069 = vpack.c.b16 %v4005, %v4005
  %v4070 = vpack.c.b16 %v4006, %v4006
  %v4071 = vpack.c.b16 %v4007, %v4007
  %v4072 = vpack.c.b16 %v4008, %v4008
  %v4073 = vpack.c.b16 %v4009, %v4009
  %v4074 = vpack.c.b16 %v4010, %v4010
  %v4075 = vpack.c.b16 %v4011, %v4011
  %v4076 = vpack.c.b16 %v4012, %v4012
  %v4077 = vpack.c.b16 %v4013, %v4013
  %v4078 = vpack.c.b16 %v4014, %v4014
  %v4079 = vpack.c.b16 %v4015, %v4015
  %v4080 = vpack.c.b16 %v4016, %v4016
  %v4081 = vpack.c.b16 %v4017, %v4017
  %v4082 = vpack.c.b16 %v4018, %v4018
  %v4083 = vpack.c.b16 %v4019, %v4019
  %v4084 = vpack.c.b16 %v4020, %v4020
  %v4085 = vpack.c.b16 %v4021, %v4021
  %v4086 = vpack.c.b16 %v4022, %v4022
  %v4087 = vpack.c.b16 %v4023, %v4023
  %v4088 = vpack.c.b16 %v4024, %v4024
  %v4089 = vpack.c.b16 %v4025, %v4025
  %v4090 = vpack.c.b16 %v4026, %v4026
  %v4091 = vpack.c.b16 %v4027, %v4027
  %v4092 = vpack.c.b16 %v4028, %v4028
  %v4093 = vpack.c.b16 %v4029, %v4029
  %v4094 = vpack.c.b16 %v4030, %v4030
  %v4095 = vpack.c.b16 %v4031, %v4031
  %v4096 = vpack.c.b16 %v4032, %v4032
  %v4097 = vpack.c.b16 %v4033, %v4033
  %v4098 = vpack.c.b16 %v4034, %v4034
  %v4099 = vpack.c.b16 %v4035, %v4035
  %v4100 = vpack.c.b16 %v4036, %v4036
  %v4101 = vpack.c.b16 %v4037, %v4037
  %v4102 = vpack.c.b16 %v4038, %v4038
  %v4103 = vpack.c.b16 %v4039, %v4039
  %v4104 = vpack.c.b16 %v4040, %v4040
  %v4105 = vpack.c.b16 %v4041, %v4041
  %v4106 = vpack.c.b16 %v4042, %v4042
  %v4107 = vpack.c.b16 %v4043, %v4043
  %v4108 = vpack.c.b16 %v4044, %v4044
  %v4109 = vpack.c.b16 %v4045, %v4045
  %v4110 = vpack.c.b16 %v4046, %v4046
  %v4111 = vpack.c.b16 %v4047, %v4047
  %v4112 = vpack.c.b16 %v4048, %v4048
  %4113 = vrot.lane.b32.xlu0 %v4049, 28
  %v4114 = vpop.permute.xlu0 %4113
  %4115 = vrot.lane.b32.xlu0 %v4050, 28
  %v4116 = vpop.permute.xlu0 %4115
  %4117 = vrot.lane.b32.xlu0 %v4051, 28
  %v4118 = vpop.permute.xlu0 %4117
  %4119 = vrot.lane.b32.xlu0 %v4052, 28
  %v4120 = vpop.permute.xlu0 %4119
  %4121 = vrot.lane.b32.xlu0 %v4053, 28
  %v4122 = vpop.permute.xlu0 %4121
  %4123 = vrot.lane.b32.xlu0 %v4054, 28
  %v4124 = vpop.permute.xlu0 %4123
  %4125 = vrot.lane.b32.xlu0 %v4055, 28
  %v4126 = vpop.permute.xlu0 %4125
  %4127 = vrot.lane.b32.xlu0 %v4056, 28
  %v4128 = vpop.permute.xlu0 %4127
  %4129 = vrot.lane.b32.xlu0 %v4057, 28
  %v4130 = vpop.permute.xlu0 %4129
  %4131 = vrot.lane.b32.xlu0 %v4058, 28
  %v4132 = vpop.permute.xlu0 %4131
  %4133 = vrot.lane.b32.xlu0 %v4059, 28
  %v4134 = vpop.permute.xlu0 %4133
  %4135 = vrot.lane.b32.xlu0 %v4060, 28
  %v4136 = vpop.permute.xlu0 %4135
  %4137 = vrot.lane.b32.xlu0 %v4061, 28
  %v4138 = vpop.permute.xlu0 %4137
  %4139 = vrot.lane.b32.xlu0 %v4062, 28
  %v4140 = vpop.permute.xlu0 %4139
  %4141 = vrot.lane.b32.xlu0 %v4063, 28
  %v4142 = vpop.permute.xlu0 %4141
  %4143 = vrot.lane.b32.xlu0 %v4064, 28
  %v4144 = vpop.permute.xlu0 %4143
  %4145 = vrot.lane.b32.xlu0 %v4065, 28
  %v4146 = vpop.permute.xlu0 %4145
  %4147 = vrot.lane.b32.xlu0 %v4066, 28
  %v4148 = vpop.permute.xlu0 %4147
  %4149 = vrot.lane.b32.xlu0 %v4067, 28
  %v4150 = vpop.permute.xlu0 %4149
  %4151 = vrot.lane.b32.xlu0 %v4068, 28
  %v4152 = vpop.permute.xlu0 %4151
  %4153 = vrot.lane.b32.xlu0 %v4069, 28
  %v4154 = vpop.permute.xlu0 %4153
  %4155 = vrot.lane.b32.xlu0 %v4070, 28
  %v4156 = vpop.permute.xlu0 %4155
  %4157 = vrot.lane.b32.xlu0 %v4071, 28
  %v4158 = vpop.permute.xlu0 %4157
  %4159 = vrot.lane.b32.xlu0 %v4072, 28
  %v4160 = vpop.permute.xlu0 %4159
  %4161 = vrot.lane.b32.xlu0 %v4073, 28
  %v4162 = vpop.permute.xlu0 %4161
  %4163 = vrot.lane.b32.xlu0 %v4074, 28
  %v4164 = vpop.permute.xlu0 %4163
  %4165 = vrot.lane.b32.xlu0 %v4075, 28
  %v4166 = vpop.permute.xlu0 %4165
  %4167 = vrot.lane.b32.xlu0 %v4076, 28
  %v4168 = vpop.permute.xlu0 %4167
  %4169 = vrot.lane.b32.xlu0 %v4077, 28
  %v4170 = vpop.permute.xlu0 %4169
  %4171 = vrot.lane.b32.xlu0 %v4078, 28
  %v4172 = vpop.permute.xlu0 %4171
  %4173 = vrot.lane.b32.xlu0 %v4079, 28
  %v4174 = vpop.permute.xlu0 %4173
  %4175 = vrot.lane.b32.xlu0 %v4080, 28
  %v4176 = vpop.permute.xlu0 %4175
  %4177 = vrot.lane.b32.xlu0 %v4081, 28
  %v4178 = vpop.permute.xlu0 %4177
  %4179 = vrot.lane.b32.xlu0 %v4082, 28
  %v4180 = vpop.permute.xlu0 %4179
  %4181 = vrot.lane.b32.xlu0 %v4083, 28
  %v4182 = vpop.permute.xlu0 %4181
  %4183 = vrot.lane.b32.xlu0 %v4084, 28
  %v4184 = vpop.permute.xlu0 %4183
  %4185 = vrot.lane.b32.xlu0 %v4085, 28
  %v4186 = vpop.permute.xlu0 %4185
  %4187 = vrot.lane.b32.xlu0 %v4086, 28
  %v4188 = vpop.permute.xlu0 %4187
  %4189 = vrot.lane.b32.xlu0 %v4087, 28
  %v4190 = vpop.permute.xlu0 %4189
  %4191 = vrot.lane.b32.xlu0 %v4088, 28
  %v4192 = vpop.permute.xlu0 %4191
  %4193 = vrot.lane.b32.xlu0 %v4089, 28
  %v4194 = vpop.permute.xlu0 %4193
  %4195 = vrot.lane.b32.xlu0 %v4090, 28
  %v4196 = vpop.permute.xlu0 %4195
  %4197 = vrot.lane.b32.xlu0 %v4091, 28
  %v4198 = vpop.permute.xlu0 %4197
  %4199 = vrot.lane.b32.xlu0 %v4092, 28
  %v4200 = vpop.permute.xlu0 %4199
  %4201 = vrot.lane.b32.xlu0 %v4093, 28
  %v4202 = vpop.permute.xlu0 %4201
  %4203 = vrot.lane.b32.xlu0 %v4094, 28
  %v4204 = vpop.permute.xlu0 %4203
  %4205 = vrot.lane.b32.xlu0 %v4095, 28
  %v4206 = vpop.permute.xlu0 %4205
  %4207 = vrot.lane.b32.xlu0 %v4096, 28
  %v4208 = vpop.permute.xlu0 %4207
  %4209 = vrot.lane.b32.xlu0 %v4097, 28
  %v4210 = vpop.permute.xlu0 %4209
  %4211 = vrot.lane.b32.xlu0 %v4098, 28
  %v4212 = vpop.permute.xlu0 %4211
  %4213 = vrot.lane.b32.xlu0 %v4099, 28
  %v4214 = vpop.permute.xlu0 %4213
  %4215 = vrot.lane.b32.xlu0 %v4100, 28
  %v4216 = vpop.permute.xlu0 %4215
  %4217 = vrot.lane.b32.xlu0 %v4101, 28
  %v4218 = vpop.permute.xlu0 %4217
  %4219 = vrot.lane.b32.xlu0 %v4102, 28
  %v4220 = vpop.permute.xlu0 %4219
  %4221 = vrot.lane.b32.xlu0 %v4103, 28
  %v4222 = vpop.permute.xlu0 %4221
  %4223 = vrot.lane.b32.xlu0 %v4104, 28
  %v4224 = vpop.permute.xlu0 %4223
  %4225 = vrot.lane.b32.xlu0 %v4105, 28
  %v4226 = vpop.permute.xlu0 %4225
  %4227 = vrot.lane.b32.xlu0 %v4106, 28
  %v4228 = vpop.permute.xlu0 %4227
  %4229 = vrot.lane.b32.xlu0 %v4107, 28
  %v4230 = vpop.permute.xlu0 %4229
  %4231 = vrot.lane.b32.xlu0 %v4108, 28
  %v4232 = vpop.permute.xlu0 %4231
  %4233 = vrot.lane.b32.xlu0 %v4109, 28
  %v4234 = vpop.permute.xlu0 %4233
  %4235 = vrot.lane.b32.xlu0 %v4110, 28
  %v4236 = vpop.permute.xlu0 %4235
  %4237 = vrot.lane.b32.xlu0 %v4111, 28
  %v4238 = vpop.permute.xlu0 %4237
  %4239 = vrot.lane.b32.xlu0 %v4112, 28
  %v4240 = vpop.permute.xlu0 %4239
  %vm4305 = vcmask 257248
  %4306 = vst.msk [vmem:[#allocation4] sm:$0xf] %vm4305, %v4114
  %4307 = vst.msk [vmem:[#allocation4 + $0x4] sm:$0xf] %vm4305, %v4116
  %4308 = vst.msk [vmem:[#allocation4 + $0x8] sm:$0xf] %vm4305, %v4118
  %4309 = vst.msk [vmem:[#allocation4 + $0xc] sm:$0xf] %vm4305, %v4120
  %4310 = vst.msk [vmem:[#allocation4 + $0x10] sm:$0xf] %vm4305, %v4122
  %4311 = vst.msk [vmem:[#allocation4 + $0x14] sm:$0xf] %vm4305, %v4124
  %4312 = vst.msk [vmem:[#allocation4 + $0x18] sm:$0xf] %vm4305, %v4126
  %4313 = vst.msk [vmem:[#allocation4 + $0x1c] sm:$0xf] %vm4305, %v4128
  %4314 = vst.msk [vmem:[#allocation4 + $0x20] sm:$0xf] %vm4305, %v4130
  %4315 = vst.msk [vmem:[#allocation4 + $0x24] sm:$0xf] %vm4305, %v4132
  %4316 = vst.msk [vmem:[#allocation4 + $0x28] sm:$0xf] %vm4305, %v4134
  %4317 = vst.msk [vmem:[#allocation4 + $0x2c] sm:$0xf] %vm4305, %v4136
  %4318 = vst.msk [vmem:[#allocation4 + $0x30] sm:$0xf] %vm4305, %v4138
  %4319 = vst.msk [vmem:[#allocation4 + $0x34] sm:$0xf] %vm4305, %v4140
  %4320 = vst.msk [vmem:[#allocation4 + $0x38] sm:$0xf] %vm4305, %v4142
  %4321 = vst.msk [vmem:[#allocation4 + $0x3c] sm:$0xf] %vm4305, %v4144
  %4322 = vst.msk [vmem:[#allocation4 + $0x40] sm:$0xf] %vm4305, %v4146
  %4323 = vst.msk [vmem:[#allocation4 + $0x44] sm:$0xf] %vm4305, %v4148
  %4324 = vst.msk [vmem:[#allocation4 + $0x48] sm:$0xf] %vm4305, %v4150
  %4325 = vst.msk [vmem:[#allocation4 + $0x4c] sm:$0xf] %vm4305, %v4152
  %4326 = vst.msk [vmem:[#allocation4 + $0x50] sm:$0xf] %vm4305, %v4154
  %4327 = vst.msk [vmem:[#allocation4 + $0x54] sm:$0xf] %vm4305, %v4156
  %4328 = vst.msk [vmem:[#allocation4 + $0x58] sm:$0xf] %vm4305, %v4158
  %4329 = vst.msk [vmem:[#allocation4 + $0x5c] sm:$0xf] %vm4305, %v4160
  %4330 = vst.msk [vmem:[#allocation4 + $0x60] sm:$0xf] %vm4305, %v4162
  %4331 = vst.msk [vmem:[#allocation4 + $0x64] sm:$0xf] %vm4305, %v4164
  %4332 = vst.msk [vmem:[#allocation4 + $0x68] sm:$0xf] %vm4305, %v4166
  %4333 = vst.msk [vmem:[#allocation4 + $0x6c] sm:$0xf] %vm4305, %v4168
  %4334 = vst.msk [vmem:[#allocation4 + $0x70] sm:$0xf] %vm4305, %v4170
  %4335 = vst.msk [vmem:[#allocation4 + $0x74] sm:$0xf] %vm4305, %v4172
  %4336 = vst.msk [vmem:[#allocation4 + $0x78] sm:$0xf] %vm4305, %v4174
  %4337 = vst.msk [vmem:[#allocation4 + $0x7c] sm:$0xf] %vm4305, %v4176
  %4338 = vst.msk [vmem:[#allocation4 + $0x80] sm:$0xf] %vm4305, %v4178
  %4339 = vst.msk [vmem:[#allocation4 + $0x84] sm:$0xf] %vm4305, %v4180
  %4340 = vst.msk [vmem:[#allocation4 + $0x88] sm:$0xf] %vm4305, %v4182
  %4341 = vst.msk [vmem:[#allocation4 + $0x8c] sm:$0xf] %vm4305, %v4184
  %4342 = vst.msk [vmem:[#allocation4 + $0x90] sm:$0xf] %vm4305, %v4186
  %4343 = vst.msk [vmem:[#allocation4 + $0x94] sm:$0xf] %vm4305, %v4188
  %4344 = vst.msk [vmem:[#allocation4 + $0x98] sm:$0xf] %vm4305, %v4190
  %4345 = vst.msk [vmem:[#allocation4 + $0x9c] sm:$0xf] %vm4305, %v4192
  %4346 = vst.msk [vmem:[#allocation4 + $0xa0] sm:$0xf] %vm4305, %v4194
  %4347 = vst.msk [vmem:[#allocation4 + $0xa4] sm:$0xf] %vm4305, %v4196
  %4348 = vst.msk [vmem:[#allocation4 + $0xa8] sm:$0xf] %vm4305, %v4198
  %4349 = vst.msk [vmem:[#allocation4 + $0xac] sm:$0xf] %vm4305, %v4200
  %4350 = vst.msk [vmem:[#allocation4 + $0xb0] sm:$0xf] %vm4305, %v4202
  %4351 = vst.msk [vmem:[#allocation4 + $0xb4] sm:$0xf] %vm4305, %v4204
  %4352 = vst.msk [vmem:[#allocation4 + $0xb8] sm:$0xf] %vm4305, %v4206
  %4353 = vst.msk [vmem:[#allocation4 + $0xbc] sm:$0xf] %vm4305, %v4208
  %4354 = vst.msk [vmem:[#allocation4 + $0xc0] sm:$0xf] %vm4305, %v4210
  %4355 = vst.msk [vmem:[#allocation4 + $0xc4] sm:$0xf] %vm4305, %v4212
  %4356 = vst.msk [vmem:[#allocation4 + $0xc8] sm:$0xf] %vm4305, %v4214
  %4357 = vst.msk [vmem:[#allocation4 + $0xcc] sm:$0xf] %vm4305, %v4216
  %4358 = vst.msk [vmem:[#allocation4 + $0xd0] sm:$0xf] %vm4305, %v4218
  %4359 = vst.msk [vmem:[#allocation4 + $0xd4] sm:$0xf] %vm4305, %v4220
  %4360 = vst.msk [vmem:[#allocation4 + $0xd8] sm:$0xf] %vm4305, %v4222
  %4361 = vst.msk [vmem:[#allocation4 + $0xdc] sm:$0xf] %vm4305, %v4224
  %4362 = vst.msk [vmem:[#allocation4 + $0xe0] sm:$0xf] %vm4305, %v4226
  %4363 = vst.msk [vmem:[#allocation4 + $0xe4] sm:$0xf] %vm4305, %v4228
  %4364 = vst.msk [vmem:[#allocation4 + $0xe8] sm:$0xf] %vm4305, %v4230
  %4365 = vst.msk [vmem:[#allocation4 + $0xec] sm:$0xf] %vm4305, %v4232
  %4366 = vst.msk [vmem:[#allocation4 + $0xf0] sm:$0xf] %vm4305, %v4234
  %4367 = vst.msk [vmem:[#allocation4 + $0xf4] sm:$0xf] %vm4305, %v4236
  %4368 = vst.msk [vmem:[#allocation4 + $0xf8] sm:$0xf] %vm4305, %v4238
  %4369 = vst.msk [vmem:[#allocation4 + $0xfc] sm:$0xf] %vm4305, %v4240
  %v4370 = vld [vmem:[%s3343 + $0x2] sm:$0xff]
  %v4371 = vld [vmem:[%s3343 + $0xa] sm:$0xff]
  %v4372 = vld [vmem:[%s3343 + $0x1a] sm:$0xff]
  %v4373 = vld [vmem:[%s3343 + $0x22] sm:$0xff]
  %v4374 = vld [vmem:[%s3343 + $0x32] sm:$0xff]
  %v4375 = vld [vmem:[%s3343 + $0x3a] sm:$0xff]
  %v4376 = vld [vmem:[%s3343 + $0x4a] sm:$0xff]
  %v4377 = vld [vmem:[%s3343 + $0x52] sm:$0xff]
  %v4378 = vld [vmem:[%s3343 + $0x62] sm:$0xff]
  %v4379 = vld [vmem:[%s3343 + $0x6a] sm:$0xff]
  %v4380 = vld [vmem:[%s3343 + $0x7a] sm:$0xff]
  %v4381 = vld [vmem:[%s3343 + $0x82] sm:$0xff]
  %v4382 = vld [vmem:[%s3343 + $0x92] sm:$0xff]
  %v4383 = vld [vmem:[%s3343 + $0x9a] sm:$0xff]
  %v4384 = vld [vmem:[%s3343 + $0xaa] sm:$0xff]
  %v4385 = vld [vmem:[%s3343 + $0xb2] sm:$0xff]
  %v4386 = vld [vmem:[%s3343 + $0xc2] sm:$0xff]
  %v4387 = vld [vmem:[%s3343 + $0xca] sm:$0xff]
  %v4388 = vld [vmem:[%s3343 + $0xda] sm:$0xff]
  %v4389 = vld [vmem:[%s3343 + $0xe2] sm:$0xff]
  %v4390 = vld [vmem:[%s3343 + $0xf2] sm:$0xff]
  %v4391 = vld [vmem:[%s3343 + $0xfa] sm:$0xff]
  %v4392 = vld [vmem:[%s3343 + $0x10a] sm:$0xff]
  %v4393 = vld [vmem:[%s3343 + $0x112] sm:$0xff]
  %v4394 = vld [vmem:[%s3343 + $0x122] sm:$0xff]
  %v4395 = vld [vmem:[%s3343 + $0x12a] sm:$0xff]
  %v4396 = vld [vmem:[%s3343 + $0x13a] sm:$0xff]
  %v4397 = vld [vmem:[%s3343 + $0x142] sm:$0xff]
  %v4398 = vld [vmem:[%s3343 + $0x152] sm:$0xff]
  %v4399 = vld [vmem:[%s3343 + $0x15a] sm:$0xff]
  %v4400 = vld [vmem:[%s3343 + $0x16a] sm:$0xff]
  %v4401 = vld [vmem:[%s3343 + $0x172] sm:$0xff]
  %v4402 = vld [vmem:[%s3343 + $0x1b2] sm:$0xff]
  %v4403 = vld [vmem:[%s3343 + $0x1ba] sm:$0xff]
  %v4404 = vld [vmem:[%s3343 + $0x1ca] sm:$0xff]
  %v4405 = vld [vmem:[%s3343 + $0x1d2] sm:$0xff]
  %v4406 = vld [vmem:[%s3343 + $0x1e2] sm:$0xff]
  %v4407 = vld [vmem:[%s3343 + $0x1ea] sm:$0xff]
  %v4408 = vld [vmem:[%s3343 + $0x1fa] sm:$0xff]
  %v4409 = vld [vmem:[%s3343 + $0x202] sm:$0xff]
  %v4410 = vld [vmem:[%s3343 + $0x212] sm:$0xff]
  %v4411 = vld [vmem:[%s3343 + $0x21a] sm:$0xff]
  %v4412 = vld [vmem:[%s3343 + $0x22a] sm:$0xff]
  %v4413 = vld [vmem:[%s3343 + $0x232] sm:$0xff]
  %v4414 = vld [vmem:[%s3343 + $0x242] sm:$0xff]
  %v4415 = vld [vmem:[%s3343 + $0x24a] sm:$0xff]
  %v4416 = vld [vmem:[%s3343 + $0x25a] sm:$0xff]
  %v4417 = vld [vmem:[%s3343 + $0x262] sm:$0xff]
  %v4418 = vld [vmem:[%s3343 + $0x272] sm:$0xff]
  %v4419 = vld [vmem:[%s3343 + $0x27a] sm:$0xff]
  %v4420 = vld [vmem:[%s3343 + $0x28a] sm:$0xff]
  %v4421 = vld [vmem:[%s3343 + $0x292] sm:$0xff]
  %v4422 = vld [vmem:[%s3343 + $0x2a2] sm:$0xff]
  %v4423 = vld [vmem:[%s3343 + $0x2aa] sm:$0xff]
  %v4424 = vld [vmem:[%s3343 + $0x2ba] sm:$0xff]
  %v4425 = vld [vmem:[%s3343 + $0x2c2] sm:$0xff]
  %v4426 = vld [vmem:[%s3343 + $0x2d2] sm:$0xff]
  %v4427 = vld [vmem:[%s3343 + $0x2da] sm:$0xff]
  %v4428 = vld [vmem:[%s3343 + $0x2ea] sm:$0xff]
  %v4429 = vld [vmem:[%s3343 + $0x2f2] sm:$0xff]
  %v4430 = vld [vmem:[%s3343 + $0x302] sm:$0xff]
  %v4431 = vld [vmem:[%s3343 + $0x30a] sm:$0xff]
  %v4432 = vld [vmem:[%s3343 + $0x31a] sm:$0xff]
  %v4433 = vld [vmem:[%s3343 + $0x322] sm:$0xff]
  %v4434 = vpack.c.bf16 %v4371, %v4370
  %v4435 = vpack.c.bf16 %v4373, %v4372
  %v4436 = vpack.c.bf16 %v4375, %v4374
  %v4437 = vpack.c.bf16 %v4377, %v4376
  %v4438 = vpack.c.bf16 %v4379, %v4378
  %v4439 = vpack.c.bf16 %v4381, %v4380
  %v4440 = vpack.c.bf16 %v4383, %v4382
  %v4441 = vpack.c.bf16 %v4385, %v4384
  %v4442 = vpack.c.bf16 %v4387, %v4386
  %v4443 = vpack.c.bf16 %v4389, %v4388
  %v4444 = vpack.c.bf16 %v4391, %v4390
  %v4445 = vpack.c.bf16 %v4393, %v4392
  %v4446 = vpack.c.bf16 %v4395, %v4394
  %v4447 = vpack.c.bf16 %v4397, %v4396
  %v4448 = vpack.c.bf16 %v4399, %v4398
  %v4449 = vpack.c.bf16 %v4401, %v4400
  %v4450 = vpack.c.bf16 %v4403, %v4402
  %v4451 = vpack.c.bf16 %v4405, %v4404
  %v4452 = vpack.c.bf16 %v4407, %v4406
  %v4453 = vpack.c.bf16 %v4409, %v4408
  %v4454 = vpack.c.bf16 %v4411, %v4410
  %v4455 = vpack.c.bf16 %v4413, %v4412
  %v4456 = vpack.c.bf16 %v4415, %v4414
  %v4457 = vpack.c.bf16 %v4417, %v4416
  %v4458 = vpack.c.bf16 %v4419, %v4418
  %v4459 = vpack.c.bf16 %v4421, %v4420
  %v4460 = vpack.c.bf16 %v4423, %v4422
  %v4461 = vpack.c.bf16 %v4425, %v4424
  %v4462 = vpack.c.bf16 %v4427, %v4426
  %v4463 = vpack.c.bf16 %v4429, %v4428
  %v4464 = vpack.c.bf16 %v4431, %v4430
  %v4465 = vpack.c.bf16 %v4433, %v4432
  %v4498 = vunpack.c.l.b16 %v4434
  %v4499 = vunpack.c.h.b16 %v4434
  %v4500 = vunpack.c.l.b16 %v4435
  %v4501 = vunpack.c.h.b16 %v4435
  %v4502 = vunpack.c.l.b16 %v4436
  %v4503 = vunpack.c.h.b16 %v4436
  %v4504 = vunpack.c.l.b16 %v4437
  %v4505 = vunpack.c.h.b16 %v4437
  %v4506 = vunpack.c.l.b16 %v4438
  %v4507 = vunpack.c.h.b16 %v4438
  %v4508 = vunpack.c.l.b16 %v4439
  %v4509 = vunpack.c.h.b16 %v4439
  %v4510 = vunpack.c.l.b16 %v4440
  %v4511 = vunpack.c.h.b16 %v4440
  %v4512 = vunpack.c.l.b16 %v4441
  %v4513 = vunpack.c.h.b16 %v4441
  %v4514 = vunpack.c.l.b16 %v4442
  %v4515 = vunpack.c.h.b16 %v4442
  %v4516 = vunpack.c.l.b16 %v4443
  %v4517 = vunpack.c.h.b16 %v4443
  %v4518 = vunpack.c.l.b16 %v4444
  %v4519 = vunpack.c.h.b16 %v4444
  %v4520 = vunpack.c.l.b16 %v4445
  %v4521 = vunpack.c.h.b16 %v4445
  %v4522 = vunpack.c.l.b16 %v4446
  %v4523 = vunpack.c.h.b16 %v4446
  %v4524 = vunpack.c.l.b16 %v4447
  %v4525 = vunpack.c.h.b16 %v4447
  %v4526 = vunpack.c.l.b16 %v4448
  %v4527 = vunpack.c.h.b16 %v4448
  %v4528 = vunpack.c.l.b16 %v4449
  %v4529 = vunpack.c.h.b16 %v4449
  %v4530 = vunpack.c.l.b16 %v4450
  %v4531 = vunpack.c.h.b16 %v4450
  %v4532 = vunpack.c.l.b16 %v4451
  %v4533 = vunpack.c.h.b16 %v4451
  %v4534 = vunpack.c.l.b16 %v4452
  %v4535 = vunpack.c.h.b16 %v4452
  %v4536 = vunpack.c.l.b16 %v4453
  %v4537 = vunpack.c.h.b16 %v4453
  %v4538 = vunpack.c.l.b16 %v4454
  %v4539 = vunpack.c.h.b16 %v4454
  %v4540 = vunpack.c.l.b16 %v4455
  %v4541 = vunpack.c.h.b16 %v4455
  %v4542 = vunpack.c.l.b16 %v4456
  %v4543 = vunpack.c.h.b16 %v4456
  %v4544 = vunpack.c.l.b16 %v4457
  %v4545 = vunpack.c.h.b16 %v4457
  %v4546 = vunpack.c.l.b16 %v4458
  %v4547 = vunpack.c.h.b16 %v4458
  %v4548 = vunpack.c.l.b16 %v4459
  %v4549 = vunpack.c.h.b16 %v4459
  %v4550 = vunpack.c.l.b16 %v4460
  %v4551 = vunpack.c.h.b16 %v4460
  %v4552 = vunpack.c.l.b16 %v4461
  %v4553 = vunpack.c.h.b16 %v4461
  %v4554 = vunpack.c.l.b16 %v4462
  %v4555 = vunpack.c.h.b16 %v4462
  %v4556 = vunpack.c.l.b16 %v4463
  %v4557 = vunpack.c.h.b16 %v4463
  %v4558 = vunpack.c.l.b16 %v4464
  %v4559 = vunpack.c.h.b16 %v4464
  %v4560 = vunpack.c.l.b16 %v4465
  %v4561 = vunpack.c.h.b16 %v4465
  %v4562 = vpack.c.b16 %v4498, %v4498
  %v4563 = vpack.c.b16 %v4499, %v4499
  %v4564 = vpack.c.b16 %v4500, %v4500
  %v4565 = vpack.c.b16 %v4501, %v4501
  %v4566 = vpack.c.b16 %v4502, %v4502
  %v4567 = vpack.c.b16 %v4503, %v4503
  %v4568 = vpack.c.b16 %v4504, %v4504
  %v4569 = vpack.c.b16 %v4505, %v4505
  %v4570 = vpack.c.b16 %v4506, %v4506
  %v4571 = vpack.c.b16 %v4507, %v4507
  %v4572 = vpack.c.b16 %v4508, %v4508
  %v4573 = vpack.c.b16 %v4509, %v4509
  %v4574 = vpack.c.b16 %v4510, %v4510
  %v4575 = vpack.c.b16 %v4511, %v4511
  %v4576 = vpack.c.b16 %v4512, %v4512
  %v4577 = vpack.c.b16 %v4513, %v4513
  %v4578 = vpack.c.b16 %v4514, %v4514
  %v4579 = vpack.c.b16 %v4515, %v4515
  %v4580 = vpack.c.b16 %v4516, %v4516
  %v4581 = vpack.c.b16 %v4517, %v4517
  %v4582 = vpack.c.b16 %v4518, %v4518
  %v4583 = vpack.c.b16 %v4519, %v4519
  %v4584 = vpack.c.b16 %v4520, %v4520
  %v4585 = vpack.c.b16 %v4521, %v4521
  %v4586 = vpack.c.b16 %v4522, %v4522
  %v4587 = vpack.c.b16 %v4523, %v4523
  %v4588 = vpack.c.b16 %v4524, %v4524
  %v4589 = vpack.c.b16 %v4525, %v4525
  %v4590 = vpack.c.b16 %v4526, %v4526
  %v4591 = vpack.c.b16 %v4527, %v4527
  %v4592 = vpack.c.b16 %v4528, %v4528
  %v4593 = vpack.c.b16 %v4529, %v4529
  %v4594 = vpack.c.b16 %v4530, %v4530
  %v4595 = vpack.c.b16 %v4531, %v4531
  %v4596 = vpack.c.b16 %v4532, %v4532
  %v4597 = vpack.c.b16 %v4533, %v4533
  %v4598 = vpack.c.b16 %v4534, %v4534
  %v4599 = vpack.c.b16 %v4535, %v4535
  %v4600 = vpack.c.b16 %v4536, %v4536
  %v4601 = vpack.c.b16 %v4537, %v4537
  %v4602 = vpack.c.b16 %v4538, %v4538
  %v4603 = vpack.c.b16 %v4539, %v4539
  %v4604 = vpack.c.b16 %v4540, %v4540
  %v4605 = vpack.c.b16 %v4541, %v4541
  %v4606 = vpack.c.b16 %v4542, %v4542
  %v4607 = vpack.c.b16 %v4543, %v4543
  %v4608 = vpack.c.b16 %v4544, %v4544
  %v4609 = vpack.c.b16 %v4545, %v4545
  %v4610 = vpack.c.b16 %v4546, %v4546
  %v4611 = vpack.c.b16 %v4547, %v4547
  %v4612 = vpack.c.b16 %v4548, %v4548
  %v4613 = vpack.c.b16 %v4549, %v4549
  %v4614 = vpack.c.b16 %v4550, %v4550
  %v4615 = vpack.c.b16 %v4551, %v4551
  %v4616 = vpack.c.b16 %v4552, %v4552
  %v4617 = vpack.c.b16 %v4553, %v4553
  %v4618 = vpack.c.b16 %v4554, %v4554
  %v4619 = vpack.c.b16 %v4555, %v4555
  %v4620 = vpack.c.b16 %v4556, %v4556
  %v4621 = vpack.c.b16 %v4557, %v4557
  %v4622 = vpack.c.b16 %v4558, %v4558
  %v4623 = vpack.c.b16 %v4559, %v4559
  %v4624 = vpack.c.b16 %v4560, %v4560
  %v4625 = vpack.c.b16 %v4561, %v4561
  %4626 = vrot.lane.b32.xlu0 %v4562, 32
  %v4627 = vpop.permute.xlu0 %4626
  %4628 = vrot.lane.b32.xlu0 %v4563, 32
  %v4629 = vpop.permute.xlu0 %4628
  %4630 = vrot.lane.b32.xlu0 %v4564, 32
  %v4631 = vpop.permute.xlu0 %4630
  %4632 = vrot.lane.b32.xlu0 %v4565, 32
  %v4633 = vpop.permute.xlu0 %4632
  %4634 = vrot.lane.b32.xlu0 %v4566, 32
  %v4635 = vpop.permute.xlu0 %4634
  %4636 = vrot.lane.b32.xlu0 %v4567, 32
  %v4637 = vpop.permute.xlu0 %4636
  %4638 = vrot.lane.b32.xlu0 %v4568, 32
  %v4639 = vpop.permute.xlu0 %4638
  %4640 = vrot.lane.b32.xlu0 %v4569, 32
  %v4641 = vpop.permute.xlu0 %4640
  %4642 = vrot.lane.b32.xlu0 %v4570, 32
  %v4643 = vpop.permute.xlu0 %4642
  %4644 = vrot.lane.b32.xlu0 %v4571, 32
  %v4645 = vpop.permute.xlu0 %4644
  %4646 = vrot.lane.b32.xlu0 %v4572, 32
  %v4647 = vpop.permute.xlu0 %4646
  %4648 = vrot.lane.b32.xlu0 %v4573, 32
  %v4649 = vpop.permute.xlu0 %4648
  %4650 = vrot.lane.b32.xlu0 %v4574, 32
  %v4651 = vpop.permute.xlu0 %4650
  %4652 = vrot.lane.b32.xlu0 %v4575, 32
  %v4653 = vpop.permute.xlu0 %4652
  %4654 = vrot.lane.b32.xlu0 %v4576, 32
  %v4655 = vpop.permute.xlu0 %4654
  %4656 = vrot.lane.b32.xlu0 %v4577, 32
  %v4657 = vpop.permute.xlu0 %4656
  %4658 = vrot.lane.b32.xlu0 %v4578, 32
  %v4659 = vpop.permute.xlu0 %4658
  %4660 = vrot.lane.b32.xlu0 %v4579, 32
  %v4661 = vpop.permute.xlu0 %4660
  %4662 = vrot.lane.b32.xlu0 %v4580, 32
  %v4663 = vpop.permute.xlu0 %4662
  %4664 = vrot.lane.b32.xlu0 %v4581, 32
  %v4665 = vpop.permute.xlu0 %4664
  %4666 = vrot.lane.b32.xlu0 %v4582, 32
  %v4667 = vpop.permute.xlu0 %4666
  %4668 = vrot.lane.b32.xlu0 %v4583, 32
  %v4669 = vpop.permute.xlu0 %4668
  %4670 = vrot.lane.b32.xlu0 %v4584, 32
  %v4671 = vpop.permute.xlu0 %4670
  %4672 = vrot.lane.b32.xlu0 %v4585, 32
  %v4673 = vpop.permute.xlu0 %4672
  %4674 = vrot.lane.b32.xlu0 %v4586, 32
  %v4675 = vpop.permute.xlu0 %4674
  %4676 = vrot.lane.b32.xlu0 %v4587, 32
  %v4677 = vpop.permute.xlu0 %4676
  %4678 = vrot.lane.b32.xlu0 %v4588, 32
  %v4679 = vpop.permute.xlu0 %4678
  %4680 = vrot.lane.b32.xlu0 %v4589, 32
  %v4681 = vpop.permute.xlu0 %4680
  %4682 = vrot.lane.b32.xlu0 %v4590, 32
  %v4683 = vpop.permute.xlu0 %4682
  %4684 = vrot.lane.b32.xlu0 %v4591, 32
  %v4685 = vpop.permute.xlu0 %4684
  %4686 = vrot.lane.b32.xlu0 %v4592, 32
  %v4687 = vpop.permute.xlu0 %4686
  %4688 = vrot.lane.b32.xlu0 %v4593, 32
  %v4689 = vpop.permute.xlu0 %4688
  %4690 = vrot.lane.b32.xlu0 %v4594, 32
  %v4691 = vpop.permute.xlu0 %4690
  %4692 = vrot.lane.b32.xlu0 %v4595, 32
  %v4693 = vpop.permute.xlu0 %4692
  %4694 = vrot.lane.b32.xlu0 %v4596, 32
  %v4695 = vpop.permute.xlu0 %4694
  %4696 = vrot.lane.b32.xlu0 %v4597, 32
  %v4697 = vpop.permute.xlu0 %4696
  %4698 = vrot.lane.b32.xlu0 %v4598, 32
  %v4699 = vpop.permute.xlu0 %4698
  %4700 = vrot.lane.b32.xlu0 %v4599, 32
  %v4701 = vpop.permute.xlu0 %4700
  %4702 = vrot.lane.b32.xlu0 %v4600, 32
  %v4703 = vpop.permute.xlu0 %4702
  %4704 = vrot.lane.b32.xlu0 %v4601, 32
  %v4705 = vpop.permute.xlu0 %4704
  %4706 = vrot.lane.b32.xlu0 %v4602, 32
  %v4707 = vpop.permute.xlu0 %4706
  %4708 = vrot.lane.b32.xlu0 %v4603, 32
  %v4709 = vpop.permute.xlu0 %4708
  %4710 = vrot.lane.b32.xlu0 %v4604, 32
  %v4711 = vpop.permute.xlu0 %4710
  %4712 = vrot.lane.b32.xlu0 %v4605, 32
  %v4713 = vpop.permute.xlu0 %4712
  %4714 = vrot.lane.b32.xlu0 %v4606, 32
  %v4715 = vpop.permute.xlu0 %4714
  %4716 = vrot.lane.b32.xlu0 %v4607, 32
  %v4717 = vpop.permute.xlu0 %4716
  %4718 = vrot.lane.b32.xlu0 %v4608, 32
  %v4719 = vpop.permute.xlu0 %4718
  %4720 = vrot.lane.b32.xlu0 %v4609, 32
  %v4721 = vpop.permute.xlu0 %4720
  %4722 = vrot.lane.b32.xlu0 %v4610, 32
  %v4723 = vpop.permute.xlu0 %4722
  %4724 = vrot.lane.b32.xlu0 %v4611, 32
  %v4725 = vpop.permute.xlu0 %4724
  %4726 = vrot.lane.b32.xlu0 %v4612, 32
  %v4727 = vpop.permute.xlu0 %4726
  %4728 = vrot.lane.b32.xlu0 %v4613, 32
  %v4729 = vpop.permute.xlu0 %4728
  %4730 = vrot.lane.b32.xlu0 %v4614, 32
  %v4731 = vpop.permute.xlu0 %4730
  %4732 = vrot.lane.b32.xlu0 %v4615, 32
  %v4733 = vpop.permute.xlu0 %4732
  %4734 = vrot.lane.b32.xlu0 %v4616, 32
  %v4735 = vpop.permute.xlu0 %4734
  %4736 = vrot.lane.b32.xlu0 %v4617, 32
  %v4737 = vpop.permute.xlu0 %4736
  %4738 = vrot.lane.b32.xlu0 %v4618, 32
  %v4739 = vpop.permute.xlu0 %4738
  %4740 = vrot.lane.b32.xlu0 %v4619, 32
  %v4741 = vpop.permute.xlu0 %4740
  %4742 = vrot.lane.b32.xlu0 %v4620, 32
  %v4743 = vpop.permute.xlu0 %4742
  %4744 = vrot.lane.b32.xlu0 %v4621, 32
  %v4745 = vpop.permute.xlu0 %4744
  %4746 = vrot.lane.b32.xlu0 %v4622, 32
  %v4747 = vpop.permute.xlu0 %4746
  %4748 = vrot.lane.b32.xlu0 %v4623, 32
  %v4749 = vpop.permute.xlu0 %4748
  %4750 = vrot.lane.b32.xlu0 %v4624, 32
  %v4751 = vpop.permute.xlu0 %4750
  %4752 = vrot.lane.b32.xlu0 %v4625, 32
  %v4753 = vpop.permute.xlu0 %4752
  %vm4818 = vcmask 290048
  %4819 = vst.msk [vmem:[#allocation4] sm:$0xf] %vm4818, %v4627
  %4820 = vst.msk [vmem:[#allocation4 + $0x4] sm:$0xf] %vm4818, %v4629
  %4821 = vst.msk [vmem:[#allocation4 + $0x8] sm:$0xf] %vm4818, %v4631
  %4822 = vst.msk [vmem:[#allocation4 + $0xc] sm:$0xf] %vm4818, %v4633
  %4823 = vst.msk [vmem:[#allocation4 + $0x10] sm:$0xf] %vm4818, %v4635
  %4824 = vst.msk [vmem:[#allocation4 + $0x14] sm:$0xf] %vm4818, %v4637
  %4825 = vst.msk [vmem:[#allocation4 + $0x18] sm:$0xf] %vm4818, %v4639
  %4826 = vst.msk [vmem:[#allocation4 + $0x1c] sm:$0xf] %vm4818, %v4641
  %4827 = vst.msk [vmem:[#allocation4 + $0x20] sm:$0xf] %vm4818, %v4643
  %4828 = vst.msk [vmem:[#allocation4 + $0x24] sm:$0xf] %vm4818, %v4645
  %4829 = vst.msk [vmem:[#allocation4 + $0x28] sm:$0xf] %vm4818, %v4647
  %4830 = vst.msk [vmem:[#allocation4 + $0x2c] sm:$0xf] %vm4818, %v4649
  %4831 = vst.msk [vmem:[#allocation4 + $0x30] sm:$0xf] %vm4818, %v4651
  %4832 = vst.msk [vmem:[#allocation4 + $0x34] sm:$0xf] %vm4818, %v4653
  %4833 = vst.msk [vmem:[#allocation4 + $0x38] sm:$0xf] %vm4818, %v4655
  %4834 = vst.msk [vmem:[#allocation4 + $0x3c] sm:$0xf] %vm4818, %v4657
  %4835 = vst.msk [vmem:[#allocation4 + $0x40] sm:$0xf] %vm4818, %v4659
  %4836 = vst.msk [vmem:[#allocation4 + $0x44] sm:$0xf] %vm4818, %v4661
  %4837 = vst.msk [vmem:[#allocation4 + $0x48] sm:$0xf] %vm4818, %v4663
  %4838 = vst.msk [vmem:[#allocation4 + $0x4c] sm:$0xf] %vm4818, %v4665
  %4839 = vst.msk [vmem:[#allocation4 + $0x50] sm:$0xf] %vm4818, %v4667
  %4840 = vst.msk [vmem:[#allocation4 + $0x54] sm:$0xf] %vm4818, %v4669
  %4841 = vst.msk [vmem:[#allocation4 + $0x58] sm:$0xf] %vm4818, %v4671
  %4842 = vst.msk [vmem:[#allocation4 + $0x5c] sm:$0xf] %vm4818, %v4673
  %4843 = vst.msk [vmem:[#allocation4 + $0x60] sm:$0xf] %vm4818, %v4675
  %4844 = vst.msk [vmem:[#allocation4 + $0x64] sm:$0xf] %vm4818, %v4677
  %4845 = vst.msk [vmem:[#allocation4 + $0x68] sm:$0xf] %vm4818, %v4679
  %4846 = vst.msk [vmem:[#allocation4 + $0x6c] sm:$0xf] %vm4818, %v4681
  %4847 = vst.msk [vmem:[#allocation4 + $0x70] sm:$0xf] %vm4818, %v4683
  %4848 = vst.msk [vmem:[#allocation4 + $0x74] sm:$0xf] %vm4818, %v4685
  %4849 = vst.msk [vmem:[#allocation4 + $0x78] sm:$0xf] %vm4818, %v4687
  %4850 = vst.msk [vmem:[#allocation4 + $0x7c] sm:$0xf] %vm4818, %v4689
  %4851 = vst.msk [vmem:[#allocation4 + $0x80] sm:$0xf] %vm4818, %v4691
  %4852 = vst.msk [vmem:[#allocation4 + $0x84] sm:$0xf] %vm4818, %v4693
  %4853 = vst.msk [vmem:[#allocation4 + $0x88] sm:$0xf] %vm4818, %v4695
  %4854 = vst.msk [vmem:[#allocation4 + $0x8c] sm:$0xf] %vm4818, %v4697
  %4855 = vst.msk [vmem:[#allocation4 + $0x90] sm:$0xf] %vm4818, %v4699
  %4856 = vst.msk [vmem:[#allocation4 + $0x94] sm:$0xf] %vm4818, %v4701
  %4857 = vst.msk [vmem:[#allocation4 + $0x98] sm:$0xf] %vm4818, %v4703
  %4858 = vst.msk [vmem:[#allocation4 + $0x9c] sm:$0xf] %vm4818, %v4705
  %4859 = vst.msk [vmem:[#allocation4 + $0xa0] sm:$0xf] %vm4818, %v4707
  %4860 = vst.msk [vmem:[#allocation4 + $0xa4] sm:$0xf] %vm4818, %v4709
  %4861 = vst.msk [vmem:[#allocation4 + $0xa8] sm:$0xf] %vm4818, %v4711
  %4862 = vst.msk [vmem:[#allocation4 + $0xac] sm:$0xf] %vm4818, %v4713
  %4863 = vst.msk [vmem:[#allocation4 + $0xb0] sm:$0xf] %vm4818, %v4715
  %4864 = vst.msk [vmem:[#allocation4 + $0xb4] sm:$0xf] %vm4818, %v4717
  %4865 = vst.msk [vmem:[#allocation4 + $0xb8] sm:$0xf] %vm4818, %v4719
  %4866 = vst.msk [vmem:[#allocation4 + $0xbc] sm:$0xf] %vm4818, %v4721
  %4867 = vst.msk [vmem:[#allocation4 + $0xc0] sm:$0xf] %vm4818, %v4723
  %4868 = vst.msk [vmem:[#allocation4 + $0xc4] sm:$0xf] %vm4818, %v4725
  %4869 = vst.msk [vmem:[#allocation4 + $0xc8] sm:$0xf] %vm4818, %v4727
  %4870 = vst.msk [vmem:[#allocation4 + $0xcc] sm:$0xf] %vm4818, %v4729
  %4871 = vst.msk [vmem:[#allocation4 + $0xd0] sm:$0xf] %vm4818, %v4731
  %4872 = vst.msk [vmem:[#allocation4 + $0xd4] sm:$0xf] %vm4818, %v4733
  %4873 = vst.msk [vmem:[#allocation4 + $0xd8] sm:$0xf] %vm4818, %v4735
  %4874 = vst.msk [vmem:[#allocation4 + $0xdc] sm:$0xf] %vm4818, %v4737
  %4875 = vst.msk [vmem:[#allocation4 + $0xe0] sm:$0xf] %vm4818, %v4739
  %4876 = vst.msk [vmem:[#allocation4 + $0xe4] sm:$0xf] %vm4818, %v4741
  %4877 = vst.msk [vmem:[#allocation4 + $0xe8] sm:$0xf] %vm4818, %v4743
  %4878 = vst.msk [vmem:[#allocation4 + $0xec] sm:$0xf] %vm4818, %v4745
  %4879 = vst.msk [vmem:[#allocation4 + $0xf0] sm:$0xf] %vm4818, %v4747
  %4880 = vst.msk [vmem:[#allocation4 + $0xf4] sm:$0xf] %vm4818, %v4749
  %4881 = vst.msk [vmem:[#allocation4 + $0xf8] sm:$0xf] %vm4818, %v4751
  %4882 = vst.msk [vmem:[#allocation4 + $0xfc] sm:$0xf] %vm4818, %v4753
  %v4883 = vld [vmem:[#allocation4] sm:$0xf]
  %v4884 = vld [vmem:[#allocation4 + $0x4] sm:$0xf]
  %v4885 = vld [vmem:[#allocation4 + $0x8] sm:$0xf]
  %v4886 = vld [vmem:[#allocation4 + $0xc] sm:$0xf]
  %v4887 = vld [vmem:[#allocation4 + $0x10] sm:$0xf]
  %v4888 = vld [vmem:[#allocation4 + $0x14] sm:$0xf]
  %v4889 = vld [vmem:[#allocation4 + $0x18] sm:$0xf]
  %v4890 = vld [vmem:[#allocation4 + $0x1c] sm:$0xf]
  %v4891 = vld [vmem:[#allocation4 + $0x20] sm:$0xf]
  %v4892 = vld [vmem:[#allocation4 + $0x24] sm:$0xf]
  %v4893 = vld [vmem:[#allocation4 + $0x28] sm:$0xf]
  %v4894 = vld [vmem:[#allocation4 + $0x2c] sm:$0xf]
  %v4895 = vld [vmem:[#allocation4 + $0x30] sm:$0xf]
  %v4896 = vld [vmem:[#allocation4 + $0x34] sm:$0xf]
  %v4897 = vld [vmem:[#allocation4 + $0x38] sm:$0xf]
  %v4898 = vld [vmem:[#allocation4 + $0x3c] sm:$0xf]
  %v4899 = vld [vmem:[#allocation4 + $0x40] sm:$0xf]
  %v4900 = vld [vmem:[#allocation4 + $0x44] sm:$0xf]
  %v4901 = vld [vmem:[#allocation4 + $0x48] sm:$0xf]
  %v4902 = vld [vmem:[#allocation4 + $0x4c] sm:$0xf]
  %v4903 = vld [vmem:[#allocation4 + $0x50] sm:$0xf]
  %v4904 = vld [vmem:[#allocation4 + $0x54] sm:$0xf]
  %v4905 = vld [vmem:[#allocation4 + $0x58] sm:$0xf]
  %v4906 = vld [vmem:[#allocation4 + $0x5c] sm:$0xf]
  %v4907 = vld [vmem:[#allocation4 + $0x60] sm:$0xf]
  %v4908 = vld [vmem:[#allocation4 + $0x64] sm:$0xf]
  %v4909 = vld [vmem:[#allocation4 + $0x68] sm:$0xf]
  %v4910 = vld [vmem:[#allocation4 + $0x6c] sm:$0xf]
  %v4911 = vld [vmem:[#allocation4 + $0x70] sm:$0xf]
  %v4912 = vld [vmem:[#allocation4 + $0x74] sm:$0xf]
  %v4913 = vld [vmem:[#allocation4 + $0x78] sm:$0xf]
  %v4914 = vld [vmem:[#allocation4 + $0x7c] sm:$0xf]
  %v4915 = vld [vmem:[#allocation4 + $0x80] sm:$0xf]
  %v4916 = vld [vmem:[#allocation4 + $0x84] sm:$0xf]
  %v4917 = vld [vmem:[#allocation4 + $0x88] sm:$0xf]
  %v4918 = vld [vmem:[#allocation4 + $0x8c] sm:$0xf]
  %v4919 = vld [vmem:[#allocation4 + $0x90] sm:$0xf]
  %v4920 = vld [vmem:[#allocation4 + $0x94] sm:$0xf]
  %v4921 = vld [vmem:[#allocation4 + $0x98] sm:$0xf]
  %v4922 = vld [vmem:[#allocation4 + $0x9c] sm:$0xf]
  %v4923 = vld [vmem:[#allocation4 + $0xa0] sm:$0xf]
  %v4924 = vld [vmem:[#allocation4 + $0xa4] sm:$0xf]
  %v4925 = vld [vmem:[#allocation4 + $0xa8] sm:$0xf]
  %v4926 = vld [vmem:[#allocation4 + $0xac] sm:$0xf]
  %v4927 = vld [vmem:[#allocation4 + $0xb0] sm:$0xf]
  %v4928 = vld [vmem:[#allocation4 + $0xb4] sm:$0xf]
  %v4929 = vld [vmem:[#allocation4 + $0xb8] sm:$0xf]
  %v4930 = vld [vmem:[#allocation4 + $0xbc] sm:$0xf]
  %v4931 = vld [vmem:[#allocation4 + $0xc0] sm:$0xf]
  %v4932 = vld [vmem:[#allocation4 + $0xc4] sm:$0xf]
  %v4933 = vld [vmem:[#allocation4 + $0xc8] sm:$0xf]
  %v4934 = vld [vmem:[#allocation4 + $0xcc] sm:$0xf]
  %v4935 = vld [vmem:[#allocation4 + $0xd0] sm:$0xf]
  %v4936 = vld [vmem:[#allocation4 + $0xd4] sm:$0xf]
  %v4937 = vld [vmem:[#allocation4 + $0xd8] sm:$0xf]
  %v4938 = vld [vmem:[#allocation4 + $0xdc] sm:$0xf]
  %v4939 = vld [vmem:[#allocation4 + $0xe0] sm:$0xf]
  %v4940 = vld [vmem:[#allocation4 + $0xe4] sm:$0xf]
  %v4941 = vld [vmem:[#allocation4 + $0xe8] sm:$0xf]
  %v4942 = vld [vmem:[#allocation4 + $0xec] sm:$0xf]
  %v4943 = vld [vmem:[#allocation4 + $0xf0] sm:$0xf]
  %v4944 = vld [vmem:[#allocation4 + $0xf4] sm:$0xf]
  %v4945 = vld [vmem:[#allocation4 + $0xf8] sm:$0xf]
  %v4946 = vld [vmem:[#allocation4 + $0xfc] sm:$0xf]
  %v4947 = vld [vmem:[%s1] sm:$0xf]
  %v4948 = vld [vmem:[%s1 + $0x4] sm:$0xf]
  %v4949 = vld [vmem:[%s1 + $0x8] sm:$0xf]
  %v4950 = vld [vmem:[%s1 + $0xc] sm:$0xf]
  %v4951 = vld [vmem:[%s1 + $0x10] sm:$0x3]
  %v5016 = vunpack.c.l.b16 %v4883
  %v5017 = vunpack.c.l.b16 %v4884
  %v5018 = vunpack.c.l.b16 %v4885
  %v5019 = vunpack.c.l.b16 %v4886
  %v5020 = vunpack.c.l.b16 %v4887
  %v5021 = vunpack.c.l.b16 %v4888
  %v5022 = vunpack.c.l.b16 %v4889
  %v5023 = vunpack.c.l.b16 %v4890
  %v5024 = vunpack.c.l.b16 %v4891
  %v5025 = vunpack.c.l.b16 %v4892
  %v5026 = vunpack.c.l.b16 %v4893
  %v5027 = vunpack.c.l.b16 %v4894
  %v5028 = vunpack.c.l.b16 %v4895
  %v5029 = vunpack.c.l.b16 %v4896
  %v5030 = vunpack.c.l.b16 %v4897
  %v5031 = vunpack.c.l.b16 %v4898
  %v5032 = vunpack.c.l.b16 %v4899
  %v5033 = vunpack.c.l.b16 %v4900
  %v5034 = vunpack.c.l.b16 %v4901
  %v5035 = vunpack.c.l.b16 %v4902
  %v5036 = vunpack.c.l.b16 %v4903
  %v5037 = vunpack.c.l.b16 %v4904
  %v5038 = vunpack.c.l.b16 %v4905
  %v5039 = vunpack.c.l.b16 %v4906
  %v5040 = vunpack.c.l.b16 %v4907
  %v5041 = vunpack.c.l.b16 %v4908
  %v5042 = vunpack.c.l.b16 %v4909
  %v5043 = vunpack.c.l.b16 %v4910
  %v5044 = vunpack.c.l.b16 %v4911
  %v5045 = vunpack.c.l.b16 %v4912
  %v5046 = vunpack.c.l.b16 %v4913
  %v5047 = vunpack.c.l.b16 %v4914
  %v5048 = vunpack.c.l.b16 %v4915
  %v5049 = vunpack.c.l.b16 %v4916
  %v5050 = vunpack.c.l.b16 %v4917
  %v5051 = vunpack.c.l.b16 %v4918
  %v5052 = vunpack.c.l.b16 %v4919
  %v5053 = vunpack.c.l.b16 %v4920
  %v5054 = vunpack.c.l.b16 %v4921
  %v5055 = vunpack.c.l.b16 %v4922
  %v5056 = vunpack.c.l.b16 %v4923
  %v5057 = vunpack.c.l.b16 %v4924
  %v5058 = vunpack.c.l.b16 %v4925
  %v5059 = vunpack.c.l.b16 %v4926
  %v5060 = vunpack.c.l.b16 %v4927
  %v5061 = vunpack.c.l.b16 %v4928
  %v5062 = vunpack.c.l.b16 %v4929
  %v5063 = vunpack.c.l.b16 %v4930
  %v5064 = vunpack.c.l.b16 %v4931
  %v5065 = vunpack.c.l.b16 %v4932
  %v5066 = vunpack.c.l.b16 %v4933
  %v5067 = vunpack.c.l.b16 %v4934
  %v5068 = vunpack.c.l.b16 %v4935
  %v5069 = vunpack.c.l.b16 %v4936
  %v5070 = vunpack.c.l.b16 %v4937
  %v5071 = vunpack.c.l.b16 %v4938
  %v5072 = vunpack.c.l.b16 %v4939
  %v5073 = vunpack.c.l.b16 %v4940
  %v5074 = vunpack.c.l.b16 %v4941
  %v5075 = vunpack.c.l.b16 %v4942
  %v5076 = vunpack.c.l.b16 %v4943
  %v5077 = vunpack.c.l.b16 %v4944
  %v5078 = vunpack.c.l.b16 %v4945
  %v5079 = vunpack.c.l.b16 %v4946
  %v5080 = vpack.c.b16 %v5017, %v5016
  %v5081 = vpack.c.b16 %v5019, %v5018
  %v5082 = vpack.c.b16 %v5021, %v5020
  %v5083 = vpack.c.b16 %v5023, %v5022
  %v5084 = vpack.c.b16 %v5025, %v5024
  %v5085 = vpack.c.b16 %v5027, %v5026
  %v5086 = vpack.c.b16 %v5029, %v5028
  %v5087 = vpack.c.b16 %v5031, %v5030
  %v5088 = vpack.c.b16 %v5033, %v5032
  %v5089 = vpack.c.b16 %v5035, %v5034
  %v5090 = vpack.c.b16 %v5037, %v5036
  %v5091 = vpack.c.b16 %v5039, %v5038
  %v5092 = vpack.c.b16 %v5041, %v5040
  %v5093 = vpack.c.b16 %v5043, %v5042
  %v5094 = vpack.c.b16 %v5045, %v5044
  %v5095 = vpack.c.b16 %v5047, %v5046
  %v5096 = vpack.c.b16 %v5049, %v5048
  %v5097 = vpack.c.b16 %v5051, %v5050
  %v5098 = vpack.c.b16 %v5053, %v5052
  %v5099 = vpack.c.b16 %v5055, %v5054
  %v5100 = vpack.c.b16 %v5057, %v5056
  %v5101 = vpack.c.b16 %v5059, %v5058
  %v5102 = vpack.c.b16 %v5061, %v5060
  %v5103 = vpack.c.b16 %v5063, %v5062
  %v5104 = vpack.c.b16 %v5065, %v5064
  %v5105 = vpack.c.b16 %v5067, %v5066
  %v5106 = vpack.c.b16 %v5069, %v5068
  %v5107 = vpack.c.b16 %v5071, %v5070
  %v5108 = vpack.c.b16 %v5073, %v5072
  %v5109 = vpack.c.b16 %v5075, %v5074
  %v5110 = vpack.c.b16 %v5077, %v5076
  %v5111 = vpack.c.b16 %v5079, %v5078
  %v5117 = vunpack.c.l.b16 %v4947
  %v5118 = vunpack.c.l.b16 %v4948
  %v5119 = vunpack.c.l.b16 %v4949
  %v5120 = vunpack.c.l.b16 %v4950
  %v5121 = vunpack.c.l.b16 %v4951
  %v5122 = vpack.c.b16 %v5118, %v5117
  %v5123 = vpack.c.b16 %v5120, %v5119
  %v5124 = vpack.c.b16 %v5121, %v5121
  %vm5127 = vcmask 293888
  %v5129 = vsel %vm5127, %v5080, 0
  %v5132 = vsel %vm5127, %v5081, 0
  %v5135 = vsel %vm5127, %v5082, 0
  %v5138 = vsel %vm5127, %v5083, 0
  %v5141 = vsel %vm5127, %v5084, 0
  %v5144 = vsel %vm5127, %v5085, 0
  %v5147 = vsel %vm5127, %v5086, 0
  %v5150 = vsel %vm5127, %v5087, 0
  %v5153 = vsel %vm5127, %v5088, 0
  %v5156 = vsel %vm5127, %v5089, 0
  %v5159 = vsel %vm5127, %v5090, 0
  %v5162 = vsel %vm5127, %v5091, 0
  %v5165 = vsel %vm5127, %v5092, 0
  %v5168 = vsel %vm5127, %v5093, 0
  %v5171 = vsel %vm5127, %v5094, 0
  %v5174 = vsel %vm5127, %v5095, 0
  %v5177 = vsel %vm5127, %v5096, 0
  %v5180 = vsel %vm5127, %v5097, 0
  %v5183 = vsel %vm5127, %v5098, 0
  %v5186 = vsel %vm5127, %v5099, 0
  %v5189 = vsel %vm5127, %v5100, 0
  %v5192 = vsel %vm5127, %v5101, 0
  %v5195 = vsel %vm5127, %v5102, 0
  %v5198 = vsel %vm5127, %v5103, 0
  %v5201 = vsel %vm5127, %v5104, 0
  %v5204 = vsel %vm5127, %v5105, 0
  %v5207 = vsel %vm5127, %v5106, 0
  %v5210 = vsel %vm5127, %v5107, 0
  %v5213 = vsel %vm5127, %v5108, 0
  %v5216 = vsel %vm5127, %v5109, 0
  %v5219 = vsel %vm5127, %v5110, 0
  %v5222 = vsel %vm5127, %v5111, 0
  %vm5224 = vcmask 1041408
  %v5226 = vsel %vm5224, %v5124, 0
  %5228 = vmatprep.subr.bf16.mxu0 0
  %5229 = vmatpush1.bf16.msra.mxu0 0
  %5230 = vmatprep.subr.bf16.mxu0 0
  %5231 = vmatpush1.bf16.msra.mxu0 0
  %5232 = vmatprep.subr.bf16.mxu0 0
  %5233 = vmatpush1.bf16.msra.mxu0 0
  %5234 = vmatprep.subr.bf16.mxu0 0
  %5235 = vmatpush1.bf16.msra.mxu0 0
  %5236 = vmatprep.subr.bf16.mxu0 0
  %5237 = vmatpush1.bf16.msra.mxu0 0
  %5238 = vmatprep.subr.bf16.mxu0 0
  %5239 = vmatpush1.bf16.msra.mxu0 %v5226
  %5240 = vmatprep.subr.bf16.mxu0 0
  %5241 = vmatpush1.bf16.msra.mxu0 %v5123
  %5242 = vmatprep.subr.bf16.mxu0 0
  %5243 = vmatpush1.bf16.msra.mxu0 %v5122
  %5244 = vmatprep.subr.bf16.mxu0 0
  %5245 = vmatpush2.bf16.msra.mxu0 0
  %5246 = vmatprep.subr.bf16.mxu0 0
  %5247 = vmatpush2.bf16.msra.mxu0 0
  %5248 = vmatprep.subr.bf16.mxu0 0
  %5249 = vmatpush2.bf16.msra.mxu0 0
  %5250 = vmatprep.subr.bf16.mxu0 0
  %5251 = vmatpush2.bf16.msra.mxu0 0
  %5252 = vmatprep.subr.bf16.mxu0 0
  %5253 = vmatpush2.bf16.msra.mxu0 0
  %5254 = vmatprep.subr.bf16.mxu0 0
  %5255 = vmatpush2.bf16.msra.mxu0 0
  %5256 = vmatprep.subr.bf16.mxu0 0
  %5257 = vmatpush2.bf16.msra.mxu0 0
  %5258 = vmatprep.subr.bf16.mxu0 0
  %5259 = vmatpush2.bf16.msra.mxu0 0
  %5260 = vmatprep.mubr.bf16.mxu0 0
  %5261 = vmatmul.mubr.bf16.gmra.mxu0 %v5129
  %v5262 = vpop.f32.mrf.mxu0
  %v5263 = vadd.f32 0.0, %v5262
  %v5264 = vpop.f32.mrf.mxu0
  %v5265 = vpop.f32.mrf.mxu0
  %v5266 = vadd.f32 0.0, %v5265
  %v5267 = vpop.f32.mrf.mxu0
  %5268 = vmatprep.mubr.bf16.mxu0 0
  %5269 = vmatmul.mubr.bf16.gmra.mxu0 %v5132
  %v5270 = vpop.f32.mrf.mxu0
  %v5271 = vadd.f32 0.0, %v5270
  %v5272 = vpop.f32.mrf.mxu0
  %v5273 = vpop.f32.mrf.mxu0
  %v5274 = vadd.f32 0.0, %v5273
  %v5275 = vpop.f32.mrf.mxu0
  %5276 = vmatprep.mubr.bf16.mxu0 0
  %5277 = vmatmul.mubr.bf16.gmra.mxu0 %v5135
  %v5278 = vpop.f32.mrf.mxu0
  %v5279 = vadd.f32 0.0, %v5278
  %v5280 = vpop.f32.mrf.mxu0
  %v5281 = vpop.f32.mrf.mxu0
  %v5282 = vadd.f32 0.0, %v5281
  %v5283 = vpop.f32.mrf.mxu0
  %5284 = vmatprep.mubr.bf16.mxu0 0
  %5285 = vmatmul.mubr.bf16.gmra.mxu0 %v5138
  %v5286 = vpop.f32.mrf.mxu0
  %v5287 = vadd.f32 0.0, %v5286
  %v5288 = vpop.f32.mrf.mxu0
  %v5289 = vpop.f32.mrf.mxu0
  %v5290 = vadd.f32 0.0, %v5289
  %v5291 = vpop.f32.mrf.mxu0
  %5292 = vmatprep.mubr.bf16.mxu0 0
  %5293 = vmatmul.mubr.bf16.gmra.mxu0 %v5141
  %v5294 = vpop.f32.mrf.mxu0
  %v5295 = vadd.f32 0.0, %v5294
  %v5296 = vpop.f32.mrf.mxu0
  %v5297 = vpop.f32.mrf.mxu0
  %v5298 = vadd.f32 0.0, %v5297
  %v5299 = vpop.f32.mrf.mxu0
  %5300 = vmatprep.mubr.bf16.mxu0 0
  %5301 = vmatmul.mubr.bf16.gmra.mxu0 %v5144
  %v5302 = vpop.f32.mrf.mxu0
  %v5303 = vadd.f32 0.0, %v5302
  %v5304 = vpop.f32.mrf.mxu0
  %v5305 = vpop.f32.mrf.mxu0
  %v5306 = vadd.f32 0.0, %v5305
  %v5307 = vpop.f32.mrf.mxu0
  %5308 = vmatprep.mubr.bf16.mxu0 0
  %5309 = vmatmul.mubr.bf16.gmra.mxu0 %v5147
  %v5310 = vpop.f32.mrf.mxu0
  %v5311 = vadd.f32 0.0, %v5310
  %v5312 = vpop.f32.mrf.mxu0
  %v5313 = vpop.f32.mrf.mxu0
  %v5314 = vadd.f32 0.0, %v5313
  %v5315 = vpop.f32.mrf.mxu0
  %5316 = vmatprep.mubr.bf16.mxu0 0
  %5317 = vmatmul.mubr.bf16.gmra.mxu0 %v5150
  %v5318 = vpop.f32.mrf.mxu0
  %v5319 = vadd.f32 0.0, %v5318
  %v5320 = vpop.f32.mrf.mxu0
  %v5321 = vpop.f32.mrf.mxu0
  %v5322 = vadd.f32 0.0, %v5321
  %v5323 = vpop.f32.mrf.mxu0
  %5324 = vmatprep.mubr.bf16.mxu0 0
  %5325 = vmatmul.mubr.bf16.gmra.mxu0 %v5153
  %v5326 = vpop.f32.mrf.mxu0
  %v5327 = vadd.f32 0.0, %v5326
  %v5328 = vpop.f32.mrf.mxu0
  %v5329 = vpop.f32.mrf.mxu0
  %v5330 = vadd.f32 0.0, %v5329
  %v5331 = vpop.f32.mrf.mxu0
  %5332 = vmatprep.mubr.bf16.mxu0 0
  %5333 = vmatmul.mubr.bf16.gmra.mxu0 %v5156
  %v5334 = vpop.f32.mrf.mxu0
  %v5335 = vadd.f32 0.0, %v5334
  %v5336 = vpop.f32.mrf.mxu0
  %v5337 = vpop.f32.mrf.mxu0
  %v5338 = vadd.f32 0.0, %v5337
  %v5339 = vpop.f32.mrf.mxu0
  %5340 = vmatprep.mubr.bf16.mxu0 0
  %5341 = vmatmul.mubr.bf16.gmra.mxu0 %v5159
  %v5342 = vpop.f32.mrf.mxu0
  %v5343 = vadd.f32 0.0, %v5342
  %v5344 = vpop.f32.mrf.mxu0
  %v5345 = vpop.f32.mrf.mxu0
  %v5346 = vadd.f32 0.0, %v5345
  %v5347 = vpop.f32.mrf.mxu0
  %5348 = vmatprep.mubr.bf16.mxu0 0
  %5349 = vmatmul.mubr.bf16.gmra.mxu0 %v5162
  %v5350 = vpop.f32.mrf.mxu0
  %v5351 = vadd.f32 0.0, %v5350
  %v5352 = vpop.f32.mrf.mxu0
  %v5353 = vpop.f32.mrf.mxu0
  %v5354 = vadd.f32 0.0, %v5353
  %v5355 = vpop.f32.mrf.mxu0
  %5356 = vmatprep.mubr.bf16.mxu0 0
  %5357 = vmatmul.mubr.bf16.gmra.mxu0 %v5165
  %v5358 = vpop.f32.mrf.mxu0
  %v5359 = vadd.f32 0.0, %v5358
  %v5360 = vpop.f32.mrf.mxu0
  %v5361 = vpop.f32.mrf.mxu0
  %v5362 = vadd.f32 0.0, %v5361
  %v5363 = vpop.f32.mrf.mxu0
  %5364 = vmatprep.mubr.bf16.mxu0 0
  %5365 = vmatmul.mubr.bf16.gmra.mxu0 %v5168
  %v5366 = vpop.f32.mrf.mxu0
  %v5367 = vadd.f32 0.0, %v5366
  %v5368 = vpop.f32.mrf.mxu0
  %v5369 = vpop.f32.mrf.mxu0
  %v5370 = vadd.f32 0.0, %v5369
  %v5371 = vpop.f32.mrf.mxu0
  %5372 = vmatprep.mubr.bf16.mxu0 0
  %5373 = vmatmul.mubr.bf16.gmra.mxu0 %v5171
  %v5374 = vpop.f32.mrf.mxu0
  %v5375 = vadd.f32 0.0, %v5374
  %v5376 = vpop.f32.mrf.mxu0
  %v5377 = vpop.f32.mrf.mxu0
  %v5378 = vadd.f32 0.0, %v5377
  %v5379 = vpop.f32.mrf.mxu0
  %5380 = vmatprep.mubr.bf16.mxu0 0
  %5381 = vmatmul.mubr.bf16.gmra.mxu0 %v5174
  %v5382 = vpop.f32.mrf.mxu0
  %v5383 = vadd.f32 0.0, %v5382
  %v5384 = vpop.f32.mrf.mxu0
  %v5385 = vpop.f32.mrf.mxu0
  %v5386 = vadd.f32 0.0, %v5385
  %v5387 = vpop.f32.mrf.mxu0
  %5388 = vmatprep.mubr.bf16.mxu0 0
  %5389 = vmatmul.mubr.bf16.gmra.mxu0 %v5177
  %v5390 = vpop.f32.mrf.mxu0
  %v5391 = vadd.f32 0.0, %v5390
  %v5392 = vpop.f32.mrf.mxu0
  %v5393 = vpop.f32.mrf.mxu0
  %v5394 = vadd.f32 0.0, %v5393
  %v5395 = vpop.f32.mrf.mxu0
  %5396 = vmatprep.mubr.bf16.mxu0 0
  %5397 = vmatmul.mubr.bf16.gmra.mxu0 %v5180
  %v5398 = vpop.f32.mrf.mxu0
  %v5399 = vadd.f32 0.0, %v5398
  %v5400 = vpop.f32.mrf.mxu0
  %v5401 = vpop.f32.mrf.mxu0
  %v5402 = vadd.f32 0.0, %v5401
  %v5403 = vpop.f32.mrf.mxu0
  %5404 = vmatprep.mubr.bf16.mxu0 0
  %5405 = vmatmul.mubr.bf16.gmra.mxu0 %v5183
  %v5406 = vpop.f32.mrf.mxu0
  %v5407 = vadd.f32 0.0, %v5406
  %v5408 = vpop.f32.mrf.mxu0
  %v5409 = vpop.f32.mrf.mxu0
  %v5410 = vadd.f32 0.0, %v5409
  %v5411 = vpop.f32.mrf.mxu0
  %5412 = vmatprep.mubr.bf16.mxu0 0
  %5413 = vmatmul.mubr.bf16.gmra.mxu0 %v5186
  %v5414 = vpop.f32.mrf.mxu0
  %v5415 = vadd.f32 0.0, %v5414
  %v5416 = vpop.f32.mrf.mxu0
  %v5417 = vpop.f32.mrf.mxu0
  %v5418 = vadd.f32 0.0, %v5417
  %v5419 = vpop.f32.mrf.mxu0
  %5420 = vmatprep.mubr.bf16.mxu0 0
  %5421 = vmatmul.mubr.bf16.gmra.mxu0 %v5189
  %v5422 = vpop.f32.mrf.mxu0
  %v5423 = vadd.f32 0.0, %v5422
  %v5424 = vpop.f32.mrf.mxu0
  %v5425 = vpop.f32.mrf.mxu0
  %v5426 = vadd.f32 0.0, %v5425
  %v5427 = vpop.f32.mrf.mxu0
  %5428 = vmatprep.mubr.bf16.mxu0 0
  %5429 = vmatmul.mubr.bf16.gmra.mxu0 %v5192
  %v5430 = vpop.f32.mrf.mxu0
  %v5431 = vadd.f32 0.0, %v5430
  %v5432 = vpop.f32.mrf.mxu0
  %v5433 = vpop.f32.mrf.mxu0
  %v5434 = vadd.f32 0.0, %v5433
  %v5435 = vpop.f32.mrf.mxu0
  %5436 = vmatprep.mubr.bf16.mxu0 0
  %5437 = vmatmul.mubr.bf16.gmra.mxu0 %v5195
  %v5438 = vpop.f32.mrf.mxu0
  %v5439 = vadd.f32 0.0, %v5438
  %v5440 = vpop.f32.mrf.mxu0
  %v5441 = vpop.f32.mrf.mxu0
  %v5442 = vadd.f32 0.0, %v5441
  %v5443 = vpop.f32.mrf.mxu0
  %5444 = vmatprep.mubr.bf16.mxu0 0
  %5445 = vmatmul.mubr.bf16.gmra.mxu0 %v5198
  %v5446 = vpop.f32.mrf.mxu0
  %v5447 = vadd.f32 0.0, %v5446
  %v5448 = vpop.f32.mrf.mxu0
  %v5449 = vpop.f32.mrf.mxu0
  %v5450 = vadd.f32 0.0, %v5449
  %v5451 = vpop.f32.mrf.mxu0
  %5452 = vmatprep.mubr.bf16.mxu0 0
  %5453 = vmatmul.mubr.bf16.gmra.mxu0 %v5201
  %v5454 = vpop.f32.mrf.mxu0
  %v5455 = vadd.f32 0.0, %v5454
  %v5456 = vpop.f32.mrf.mxu0
  %v5457 = vpop.f32.mrf.mxu0
  %v5458 = vadd.f32 0.0, %v5457
  %v5459 = vpop.f32.mrf.mxu0
  %5460 = vmatprep.mubr.bf16.mxu0 0
  %5461 = vmatmul.mubr.bf16.gmra.mxu0 %v5204
  %v5462 = vpop.f32.mrf.mxu0
  %v5463 = vadd.f32 0.0, %v5462
  %v5464 = vpop.f32.mrf.mxu0
  %v5465 = vpop.f32.mrf.mxu0
  %v5466 = vadd.f32 0.0, %v5465
  %v5467 = vpop.f32.mrf.mxu0
  %5468 = vmatprep.mubr.bf16.mxu0 0
  %5469 = vmatmul.mubr.bf16.gmra.mxu0 %v5207
  %v5470 = vpop.f32.mrf.mxu0
  %v5471 = vadd.f32 0.0, %v5470
  %v5472 = vpop.f32.mrf.mxu0
  %v5473 = vpop.f32.mrf.mxu0
  %v5474 = vadd.f32 0.0, %v5473
  %v5475 = vpop.f32.mrf.mxu0
  %5476 = vmatprep.mubr.bf16.mxu0 0
  %5477 = vmatmul.mubr.bf16.gmra.mxu0 %v5210
  %v5478 = vpop.f32.mrf.mxu0
  %v5479 = vadd.f32 0.0, %v5478
  %v5480 = vpop.f32.mrf.mxu0
  %v5481 = vpop.f32.mrf.mxu0
  %v5482 = vadd.f32 0.0, %v5481
  %v5483 = vpop.f32.mrf.mxu0
  %5484 = vmatprep.mubr.bf16.mxu0 0
  %5485 = vmatmul.mubr.bf16.gmra.mxu0 %v5213
  %v5486 = vpop.f32.mrf.mxu0
  %v5487 = vadd.f32 0.0, %v5486
  %v5488 = vpop.f32.mrf.mxu0
  %v5489 = vpop.f32.mrf.mxu0
  %v5490 = vadd.f32 0.0, %v5489
  %v5491 = vpop.f32.mrf.mxu0
  %5492 = vmatprep.mubr.bf16.mxu0 0
  %5493 = vmatmul.mubr.bf16.gmra.mxu0 %v5216
  %v5494 = vpop.f32.mrf.mxu0
  %v5495 = vadd.f32 0.0, %v5494
  %v5496 = vpop.f32.mrf.mxu0
  %v5497 = vpop.f32.mrf.mxu0
  %v5498 = vadd.f32 0.0, %v5497
  %v5499 = vpop.f32.mrf.mxu0
  %5500 = vmatprep.mubr.bf16.mxu0 0
  %5501 = vmatmul.mubr.bf16.gmra.mxu0 %v5219
  %v5502 = vpop.f32.mrf.mxu0
  %v5503 = vadd.f32 0.0, %v5502
  %v5504 = vpop.f32.mrf.mxu0
  %v5505 = vpop.f32.mrf.mxu0
  %v5506 = vadd.f32 0.0, %v5505
  %v5507 = vpop.f32.mrf.mxu0
  %5508 = vmatprep.mubr.bf16.mxu0 0
  %5509 = vmatmul.mubr.bf16.gmra.mxu0 %v5222
  %v5510 = vpop.f32.mrf.mxu0
  %v5511 = vadd.f32 0.0, %v5510
  %v5512 = vpop.f32.mrf.mxu0
  %v5513 = vpop.f32.mrf.mxu0
  %v5514 = vadd.f32 0.0, %v5513
  %v5515 = vpop.f32.mrf.mxu0
  %5516 = vdwg.mxu0
  %v5517 = vld [vmem:[%s2] sm:$0x1]
  %v5518 = vld [vmem:[%s3] sm:$0x1]
  %v5519 = vsel %vm27, %v5263, 0.0
  %v5520 = vsel %vm27, %v5266, 0.0
  %v5521 = vadd.f32 %v5519, %v5520
  %v5522 = vsel %vm27, %v5271, 0.0
  %v5523 = vadd.f32 %v5521, %v5522
  %v5524 = vsel %vm27, %v5274, 0.0
  %v5525 = vadd.f32 %v5523, %v5524
  %v5526 = vsel %vm27, %v5279, 0.0
  %v5527 = vadd.f32 %v5525, %v5526
  %v5528 = vsel %vm27, %v5282, 0.0
  %v5529 = vadd.f32 %v5527, %v5528
  %v5530 = vsel %vm27, %v5287, 0.0
  %v5531 = vadd.f32 %v5529, %v5530
  %v5532 = vsel %vm27, %v5290, 0.0
  %v5533 = vadd.f32 %v5531, %v5532
  %v5534 = vsel %vm27, %v5295, 0.0
  %v5535 = vadd.f32 %v5533, %v5534
  %v5536 = vsel %vm27, %v5298, 0.0
  %v5537 = vadd.f32 %v5535, %v5536
  %v5538 = vsel %vm27, %v5303, 0.0
  %v5539 = vadd.f32 %v5537, %v5538
  %v5540 = vsel %vm27, %v5306, 0.0
  %v5541 = vadd.f32 %v5539, %v5540
  %v5542 = vsel %vm27, %v5311, 0.0
  %v5543 = vadd.f32 %v5541, %v5542
  %v5544 = vsel %vm27, %v5314, 0.0
  %v5545 = vadd.f32 %v5543, %v5544
  %v5546 = vsel %vm27, %v5319, 0.0
  %v5547 = vadd.f32 %v5545, %v5546
  %v5548 = vsel %vm27, %v5322, 0.0
  %v5549 = vadd.f32 %v5547, %v5548
  %v5550 = vsel %vm27, %v5327, 0.0
  %v5551 = vadd.f32 %v5549, %v5550
  %v5552 = vsel %vm27, %v5330, 0.0
  %v5553 = vadd.f32 %v5551, %v5552
  %v5554 = vsel %vm27, %v5335, 0.0
  %v5555 = vadd.f32 %v5553, %v5554
  %v5556 = vsel %vm27, %v5338, 0.0
  %v5557 = vadd.f32 %v5555, %v5556
  %v5558 = vsel %vm27, %v5343, 0.0
  %v5559 = vadd.f32 %v5557, %v5558
  %v5560 = vsel %vm27, %v5346, 0.0
  %v5561 = vadd.f32 %v5559, %v5560
  %v5562 = vsel %vm27, %v5351, 0.0
  %v5563 = vadd.f32 %v5561, %v5562
  %v5564 = vsel %vm27, %v5354, 0.0
  %v5565 = vadd.f32 %v5563, %v5564
  %v5566 = vsel %vm27, %v5359, 0.0
  %v5567 = vadd.f32 %v5565, %v5566
  %v5568 = vsel %vm27, %v5362, 0.0
  %v5569 = vadd.f32 %v5567, %v5568
  %v5570 = vsel %vm27, %v5367, 0.0
  %v5571 = vadd.f32 %v5569, %v5570
  %v5572 = vsel %vm27, %v5370, 0.0
  %v5573 = vadd.f32 %v5571, %v5572
  %v5574 = vsel %vm27, %v5375, 0.0
  %v5575 = vadd.f32 %v5573, %v5574
  %v5576 = vsel %vm27, %v5378, 0.0
  %v5577 = vadd.f32 %v5575, %v5576
  %v5578 = vsel %vm27, %v5383, 0.0
  %v5579 = vadd.f32 %v5577, %v5578
  %v5580 = vsel %vm27, %v5386, 0.0
  %v5581 = vadd.f32 %v5579, %v5580
  %v5582 = vsel %vm27, %v5391, 0.0
  %v5583 = vadd.f32 %v5581, %v5582
  %v5584 = vsel %vm27, %v5394, 0.0
  %v5585 = vadd.f32 %v5583, %v5584
  %v5586 = vsel %vm27, %v5399, 0.0
  %v5587 = vadd.f32 %v5585, %v5586
  %v5588 = vsel %vm27, %v5402, 0.0
  %v5589 = vadd.f32 %v5587, %v5588
  %v5590 = vsel %vm27, %v5407, 0.0
  %v5591 = vadd.f32 %v5589, %v5590
  %v5592 = vsel %vm27, %v5410, 0.0
  %v5593 = vadd.f32 %v5591, %v5592
  %v5594 = vsel %vm27, %v5415, 0.0
  %v5595 = vadd.f32 %v5593, %v5594
  %v5596 = vsel %vm27, %v5418, 0.0
  %v5597 = vadd.f32 %v5595, %v5596
  %v5598 = vsel %vm27, %v5423, 0.0
  %v5599 = vadd.f32 %v5597, %v5598
  %v5600 = vsel %vm27, %v5426, 0.0
  %v5601 = vadd.f32 %v5599, %v5600
  %v5602 = vsel %vm27, %v5431, 0.0
  %v5603 = vadd.f32 %v5601, %v5602
  %v5604 = vsel %vm27, %v5434, 0.0
  %v5605 = vadd.f32 %v5603, %v5604
  %v5606 = vsel %vm27, %v5439, 0.0
  %v5607 = vadd.f32 %v5605, %v5606
  %v5608 = vsel %vm27, %v5442, 0.0
  %v5609 = vadd.f32 %v5607, %v5608
  %v5610 = vsel %vm27, %v5447, 0.0
  %v5611 = vadd.f32 %v5609, %v5610
  %v5612 = vsel %vm27, %v5450, 0.0
  %v5613 = vadd.f32 %v5611, %v5612
  %v5614 = vsel %vm27, %v5455, 0.0
  %v5615 = vadd.f32 %v5613, %v5614
  %v5616 = vsel %vm27, %v5458, 0.0
  %v5617 = vadd.f32 %v5615, %v5616
  %v5618 = vsel %vm27, %v5463, 0.0
  %v5619 = vadd.f32 %v5617, %v5618
  %v5620 = vsel %vm27, %v5466, 0.0
  %v5621 = vadd.f32 %v5619, %v5620
  %v5622 = vsel %vm27, %v5471, 0.0
  %v5623 = vadd.f32 %v5621, %v5622
  %v5624 = vsel %vm27, %v5474, 0.0
  %v5625 = vadd.f32 %v5623, %v5624
  %v5626 = vsel %vm27, %v5479, 0.0
  %v5627 = vadd.f32 %v5625, %v5626
  %v5628 = vsel %vm27, %v5482, 0.0
  %v5629 = vadd.f32 %v5627, %v5628
  %v5630 = vsel %vm27, %v5487, 0.0
  %v5631 = vadd.f32 %v5629, %v5630
  %v5632 = vsel %vm27, %v5490, 0.0
  %v5633 = vadd.f32 %v5631, %v5632
  %v5634 = vsel %vm27, %v5495, 0.0
  %v5635 = vadd.f32 %v5633, %v5634
  %v5636 = vsel %vm27, %v5498, 0.0
  %v5637 = vadd.f32 %v5635, %v5636
  %v5638 = vsel %vm27, %v5503, 0.0
  %v5639 = vadd.f32 %v5637, %v5638
  %v5640 = vsel %vm27, %v5506, 0.0
  %v5641 = vadd.f32 %v5639, %v5640
  %v5642 = vsel %vm27, %v5511, 0.0
  %v5643 = vadd.f32 %v5641, %v5642
  %v5644 = vsel %vm27, %v5514, 0.0
  %v5645 = vadd.f32 %v5643, %v5644
  %v5646 = vrot.slane %v5645, 4
  %v5647 = vadd.f32 %v5645, %v5646
  %v5648 = vrot.slane %v5647, 2
  %v5649 = vadd.f32 %v5647, %v5648
  %v5650 = vrot.slane %v5649, 1
  %v5651 = vadd.f32 %v5649, %v5650
  %v5652 = vmul.f32 %v5651, 0.001953125
  %v5653 = vmul.f32 %v5263, %v5263
  %v5654 = vmul.f32 %v5266, %v5266
  %v5655 = vmul.f32 %v5271, %v5271
  %v5656 = vmul.f32 %v5274, %v5274
  %v5657 = vmul.f32 %v5279, %v5279
  %v5658 = vmul.f32 %v5282, %v5282
  %v5659 = vmul.f32 %v5287, %v5287
  %v5660 = vmul.f32 %v5290, %v5290
  %v5661 = vmul.f32 %v5295, %v5295
  %v5662 = vmul.f32 %v5298, %v5298
  %v5663 = vmul.f32 %v5303, %v5303
  %v5664 = vmul.f32 %v5306, %v5306
  %v5665 = vmul.f32 %v5311, %v5311
  %v5666 = vmul.f32 %v5314, %v5314
  %v5667 = vmul.f32 %v5319, %v5319
  %v5668 = vmul.f32 %v5322, %v5322
  %v5669 = vmul.f32 %v5327, %v5327
  %v5670 = vmul.f32 %v5330, %v5330
  %v5671 = vmul.f32 %v5335, %v5335
  %v5672 = vmul.f32 %v5338, %v5338
  %v5673 = vmul.f32 %v5343, %v5343
  %v5674 = vmul.f32 %v5346, %v5346
  %v5675 = vmul.f32 %v5351, %v5351
  %v5676 = vmul.f32 %v5354, %v5354
  %v5677 = vmul.f32 %v5359, %v5359
  %v5678 = vmul.f32 %v5362, %v5362
  %v5679 = vmul.f32 %v5367, %v5367
  %v5680 = vmul.f32 %v5370, %v5370
  %v5681 = vmul.f32 %v5375, %v5375
  %v5682 = vmul.f32 %v5378, %v5378
  %v5683 = vmul.f32 %v5383, %v5383
  %v5684 = vmul.f32 %v5386, %v5386
  %v5685 = vmul.f32 %v5391, %v5391
  %v5686 = vmul.f32 %v5394, %v5394
  %v5687 = vmul.f32 %v5399, %v5399
  %v5688 = vmul.f32 %v5402, %v5402
  %v5689 = vmul.f32 %v5407, %v5407
  %v5690 = vmul.f32 %v5410, %v5410
  %v5691 = vmul.f32 %v5415, %v5415
  %v5692 = vmul.f32 %v5418, %v5418
  %v5693 = vmul.f32 %v5423, %v5423
  %v5694 = vmul.f32 %v5426, %v5426
  %v5695 = vmul.f32 %v5431, %v5431
  %v5696 = vmul.f32 %v5434, %v5434
  %v5697 = vmul.f32 %v5439, %v5439
  %v5698 = vmul.f32 %v5442, %v5442
  %v5699 = vmul.f32 %v5447, %v5447
  %v5700 = vmul.f32 %v5450, %v5450
  %v5701 = vmul.f32 %v5455, %v5455
  %v5702 = vmul.f32 %v5458, %v5458
  %v5703 = vmul.f32 %v5463, %v5463
  %v5704 = vmul.f32 %v5466, %v5466
  %v5705 = vmul.f32 %v5471, %v5471
  %v5706 = vmul.f32 %v5474, %v5474
  %v5707 = vmul.f32 %v5479, %v5479
  %v5708 = vmul.f32 %v5482, %v5482
  %v5709 = vmul.f32 %v5487, %v5487
  %v5710 = vmul.f32 %v5490, %v5490
  %v5711 = vmul.f32 %v5495, %v5495
  %v5712 = vmul.f32 %v5498, %v5498
  %v5713 = vmul.f32 %v5503, %v5503
  %v5714 = vmul.f32 %v5506, %v5506
  %v5715 = vmul.f32 %v5511, %v5511
  %v5716 = vmul.f32 %v5514, %v5514
  %v5717 = vsel %vm27, %v5653, 0.0
  %v5718 = vsel %vm27, %v5654, 0.0
  %v5719 = vadd.f32 %v5717, %v5718
  %v5720 = vsel %vm27, %v5655, 0.0
  %v5721 = vadd.f32 %v5719, %v5720
  %v5722 = vsel %vm27, %v5656, 0.0
  %v5723 = vadd.f32 %v5721, %v5722
  %v5724 = vsel %vm27, %v5657, 0.0
  %v5725 = vadd.f32 %v5723, %v5724
  %v5726 = vsel %vm27, %v5658, 0.0
  %v5727 = vadd.f32 %v5725, %v5726
  %v5728 = vsel %vm27, %v5659, 0.0
  %v5729 = vadd.f32 %v5727, %v5728
  %v5730 = vsel %vm27, %v5660, 0.0
  %v5731 = vadd.f32 %v5729, %v5730
  %v5732 = vsel %vm27, %v5661, 0.0
  %v5733 = vadd.f32 %v5731, %v5732
  %v5734 = vsel %vm27, %v5662, 0.0
  %v5735 = vadd.f32 %v5733, %v5734
  %v5736 = vsel %vm27, %v5663, 0.0
  %v5737 = vadd.f32 %v5735, %v5736
  %v5738 = vsel %vm27, %v5664, 0.0
  %v5739 = vadd.f32 %v5737, %v5738
  %v5740 = vsel %vm27, %v5665, 0.0
  %v5741 = vadd.f32 %v5739, %v5740
  %v5742 = vsel %vm27, %v5666, 0.0
  %v5743 = vadd.f32 %v5741, %v5742
  %v5744 = vsel %vm27, %v5667, 0.0
  %v5745 = vadd.f32 %v5743, %v5744
  %v5746 = vsel %vm27, %v5668, 0.0
  %v5747 = vadd.f32 %v5745, %v5746
  %v5748 = vsel %vm27, %v5669, 0.0
  %v5749 = vadd.f32 %v5747, %v5748
  %v5750 = vsel %vm27, %v5670, 0.0
  %v5751 = vadd.f32 %v5749, %v5750
  %v5752 = vsel %vm27, %v5671, 0.0
  %v5753 = vadd.f32 %v5751, %v5752
  %v5754 = vsel %vm27, %v5672, 0.0
  %v5755 = vadd.f32 %v5753, %v5754
  %v5756 = vsel %vm27, %v5673, 0.0
  %v5757 = vadd.f32 %v5755, %v5756
  %v5758 = vsel %vm27, %v5674, 0.0
  %v5759 = vadd.f32 %v5757, %v5758
  %v5760 = vsel %vm27, %v5675, 0.0
  %v5761 = vadd.f32 %v5759, %v5760
  %v5762 = vsel %vm27, %v5676, 0.0
  %v5763 = vadd.f32 %v5761, %v5762
  %v5764 = vsel %vm27, %v5677, 0.0
  %v5765 = vadd.f32 %v5763, %v5764
  %v5766 = vsel %vm27, %v5678, 0.0
  %v5767 = vadd.f32 %v5765, %v5766
  %v5768 = vsel %vm27, %v5679, 0.0
  %v5769 = vadd.f32 %v5767, %v5768
  %v5770 = vsel %vm27, %v5680, 0.0
  %v5771 = vadd.f32 %v5769, %v5770
  %v5772 = vsel %vm27, %v5681, 0.0
  %v5773 = vadd.f32 %v5771, %v5772
  %v5774 = vsel %vm27, %v5682, 0.0
  %v5775 = vadd.f32 %v5773, %v5774
  %v5776 = vsel %vm27, %v5683, 0.0
  %v5777 = vadd.f32 %v5775, %v5776
  %v5778 = vsel %vm27, %v5684, 0.0
  %v5779 = vadd.f32 %v5777, %v5778
  %v5780 = vsel %vm27, %v5685, 0.0
  %v5781 = vadd.f32 %v5779, %v5780
  %v5782 = vsel %vm27, %v5686, 0.0
  %v5783 = vadd.f32 %v5781, %v5782
  %v5784 = vsel %vm27, %v5687, 0.0
  %v5785 = vadd.f32 %v5783, %v5784
  %v5786 = vsel %vm27, %v5688, 0.0
  %v5787 = vadd.f32 %v5785, %v5786
  %v5788 = vsel %vm27, %v5689, 0.0
  %v5789 = vadd.f32 %v5787, %v5788
  %v5790 = vsel %vm27, %v5690, 0.0
  %v5791 = vadd.f32 %v5789, %v5790
  %v5792 = vsel %vm27, %v5691, 0.0
  %v5793 = vadd.f32 %v5791, %v5792
  %v5794 = vsel %vm27, %v5692, 0.0
  %v5795 = vadd.f32 %v5793, %v5794
  %v5796 = vsel %vm27, %v5693, 0.0
  %v5797 = vadd.f32 %v5795, %v5796
  %v5798 = vsel %vm27, %v5694, 0.0
  %v5799 = vadd.f32 %v5797, %v5798
  %v5800 = vsel %vm27, %v5695, 0.0
  %v5801 = vadd.f32 %v5799, %v5800
  %v5802 = vsel %vm27, %v5696, 0.0
  %v5803 = vadd.f32 %v5801, %v5802
  %v5804 = vsel %vm27, %v5697, 0.0
  %v5805 = vadd.f32 %v5803, %v5804
  %v5806 = vsel %vm27, %v5698, 0.0
  %v5807 = vadd.f32 %v5805, %v5806
  %v5808 = vsel %vm27, %v5699, 0.0
  %v5809 = vadd.f32 %v5807, %v5808
  %v5810 = vsel %vm27, %v5700, 0.0
  %v5811 = vadd.f32 %v5809, %v5810
  %v5812 = vsel %vm27, %v5701, 0.0
  %v5813 = vadd.f32 %v5811, %v5812
  %v5814 = vsel %vm27, %v5702, 0.0
  %v5815 = vadd.f32 %v5813, %v5814
  %v5816 = vsel %vm27, %v5703, 0.0
  %v5817 = vadd.f32 %v5815, %v5816
  %v5818 = vsel %vm27, %v5704, 0.0
  %v5819 = vadd.f32 %v5817, %v5818
  %v5820 = vsel %vm27, %v5705, 0.0
  %v5821 = vadd.f32 %v5819, %v5820
  %v5822 = vsel %vm27, %v5706, 0.0
  %v5823 = vadd.f32 %v5821, %v5822
  %v5824 = vsel %vm27, %v5707, 0.0
  %v5825 = vadd.f32 %v5823, %v5824
  %v5826 = vsel %vm27, %v5708, 0.0
  %v5827 = vadd.f32 %v5825, %v5826
  %v5828 = vsel %vm27, %v5709, 0.0
  %v5829 = vadd.f32 %v5827, %v5828
  %v5830 = vsel %vm27, %v5710, 0.0
  %v5831 = vadd.f32 %v5829, %v5830
  %v5832 = vsel %vm27, %v5711, 0.0
  %v5833 = vadd.f32 %v5831, %v5832
  %v5834 = vsel %vm27, %v5712, 0.0
  %v5835 = vadd.f32 %v5833, %v5834
  %v5836 = vsel %vm27, %v5713, 0.0
  %v5837 = vadd.f32 %v5835, %v5836
  %v5838 = vsel %vm27, %v5714, 0.0
  %v5839 = vadd.f32 %v5837, %v5838
  %v5840 = vsel %vm27, %v5715, 0.0
  %v5841 = vadd.f32 %v5839, %v5840
  %v5842 = vsel %vm27, %v5716, 0.0
  %v5843 = vadd.f32 %v5841, %v5842
  %v5844 = vrot.slane %v5843, 4
  %v5845 = vadd.f32 %v5843, %v5844
  %v5846 = vrot.slane %v5845, 2
  %v5847 = vadd.f32 %v5845, %v5846
  %v5848 = vrot.slane %v5847, 1
  %v5849 = vadd.f32 %v5847, %v5848
  %v5850 = vmul.f32 %v5849, 0.001953125
  %v5851 = vmul.f32 %v5652, %v5652
  %v5852 = vsub.f32 %v5850, %v5851
  %v5853 = vmax.f32 %v5852, 0.0
  %v5854 = vsub.f32 %v5263, %v5652
  %v5855 = vsub.f32 %v5266, %v5652
  %v5856 = vsub.f32 %v5271, %v5652
  %v5857 = vsub.f32 %v5274, %v5652
  %v5858 = vsub.f32 %v5279, %v5652
  %v5859 = vsub.f32 %v5282, %v5652
  %v5860 = vsub.f32 %v5287, %v5652
  %v5861 = vsub.f32 %v5290, %v5652
  %v5862 = vsub.f32 %v5295, %v5652
  %v5863 = vsub.f32 %v5298, %v5652
  %v5864 = vsub.f32 %v5303, %v5652
  %v5865 = vsub.f32 %v5306, %v5652
  %v5866 = vsub.f32 %v5311, %v5652
  %v5867 = vsub.f32 %v5314, %v5652
  %v5868 = vsub.f32 %v5319, %v5652
  %v5869 = vsub.f32 %v5322, %v5652
  %v5870 = vsub.f32 %v5327, %v5652
  %v5871 = vsub.f32 %v5330, %v5652
  %v5872 = vsub.f32 %v5335, %v5652
  %v5873 = vsub.f32 %v5338, %v5652
  %v5874 = vsub.f32 %v5343, %v5652
  %v5875 = vsub.f32 %v5346, %v5652
  %v5876 = vsub.f32 %v5351, %v5652
  %v5877 = vsub.f32 %v5354, %v5652
  %v5878 = vsub.f32 %v5359, %v5652
  %v5879 = vsub.f32 %v5362, %v5652
  %v5880 = vsub.f32 %v5367, %v5652
  %v5881 = vsub.f32 %v5370, %v5652
  %v5882 = vsub.f32 %v5375, %v5652
  %v5883 = vsub.f32 %v5378, %v5652
  %v5884 = vsub.f32 %v5383, %v5652
  %v5885 = vsub.f32 %v5386, %v5652
  %v5886 = vsub.f32 %v5391, %v5652
  %v5887 = vsub.f32 %v5394, %v5652
  %v5888 = vsub.f32 %v5399, %v5652
  %v5889 = vsub.f32 %v5402, %v5652
  %v5890 = vsub.f32 %v5407, %v5652
  %v5891 = vsub.f32 %v5410, %v5652
  %v5892 = vsub.f32 %v5415, %v5652
  %v5893 = vsub.f32 %v5418, %v5652
  %v5894 = vsub.f32 %v5423, %v5652
  %v5895 = vsub.f32 %v5426, %v5652
  %v5896 = vsub.f32 %v5431, %v5652
  %v5897 = vsub.f32 %v5434, %v5652
  %v5898 = vsub.f32 %v5439, %v5652
  %v5899 = vsub.f32 %v5442, %v5652
  %v5900 = vsub.f32 %v5447, %v5652
  %v5901 = vsub.f32 %v5450, %v5652
  %v5902 = vsub.f32 %v5455, %v5652
  %v5903 = vsub.f32 %v5458, %v5652
  %v5904 = vsub.f32 %v5463, %v5652
  %v5905 = vsub.f32 %v5466, %v5652
  %v5906 = vsub.f32 %v5471, %v5652
  %v5907 = vsub.f32 %v5474, %v5652
  %v5908 = vsub.f32 %v5479, %v5652
  %v5909 = vsub.f32 %v5482, %v5652
  %v5910 = vsub.f32 %v5487, %v5652
  %v5911 = vsub.f32 %v5490, %v5652
  %v5912 = vsub.f32 %v5495, %v5652
  %v5913 = vsub.f32 %v5498, %v5652
  %v5914 = vsub.f32 %v5503, %v5652
  %v5915 = vsub.f32 %v5506, %v5652
  %v5916 = vsub.f32 %v5511, %v5652
  %v5917 = vsub.f32 %v5514, %v5652
  %v5918 = vadd.f32 %v5853, 1e-05
  %v5919 = vrsqrt.pop %v5918
  %v5920 = vmul.f32 %v5919, %v5517
  %v5921 = vlaneseq
  %v5922 = vshrl.u32 %v5921, 7
  %v5923 = vsub.s32 0, %v5922
  %v5924 = vrot.slane %v5920, %v5923
  %v5925 = vmul.f32 %v5854, %v5924
  %v5926 = vmul.f32 %v5855, %v5924
  %v5927 = vmul.f32 %v5856, %v5924
  %v5928 = vmul.f32 %v5857, %v5924
  %v5929 = vmul.f32 %v5858, %v5924
  %v5930 = vmul.f32 %v5859, %v5924
  %v5931 = vmul.f32 %v5860, %v5924
  %v5932 = vmul.f32 %v5861, %v5924
  %v5933 = vmul.f32 %v5862, %v5924
  %v5934 = vmul.f32 %v5863, %v5924
  %v5935 = vmul.f32 %v5864, %v5924
  %v5936 = vmul.f32 %v5865, %v5924
  %v5937 = vmul.f32 %v5866, %v5924
  %v5938 = vmul.f32 %v5867, %v5924
  %v5939 = vmul.f32 %v5868, %v5924
  %v5940 = vmul.f32 %v5869, %v5924
  %v5941 = vmul.f32 %v5870, %v5924
  %v5942 = vmul.f32 %v5871, %v5924
  %v5943 = vmul.f32 %v5872, %v5924
  %v5944 = vmul.f32 %v5873, %v5924
  %v5945 = vmul.f32 %v5874, %v5924
  %v5946 = vmul.f32 %v5875, %v5924
  %v5947 = vmul.f32 %v5876, %v5924
  %v5948 = vmul.f32 %v5877, %v5924
  %v5949 = vmul.f32 %v5878, %v5924
  %v5950 = vmul.f32 %v5879, %v5924
  %v5951 = vmul.f32 %v5880, %v5924
  %v5952 = vmul.f32 %v5881, %v5924
  %v5953 = vmul.f32 %v5882, %v5924
  %v5954 = vmul.f32 %v5883, %v5924
  %v5955 = vmul.f32 %v5884, %v5924
  %v5956 = vmul.f32 %v5885, %v5924
  %v5957 = vmul.f32 %v5886, %v5924
  %v5958 = vmul.f32 %v5887, %v5924
  %v5959 = vmul.f32 %v5888, %v5924
  %v5960 = vmul.f32 %v5889, %v5924
  %v5961 = vmul.f32 %v5890, %v5924
  %v5962 = vmul.f32 %v5891, %v5924
  %v5963 = vmul.f32 %v5892, %v5924
  %v5964 = vmul.f32 %v5893, %v5924
  %v5965 = vmul.f32 %v5894, %v5924
  %v5966 = vmul.f32 %v5895, %v5924
  %v5967 = vmul.f32 %v5896, %v5924
  %v5968 = vmul.f32 %v5897, %v5924
  %v5969 = vmul.f32 %v5898, %v5924
  %v5970 = vmul.f32 %v5899, %v5924
  %v5971 = vmul.f32 %v5900, %v5924
  %v5972 = vmul.f32 %v5901, %v5924
  %v5973 = vmul.f32 %v5902, %v5924
  %v5974 = vmul.f32 %v5903, %v5924
  %v5975 = vmul.f32 %v5904, %v5924
  %v5976 = vmul.f32 %v5905, %v5924
  %v5977 = vmul.f32 %v5906, %v5924
  %v5978 = vmul.f32 %v5907, %v5924
  %v5979 = vmul.f32 %v5908, %v5924
  %v5980 = vmul.f32 %v5909, %v5924
  %v5981 = vmul.f32 %v5910, %v5924
  %v5982 = vmul.f32 %v5911, %v5924
  %v5983 = vmul.f32 %v5912, %v5924
  %v5984 = vmul.f32 %v5913, %v5924
  %v5985 = vmul.f32 %v5914, %v5924
  %v5986 = vmul.f32 %v5915, %v5924
  %v5987 = vmul.f32 %v5916, %v5924
  %v5988 = vmul.f32 %v5917, %v5924
  %v5990 = vlaneseq
  %v5991 = vshrl.u32 %v5990, 7
  %v5992 = vsub.s32 0, %v5991
  %v5993 = vrot.slane %v5518, %v5992
  %v5995 = vadd.f32 %v5925, %v5993
  %v5996 = vadd.f32 %v5926, %v5993
  %v5997 = vadd.f32 %v5927, %v5993
  %v5998 = vadd.f32 %v5928, %v5993
  %v5999 = vadd.f32 %v5929, %v5993
  %v6000 = vadd.f32 %v5930, %v5993
  %v6001 = vadd.f32 %v5931, %v5993
  %v6002 = vadd.f32 %v5932, %v5993
  %v6003 = vadd.f32 %v5933, %v5993
  %v6004 = vadd.f32 %v5934, %v5993
  %v6005 = vadd.f32 %v5935, %v5993
  %v6006 = vadd.f32 %v5936, %v5993
  %v6007 = vadd.f32 %v5937, %v5993
  %v6008 = vadd.f32 %v5938, %v5993
  %v6009 = vadd.f32 %v5939, %v5993
  %v6010 = vadd.f32 %v5940, %v5993
  %v6011 = vadd.f32 %v5941, %v5993
  %v6012 = vadd.f32 %v5942, %v5993
  %v6013 = vadd.f32 %v5943, %v5993
  %v6014 = vadd.f32 %v5944, %v5993
  %v6015 = vadd.f32 %v5945, %v5993
  %v6016 = vadd.f32 %v5946, %v5993
  %v6017 = vadd.f32 %v5947, %v5993
  %v6018 = vadd.f32 %v5948, %v5993
  %v6019 = vadd.f32 %v5949, %v5993
  %v6020 = vadd.f32 %v5950, %v5993
  %v6021 = vadd.f32 %v5951, %v5993
  %v6022 = vadd.f32 %v5952, %v5993
  %v6023 = vadd.f32 %v5953, %v5993
  %v6024 = vadd.f32 %v5954, %v5993
  %v6025 = vadd.f32 %v5955, %v5993
  %v6026 = vadd.f32 %v5956, %v5993
  %v6027 = vadd.f32 %v5957, %v5993
  %v6028 = vadd.f32 %v5958, %v5993
  %v6029 = vadd.f32 %v5959, %v5993
  %v6030 = vadd.f32 %v5960, %v5993
  %v6031 = vadd.f32 %v5961, %v5993
  %v6032 = vadd.f32 %v5962, %v5993
  %v6033 = vadd.f32 %v5963, %v5993
  %v6034 = vadd.f32 %v5964, %v5993
  %v6035 = vadd.f32 %v5965, %v5993
  %v6036 = vadd.f32 %v5966, %v5993
  %v6037 = vadd.f32 %v5967, %v5993
  %v6038 = vadd.f32 %v5968, %v5993
  %v6039 = vadd.f32 %v5969, %v5993
  %v6040 = vadd.f32 %v5970, %v5993
  %v6041 = vadd.f32 %v5971, %v5993
  %v6042 = vadd.f32 %v5972, %v5993
  %v6043 = vadd.f32 %v5973, %v5993
  %v6044 = vadd.f32 %v5974, %v5993
  %v6045 = vadd.f32 %v5975, %v5993
  %v6046 = vadd.f32 %v5976, %v5993
  %v6047 = vadd.f32 %v5977, %v5993
  %v6048 = vadd.f32 %v5978, %v5993
  %v6049 = vadd.f32 %v5979, %v5993
  %v6050 = vadd.f32 %v5980, %v5993
  %v6051 = vadd.f32 %v5981, %v5993
  %v6052 = vadd.f32 %v5982, %v5993
  %v6053 = vadd.f32 %v5983, %v5993
  %v6054 = vadd.f32 %v5984, %v5993
  %v6055 = vadd.f32 %v5985, %v5993
  %v6056 = vadd.f32 %v5986, %v5993
  %v6057 = vadd.f32 %v5987, %v5993
  %v6058 = vadd.f32 %v5988, %v5993
  %v6059 = vmax.f32 %v5995, 0.0
  %v6060 = vmax.f32 %v5996, 0.0
  %v6061 = vmax.f32 %v5997, 0.0
  %v6062 = vmax.f32 %v5998, 0.0
  %v6063 = vmax.f32 %v5999, 0.0
  %v6064 = vmax.f32 %v6000, 0.0
  %v6065 = vmax.f32 %v6001, 0.0
  %v6066 = vmax.f32 %v6002, 0.0
  %v6067 = vmax.f32 %v6003, 0.0
  %v6068 = vmax.f32 %v6004, 0.0
  %v6069 = vmax.f32 %v6005, 0.0
  %v6070 = vmax.f32 %v6006, 0.0
  %v6071 = vmax.f32 %v6007, 0.0
  %v6072 = vmax.f32 %v6008, 0.0
  %v6073 = vmax.f32 %v6009, 0.0
  %v6074 = vmax.f32 %v6010, 0.0
  %v6075 = vmax.f32 %v6011, 0.0
  %v6076 = vmax.f32 %v6012, 0.0
  %v6077 = vmax.f32 %v6013, 0.0
  %v6078 = vmax.f32 %v6014, 0.0
  %v6079 = vmax.f32 %v6015, 0.0
  %v6080 = vmax.f32 %v6016, 0.0
  %v6081 = vmax.f32 %v6017, 0.0
  %v6082 = vmax.f32 %v6018, 0.0
  %v6083 = vmax.f32 %v6019, 0.0
  %v6084 = vmax.f32 %v6020, 0.0
  %v6085 = vmax.f32 %v6021, 0.0
  %v6086 = vmax.f32 %v6022, 0.0
  %v6087 = vmax.f32 %v6023, 0.0
  %v6088 = vmax.f32 %v6024, 0.0
  %v6089 = vmax.f32 %v6025, 0.0
  %v6090 = vmax.f32 %v6026, 0.0
  %v6091 = vmax.f32 %v6027, 0.0
  %v6092 = vmax.f32 %v6028, 0.0
  %v6093 = vmax.f32 %v6029, 0.0
  %v6094 = vmax.f32 %v6030, 0.0
  %v6095 = vmax.f32 %v6031, 0.0
  %v6096 = vmax.f32 %v6032, 0.0
  %v6097 = vmax.f32 %v6033, 0.0
  %v6098 = vmax.f32 %v6034, 0.0
  %v6099 = vmax.f32 %v6035, 0.0
  %v6100 = vmax.f32 %v6036, 0.0
  %v6101 = vmax.f32 %v6037, 0.0
  %v6102 = vmax.f32 %v6038, 0.0
  %v6103 = vmax.f32 %v6039, 0.0
  %v6104 = vmax.f32 %v6040, 0.0
  %v6105 = vmax.f32 %v6041, 0.0
  %v6106 = vmax.f32 %v6042, 0.0
  %v6107 = vmax.f32 %v6043, 0.0
  %v6108 = vmax.f32 %v6044, 0.0
  %v6109 = vmax.f32 %v6045, 0.0
  %v6110 = vmax.f32 %v6046, 0.0
  %v6111 = vmax.f32 %v6047, 0.0
  %v6112 = vmax.f32 %v6048, 0.0
  %v6113 = vmax.f32 %v6049, 0.0
  %v6114 = vmax.f32 %v6050, 0.0
  %v6115 = vmax.f32 %v6051, 0.0
  %v6116 = vmax.f32 %v6052, 0.0
  %v6117 = vmax.f32 %v6053, 0.0
  %v6118 = vmax.f32 %v6054, 0.0
  %v6119 = vmax.f32 %v6055, 0.0
  %v6120 = vmax.f32 %v6056, 0.0
  %v6121 = vmax.f32 %v6057, 0.0
  %v6122 = vmax.f32 %v6058, 0.0
  %s6123 = scalar_lea.vmem [#allocation3], 24
  %6124 = vst.msk [vmem:[%s6123 + $0x1] sm:$0xff] %vm27, %v6059
  %6125 = vst.msk [vmem:[%s6123 + $0x9] sm:$0xff] %vm27, %v6060
  %6126 = vst.msk [vmem:[%s6123 + $0x19] sm:$0xff] %vm27, %v6061
  %6127 = vst.msk [vmem:[%s6123 + $0x21] sm:$0xff] %vm27, %v6062
  %6128 = vst.msk [vmem:[%s6123 + $0x31] sm:$0xff] %vm27, %v6063
  %6129 = vst.msk [vmem:[%s6123 + $0x39] sm:$0xff] %vm27, %v6064
  %6130 = vst.msk [vmem:[%s6123 + $0x49] sm:$0xff] %vm27, %v6065
  %6131 = vst.msk [vmem:[%s6123 + $0x51] sm:$0xff] %vm27, %v6066
  %6132 = vst.msk [vmem:[%s6123 + $0x61] sm:$0xff] %vm27, %v6067
  %6133 = vst.msk [vmem:[%s6123 + $0x69] sm:$0xff] %vm27, %v6068
  %6134 = vst.msk [vmem:[%s6123 + $0x79] sm:$0xff] %vm27, %v6069
  %6135 = vst.msk [vmem:[%s6123 + $0x81] sm:$0xff] %vm27, %v6070
  %6136 = vst.msk [vmem:[%s6123 + $0x91] sm:$0xff] %vm27, %v6071
  %6137 = vst.msk [vmem:[%s6123 + $0x99] sm:$0xff] %vm27, %v6072
  %6138 = vst.msk [vmem:[%s6123 + $0xa9] sm:$0xff] %vm27, %v6073
  %6139 = vst.msk [vmem:[%s6123 + $0xb1] sm:$0xff] %vm27, %v6074
  %6140 = vst.msk [vmem:[%s6123 + $0xc1] sm:$0xff] %vm27, %v6075
  %6141 = vst.msk [vmem:[%s6123 + $0xc9] sm:$0xff] %vm27, %v6076
  %6142 = vst.msk [vmem:[%s6123 + $0xd9] sm:$0xff] %vm27, %v6077
  %6143 = vst.msk [vmem:[%s6123 + $0xe1] sm:$0xff] %vm27, %v6078
  %6144 = vst.msk [vmem:[%s6123 + $0xf1] sm:$0xff] %vm27, %v6079
  %6145 = vst.msk [vmem:[%s6123 + $0xf9] sm:$0xff] %vm27, %v6080
  %6146 = vst.msk [vmem:[%s6123 + $0x109] sm:$0xff] %vm27, %v6081
  %6147 = vst.msk [vmem:[%s6123 + $0x111] sm:$0xff] %vm27, %v6082
  %6148 = vst.msk [vmem:[%s6123 + $0x121] sm:$0xff] %vm27, %v6083
  %6149 = vst.msk [vmem:[%s6123 + $0x129] sm:$0xff] %vm27, %v6084
  %6150 = vst.msk [vmem:[%s6123 + $0x139] sm:$0xff] %vm27, %v6085
  %6151 = vst.msk [vmem:[%s6123 + $0x141] sm:$0xff] %vm27, %v6086
  %6152 = vst.msk [vmem:[%s6123 + $0x151] sm:$0xff] %vm27, %v6087
  %6153 = vst.msk [vmem:[%s6123 + $0x159] sm:$0xff] %vm27, %v6088
  %6154 = vst.msk [vmem:[%s6123 + $0x169] sm:$0xff] %vm27, %v6089
  %6155 = vst.msk [vmem:[%s6123 + $0x171] sm:$0xff] %vm27, %v6090
  %6156 = vst.msk [vmem:[%s6123 + $0x1b1] sm:$0xff] %vm27, %v6091
  %6157 = vst.msk [vmem:[%s6123 + $0x1b9] sm:$0xff] %vm27, %v6092
  %6158 = vst.msk [vmem:[%s6123 + $0x1c9] sm:$0xff] %vm27, %v6093
  %6159 = vst.msk [vmem:[%s6123 + $0x1d1] sm:$0xff] %vm27, %v6094
  %6160 = vst.msk [vmem:[%s6123 + $0x1e1] sm:$0xff] %vm27, %v6095
  %6161 = vst.msk [vmem:[%s6123 + $0x1e9] sm:$0xff] %vm27, %v6096
  %6162 = vst.msk [vmem:[%s6123 + $0x1f9] sm:$0xff] %vm27, %v6097
  %6163 = vst.msk [vmem:[%s6123 + $0x201] sm:$0xff] %vm27, %v6098
  %6164 = vst.msk [vmem:[%s6123 + $0x211] sm:$0xff] %vm27, %v6099
  %6165 = vst.msk [vmem:[%s6123 + $0x219] sm:$0xff] %vm27, %v6100
  %6166 = vst.msk [vmem:[%s6123 + $0x229] sm:$0xff] %vm27, %v6101
  %6167 = vst.msk [vmem:[%s6123 + $0x231] sm:$0xff] %vm27, %v6102
  %6168 = vst.msk [vmem:[%s6123 + $0x241] sm:$0xff] %vm27, %v6103
  %6169 = vst.msk [vmem:[%s6123 + $0x249] sm:$0xff] %vm27, %v6104
  %6170 = vst.msk [vmem:[%s6123 + $0x259] sm:$0xff] %vm27, %v6105
  %6171 = vst.msk [vmem:[%s6123 + $0x261] sm:$0xff] %vm27, %v6106
  %6172 = vst.msk [vmem:[%s6123 + $0x271] sm:$0xff] %vm27, %v6107
  %6173 = vst.msk [vmem:[%s6123 + $0x279] sm:$0xff] %vm27, %v6108
  %6174 = vst.msk [vmem:[%s6123 + $0x289] sm:$0xff] %vm27, %v6109
  %6175 = vst.msk [vmem:[%s6123 + $0x291] sm:$0xff] %vm27, %v6110
  %6176 = vst.msk [vmem:[%s6123 + $0x2a1] sm:$0xff] %vm27, %v6111
  %6177 = vst.msk [vmem:[%s6123 + $0x2a9] sm:$0xff] %vm27, %v6112
  %6178 = vst.msk [vmem:[%s6123 + $0x2b9] sm:$0xff] %vm27, %v6113
  %6179 = vst.msk [vmem:[%s6123 + $0x2c1] sm:$0xff] %vm27, %v6114
  %6180 = vst.msk [vmem:[%s6123 + $0x2d1] sm:$0xff] %vm27, %v6115
  %6181 = vst.msk [vmem:[%s6123 + $0x2d9] sm:$0xff] %vm27, %v6116
  %6182 = vst.msk [vmem:[%s6123 + $0x2e9] sm:$0xff] %vm27, %v6117
  %6183 = vst.msk [vmem:[%s6123 + $0x2f1] sm:$0xff] %vm27, %v6118
  %6184 = vst.msk [vmem:[%s6123 + $0x301] sm:$0xff] %vm27, %v6119
  %6185 = vst.msk [vmem:[%s6123 + $0x309] sm:$0xff] %vm27, %v6120
  %6186 = vst.msk [vmem:[%s6123 + $0x319] sm:$0xff] %vm27, %v6121
  %6187 = vst.msk [vmem:[%s6123 + $0x321] sm:$0xff] %vm27, %v6122
  %v6188 = vld [vmem:[#allocation3] sm:$0xff]
  %v6189 = vld [vmem:[#allocation3 + $0x8] sm:$0xff]
  %v6190 = vld [vmem:[#allocation3 + $0x18] sm:$0xff]
  %v6191 = vld [vmem:[#allocation3 + $0x20] sm:$0xff]
  %v6192 = vld [vmem:[#allocation3 + $0x30] sm:$0xff]
  %v6193 = vld [vmem:[#allocation3 + $0x38] sm:$0xff]
  %v6194 = vld [vmem:[#allocation3 + $0x48] sm:$0xff]
  %v6195 = vld [vmem:[#allocation3 + $0x50] sm:$0xff]
  %v6196 = vld [vmem:[#allocation3 + $0x60] sm:$0xff]
  %v6197 = vld [vmem:[#allocation3 + $0x68] sm:$0xff]
  %v6198 = vld [vmem:[#allocation3 + $0x78] sm:$0xff]
  %v6199 = vld [vmem:[#allocation3 + $0x80] sm:$0xff]
  %v6200 = vld [vmem:[#allocation3 + $0x90] sm:$0xff]
  %v6201 = vld [vmem:[#allocation3 + $0x98] sm:$0xff]
  %v6202 = vld [vmem:[#allocation3 + $0xa8] sm:$0xff]
  %v6203 = vld [vmem:[#allocation3 + $0xb0] sm:$0xff]
  %v6204 = vld [vmem:[#allocation3 + $0xc0] sm:$0xff]
  %v6205 = vld [vmem:[#allocation3 + $0xc8] sm:$0xff]
  %v6206 = vld [vmem:[#allocation3 + $0xd8] sm:$0xff]
  %v6207 = vld [vmem:[#allocation3 + $0xe0] sm:$0xff]
  %v6208 = vld [vmem:[#allocation3 + $0xf0] sm:$0xff]
  %v6209 = vld [vmem:[#allocation3 + $0xf8] sm:$0xff]
  %v6210 = vld [vmem:[#allocation3 + $0x108] sm:$0xff]
  %v6211 = vld [vmem:[#allocation3 + $0x110] sm:$0xff]
  %v6212 = vld [vmem:[#allocation3 + $0x120] sm:$0xff]
  %v6213 = vld [vmem:[#allocation3 + $0x128] sm:$0xff]
  %v6214 = vld [vmem:[#allocation3 + $0x138] sm:$0xff]
  %v6215 = vld [vmem:[#allocation3 + $0x140] sm:$0xff]
  %v6216 = vld [vmem:[#allocation3 + $0x150] sm:$0xff]
  %v6217 = vld [vmem:[#allocation3 + $0x158] sm:$0xff]
  %v6218 = vld [vmem:[#allocation3 + $0x168] sm:$0xff]
  %v6219 = vld [vmem:[#allocation3 + $0x170] sm:$0xff]
  %v6220 = vld [vmem:[#allocation3 + $0x1b0] sm:$0xff]
  %v6221 = vld [vmem:[#allocation3 + $0x1b8] sm:$0xff]
  %v6222 = vld [vmem:[#allocation3 + $0x1c8] sm:$0xff]
  %v6223 = vld [vmem:[#allocation3 + $0x1d0] sm:$0xff]
  %v6224 = vld [vmem:[#allocation3 + $0x1e0] sm:$0xff]
  %v6225 = vld [vmem:[#allocation3 + $0x1e8] sm:$0xff]
  %v6226 = vld [vmem:[#allocation3 + $0x1f8] sm:$0xff]
  %v6227 = vld [vmem:[#allocation3 + $0x200] sm:$0xff]
  %v6228 = vld [vmem:[#allocation3 + $0x210] sm:$0xff]
  %v6229 = vld [vmem:[#allocation3 + $0x218] sm:$0xff]
  %v6230 = vld [vmem:[#allocation3 + $0x228] sm:$0xff]
  %v6231 = vld [vmem:[#allocation3 + $0x230] sm:$0xff]
  %v6232 = vld [vmem:[#allocation3 + $0x240] sm:$0xff]
  %v6233 = vld [vmem:[#allocation3 + $0x248] sm:$0xff]
  %v6234 = vld [vmem:[#allocation3 + $0x258] sm:$0xff]
  %v6235 = vld [vmem:[#allocation3 + $0x260] sm:$0xff]
  %v6236 = vld [vmem:[#allocation3 + $0x270] sm:$0xff]
  %v6237 = vld [vmem:[#allocation3 + $0x278] sm:$0xff]
  %v6238 = vld [vmem:[#allocation3 + $0x288] sm:$0xff]
  %v6239 = vld [vmem:[#allocation3 + $0x290] sm:$0xff]
  %v6240 = vld [vmem:[#allocation3 + $0x2a0] sm:$0xff]
  %v6241 = vld [vmem:[#allocation3 + $0x2a8] sm:$0xff]
  %v6242 = vld [vmem:[#allocation3 + $0x2b8] sm:$0xff]
  %v6243 = vld [vmem:[#allocation3 + $0x2c0] sm:$0xff]
  %v6244 = vld [vmem:[#allocation3 + $0x2d0] sm:$0xff]
  %v6245 = vld [vmem:[#allocation3 + $0x2d8] sm:$0xff]
  %v6246 = vld [vmem:[#allocation3 + $0x2e8] sm:$0xff]
  %v6247 = vld [vmem:[#allocation3 + $0x2f0] sm:$0xff]
  %v6248 = vld [vmem:[#allocation3 + $0x300] sm:$0xff]
  %v6249 = vld [vmem:[#allocation3 + $0x308] sm:$0xff]
  %v6250 = vld [vmem:[#allocation3 + $0x318] sm:$0xff]
  %v6251 = vld [vmem:[#allocation3 + $0x320] sm:$0xff]
  %v6252 = vpack.c.bf16 %v6189, %v6188
  %v6253 = vpack.c.bf16 %v6191, %v6190
  %v6254 = vpack.c.bf16 %v6193, %v6192
  %v6255 = vpack.c.bf16 %v6195, %v6194
  %v6256 = vpack.c.bf16 %v6197, %v6196
  %v6257 = vpack.c.bf16 %v6199, %v6198
  %v6258 = vpack.c.bf16 %v6201, %v6200
  %v6259 = vpack.c.bf16 %v6203, %v6202
  %v6260 = vpack.c.bf16 %v6205, %v6204
  %v6261 = vpack.c.bf16 %v6207, %v6206
  %v6262 = vpack.c.bf16 %v6209, %v6208
  %v6263 = vpack.c.bf16 %v6211, %v6210
  %v6264 = vpack.c.bf16 %v6213, %v6212
  %v6265 = vpack.c.bf16 %v6215, %v6214
  %v6266 = vpack.c.bf16 %v6217, %v6216
  %v6267 = vpack.c.bf16 %v6219, %v6218
  %v6268 = vpack.c.bf16 %v6221, %v6220
  %v6269 = vpack.c.bf16 %v6223, %v6222
  %v6270 = vpack.c.bf16 %v6225, %v6224
  %v6271 = vpack.c.bf16 %v6227, %v6226
  %v6272 = vpack.c.bf16 %v6229, %v6228
  %v6273 = vpack.c.bf16 %v6231, %v6230
  %v6274 = vpack.c.bf16 %v6233, %v6232
  %v6275 = vpack.c.bf16 %v6235, %v6234
  %v6276 = vpack.c.bf16 %v6237, %v6236
  %v6277 = vpack.c.bf16 %v6239, %v6238
  %v6278 = vpack.c.bf16 %v6241, %v6240
  %v6279 = vpack.c.bf16 %v6243, %v6242
  %v6280 = vpack.c.bf16 %v6245, %v6244
  %v6281 = vpack.c.bf16 %v6247, %v6246
  %v6282 = vpack.c.bf16 %v6249, %v6248
  %v6283 = vpack.c.bf16 %v6251, %v6250
  %v6316 = vunpack.c.l.b16 %v6252
  %v6317 = vunpack.c.h.b16 %v6252
  %v6318 = vunpack.c.l.b16 %v6253
  %v6319 = vunpack.c.h.b16 %v6253
  %v6320 = vunpack.c.l.b16 %v6254
  %v6321 = vunpack.c.h.b16 %v6254
  %v6322 = vunpack.c.l.b16 %v6255
  %v6323 = vunpack.c.h.b16 %v6255
  %v6324 = vunpack.c.l.b16 %v6256
  %v6325 = vunpack.c.h.b16 %v6256
  %v6326 = vunpack.c.l.b16 %v6257
  %v6327 = vunpack.c.h.b16 %v6257
  %v6328 = vunpack.c.l.b16 %v6258
  %v6329 = vunpack.c.h.b16 %v6258
  %v6330 = vunpack.c.l.b16 %v6259
  %v6331 = vunpack.c.h.b16 %v6259
  %v6332 = vunpack.c.l.b16 %v6260
  %v6333 = vunpack.c.h.b16 %v6260
  %v6334 = vunpack.c.l.b16 %v6261
  %v6335 = vunpack.c.h.b16 %v6261
  %v6336 = vunpack.c.l.b16 %v6262
  %v6337 = vunpack.c.h.b16 %v6262
  %v6338 = vunpack.c.l.b16 %v6263
  %v6339 = vunpack.c.h.b16 %v6263
  %v6340 = vunpack.c.l.b16 %v6264
  %v6341 = vunpack.c.h.b16 %v6264
  %v6342 = vunpack.c.l.b16 %v6265
  %v6343 = vunpack.c.h.b16 %v6265
  %v6344 = vunpack.c.l.b16 %v6266
  %v6345 = vunpack.c.h.b16 %v6266
  %v6346 = vunpack.c.l.b16 %v6267
  %v6347 = vunpack.c.h.b16 %v6267
  %v6348 = vunpack.c.l.b16 %v6268
  %v6349 = vunpack.c.h.b16 %v6268
  %v6350 = vunpack.c.l.b16 %v6269
  %v6351 = vunpack.c.h.b16 %v6269
  %v6352 = vunpack.c.l.b16 %v6270
  %v6353 = vunpack.c.h.b16 %v6270
  %v6354 = vunpack.c.l.b16 %v6271
  %v6355 = vunpack.c.h.b16 %v6271
  %v6356 = vunpack.c.l.b16 %v6272
  %v6357 = vunpack.c.h.b16 %v6272
  %v6358 = vunpack.c.l.b16 %v6273
  %v6359 = vunpack.c.h.b16 %v6273
  %v6360 = vunpack.c.l.b16 %v6274
  %v6361 = vunpack.c.h.b16 %v6274
  %v6362 = vunpack.c.l.b16 %v6275
  %v6363 = vunpack.c.h.b16 %v6275
  %v6364 = vunpack.c.l.b16 %v6276
  %v6365 = vunpack.c.h.b16 %v6276
  %v6366 = vunpack.c.l.b16 %v6277
  %v6367 = vunpack.c.h.b16 %v6277
  %v6368 = vunpack.c.l.b16 %v6278
  %v6369 = vunpack.c.h.b16 %v6278
  %v6370 = vunpack.c.l.b16 %v6279
  %v6371 = vunpack.c.h.b16 %v6279
  %v6372 = vunpack.c.l.b16 %v6280
  %v6373 = vunpack.c.h.b16 %v6280
  %v6374 = vunpack.c.l.b16 %v6281
  %v6375 = vunpack.c.h.b16 %v6281
  %v6376 = vunpack.c.l.b16 %v6282
  %v6377 = vunpack.c.h.b16 %v6282
  %v6378 = vunpack.c.l.b16 %v6283
  %v6379 = vunpack.c.h.b16 %v6283
  %v6380 = vpack.c.b16 %v6316, %v6316
  %v6381 = vpack.c.b16 %v6317, %v6317
  %v6382 = vpack.c.b16 %v6318, %v6318
  %v6383 = vpack.c.b16 %v6319, %v6319
  %v6384 = vpack.c.b16 %v6320, %v6320
  %v6385 = vpack.c.b16 %v6321, %v6321
  %v6386 = vpack.c.b16 %v6322, %v6322
  %v6387 = vpack.c.b16 %v6323, %v6323
  %v6388 = vpack.c.b16 %v6324, %v6324
  %v6389 = vpack.c.b16 %v6325, %v6325
  %v6390 = vpack.c.b16 %v6326, %v6326
  %v6391 = vpack.c.b16 %v6327, %v6327
  %v6392 = vpack.c.b16 %v6328, %v6328
  %v6393 = vpack.c.b16 %v6329, %v6329
  %v6394 = vpack.c.b16 %v6330, %v6330
  %v6395 = vpack.c.b16 %v6331, %v6331
  %v6396 = vpack.c.b16 %v6332, %v6332
  %v6397 = vpack.c.b16 %v6333, %v6333
  %v6398 = vpack.c.b16 %v6334, %v6334
  %v6399 = vpack.c.b16 %v6335, %v6335
  %v6400 = vpack.c.b16 %v6336, %v6336
  %v6401 = vpack.c.b16 %v6337, %v6337
  %v6402 = vpack.c.b16 %v6338, %v6338
  %v6403 = vpack.c.b16 %v6339, %v6339
  %v6404 = vpack.c.b16 %v6340, %v6340
  %v6405 = vpack.c.b16 %v6341, %v6341
  %v6406 = vpack.c.b16 %v6342, %v6342
  %v6407 = vpack.c.b16 %v6343, %v6343
  %v6408 = vpack.c.b16 %v6344, %v6344
  %v6409 = vpack.c.b16 %v6345, %v6345
  %v6410 = vpack.c.b16 %v6346, %v6346
  %v6411 = vpack.c.b16 %v6347, %v6347
  %v6412 = vpack.c.b16 %v6348, %v6348
  %v6413 = vpack.c.b16 %v6349, %v6349
  %v6414 = vpack.c.b16 %v6350, %v6350
  %v6415 = vpack.c.b16 %v6351, %v6351
  %v6416 = vpack.c.b16 %v6352, %v6352
  %v6417 = vpack.c.b16 %v6353, %v6353
  %v6418 = vpack.c.b16 %v6354, %v6354
  %v6419 = vpack.c.b16 %v6355, %v6355
  %v6420 = vpack.c.b16 %v6356, %v6356
  %v6421 = vpack.c.b16 %v6357, %v6357
  %v6422 = vpack.c.b16 %v6358, %v6358
  %v6423 = vpack.c.b16 %v6359, %v6359
  %v6424 = vpack.c.b16 %v6360, %v6360
  %v6425 = vpack.c.b16 %v6361, %v6361
  %v6426 = vpack.c.b16 %v6362, %v6362
  %v6427 = vpack.c.b16 %v6363, %v6363
  %v6428 = vpack.c.b16 %v6364, %v6364
  %v6429 = vpack.c.b16 %v6365, %v6365
  %v6430 = vpack.c.b16 %v6366, %v6366
  %v6431 = vpack.c.b16 %v6367, %v6367
  %v6432 = vpack.c.b16 %v6368, %v6368
  %v6433 = vpack.c.b16 %v6369, %v6369
  %v6434 = vpack.c.b16 %v6370, %v6370
  %v6435 = vpack.c.b16 %v6371, %v6371
  %v6436 = vpack.c.b16 %v6372, %v6372
  %v6437 = vpack.c.b16 %v6373, %v6373
  %v6438 = vpack.c.b16 %v6374, %v6374
  %v6439 = vpack.c.b16 %v6375, %v6375
  %v6440 = vpack.c.b16 %v6376, %v6376
  %v6441 = vpack.c.b16 %v6377, %v6377
  %v6442 = vpack.c.b16 %v6378, %v6378
  %v6443 = vpack.c.b16 %v6379, %v6379
  %6508 = vst.msk [vmem:[#allocation5] sm:$0xf] %vm713, %v6380
  %6509 = vst.msk [vmem:[#allocation5 + $0x4] sm:$0xf] %vm713, %v6381
  %6510 = vst.msk [vmem:[#allocation5 + $0x8] sm:$0xf] %vm713, %v6382
  %6511 = vst.msk [vmem:[#allocation5 + $0xc] sm:$0xf] %vm713, %v6383
  %6512 = vst.msk [vmem:[#allocation5 + $0x10] sm:$0xf] %vm713, %v6384
  %6513 = vst.msk [vmem:[#allocation5 + $0x14] sm:$0xf] %vm713, %v6385
  %6514 = vst.msk [vmem:[#allocation5 + $0x18] sm:$0xf] %vm713, %v6386
  %6515 = vst.msk [vmem:[#allocation5 + $0x1c] sm:$0xf] %vm713, %v6387
  %6516 = vst.msk [vmem:[#allocation5 + $0x20] sm:$0xf] %vm713, %v6388
  %6517 = vst.msk [vmem:[#allocation5 + $0x24] sm:$0xf] %vm713, %v6389
  %6518 = vst.msk [vmem:[#allocation5 + $0x28] sm:$0xf] %vm713, %v6390
  %6519 = vst.msk [vmem:[#allocation5 + $0x2c] sm:$0xf] %vm713, %v6391
  %6520 = vst.msk [vmem:[#allocation5 + $0x30] sm:$0xf] %vm713, %v6392
  %6521 = vst.msk [vmem:[#allocation5 + $0x34] sm:$0xf] %vm713, %v6393
  %6522 = vst.msk [vmem:[#allocation5 + $0x38] sm:$0xf] %vm713, %v6394
  %6523 = vst.msk [vmem:[#allocation5 + $0x3c] sm:$0xf] %vm713, %v6395
  %6524 = vst.msk [vmem:[#allocation5 + $0x40] sm:$0xf] %vm713, %v6396
  %6525 = vst.msk [vmem:[#allocation5 + $0x44] sm:$0xf] %vm713, %v6397
  %6526 = vst.msk [vmem:[#allocation5 + $0x48] sm:$0xf] %vm713, %v6398
  %6527 = vst.msk [vmem:[#allocation5 + $0x4c] sm:$0xf] %vm713, %v6399
  %6528 = vst.msk [vmem:[#allocation5 + $0x50] sm:$0xf] %vm713, %v6400
  %6529 = vst.msk [vmem:[#allocation5 + $0x54] sm:$0xf] %vm713, %v6401
  %6530 = vst.msk [vmem:[#allocation5 + $0x58] sm:$0xf] %vm713, %v6402
  %6531 = vst.msk [vmem:[#allocation5 + $0x5c] sm:$0xf] %vm713, %v6403
  %6532 = vst.msk [vmem:[#allocation5 + $0x60] sm:$0xf] %vm713, %v6404
  %6533 = vst.msk [vmem:[#allocation5 + $0x64] sm:$0xf] %vm713, %v6405
  %6534 = vst.msk [vmem:[#allocation5 + $0x68] sm:$0xf] %vm713, %v6406
  %6535 = vst.msk [vmem:[#allocation5 + $0x6c] sm:$0xf] %vm713, %v6407
  %6536 = vst.msk [vmem:[#allocation5 + $0x70] sm:$0xf] %vm713, %v6408
  %6537 = vst.msk [vmem:[#allocation5 + $0x74] sm:$0xf] %vm713, %v6409
  %6538 = vst.msk [vmem:[#allocation5 + $0x78] sm:$0xf] %vm713, %v6410
  %6539 = vst.msk [vmem:[#allocation5 + $0x7c] sm:$0xf] %vm713, %v6411
  %6540 = vst.msk [vmem:[#allocation5 + $0x80] sm:$0xf] %vm713, %v6412
  %6541 = vst.msk [vmem:[#allocation5 + $0x84] sm:$0xf] %vm713, %v6413
  %6542 = vst.msk [vmem:[#allocation5 + $0x88] sm:$0xf] %vm713, %v6414
  %6543 = vst.msk [vmem:[#allocation5 + $0x8c] sm:$0xf] %vm713, %v6415
  %6544 = vst.msk [vmem:[#allocation5 + $0x90] sm:$0xf] %vm713, %v6416
  %6545 = vst.msk [vmem:[#allocation5 + $0x94] sm:$0xf] %vm713, %v6417
  %6546 = vst.msk [vmem:[#allocation5 + $0x98] sm:$0xf] %vm713, %v6418
  %6547 = vst.msk [vmem:[#allocation5 + $0x9c] sm:$0xf] %vm713, %v6419
  %6548 = vst.msk [vmem:[#allocation5 + $0xa0] sm:$0xf] %vm713, %v6420
  %6549 = vst.msk [vmem:[#allocation5 + $0xa4] sm:$0xf] %vm713, %v6421
  %6550 = vst.msk [vmem:[#allocation5 + $0xa8] sm:$0xf] %vm713, %v6422
  %6551 = vst.msk [vmem:[#allocation5 + $0xac] sm:$0xf] %vm713, %v6423
  %6552 = vst.msk [vmem:[#allocation5 + $0xb0] sm:$0xf] %vm713, %v6424
  %6553 = vst.msk [vmem:[#allocation5 + $0xb4] sm:$0xf] %vm713, %v6425
  %6554 = vst.msk [vmem:[#allocation5 + $0xb8] sm:$0xf] %vm713, %v6426
  %6555 = vst.msk [vmem:[#allocation5 + $0xbc] sm:$0xf] %vm713, %v6427
  %6556 = vst.msk [vmem:[#allocation5 + $0xc0] sm:$0xf] %vm713, %v6428
  %6557 = vst.msk [vmem:[#allocation5 + $0xc4] sm:$0xf] %vm713, %v6429
  %6558 = vst.msk [vmem:[#allocation5 + $0xc8] sm:$0xf] %vm713, %v6430
  %6559 = vst.msk [vmem:[#allocation5 + $0xcc] sm:$0xf] %vm713, %v6431
  %6560 = vst.msk [vmem:[#allocation5 + $0xd0] sm:$0xf] %vm713, %v6432
  %6561 = vst.msk [vmem:[#allocation5 + $0xd4] sm:$0xf] %vm713, %v6433
  %6562 = vst.msk [vmem:[#allocation5 + $0xd8] sm:$0xf] %vm713, %v6434
  %6563 = vst.msk [vmem:[#allocation5 + $0xdc] sm:$0xf] %vm713, %v6435
  %6564 = vst.msk [vmem:[#allocation5 + $0xe0] sm:$0xf] %vm713, %v6436
  %6565 = vst.msk [vmem:[#allocation5 + $0xe4] sm:$0xf] %vm713, %v6437
  %6566 = vst.msk [vmem:[#allocation5 + $0xe8] sm:$0xf] %vm713, %v6438
  %6567 = vst.msk [vmem:[#allocation5 + $0xec] sm:$0xf] %vm713, %v6439
  %6568 = vst.msk [vmem:[#allocation5 + $0xf0] sm:$0xf] %vm713, %v6440
  %6569 = vst.msk [vmem:[#allocation5 + $0xf4] sm:$0xf] %vm713, %v6441
  %6570 = vst.msk [vmem:[#allocation5 + $0xf8] sm:$0xf] %vm713, %v6442
  %6571 = vst.msk [vmem:[#allocation5 + $0xfc] sm:$0xf] %vm713, %v6443
  %v6572 = vld [vmem:[#allocation3 + $0x1] sm:$0xff]
  %v6573 = vld [vmem:[#allocation3 + $0x9] sm:$0xff]
  %v6574 = vld [vmem:[#allocation3 + $0x19] sm:$0xff]
  %v6575 = vld [vmem:[#allocation3 + $0x21] sm:$0xff]
  %v6576 = vld [vmem:[#allocation3 + $0x31] sm:$0xff]
  %v6577 = vld [vmem:[#allocation3 + $0x39] sm:$0xff]
  %v6578 = vld [vmem:[#allocation3 + $0x49] sm:$0xff]
  %v6579 = vld [vmem:[#allocation3 + $0x51] sm:$0xff]
  %v6580 = vld [vmem:[#allocation3 + $0x61] sm:$0xff]
  %v6581 = vld [vmem:[#allocation3 + $0x69] sm:$0xff]
  %v6582 = vld [vmem:[#allocation3 + $0x79] sm:$0xff]
  %v6583 = vld [vmem:[#allocation3 + $0x81] sm:$0xff]
  %v6584 = vld [vmem:[#allocation3 + $0x91] sm:$0xff]
  %v6585 = vld [vmem:[#allocation3 + $0x99] sm:$0xff]
  %v6586 = vld [vmem:[#allocation3 + $0xa9] sm:$0xff]
  %v6587 = vld [vmem:[#allocation3 + $0xb1] sm:$0xff]
  %v6588 = vld [vmem:[#allocation3 + $0xc1] sm:$0xff]
  %v6589 = vld [vmem:[#allocation3 + $0xc9] sm:$0xff]
  %v6590 = vld [vmem:[#allocation3 + $0xd9] sm:$0xff]
  %v6591 = vld [vmem:[#allocation3 + $0xe1] sm:$0xff]
  %v6592 = vld [vmem:[#allocation3 + $0xf1] sm:$0xff]
  %v6593 = vld [vmem:[#allocation3 + $0xf9] sm:$0xff]
  %v6594 = vld [vmem:[#allocation3 + $0x109] sm:$0xff]
  %v6595 = vld [vmem:[#allocation3 + $0x111] sm:$0xff]
  %v6596 = vld [vmem:[#allocation3 + $0x121] sm:$0xff]
  %v6597 = vld [vmem:[#allocation3 + $0x129] sm:$0xff]
  %v6598 = vld [vmem:[#allocation3 + $0x139] sm:$0xff]
  %v6599 = vld [vmem:[#allocation3 + $0x141] sm:$0xff]
  %v6600 = vld [vmem:[#allocation3 + $0x151] sm:$0xff]
  %v6601 = vld [vmem:[#allocation3 + $0x159] sm:$0xff]
  %v6602 = vld [vmem:[#allocation3 + $0x169] sm:$0xff]
  %v6603 = vld [vmem:[#allocation3 + $0x171] sm:$0xff]
  %v6604 = vld [vmem:[#allocation3 + $0x1b1] sm:$0xff]
  %v6605 = vld [vmem:[#allocation3 + $0x1b9] sm:$0xff]
  %v6606 = vld [vmem:[#allocation3 + $0x1c9] sm:$0xff]
  %v6607 = vld [vmem:[#allocation3 + $0x1d1] sm:$0xff]
  %v6608 = vld [vmem:[#allocation3 + $0x1e1] sm:$0xff]
  %v6609 = vld [vmem:[#allocation3 + $0x1e9] sm:$0xff]
  %v6610 = vld [vmem:[#allocation3 + $0x1f9] sm:$0xff]
  %v6611 = vld [vmem:[#allocation3 + $0x201] sm:$0xff]
  %v6612 = vld [vmem:[#allocation3 + $0x211] sm:$0xff]
  %v6613 = vld [vmem:[#allocation3 + $0x219] sm:$0xff]
  %v6614 = vld [vmem:[#allocation3 + $0x229] sm:$0xff]
  %v6615 = vld [vmem:[#allocation3 + $0x231] sm:$0xff]
  %v6616 = vld [vmem:[#allocation3 + $0x241] sm:$0xff]
  %v6617 = vld [vmem:[#allocation3 + $0x249] sm:$0xff]
  %v6618 = vld [vmem:[#allocation3 + $0x259] sm:$0xff]
  %v6619 = vld [vmem:[#allocation3 + $0x261] sm:$0xff]
  %v6620 = vld [vmem:[#allocation3 + $0x271] sm:$0xff]
  %v6621 = vld [vmem:[#allocation3 + $0x279] sm:$0xff]
  %v6622 = vld [vmem:[#allocation3 + $0x289] sm:$0xff]
  %v6623 = vld [vmem:[#allocation3 + $0x291] sm:$0xff]
  %v6624 = vld [vmem:[#allocation3 + $0x2a1] sm:$0xff]
  %v6625 = vld [vmem:[#allocation3 + $0x2a9] sm:$0xff]
  %v6626 = vld [vmem:[#allocation3 + $0x2b9] sm:$0xff]
  %v6627 = vld [vmem:[#allocation3 + $0x2c1] sm:$0xff]
  %v6628 = vld [vmem:[#allocation3 + $0x2d1] sm:$0xff]
  %v6629 = vld [vmem:[#allocation3 + $0x2d9] sm:$0xff]
  %v6630 = vld [vmem:[#allocation3 + $0x2e9] sm:$0xff]
  %v6631 = vld [vmem:[#allocation3 + $0x2f1] sm:$0xff]
  %v6632 = vld [vmem:[#allocation3 + $0x301] sm:$0xff]
  %v6633 = vld [vmem:[#allocation3 + $0x309] sm:$0xff]
  %v6634 = vld [vmem:[#allocation3 + $0x319] sm:$0xff]
  %v6635 = vld [vmem:[#allocation3 + $0x321] sm:$0xff]
  %v6636 = vpack.c.bf16 %v6573, %v6572
  %v6637 = vpack.c.bf16 %v6575, %v6574
  %v6638 = vpack.c.bf16 %v6577, %v6576
  %v6639 = vpack.c.bf16 %v6579, %v6578
  %v6640 = vpack.c.bf16 %v6581, %v6580
  %v6641 = vpack.c.bf16 %v6583, %v6582
  %v6642 = vpack.c.bf16 %v6585, %v6584
  %v6643 = vpack.c.bf16 %v6587, %v6586
  %v6644 = vpack.c.bf16 %v6589, %v6588
  %v6645 = vpack.c.bf16 %v6591, %v6590
  %v6646 = vpack.c.bf16 %v6593, %v6592
  %v6647 = vpack.c.bf16 %v6595, %v6594
  %v6648 = vpack.c.bf16 %v6597, %v6596
  %v6649 = vpack.c.bf16 %v6599, %v6598
  %v6650 = vpack.c.bf16 %v6601, %v6600
  %v6651 = vpack.c.bf16 %v6603, %v6602
  %v6652 = vpack.c.bf16 %v6605, %v6604
  %v6653 = vpack.c.bf16 %v6607, %v6606
  %v6654 = vpack.c.bf16 %v6609, %v6608
  %v6655 = vpack.c.bf16 %v6611, %v6610
  %v6656 = vpack.c.bf16 %v6613, %v6612
  %v6657 = vpack.c.bf16 %v6615, %v6614
  %v6658 = vpack.c.bf16 %v6617, %v6616
  %v6659 = vpack.c.bf16 %v6619, %v6618
  %v6660 = vpack.c.bf16 %v6621, %v6620
  %v6661 = vpack.c.bf16 %v6623, %v6622
  %v6662 = vpack.c.bf16 %v6625, %v6624
  %v6663 = vpack.c.bf16 %v6627, %v6626
  %v6664 = vpack.c.bf16 %v6629, %v6628
  %v6665 = vpack.c.bf16 %v6631, %v6630
  %v6666 = vpack.c.bf16 %v6633, %v6632
  %v6667 = vpack.c.bf16 %v6635, %v6634
  %v6700 = vunpack.c.l.b16 %v6636
  %v6701 = vunpack.c.h.b16 %v6636
  %v6702 = vunpack.c.l.b16 %v6637
  %v6703 = vunpack.c.h.b16 %v6637
  %v6704 = vunpack.c.l.b16 %v6638
  %v6705 = vunpack.c.h.b16 %v6638
  %v6706 = vunpack.c.l.b16 %v6639
  %v6707 = vunpack.c.h.b16 %v6639
  %v6708 = vunpack.c.l.b16 %v6640
  %v6709 = vunpack.c.h.b16 %v6640
  %v6710 = vunpack.c.l.b16 %v6641
  %v6711 = vunpack.c.h.b16 %v6641
  %v6712 = vunpack.c.l.b16 %v6642
  %v6713 = vunpack.c.h.b16 %v6642
  %v6714 = vunpack.c.l.b16 %v6643
  %v6715 = vunpack.c.h.b16 %v6643
  %v6716 = vunpack.c.l.b16 %v6644
  %v6717 = vunpack.c.h.b16 %v6644
  %v6718 = vunpack.c.l.b16 %v6645
  %v6719 = vunpack.c.h.b16 %v6645
  %v6720 = vunpack.c.l.b16 %v6646
  %v6721 = vunpack.c.h.b16 %v6646
  %v6722 = vunpack.c.l.b16 %v6647
  %v6723 = vunpack.c.h.b16 %v6647
  %v6724 = vunpack.c.l.b16 %v6648
  %v6725 = vunpack.c.h.b16 %v6648
  %v6726 = vunpack.c.l.b16 %v6649
  %v6727 = vunpack.c.h.b16 %v6649
  %v6728 = vunpack.c.l.b16 %v6650
  %v6729 = vunpack.c.h.b16 %v6650
  %v6730 = vunpack.c.l.b16 %v6651
  %v6731 = vunpack.c.h.b16 %v6651
  %v6732 = vunpack.c.l.b16 %v6652
  %v6733 = vunpack.c.h.b16 %v6652
  %v6734 = vunpack.c.l.b16 %v6653
  %v6735 = vunpack.c.h.b16 %v6653
  %v6736 = vunpack.c.l.b16 %v6654
  %v6737 = vunpack.c.h.b16 %v6654
  %v6738 = vunpack.c.l.b16 %v6655
  %v6739 = vunpack.c.h.b16 %v6655
  %v6740 = vunpack.c.l.b16 %v6656
  %v6741 = vunpack.c.h.b16 %v6656
  %v6742 = vunpack.c.l.b16 %v6657
  %v6743 = vunpack.c.h.b16 %v6657
  %v6744 = vunpack.c.l.b16 %v6658
  %v6745 = vunpack.c.h.b16 %v6658
  %v6746 = vunpack.c.l.b16 %v6659
  %v6747 = vunpack.c.h.b16 %v6659
  %v6748 = vunpack.c.l.b16 %v6660
  %v6749 = vunpack.c.h.b16 %v6660
  %v6750 = vunpack.c.l.b16 %v6661
  %v6751 = vunpack.c.h.b16 %v6661
  %v6752 = vunpack.c.l.b16 %v6662
  %v6753 = vunpack.c.h.b16 %v6662
  %v6754 = vunpack.c.l.b16 %v6663
  %v6755 = vunpack.c.h.b16 %v6663
  %v6756 = vunpack.c.l.b16 %v6664
  %v6757 = vunpack.c.h.b16 %v6664
  %v6758 = vunpack.c.l.b16 %v6665
  %v6759 = vunpack.c.h.b16 %v6665
  %v6760 = vunpack.c.l.b16 %v6666
  %v6761 = vunpack.c.h.b16 %v6666
  %v6762 = vunpack.c.l.b16 %v6667
  %v6763 = vunpack.c.h.b16 %v6667
  %v6764 = vpack.c.b16 %v6700, %v6700
  %v6765 = vpack.c.b16 %v6701, %v6701
  %v6766 = vpack.c.b16 %v6702, %v6702
  %v6767 = vpack.c.b16 %v6703, %v6703
  %v6768 = vpack.c.b16 %v6704, %v6704
  %v6769 = vpack.c.b16 %v6705, %v6705
  %v6770 = vpack.c.b16 %v6706, %v6706
  %v6771 = vpack.c.b16 %v6707, %v6707
  %v6772 = vpack.c.b16 %v6708, %v6708
  %v6773 = vpack.c.b16 %v6709, %v6709
  %v6774 = vpack.c.b16 %v6710, %v6710
  %v6775 = vpack.c.b16 %v6711, %v6711
  %v6776 = vpack.c.b16 %v6712, %v6712
  %v6777 = vpack.c.b16 %v6713, %v6713
  %v6778 = vpack.c.b16 %v6714, %v6714
  %v6779 = vpack.c.b16 %v6715, %v6715
  %v6780 = vpack.c.b16 %v6716, %v6716
  %v6781 = vpack.c.b16 %v6717, %v6717
  %v6782 = vpack.c.b16 %v6718, %v6718
  %v6783 = vpack.c.b16 %v6719, %v6719
  %v6784 = vpack.c.b16 %v6720, %v6720
  %v6785 = vpack.c.b16 %v6721, %v6721
  %v6786 = vpack.c.b16 %v6722, %v6722
  %v6787 = vpack.c.b16 %v6723, %v6723
  %v6788 = vpack.c.b16 %v6724, %v6724
  %v6789 = vpack.c.b16 %v6725, %v6725
  %v6790 = vpack.c.b16 %v6726, %v6726
  %v6791 = vpack.c.b16 %v6727, %v6727
  %v6792 = vpack.c.b16 %v6728, %v6728
  %v6793 = vpack.c.b16 %v6729, %v6729
  %v6794 = vpack.c.b16 %v6730, %v6730
  %v6795 = vpack.c.b16 %v6731, %v6731
  %v6796 = vpack.c.b16 %v6732, %v6732
  %v6797 = vpack.c.b16 %v6733, %v6733
  %v6798 = vpack.c.b16 %v6734, %v6734
  %v6799 = vpack.c.b16 %v6735, %v6735
  %v6800 = vpack.c.b16 %v6736, %v6736
  %v6801 = vpack.c.b16 %v6737, %v6737
  %v6802 = vpack.c.b16 %v6738, %v6738
  %v6803 = vpack.c.b16 %v6739, %v6739
  %v6804 = vpack.c.b16 %v6740, %v6740
  %v6805 = vpack.c.b16 %v6741, %v6741
  %v6806 = vpack.c.b16 %v6742, %v6742
  %v6807 = vpack.c.b16 %v6743, %v6743
  %v6808 = vpack.c.b16 %v6744, %v6744
  %v6809 = vpack.c.b16 %v6745, %v6745
  %v6810 = vpack.c.b16 %v6746, %v6746
  %v6811 = vpack.c.b16 %v6747, %v6747
  %v6812 = vpack.c.b16 %v6748, %v6748
  %v6813 = vpack.c.b16 %v6749, %v6749
  %v6814 = vpack.c.b16 %v6750, %v6750
  %v6815 = vpack.c.b16 %v6751, %v6751
  %v6816 = vpack.c.b16 %v6752, %v6752
  %v6817 = vpack.c.b16 %v6753, %v6753
  %v6818 = vpack.c.b16 %v6754, %v6754
  %v6819 = vpack.c.b16 %v6755, %v6755
  %v6820 = vpack.c.b16 %v6756, %v6756
  %v6821 = vpack.c.b16 %v6757, %v6757
  %v6822 = vpack.c.b16 %v6758, %v6758
  %v6823 = vpack.c.b16 %v6759, %v6759
  %v6824 = vpack.c.b16 %v6760, %v6760
  %v6825 = vpack.c.b16 %v6761, %v6761
  %v6826 = vpack.c.b16 %v6762, %v6762
  %v6827 = vpack.c.b16 %v6763, %v6763
  %6828 = vrot.lane.b32.xlu0 %v6764, 4
  %v6829 = vpop.permute.xlu0 %6828
  %6830 = vrot.lane.b32.xlu0 %v6765, 4
  %v6831 = vpop.permute.xlu0 %6830
  %6832 = vrot.lane.b32.xlu0 %v6766, 4
  %v6833 = vpop.permute.xlu0 %6832
  %6834 = vrot.lane.b32.xlu0 %v6767, 4
  %v6835 = vpop.permute.xlu0 %6834
  %6836 = vrot.lane.b32.xlu0 %v6768, 4
  %v6837 = vpop.permute.xlu0 %6836
  %6838 = vrot.lane.b32.xlu0 %v6769, 4
  %v6839 = vpop.permute.xlu0 %6838
  %6840 = vrot.lane.b32.xlu0 %v6770, 4
  %v6841 = vpop.permute.xlu0 %6840
  %6842 = vrot.lane.b32.xlu0 %v6771, 4
  %v6843 = vpop.permute.xlu0 %6842
  %6844 = vrot.lane.b32.xlu0 %v6772, 4
  %v6845 = vpop.permute.xlu0 %6844
  %6846 = vrot.lane.b32.xlu0 %v6773, 4
  %v6847 = vpop.permute.xlu0 %6846
  %6848 = vrot.lane.b32.xlu0 %v6774, 4
  %v6849 = vpop.permute.xlu0 %6848
  %6850 = vrot.lane.b32.xlu0 %v6775, 4
  %v6851 = vpop.permute.xlu0 %6850
  %6852 = vrot.lane.b32.xlu0 %v6776, 4
  %v6853 = vpop.permute.xlu0 %6852
  %6854 = vrot.lane.b32.xlu0 %v6777, 4
  %v6855 = vpop.permute.xlu0 %6854
  %6856 = vrot.lane.b32.xlu0 %v6778, 4
  %v6857 = vpop.permute.xlu0 %6856
  %6858 = vrot.lane.b32.xlu0 %v6779, 4
  %v6859 = vpop.permute.xlu0 %6858
  %6860 = vrot.lane.b32.xlu0 %v6780, 4
  %v6861 = vpop.permute.xlu0 %6860
  %6862 = vrot.lane.b32.xlu0 %v6781, 4
  %v6863 = vpop.permute.xlu0 %6862
  %6864 = vrot.lane.b32.xlu0 %v6782, 4
  %v6865 = vpop.permute.xlu0 %6864
  %6866 = vrot.lane.b32.xlu0 %v6783, 4
  %v6867 = vpop.permute.xlu0 %6866
  %6868 = vrot.lane.b32.xlu0 %v6784, 4
  %v6869 = vpop.permute.xlu0 %6868
  %6870 = vrot.lane.b32.xlu0 %v6785, 4
  %v6871 = vpop.permute.xlu0 %6870
  %6872 = vrot.lane.b32.xlu0 %v6786, 4
  %v6873 = vpop.permute.xlu0 %6872
  %6874 = vrot.lane.b32.xlu0 %v6787, 4
  %v6875 = vpop.permute.xlu0 %6874
  %6876 = vrot.lane.b32.xlu0 %v6788, 4
  %v6877 = vpop.permute.xlu0 %6876
  %6878 = vrot.lane.b32.xlu0 %v6789, 4
  %v6879 = vpop.permute.xlu0 %6878
  %6880 = vrot.lane.b32.xlu0 %v6790, 4
  %v6881 = vpop.permute.xlu0 %6880
  %6882 = vrot.lane.b32.xlu0 %v6791, 4
  %v6883 = vpop.permute.xlu0 %6882
  %6884 = vrot.lane.b32.xlu0 %v6792, 4
  %v6885 = vpop.permute.xlu0 %6884
  %6886 = vrot.lane.b32.xlu0 %v6793, 4
  %v6887 = vpop.permute.xlu0 %6886
  %6888 = vrot.lane.b32.xlu0 %v6794, 4
  %v6889 = vpop.permute.xlu0 %6888
  %6890 = vrot.lane.b32.xlu0 %v6795, 4
  %v6891 = vpop.permute.xlu0 %6890
  %6892 = vrot.lane.b32.xlu0 %v6796, 4
  %v6893 = vpop.permute.xlu0 %6892
  %6894 = vrot.lane.b32.xlu0 %v6797, 4
  %v6895 = vpop.permute.xlu0 %6894
  %6896 = vrot.lane.b32.xlu0 %v6798, 4
  %v6897 = vpop.permute.xlu0 %6896
  %6898 = vrot.lane.b32.xlu0 %v6799, 4
  %v6899 = vpop.permute.xlu0 %6898
  %6900 = vrot.lane.b32.xlu0 %v6800, 4
  %v6901 = vpop.permute.xlu0 %6900
  %6902 = vrot.lane.b32.xlu0 %v6801, 4
  %v6903 = vpop.permute.xlu0 %6902
  %6904 = vrot.lane.b32.xlu0 %v6802, 4
  %v6905 = vpop.permute.xlu0 %6904
  %6906 = vrot.lane.b32.xlu0 %v6803, 4
  %v6907 = vpop.permute.xlu0 %6906
  %6908 = vrot.lane.b32.xlu0 %v6804, 4
  %v6909 = vpop.permute.xlu0 %6908
  %6910 = vrot.lane.b32.xlu0 %v6805, 4
  %v6911 = vpop.permute.xlu0 %6910
  %6912 = vrot.lane.b32.xlu0 %v6806, 4
  %v6913 = vpop.permute.xlu0 %6912
  %6914 = vrot.lane.b32.xlu0 %v6807, 4
  %v6915 = vpop.permute.xlu0 %6914
  %6916 = vrot.lane.b32.xlu0 %v6808, 4
  %v6917 = vpop.permute.xlu0 %6916
  %6918 = vrot.lane.b32.xlu0 %v6809, 4
  %v6919 = vpop.permute.xlu0 %6918
  %6920 = vrot.lane.b32.xlu0 %v6810, 4
  %v6921 = vpop.permute.xlu0 %6920
  %6922 = vrot.lane.b32.xlu0 %v6811, 4
  %v6923 = vpop.permute.xlu0 %6922
  %6924 = vrot.lane.b32.xlu0 %v6812, 4
  %v6925 = vpop.permute.xlu0 %6924
  %6926 = vrot.lane.b32.xlu0 %v6813, 4
  %v6927 = vpop.permute.xlu0 %6926
  %6928 = vrot.lane.b32.xlu0 %v6814, 4
  %v6929 = vpop.permute.xlu0 %6928
  %6930 = vrot.lane.b32.xlu0 %v6815, 4
  %v6931 = vpop.permute.xlu0 %6930
  %6932 = vrot.lane.b32.xlu0 %v6816, 4
  %v6933 = vpop.permute.xlu0 %6932
  %6934 = vrot.lane.b32.xlu0 %v6817, 4
  %v6935 = vpop.permute.xlu0 %6934
  %6936 = vrot.lane.b32.xlu0 %v6818, 4
  %v6937 = vpop.permute.xlu0 %6936
  %6938 = vrot.lane.b32.xlu0 %v6819, 4
  %v6939 = vpop.permute.xlu0 %6938
  %6940 = vrot.lane.b32.xlu0 %v6820, 4
  %v6941 = vpop.permute.xlu0 %6940
  %6942 = vrot.lane.b32.xlu0 %v6821, 4
  %v6943 = vpop.permute.xlu0 %6942
  %6944 = vrot.lane.b32.xlu0 %v6822, 4
  %v6945 = vpop.permute.xlu0 %6944
  %6946 = vrot.lane.b32.xlu0 %v6823, 4
  %v6947 = vpop.permute.xlu0 %6946
  %6948 = vrot.lane.b32.xlu0 %v6824, 4
  %v6949 = vpop.permute.xlu0 %6948
  %6950 = vrot.lane.b32.xlu0 %v6825, 4
  %v6951 = vpop.permute.xlu0 %6950
  %6952 = vrot.lane.b32.xlu0 %v6826, 4
  %v6953 = vpop.permute.xlu0 %6952
  %6954 = vrot.lane.b32.xlu0 %v6827, 4
  %v6955 = vpop.permute.xlu0 %6954
  %7020 = vst.msk [vmem:[#allocation5] sm:$0xf] %vm1226, %v6829
  %7021 = vst.msk [vmem:[#allocation5 + $0x4] sm:$0xf] %vm1226, %v6831
  %7022 = vst.msk [vmem:[#allocation5 + $0x8] sm:$0xf] %vm1226, %v6833
  %7023 = vst.msk [vmem:[#allocation5 + $0xc] sm:$0xf] %vm1226, %v6835
  %7024 = vst.msk [vmem:[#allocation5 + $0x10] sm:$0xf] %vm1226, %v6837
  %7025 = vst.msk [vmem:[#allocation5 + $0x14] sm:$0xf] %vm1226, %v6839
  %7026 = vst.msk [vmem:[#allocation5 + $0x18] sm:$0xf] %vm1226, %v6841
  %7027 = vst.msk [vmem:[#allocation5 + $0x1c] sm:$0xf] %vm1226, %v6843
  %7028 = vst.msk [vmem:[#allocation5 + $0x20] sm:$0xf] %vm1226, %v6845
  %7029 = vst.msk [vmem:[#allocation5 + $0x24] sm:$0xf] %vm1226, %v6847
  %7030 = vst.msk [vmem:[#allocation5 + $0x28] sm:$0xf] %vm1226, %v6849
  %7031 = vst.msk [vmem:[#allocation5 + $0x2c] sm:$0xf] %vm1226, %v6851
  %7032 = vst.msk [vmem:[#allocation5 + $0x30] sm:$0xf] %vm1226, %v6853
  %7033 = vst.msk [vmem:[#allocation5 + $0x34] sm:$0xf] %vm1226, %v6855
  %7034 = vst.msk [vmem:[#allocation5 + $0x38] sm:$0xf] %vm1226, %v6857
  %7035 = vst.msk [vmem:[#allocation5 + $0x3c] sm:$0xf] %vm1226, %v6859
  %7036 = vst.msk [vmem:[#allocation5 + $0x40] sm:$0xf] %vm1226, %v6861
  %7037 = vst.msk [vmem:[#allocation5 + $0x44] sm:$0xf] %vm1226, %v6863
  %7038 = vst.msk [vmem:[#allocation5 + $0x48] sm:$0xf] %vm1226, %v6865
  %7039 = vst.msk [vmem:[#allocation5 + $0x4c] sm:$0xf] %vm1226, %v6867
  %7040 = vst.msk [vmem:[#allocation5 + $0x50] sm:$0xf] %vm1226, %v6869
  %7041 = vst.msk [vmem:[#allocation5 + $0x54] sm:$0xf] %vm1226, %v6871
  %7042 = vst.msk [vmem:[#allocation5 + $0x58] sm:$0xf] %vm1226, %v6873
  %7043 = vst.msk [vmem:[#allocation5 + $0x5c] sm:$0xf] %vm1226, %v6875
  %7044 = vst.msk [vmem:[#allocation5 + $0x60] sm:$0xf] %vm1226, %v6877
  %7045 = vst.msk [vmem:[#allocation5 + $0x64] sm:$0xf] %vm1226, %v6879
  %7046 = vst.msk [vmem:[#allocation5 + $0x68] sm:$0xf] %vm1226, %v6881
  %7047 = vst.msk [vmem:[#allocation5 + $0x6c] sm:$0xf] %vm1226, %v6883
  %7048 = vst.msk [vmem:[#allocation5 + $0x70] sm:$0xf] %vm1226, %v6885
  %7049 = vst.msk [vmem:[#allocation5 + $0x74] sm:$0xf] %vm1226, %v6887
  %7050 = vst.msk [vmem:[#allocation5 + $0x78] sm:$0xf] %vm1226, %v6889
  %7051 = vst.msk [vmem:[#allocation5 + $0x7c] sm:$0xf] %vm1226, %v6891
  %7052 = vst.msk [vmem:[#allocation5 + $0x80] sm:$0xf] %vm1226, %v6893
  %7053 = vst.msk [vmem:[#allocation5 + $0x84] sm:$0xf] %vm1226, %v6895
  %7054 = vst.msk [vmem:[#allocation5 + $0x88] sm:$0xf] %vm1226, %v6897
  %7055 = vst.msk [vmem:[#allocation5 + $0x8c] sm:$0xf] %vm1226, %v6899
  %7056 = vst.msk [vmem:[#allocation5 + $0x90] sm:$0xf] %vm1226, %v6901
  %7057 = vst.msk [vmem:[#allocation5 + $0x94] sm:$0xf] %vm1226, %v6903
  %7058 = vst.msk [vmem:[#allocation5 + $0x98] sm:$0xf] %vm1226, %v6905
  %7059 = vst.msk [vmem:[#allocation5 + $0x9c] sm:$0xf] %vm1226, %v6907
  %7060 = vst.msk [vmem:[#allocation5 + $0xa0] sm:$0xf] %vm1226, %v6909
  %7061 = vst.msk [vmem:[#allocation5 + $0xa4] sm:$0xf] %vm1226, %v6911
  %7062 = vst.msk [vmem:[#allocation5 + $0xa8] sm:$0xf] %vm1226, %v6913
  %7063 = vst.msk [vmem:[#allocation5 + $0xac] sm:$0xf] %vm1226, %v6915
  %7064 = vst.msk [vmem:[#allocation5 + $0xb0] sm:$0xf] %vm1226, %v6917
  %7065 = vst.msk [vmem:[#allocation5 + $0xb4] sm:$0xf] %vm1226, %v6919
  %7066 = vst.msk [vmem:[#allocation5 + $0xb8] sm:$0xf] %vm1226, %v6921
  %7067 = vst.msk [vmem:[#allocation5 + $0xbc] sm:$0xf] %vm1226, %v6923
  %7068 = vst.msk [vmem:[#allocation5 + $0xc0] sm:$0xf] %vm1226, %v6925
  %7069 = vst.msk [vmem:[#allocation5 + $0xc4] sm:$0xf] %vm1226, %v6927
  %7070 = vst.msk [vmem:[#allocation5 + $0xc8] sm:$0xf] %vm1226, %v6929
  %7071 = vst.msk [vmem:[#allocation5 + $0xcc] sm:$0xf] %vm1226, %v6931
  %7072 = vst.msk [vmem:[#allocation5 + $0xd0] sm:$0xf] %vm1226, %v6933
  %7073 = vst.msk [vmem:[#allocation5 + $0xd4] sm:$0xf] %vm1226, %v6935
  %7074 = vst.msk [vmem:[#allocation5 + $0xd8] sm:$0xf] %vm1226, %v6937
  %7075 = vst.msk [vmem:[#allocation5 + $0xdc] sm:$0xf] %vm1226, %v6939
  %7076 = vst.msk [vmem:[#allocation5 + $0xe0] sm:$0xf] %vm1226, %v6941
  %7077 = vst.msk [vmem:[#allocation5 + $0xe4] sm:$0xf] %vm1226, %v6943
  %7078 = vst.msk [vmem:[#allocation5 + $0xe8] sm:$0xf] %vm1226, %v6945
  %7079 = vst.msk [vmem:[#allocation5 + $0xec] sm:$0xf] %vm1226, %v6947
  %7080 = vst.msk [vmem:[#allocation5 + $0xf0] sm:$0xf] %vm1226, %v6949
  %7081 = vst.msk [vmem:[#allocation5 + $0xf4] sm:$0xf] %vm1226, %v6951
  %7082 = vst.msk [vmem:[#allocation5 + $0xf8] sm:$0xf] %vm1226, %v6953
  %7083 = vst.msk [vmem:[#allocation5 + $0xfc] sm:$0xf] %vm1226, %v6955
  %v7084 = vld [vmem:[#allocation3 + $0x2] sm:$0xff]
  %v7085 = vld [vmem:[#allocation3 + $0xa] sm:$0xff]
  %v7086 = vld [vmem:[#allocation3 + $0x1a] sm:$0xff]
  %v7087 = vld [vmem:[#allocation3 + $0x22] sm:$0xff]
  %v7088 = vld [vmem:[#allocation3 + $0x32] sm:$0xff]
  %v7089 = vld [vmem:[#allocation3 + $0x3a] sm:$0xff]
  %v7090 = vld [vmem:[#allocation3 + $0x4a] sm:$0xff]
  %v7091 = vld [vmem:[#allocation3 + $0x52] sm:$0xff]
  %v7092 = vld [vmem:[#allocation3 + $0x62] sm:$0xff]
  %v7093 = vld [vmem:[#allocation3 + $0x6a] sm:$0xff]
  %v7094 = vld [vmem:[#allocation3 + $0x7a] sm:$0xff]
  %v7095 = vld [vmem:[#allocation3 + $0x82] sm:$0xff]
  %v7096 = vld [vmem:[#allocation3 + $0x92] sm:$0xff]
  %v7097 = vld [vmem:[#allocation3 + $0x9a] sm:$0xff]
  %v7098 = vld [vmem:[#allocation3 + $0xaa] sm:$0xff]
  %v7099 = vld [vmem:[#allocation3 + $0xb2] sm:$0xff]
  %v7100 = vld [vmem:[#allocation3 + $0xc2] sm:$0xff]
  %v7101 = vld [vmem:[#allocation3 + $0xca] sm:$0xff]
  %v7102 = vld [vmem:[#allocation3 + $0xda] sm:$0xff]
  %v7103 = vld [vmem:[#allocation3 + $0xe2] sm:$0xff]
  %v7104 = vld [vmem:[#allocation3 + $0xf2] sm:$0xff]
  %v7105 = vld [vmem:[#allocation3 + $0xfa] sm:$0xff]
  %v7106 = vld [vmem:[#allocation3 + $0x10a] sm:$0xff]
  %v7107 = vld [vmem:[#allocation3 + $0x112] sm:$0xff]
  %v7108 = vld [vmem:[#allocation3 + $0x122] sm:$0xff]
  %v7109 = vld [vmem:[#allocation3 + $0x12a] sm:$0xff]
  %v7110 = vld [vmem:[#allocation3 + $0x13a] sm:$0xff]
  %v7111 = vld [vmem:[#allocation3 + $0x142] sm:$0xff]
  %v7112 = vld [vmem:[#allocation3 + $0x152] sm:$0xff]
  %v7113 = vld [vmem:[#allocation3 + $0x15a] sm:$0xff]
  %v7114 = vld [vmem:[#allocation3 + $0x16a] sm:$0xff]
  %v7115 = vld [vmem:[#allocation3 + $0x172] sm:$0xff]
  %v7116 = vld [vmem:[#allocation3 + $0x1b2] sm:$0xff]
  %v7117 = vld [vmem:[#allocation3 + $0x1ba] sm:$0xff]
  %v7118 = vld [vmem:[#allocation3 + $0x1ca] sm:$0xff]
  %v7119 = vld [vmem:[#allocation3 + $0x1d2] sm:$0xff]
  %v7120 = vld [vmem:[#allocation3 + $0x1e2] sm:$0xff]
  %v7121 = vld [vmem:[#allocation3 + $0x1ea] sm:$0xff]
  %v7122 = vld [vmem:[#allocation3 + $0x1fa] sm:$0xff]
  %v7123 = vld [vmem:[#allocation3 + $0x202] sm:$0xff]
  %v7124 = vld [vmem:[#allocation3 + $0x212] sm:$0xff]
  %v7125 = vld [vmem:[#allocation3 + $0x21a] sm:$0xff]
  %v7126 = vld [vmem:[#allocation3 + $0x22a] sm:$0xff]
  %v7127 = vld [vmem:[#allocation3 + $0x232] sm:$0xff]
  %v7128 = vld [vmem:[#allocation3 + $0x242] sm:$0xff]
  %v7129 = vld [vmem:[#allocation3 + $0x24a] sm:$0xff]
  %v7130 = vld [vmem:[#allocation3 + $0x25a] sm:$0xff]
  %v7131 = vld [vmem:[#allocation3 + $0x262] sm:$0xff]
  %v7132 = vld [vmem:[#allocation3 + $0x272] sm:$0xff]
  %v7133 = vld [vmem:[#allocation3 + $0x27a] sm:$0xff]
  %v7134 = vld [vmem:[#allocation3 + $0x28a] sm:$0xff]
  %v7135 = vld [vmem:[#allocation3 + $0x292] sm:$0xff]
  %v7136 = vld [vmem:[#allocation3 + $0x2a2] sm:$0xff]
  %v7137 = vld [vmem:[#allocation3 + $0x2aa] sm:$0xff]
  %v7138 = vld [vmem:[#allocation3 + $0x2ba] sm:$0xff]
  %v7139 = vld [vmem:[#allocation3 + $0x2c2] sm:$0xff]
  %v7140 = vld [vmem:[#allocation3 + $0x2d2] sm:$0xff]
  %v7141 = vld [vmem:[#allocation3 + $0x2da] sm:$0xff]
  %v7142 = vld [vmem:[#allocation3 + $0x2ea] sm:$0xff]
  %v7143 = vld [vmem:[#allocation3 + $0x2f2] sm:$0xff]
  %v7144 = vld [vmem:[#allocation3 + $0x302] sm:$0xff]
  %v7145 = vld [vmem:[#allocation3 + $0x30a] sm:$0xff]
  %v7146 = vld [vmem:[#allocation3 + $0x31a] sm:$0xff]
  %v7147 = vld [vmem:[#allocation3 + $0x322] sm:$0xff]
  %v7148 = vpack.c.bf16 %v7085, %v7084
  %v7149 = vpack.c.bf16 %v7087, %v7086
  %v7150 = vpack.c.bf16 %v7089, %v7088
  %v7151 = vpack.c.bf16 %v7091, %v7090
  %v7152 = vpack.c.bf16 %v7093, %v7092
  %v7153 = vpack.c.bf16 %v7095, %v7094
  %v7154 = vpack.c.bf16 %v7097, %v7096
  %v7155 = vpack.c.bf16 %v7099, %v7098
  %v7156 = vpack.c.bf16 %v7101, %v7100
  %v7157 = vpack.c.bf16 %v7103, %v7102
  %v7158 = vpack.c.bf16 %v7105, %v7104
  %v7159 = vpack.c.bf16 %v7107, %v7106
  %v7160 = vpack.c.bf16 %v7109, %v7108
  %v7161 = vpack.c.bf16 %v7111, %v7110
  %v7162 = vpack.c.bf16 %v7113, %v7112
  %v7163 = vpack.c.bf16 %v7115, %v7114
  %v7164 = vpack.c.bf16 %v7117, %v7116
  %v7165 = vpack.c.bf16 %v7119, %v7118
  %v7166 = vpack.c.bf16 %v7121, %v7120
  %v7167 = vpack.c.bf16 %v7123, %v7122
  %v7168 = vpack.c.bf16 %v7125, %v7124
  %v7169 = vpack.c.bf16 %v7127, %v7126
  %v7170 = vpack.c.bf16 %v7129, %v7128
  %v7171 = vpack.c.bf16 %v7131, %v7130
  %v7172 = vpack.c.bf16 %v7133, %v7132
  %v7173 = vpack.c.bf16 %v7135, %v7134
  %v7174 = vpack.c.bf16 %v7137, %v7136
  %v7175 = vpack.c.bf16 %v7139, %v7138
  %v7176 = vpack.c.bf16 %v7141, %v7140
  %v7177 = vpack.c.bf16 %v7143, %v7142
  %v7178 = vpack.c.bf16 %v7145, %v7144
  %v7179 = vpack.c.bf16 %v7147, %v7146
  %v7212 = vunpack.c.l.b16 %v7148
  %v7213 = vunpack.c.h.b16 %v7148
  %v7214 = vunpack.c.l.b16 %v7149
  %v7215 = vunpack.c.h.b16 %v7149
  %v7216 = vunpack.c.l.b16 %v7150
  %v7217 = vunpack.c.h.b16 %v7150
  %v7218 = vunpack.c.l.b16 %v7151
  %v7219 = vunpack.c.h.b16 %v7151
  %v7220 = vunpack.c.l.b16 %v7152
  %v7221 = vunpack.c.h.b16 %v7152
  %v7222 = vunpack.c.l.b16 %v7153
  %v7223 = vunpack.c.h.b16 %v7153
  %v7224 = vunpack.c.l.b16 %v7154
  %v7225 = vunpack.c.h.b16 %v7154
  %v7226 = vunpack.c.l.b16 %v7155
  %v7227 = vunpack.c.h.b16 %v7155
  %v7228 = vunpack.c.l.b16 %v7156
  %v7229 = vunpack.c.h.b16 %v7156
  %v7230 = vunpack.c.l.b16 %v7157
  %v7231 = vunpack.c.h.b16 %v7157
  %v7232 = vunpack.c.l.b16 %v7158
  %v7233 = vunpack.c.h.b16 %v7158
  %v7234 = vunpack.c.l.b16 %v7159
  %v7235 = vunpack.c.h.b16 %v7159
  %v7236 = vunpack.c.l.b16 %v7160
  %v7237 = vunpack.c.h.b16 %v7160
  %v7238 = vunpack.c.l.b16 %v7161
  %v7239 = vunpack.c.h.b16 %v7161
  %v7240 = vunpack.c.l.b16 %v7162
  %v7241 = vunpack.c.h.b16 %v7162
  %v7242 = vunpack.c.l.b16 %v7163
  %v7243 = vunpack.c.h.b16 %v7163
  %v7244 = vunpack.c.l.b16 %v7164
  %v7245 = vunpack.c.h.b16 %v7164
  %v7246 = vunpack.c.l.b16 %v7165
  %v7247 = vunpack.c.h.b16 %v7165
  %v7248 = vunpack.c.l.b16 %v7166
  %v7249 = vunpack.c.h.b16 %v7166
  %v7250 = vunpack.c.l.b16 %v7167
  %v7251 = vunpack.c.h.b16 %v7167
  %v7252 = vunpack.c.l.b16 %v7168
  %v7253 = vunpack.c.h.b16 %v7168
  %v7254 = vunpack.c.l.b16 %v7169
  %v7255 = vunpack.c.h.b16 %v7169
  %v7256 = vunpack.c.l.b16 %v7170
  %v7257 = vunpack.c.h.b16 %v7170
  %v7258 = vunpack.c.l.b16 %v7171
  %v7259 = vunpack.c.h.b16 %v7171
  %v7260 = vunpack.c.l.b16 %v7172
  %v7261 = vunpack.c.h.b16 %v7172
  %v7262 = vunpack.c.l.b16 %v7173
  %v7263 = vunpack.c.h.b16 %v7173
  %v7264 = vunpack.c.l.b16 %v7174
  %v7265 = vunpack.c.h.b16 %v7174
  %v7266 = vunpack.c.l.b16 %v7175
  %v7267 = vunpack.c.h.b16 %v7175
  %v7268 = vunpack.c.l.b16 %v7176
  %v7269 = vunpack.c.h.b16 %v7176
  %v7270 = vunpack.c.l.b16 %v7177
  %v7271 = vunpack.c.h.b16 %v7177
  %v7272 = vunpack.c.l.b16 %v7178
  %v7273 = vunpack.c.h.b16 %v7178
  %v7274 = vunpack.c.l.b16 %v7179
  %v7275 = vunpack.c.h.b16 %v7179
  %v7276 = vpack.c.b16 %v7212, %v7212
  %v7277 = vpack.c.b16 %v7213, %v7213
  %v7278 = vpack.c.b16 %v7214, %v7214
  %v7279 = vpack.c.b16 %v7215, %v7215
  %v7280 = vpack.c.b16 %v7216, %v7216
  %v7281 = vpack.c.b16 %v7217, %v7217
  %v7282 = vpack.c.b16 %v7218, %v7218
  %v7283 = vpack.c.b16 %v7219, %v7219
  %v7284 = vpack.c.b16 %v7220, %v7220
  %v7285 = vpack.c.b16 %v7221, %v7221
  %v7286 = vpack.c.b16 %v7222, %v7222
  %v7287 = vpack.c.b16 %v7223, %v7223
  %v7288 = vpack.c.b16 %v7224, %v7224
  %v7289 = vpack.c.b16 %v7225, %v7225
  %v7290 = vpack.c.b16 %v7226, %v7226
  %v7291 = vpack.c.b16 %v7227, %v7227
  %v7292 = vpack.c.b16 %v7228, %v7228
  %v7293 = vpack.c.b16 %v7229, %v7229
  %v7294 = vpack.c.b16 %v7230, %v7230
  %v7295 = vpack.c.b16 %v7231, %v7231
  %v7296 = vpack.c.b16 %v7232, %v7232
  %v7297 = vpack.c.b16 %v7233, %v7233
  %v7298 = vpack.c.b16 %v7234, %v7234
  %v7299 = vpack.c.b16 %v7235, %v7235
  %v7300 = vpack.c.b16 %v7236, %v7236
  %v7301 = vpack.c.b16 %v7237, %v7237
  %v7302 = vpack.c.b16 %v7238, %v7238
  %v7303 = vpack.c.b16 %v7239, %v7239
  %v7304 = vpack.c.b16 %v7240, %v7240
  %v7305 = vpack.c.b16 %v7241, %v7241
  %v7306 = vpack.c.b16 %v7242, %v7242
  %v7307 = vpack.c.b16 %v7243, %v7243
  %v7308 = vpack.c.b16 %v7244, %v7244
  %v7309 = vpack.c.b16 %v7245, %v7245
  %v7310 = vpack.c.b16 %v7246, %v7246
  %v7311 = vpack.c.b16 %v7247, %v7247
  %v7312 = vpack.c.b16 %v7248, %v7248
  %v7313 = vpack.c.b16 %v7249, %v7249
  %v7314 = vpack.c.b16 %v7250, %v7250
  %v7315 = vpack.c.b16 %v7251, %v7251
  %v7316 = vpack.c.b16 %v7252, %v7252
  %v7317 = vpack.c.b16 %v7253, %v7253
  %v7318 = vpack.c.b16 %v7254, %v7254
  %v7319 = vpack.c.b16 %v7255, %v7255
  %v7320 = vpack.c.b16 %v7256, %v7256
  %v7321 = vpack.c.b16 %v7257, %v7257
  %v7322 = vpack.c.b16 %v7258, %v7258
  %v7323 = vpack.c.b16 %v7259, %v7259
  %v7324 = vpack.c.b16 %v7260, %v7260
  %v7325 = vpack.c.b16 %v7261, %v7261
  %v7326 = vpack.c.b16 %v7262, %v7262
  %v7327 = vpack.c.b16 %v7263, %v7263
  %v7328 = vpack.c.b16 %v7264, %v7264
  %v7329 = vpack.c.b16 %v7265, %v7265
  %v7330 = vpack.c.b16 %v7266, %v7266
  %v7331 = vpack.c.b16 %v7267, %v7267
  %v7332 = vpack.c.b16 %v7268, %v7268
  %v7333 = vpack.c.b16 %v7269, %v7269
  %v7334 = vpack.c.b16 %v7270, %v7270
  %v7335 = vpack.c.b16 %v7271, %v7271
  %v7336 = vpack.c.b16 %v7272, %v7272
  %v7337 = vpack.c.b16 %v7273, %v7273
  %v7338 = vpack.c.b16 %v7274, %v7274
  %v7339 = vpack.c.b16 %v7275, %v7275
  %7340 = vrot.lane.b32.xlu0 %v7276, 8
  %v7341 = vpop.permute.xlu0 %7340
  %7342 = vrot.lane.b32.xlu0 %v7277, 8
  %v7343 = vpop.permute.xlu0 %7342
  %7344 = vrot.lane.b32.xlu0 %v7278, 8
  %v7345 = vpop.permute.xlu0 %7344
  %7346 = vrot.lane.b32.xlu0 %v7279, 8
  %v7347 = vpop.permute.xlu0 %7346
  %7348 = vrot.lane.b32.xlu0 %v7280, 8
  %v7349 = vpop.permute.xlu0 %7348
  %7350 = vrot.lane.b32.xlu0 %v7281, 8
  %v7351 = vpop.permute.xlu0 %7350
  %7352 = vrot.lane.b32.xlu0 %v7282, 8
  %v7353 = vpop.permute.xlu0 %7352
  %7354 = vrot.lane.b32.xlu0 %v7283, 8
  %v7355 = vpop.permute.xlu0 %7354
  %7356 = vrot.lane.b32.xlu0 %v7284, 8
  %v7357 = vpop.permute.xlu0 %7356
  %7358 = vrot.lane.b32.xlu0 %v7285, 8
  %v7359 = vpop.permute.xlu0 %7358
  %7360 = vrot.lane.b32.xlu0 %v7286, 8
  %v7361 = vpop.permute.xlu0 %7360
  %7362 = vrot.lane.b32.xlu0 %v7287, 8
  %v7363 = vpop.permute.xlu0 %7362
  %7364 = vrot.lane.b32.xlu0 %v7288, 8
  %v7365 = vpop.permute.xlu0 %7364
  %7366 = vrot.lane.b32.xlu0 %v7289, 8
  %v7367 = vpop.permute.xlu0 %7366
  %7368 = vrot.lane.b32.xlu0 %v7290, 8
  %v7369 = vpop.permute.xlu0 %7368
  %7370 = vrot.lane.b32.xlu0 %v7291, 8
  %v7371 = vpop.permute.xlu0 %7370
  %7372 = vrot.lane.b32.xlu0 %v7292, 8
  %v7373 = vpop.permute.xlu0 %7372
  %7374 = vrot.lane.b32.xlu0 %v7293, 8
  %v7375 = vpop.permute.xlu0 %7374
  %7376 = vrot.lane.b32.xlu0 %v7294, 8
  %v7377 = vpop.permute.xlu0 %7376
  %7378 = vrot.lane.b32.xlu0 %v7295, 8
  %v7379 = vpop.permute.xlu0 %7378
  %7380 = vrot.lane.b32.xlu0 %v7296, 8
  %v7381 = vpop.permute.xlu0 %7380
  %7382 = vrot.lane.b32.xlu0 %v7297, 8
  %v7383 = vpop.permute.xlu0 %7382
  %7384 = vrot.lane.b32.xlu0 %v7298, 8
  %v7385 = vpop.permute.xlu0 %7384
  %7386 = vrot.lane.b32.xlu0 %v7299, 8
  %v7387 = vpop.permute.xlu0 %7386
  %7388 = vrot.lane.b32.xlu0 %v7300, 8
  %v7389 = vpop.permute.xlu0 %7388
  %7390 = vrot.lane.b32.xlu0 %v7301, 8
  %v7391 = vpop.permute.xlu0 %7390
  %7392 = vrot.lane.b32.xlu0 %v7302, 8
  %v7393 = vpop.permute.xlu0 %7392
  %7394 = vrot.lane.b32.xlu0 %v7303, 8
  %v7395 = vpop.permute.xlu0 %7394
  %7396 = vrot.lane.b32.xlu0 %v7304, 8
  %v7397 = vpop.permute.xlu0 %7396
  %7398 = vrot.lane.b32.xlu0 %v7305, 8
  %v7399 = vpop.permute.xlu0 %7398
  %7400 = vrot.lane.b32.xlu0 %v7306, 8
  %v7401 = vpop.permute.xlu0 %7400
  %7402 = vrot.lane.b32.xlu0 %v7307, 8
  %v7403 = vpop.permute.xlu0 %7402
  %7404 = vrot.lane.b32.xlu0 %v7308, 8
  %v7405 = vpop.permute.xlu0 %7404
  %7406 = vrot.lane.b32.xlu0 %v7309, 8
  %v7407 = vpop.permute.xlu0 %7406
  %7408 = vrot.lane.b32.xlu0 %v7310, 8
  %v7409 = vpop.permute.xlu0 %7408
  %7410 = vrot.lane.b32.xlu0 %v7311, 8
  %v7411 = vpop.permute.xlu0 %7410
  %7412 = vrot.lane.b32.xlu0 %v7312, 8
  %v7413 = vpop.permute.xlu0 %7412
  %7414 = vrot.lane.b32.xlu0 %v7313, 8
  %v7415 = vpop.permute.xlu0 %7414
  %7416 = vrot.lane.b32.xlu0 %v7314, 8
  %v7417 = vpop.permute.xlu0 %7416
  %7418 = vrot.lane.b32.xlu0 %v7315, 8
  %v7419 = vpop.permute.xlu0 %7418
  %7420 = vrot.lane.b32.xlu0 %v7316, 8
  %v7421 = vpop.permute.xlu0 %7420
  %7422 = vrot.lane.b32.xlu0 %v7317, 8
  %v7423 = vpop.permute.xlu0 %7422
  %7424 = vrot.lane.b32.xlu0 %v7318, 8
  %v7425 = vpop.permute.xlu0 %7424
  %7426 = vrot.lane.b32.xlu0 %v7319, 8
  %v7427 = vpop.permute.xlu0 %7426
  %7428 = vrot.lane.b32.xlu0 %v7320, 8
  %v7429 = vpop.permute.xlu0 %7428
  %7430 = vrot.lane.b32.xlu0 %v7321, 8
  %v7431 = vpop.permute.xlu0 %7430
  %7432 = vrot.lane.b32.xlu0 %v7322, 8
  %v7433 = vpop.permute.xlu0 %7432
  %7434 = vrot.lane.b32.xlu0 %v7323, 8
  %v7435 = vpop.permute.xlu0 %7434
  %7436 = vrot.lane.b32.xlu0 %v7324, 8
  %v7437 = vpop.permute.xlu0 %7436
  %7438 = vrot.lane.b32.xlu0 %v7325, 8
  %v7439 = vpop.permute.xlu0 %7438
  %7440 = vrot.lane.b32.xlu0 %v7326, 8
  %v7441 = vpop.permute.xlu0 %7440
  %7442 = vrot.lane.b32.xlu0 %v7327, 8
  %v7443 = vpop.permute.xlu0 %7442
  %7444 = vrot.lane.b32.xlu0 %v7328, 8
  %v7445 = vpop.permute.xlu0 %7444
  %7446 = vrot.lane.b32.xlu0 %v7329, 8
  %v7447 = vpop.permute.xlu0 %7446
  %7448 = vrot.lane.b32.xlu0 %v7330, 8
  %v7449 = vpop.permute.xlu0 %7448
  %7450 = vrot.lane.b32.xlu0 %v7331, 8
  %v7451 = vpop.permute.xlu0 %7450
  %7452 = vrot.lane.b32.xlu0 %v7332, 8
  %v7453 = vpop.permute.xlu0 %7452
  %7454 = vrot.lane.b32.xlu0 %v7333, 8
  %v7455 = vpop.permute.xlu0 %7454
  %7456 = vrot.lane.b32.xlu0 %v7334, 8
  %v7457 = vpop.permute.xlu0 %7456
  %7458 = vrot.lane.b32.xlu0 %v7335, 8
  %v7459 = vpop.permute.xlu0 %7458
  %7460 = vrot.lane.b32.xlu0 %v7336, 8
  %v7461 = vpop.permute.xlu0 %7460
  %7462 = vrot.lane.b32.xlu0 %v7337, 8
  %v7463 = vpop.permute.xlu0 %7462
  %7464 = vrot.lane.b32.xlu0 %v7338, 8
  %v7465 = vpop.permute.xlu0 %7464
  %7466 = vrot.lane.b32.xlu0 %v7339, 8
  %v7467 = vpop.permute.xlu0 %7466
  %7532 = vst.msk [vmem:[#allocation5] sm:$0xf] %vm1739, %v7341
  %7533 = vst.msk [vmem:[#allocation5 + $0x4] sm:$0xf] %vm1739, %v7343
  %7534 = vst.msk [vmem:[#allocation5 + $0x8] sm:$0xf] %vm1739, %v7345
  %7535 = vst.msk [vmem:[#allocation5 + $0xc] sm:$0xf] %vm1739, %v7347
  %7536 = vst.msk [vmem:[#allocation5 + $0x10] sm:$0xf] %vm1739, %v7349
  %7537 = vst.msk [vmem:[#allocation5 + $0x14] sm:$0xf] %vm1739, %v7351
  %7538 = vst.msk [vmem:[#allocation5 + $0x18] sm:$0xf] %vm1739, %v7353
  %7539 = vst.msk [vmem:[#allocation5 + $0x1c] sm:$0xf] %vm1739, %v7355
  %7540 = vst.msk [vmem:[#allocation5 + $0x20] sm:$0xf] %vm1739, %v7357
  %7541 = vst.msk [vmem:[#allocation5 + $0x24] sm:$0xf] %vm1739, %v7359
  %7542 = vst.msk [vmem:[#allocation5 + $0x28] sm:$0xf] %vm1739, %v7361
  %7543 = vst.msk [vmem:[#allocation5 + $0x2c] sm:$0xf] %vm1739, %v7363
  %7544 = vst.msk [vmem:[#allocation5 + $0x30] sm:$0xf] %vm1739, %v7365
  %7545 = vst.msk [vmem:[#allocation5 + $0x34] sm:$0xf] %vm1739, %v7367
  %7546 = vst.msk [vmem:[#allocation5 + $0x38] sm:$0xf] %vm1739, %v7369
  %7547 = vst.msk [vmem:[#allocation5 + $0x3c] sm:$0xf] %vm1739, %v7371
  %7548 = vst.msk [vmem:[#allocation5 + $0x40] sm:$0xf] %vm1739, %v7373
  %7549 = vst.msk [vmem:[#allocation5 + $0x44] sm:$0xf] %vm1739, %v7375
  %7550 = vst.msk [vmem:[#allocation5 + $0x48] sm:$0xf] %vm1739, %v7377
  %7551 = vst.msk [vmem:[#allocation5 + $0x4c] sm:$0xf] %vm1739, %v7379
  %7552 = vst.msk [vmem:[#allocation5 + $0x50] sm:$0xf] %vm1739, %v7381
  %7553 = vst.msk [vmem:[#allocation5 + $0x54] sm:$0xf] %vm1739, %v7383
  %7554 = vst.msk [vmem:[#allocation5 + $0x58] sm:$0xf] %vm1739, %v7385
  %7555 = vst.msk [vmem:[#allocation5 + $0x5c] sm:$0xf] %vm1739, %v7387
  %7556 = vst.msk [vmem:[#allocation5 + $0x60] sm:$0xf] %vm1739, %v7389
  %7557 = vst.msk [vmem:[#allocation5 + $0x64] sm:$0xf] %vm1739, %v7391
  %7558 = vst.msk [vmem:[#allocation5 + $0x68] sm:$0xf] %vm1739, %v7393
  %7559 = vst.msk [vmem:[#allocation5 + $0x6c] sm:$0xf] %vm1739, %v7395
  %7560 = vst.msk [vmem:[#allocation5 + $0x70] sm:$0xf] %vm1739, %v7397
  %7561 = vst.msk [vmem:[#allocation5 + $0x74] sm:$0xf] %vm1739, %v7399
  %7562 = vst.msk [vmem:[#allocation5 + $0x78] sm:$0xf] %vm1739, %v7401
  %7563 = vst.msk [vmem:[#allocation5 + $0x7c] sm:$0xf] %vm1739, %v7403
  %7564 = vst.msk [vmem:[#allocation5 + $0x80] sm:$0xf] %vm1739, %v7405
  %7565 = vst.msk [vmem:[#allocation5 + $0x84] sm:$0xf] %vm1739, %v7407
  %7566 = vst.msk [vmem:[#allocation5 + $0x88] sm:$0xf] %vm1739, %v7409
  %7567 = vst.msk [vmem:[#allocation5 + $0x8c] sm:$0xf] %vm1739, %v7411
  %7568 = vst.msk [vmem:[#allocation5 + $0x90] sm:$0xf] %vm1739, %v7413
  %7569 = vst.msk [vmem:[#allocation5 + $0x94] sm:$0xf] %vm1739, %v7415
  %7570 = vst.msk [vmem:[#allocation5 + $0x98] sm:$0xf] %vm1739, %v7417
  %7571 = vst.msk [vmem:[#allocation5 + $0x9c] sm:$0xf] %vm1739, %v7419
  %7572 = vst.msk [vmem:[#allocation5 + $0xa0] sm:$0xf] %vm1739, %v7421
  %7573 = vst.msk [vmem:[#allocation5 + $0xa4] sm:$0xf] %vm1739, %v7423
  %7574 = vst.msk [vmem:[#allocation5 + $0xa8] sm:$0xf] %vm1739, %v7425
  %7575 = vst.msk [vmem:[#allocation5 + $0xac] sm:$0xf] %vm1739, %v7427
  %7576 = vst.msk [vmem:[#allocation5 + $0xb0] sm:$0xf] %vm1739, %v7429
  %7577 = vst.msk [vmem:[#allocation5 + $0xb4] sm:$0xf] %vm1739, %v7431
  %7578 = vst.msk [vmem:[#allocation5 + $0xb8] sm:$0xf] %vm1739, %v7433
  %7579 = vst.msk [vmem:[#allocation5 + $0xbc] sm:$0xf] %vm1739, %v7435
  %7580 = vst.msk [vmem:[#allocation5 + $0xc0] sm:$0xf] %vm1739, %v7437
  %7581 = vst.msk [vmem:[#allocation5 + $0xc4] sm:$0xf] %vm1739, %v7439
  %7582 = vst.msk [vmem:[#allocation5 + $0xc8] sm:$0xf] %vm1739, %v7441
  %7583 = vst.msk [vmem:[#allocation5 + $0xcc] sm:$0xf] %vm1739, %v7443
  %7584 = vst.msk [vmem:[#allocation5 + $0xd0] sm:$0xf] %vm1739, %v7445
  %7585 = vst.msk [vmem:[#allocation5 + $0xd4] sm:$0xf] %vm1739, %v7447
  %7586 = vst.msk [vmem:[#allocation5 + $0xd8] sm:$0xf] %vm1739, %v7449
  %7587 = vst.msk [vmem:[#allocation5 + $0xdc] sm:$0xf] %vm1739, %v7451
  %7588 = vst.msk [vmem:[#allocation5 + $0xe0] sm:$0xf] %vm1739, %v7453
  %7589 = vst.msk [vmem:[#allocation5 + $0xe4] sm:$0xf] %vm1739, %v7455
  %7590 = vst.msk [vmem:[#allocation5 + $0xe8] sm:$0xf] %vm1739, %v7457
  %7591 = vst.msk [vmem:[#allocation5 + $0xec] sm:$0xf] %vm1739, %v7459
  %7592 = vst.msk [vmem:[#allocation5 + $0xf0] sm:$0xf] %vm1739, %v7461
  %7593 = vst.msk [vmem:[#allocation5 + $0xf4] sm:$0xf] %vm1739, %v7463
  %7594 = vst.msk [vmem:[#allocation5 + $0xf8] sm:$0xf] %vm1739, %v7465
  %7595 = vst.msk [vmem:[#allocation5 + $0xfc] sm:$0xf] %vm1739, %v7467
  %v7596 = vld [vmem:[%s6123] sm:$0xff]
  %v7597 = vld [vmem:[%s6123 + $0x8] sm:$0xff]
  %v7598 = vld [vmem:[%s6123 + $0x18] sm:$0xff]
  %v7599 = vld [vmem:[%s6123 + $0x20] sm:$0xff]
  %v7600 = vld [vmem:[%s6123 + $0x30] sm:$0xff]
  %v7601 = vld [vmem:[%s6123 + $0x38] sm:$0xff]
  %v7602 = vld [vmem:[%s6123 + $0x48] sm:$0xff]
  %v7603 = vld [vmem:[%s6123 + $0x50] sm:$0xff]
  %v7604 = vld [vmem:[%s6123 + $0x60] sm:$0xff]
  %v7605 = vld [vmem:[%s6123 + $0x68] sm:$0xff]
  %v7606 = vld [vmem:[%s6123 + $0x78] sm:$0xff]
  %v7607 = vld [vmem:[%s6123 + $0x80] sm:$0xff]
  %v7608 = vld [vmem:[%s6123 + $0x90] sm:$0xff]
  %v7609 = vld [vmem:[%s6123 + $0x98] sm:$0xff]
  %v7610 = vld [vmem:[%s6123 + $0xa8] sm:$0xff]
  %v7611 = vld [vmem:[%s6123 + $0xb0] sm:$0xff]
  %v7612 = vld [vmem:[%s6123 + $0xc0] sm:$0xff]
  %v7613 = vld [vmem:[%s6123 + $0xc8] sm:$0xff]
  %v7614 = vld [vmem:[%s6123 + $0xd8] sm:$0xff]
  %v7615 = vld [vmem:[%s6123 + $0xe0] sm:$0xff]
  %v7616 = vld [vmem:[%s6123 + $0xf0] sm:$0xff]
  %v7617 = vld [vmem:[%s6123 + $0xf8] sm:$0xff]
  %v7618 = vld [vmem:[%s6123 + $0x108] sm:$0xff]
  %v7619 = vld [vmem:[%s6123 + $0x110] sm:$0xff]
  %v7620 = vld [vmem:[%s6123 + $0x120] sm:$0xff]
  %v7621 = vld [vmem:[%s6123 + $0x128] sm:$0xff]
  %v7622 = vld [vmem:[%s6123 + $0x138] sm:$0xff]
  %v7623 = vld [vmem:[%s6123 + $0x140] sm:$0xff]
  %v7624 = vld [vmem:[%s6123 + $0x150] sm:$0xff]
  %v7625 = vld [vmem:[%s6123 + $0x158] sm:$0xff]
  %v7626 = vld [vmem:[%s6123 + $0x168] sm:$0xff]
  %v7627 = vld [vmem:[%s6123 + $0x170] sm:$0xff]
  %v7628 = vld [vmem:[%s6123 + $0x1b0] sm:$0xff]
  %v7629 = vld [vmem:[%s6123 + $0x1b8] sm:$0xff]
  %v7630 = vld [vmem:[%s6123 + $0x1c8] sm:$0xff]
  %v7631 = vld [vmem:[%s6123 + $0x1d0] sm:$0xff]
  %v7632 = vld [vmem:[%s6123 + $0x1e0] sm:$0xff]
  %v7633 = vld [vmem:[%s6123 + $0x1e8] sm:$0xff]
  %v7634 = vld [vmem:[%s6123 + $0x1f8] sm:$0xff]
  %v7635 = vld [vmem:[%s6123 + $0x200] sm:$0xff]
  %v7636 = vld [vmem:[%s6123 + $0x210] sm:$0xff]
  %v7637 = vld [vmem:[%s6123 + $0x218] sm:$0xff]
  %v7638 = vld [vmem:[%s6123 + $0x228] sm:$0xff]
  %v7639 = vld [vmem:[%s6123 + $0x230] sm:$0xff]
  %v7640 = vld [vmem:[%s6123 + $0x240] sm:$0xff]
  %v7641 = vld [vmem:[%s6123 + $0x248] sm:$0xff]
  %v7642 = vld [vmem:[%s6123 + $0x258] sm:$0xff]
  %v7643 = vld [vmem:[%s6123 + $0x260] sm:$0xff]
  %v7644 = vld [vmem:[%s6123 + $0x270] sm:$0xff]
  %v7645 = vld [vmem:[%s6123 + $0x278] sm:$0xff]
  %v7646 = vld [vmem:[%s6123 + $0x288] sm:$0xff]
  %v7647 = vld [vmem:[%s6123 + $0x290] sm:$0xff]
  %v7648 = vld [vmem:[%s6123 + $0x2a0] sm:$0xff]
  %v7649 = vld [vmem:[%s6123 + $0x2a8] sm:$0xff]
  %v7650 = vld [vmem:[%s6123 + $0x2b8] sm:$0xff]
  %v7651 = vld [vmem:[%s6123 + $0x2c0] sm:$0xff]
  %v7652 = vld [vmem:[%s6123 + $0x2d0] sm:$0xff]
  %v7653 = vld [vmem:[%s6123 + $0x2d8] sm:$0xff]
  %v7654 = vld [vmem:[%s6123 + $0x2e8] sm:$0xff]
  %v7655 = vld [vmem:[%s6123 + $0x2f0] sm:$0xff]
  %v7656 = vld [vmem:[%s6123 + $0x300] sm:$0xff]
  %v7657 = vld [vmem:[%s6123 + $0x308] sm:$0xff]
  %v7658 = vld [vmem:[%s6123 + $0x318] sm:$0xff]
  %v7659 = vld [vmem:[%s6123 + $0x320] sm:$0xff]
  %v7660 = vpack.c.bf16 %v7597, %v7596
  %v7661 = vpack.c.bf16 %v7599, %v7598
  %v7662 = vpack.c.bf16 %v7601, %v7600
  %v7663 = vpack.c.bf16 %v7603, %v7602
  %v7664 = vpack.c.bf16 %v7605, %v7604
  %v7665 = vpack.c.bf16 %v7607, %v7606
  %v7666 = vpack.c.bf16 %v7609, %v7608
  %v7667 = vpack.c.bf16 %v7611, %v7610
  %v7668 = vpack.c.bf16 %v7613, %v7612
  %v7669 = vpack.c.bf16 %v7615, %v7614
  %v7670 = vpack.c.bf16 %v7617, %v7616
  %v7671 = vpack.c.bf16 %v7619, %v7618
  %v7672 = vpack.c.bf16 %v7621, %v7620
  %v7673 = vpack.c.bf16 %v7623, %v7622
  %v7674 = vpack.c.bf16 %v7625, %v7624
  %v7675 = vpack.c.bf16 %v7627, %v7626
  %v7676 = vpack.c.bf16 %v7629, %v7628
  %v7677 = vpack.c.bf16 %v7631, %v7630
  %v7678 = vpack.c.bf16 %v7633, %v7632
  %v7679 = vpack.c.bf16 %v7635, %v7634
  %v7680 = vpack.c.bf16 %v7637, %v7636
  %v7681 = vpack.c.bf16 %v7639, %v7638
  %v7682 = vpack.c.bf16 %v7641, %v7640
  %v7683 = vpack.c.bf16 %v7643, %v7642
  %v7684 = vpack.c.bf16 %v7645, %v7644
  %v7685 = vpack.c.bf16 %v7647, %v7646
  %v7686 = vpack.c.bf16 %v7649, %v7648
  %v7687 = vpack.c.bf16 %v7651, %v7650
  %v7688 = vpack.c.bf16 %v7653, %v7652
  %v7689 = vpack.c.bf16 %v7655, %v7654
  %v7690 = vpack.c.bf16 %v7657, %v7656
  %v7691 = vpack.c.bf16 %v7659, %v7658
  %v7724 = vunpack.c.l.b16 %v7660
  %v7725 = vunpack.c.h.b16 %v7660
  %v7726 = vunpack.c.l.b16 %v7661
  %v7727 = vunpack.c.h.b16 %v7661
  %v7728 = vunpack.c.l.b16 %v7662
  %v7729 = vunpack.c.h.b16 %v7662
  %v7730 = vunpack.c.l.b16 %v7663
  %v7731 = vunpack.c.h.b16 %v7663
  %v7732 = vunpack.c.l.b16 %v7664
  %v7733 = vunpack.c.h.b16 %v7664
  %v7734 = vunpack.c.l.b16 %v7665
  %v7735 = vunpack.c.h.b16 %v7665
  %v7736 = vunpack.c.l.b16 %v7666
  %v7737 = vunpack.c.h.b16 %v7666
  %v7738 = vunpack.c.l.b16 %v7667
  %v7739 = vunpack.c.h.b16 %v7667
  %v7740 = vunpack.c.l.b16 %v7668
  %v7741 = vunpack.c.h.b16 %v7668
  %v7742 = vunpack.c.l.b16 %v7669
  %v7743 = vunpack.c.h.b16 %v7669
  %v7744 = vunpack.c.l.b16 %v7670
  %v7745 = vunpack.c.h.b16 %v7670
  %v7746 = vunpack.c.l.b16 %v7671
  %v7747 = vunpack.c.h.b16 %v7671
  %v7748 = vunpack.c.l.b16 %v7672
  %v7749 = vunpack.c.h.b16 %v7672
  %v7750 = vunpack.c.l.b16 %v7673
  %v7751 = vunpack.c.h.b16 %v7673
  %v7752 = vunpack.c.l.b16 %v7674
  %v7753 = vunpack.c.h.b16 %v7674
  %v7754 = vunpack.c.l.b16 %v7675
  %v7755 = vunpack.c.h.b16 %v7675
  %v7756 = vunpack.c.l.b16 %v7676
  %v7757 = vunpack.c.h.b16 %v7676
  %v7758 = vunpack.c.l.b16 %v7677
  %v7759 = vunpack.c.h.b16 %v7677
  %v7760 = vunpack.c.l.b16 %v7678
  %v7761 = vunpack.c.h.b16 %v7678
  %v7762 = vunpack.c.l.b16 %v7679
  %v7763 = vunpack.c.h.b16 %v7679
  %v7764 = vunpack.c.l.b16 %v7680
  %v7765 = vunpack.c.h.b16 %v7680
  %v7766 = vunpack.c.l.b16 %v7681
  %v7767 = vunpack.c.h.b16 %v7681
  %v7768 = vunpack.c.l.b16 %v7682
  %v7769 = vunpack.c.h.b16 %v7682
  %v7770 = vunpack.c.l.b16 %v7683
  %v7771 = vunpack.c.h.b16 %v7683
  %v7772 = vunpack.c.l.b16 %v7684
  %v7773 = vunpack.c.h.b16 %v7684
  %v7774 = vunpack.c.l.b16 %v7685
  %v7775 = vunpack.c.h.b16 %v7685
  %v7776 = vunpack.c.l.b16 %v7686
  %v7777 = vunpack.c.h.b16 %v7686
  %v7778 = vunpack.c.l.b16 %v7687
  %v7779 = vunpack.c.h.b16 %v7687
  %v7780 = vunpack.c.l.b16 %v7688
  %v7781 = vunpack.c.h.b16 %v7688
  %v7782 = vunpack.c.l.b16 %v7689
  %v7783 = vunpack.c.h.b16 %v7689
  %v7784 = vunpack.c.l.b16 %v7690
  %v7785 = vunpack.c.h.b16 %v7690
  %v7786 = vunpack.c.l.b16 %v7691
  %v7787 = vunpack.c.h.b16 %v7691
  %v7788 = vpack.c.b16 %v7724, %v7724
  %v7789 = vpack.c.b16 %v7725, %v7725
  %v7790 = vpack.c.b16 %v7726, %v7726
  %v7791 = vpack.c.b16 %v7727, %v7727
  %v7792 = vpack.c.b16 %v7728, %v7728
  %v7793 = vpack.c.b16 %v7729, %v7729
  %v7794 = vpack.c.b16 %v7730, %v7730
  %v7795 = vpack.c.b16 %v7731, %v7731
  %v7796 = vpack.c.b16 %v7732, %v7732
  %v7797 = vpack.c.b16 %v7733, %v7733
  %v7798 = vpack.c.b16 %v7734, %v7734
  %v7799 = vpack.c.b16 %v7735, %v7735
  %v7800 = vpack.c.b16 %v7736, %v7736
  %v7801 = vpack.c.b16 %v7737, %v7737
  %v7802 = vpack.c.b16 %v7738, %v7738
  %v7803 = vpack.c.b16 %v7739, %v7739
  %v7804 = vpack.c.b16 %v7740, %v7740
  %v7805 = vpack.c.b16 %v7741, %v7741
  %v7806 = vpack.c.b16 %v7742, %v7742
  %v7807 = vpack.c.b16 %v7743, %v7743
  %v7808 = vpack.c.b16 %v7744, %v7744
  %v7809 = vpack.c.b16 %v7745, %v7745
  %v7810 = vpack.c.b16 %v7746, %v7746
  %v7811 = vpack.c.b16 %v7747, %v7747
  %v7812 = vpack.c.b16 %v7748, %v7748
  %v7813 = vpack.c.b16 %v7749, %v7749
  %v7814 = vpack.c.b16 %v7750, %v7750
  %v7815 = vpack.c.b16 %v7751, %v7751
  %v7816 = vpack.c.b16 %v7752, %v7752
  %v7817 = vpack.c.b16 %v7753, %v7753
  %v7818 = vpack.c.b16 %v7754, %v7754
  %v7819 = vpack.c.b16 %v7755, %v7755
  %v7820 = vpack.c.b16 %v7756, %v7756
  %v7821 = vpack.c.b16 %v7757, %v7757
  %v7822 = vpack.c.b16 %v7758, %v7758
  %v7823 = vpack.c.b16 %v7759, %v7759
  %v7824 = vpack.c.b16 %v7760, %v7760
  %v7825 = vpack.c.b16 %v7761, %v7761
  %v7826 = vpack.c.b16 %v7762, %v7762
  %v7827 = vpack.c.b16 %v7763, %v7763
  %v7828 = vpack.c.b16 %v7764, %v7764
  %v7829 = vpack.c.b16 %v7765, %v7765
  %v7830 = vpack.c.b16 %v7766, %v7766
  %v7831 = vpack.c.b16 %v7767, %v7767
  %v7832 = vpack.c.b16 %v7768, %v7768
  %v7833 = vpack.c.b16 %v7769, %v7769
  %v7834 = vpack.c.b16 %v7770, %v7770
  %v7835 = vpack.c.b16 %v7771, %v7771
  %v7836 = vpack.c.b16 %v7772, %v7772
  %v7837 = vpack.c.b16 %v7773, %v7773
  %v7838 = vpack.c.b16 %v7774, %v7774
  %v7839 = vpack.c.b16 %v7775, %v7775
  %v7840 = vpack.c.b16 %v7776, %v7776
  %v7841 = vpack.c.b16 %v7777, %v7777
  %v7842 = vpack.c.b16 %v7778, %v7778
  %v7843 = vpack.c.b16 %v7779, %v7779
  %v7844 = vpack.c.b16 %v7780, %v7780
  %v7845 = vpack.c.b16 %v7781, %v7781
  %v7846 = vpack.c.b16 %v7782, %v7782
  %v7847 = vpack.c.b16 %v7783, %v7783
  %v7848 = vpack.c.b16 %v7784, %v7784
  %v7849 = vpack.c.b16 %v7785, %v7785
  %v7850 = vpack.c.b16 %v7786, %v7786
  %v7851 = vpack.c.b16 %v7787, %v7787
  %7852 = vrot.lane.b32.xlu0 %v7788, 12
  %v7853 = vpop.permute.xlu0 %7852
  %7854 = vrot.lane.b32.xlu0 %v7789, 12
  %v7855 = vpop.permute.xlu0 %7854
  %7856 = vrot.lane.b32.xlu0 %v7790, 12
  %v7857 = vpop.permute.xlu0 %7856
  %7858 = vrot.lane.b32.xlu0 %v7791, 12
  %v7859 = vpop.permute.xlu0 %7858
  %7860 = vrot.lane.b32.xlu0 %v7792, 12
  %v7861 = vpop.permute.xlu0 %7860
  %7862 = vrot.lane.b32.xlu0 %v7793, 12
  %v7863 = vpop.permute.xlu0 %7862
  %7864 = vrot.lane.b32.xlu0 %v7794, 12
  %v7865 = vpop.permute.xlu0 %7864
  %7866 = vrot.lane.b32.xlu0 %v7795, 12
  %v7867 = vpop.permute.xlu0 %7866
  %7868 = vrot.lane.b32.xlu0 %v7796, 12
  %v7869 = vpop.permute.xlu0 %7868
  %7870 = vrot.lane.b32.xlu0 %v7797, 12
  %v7871 = vpop.permute.xlu0 %7870
  %7872 = vrot.lane.b32.xlu0 %v7798, 12
  %v7873 = vpop.permute.xlu0 %7872
  %7874 = vrot.lane.b32.xlu0 %v7799, 12
  %v7875 = vpop.permute.xlu0 %7874
  %7876 = vrot.lane.b32.xlu0 %v7800, 12
  %v7877 = vpop.permute.xlu0 %7876
  %7878 = vrot.lane.b32.xlu0 %v7801, 12
  %v7879 = vpop.permute.xlu0 %7878
  %7880 = vrot.lane.b32.xlu0 %v7802, 12
  %v7881 = vpop.permute.xlu0 %7880
  %7882 = vrot.lane.b32.xlu0 %v7803, 12
  %v7883 = vpop.permute.xlu0 %7882
  %7884 = vrot.lane.b32.xlu0 %v7804, 12
  %v7885 = vpop.permute.xlu0 %7884
  %7886 = vrot.lane.b32.xlu0 %v7805, 12
  %v7887 = vpop.permute.xlu0 %7886
  %7888 = vrot.lane.b32.xlu0 %v7806, 12
  %v7889 = vpop.permute.xlu0 %7888
  %7890 = vrot.lane.b32.xlu0 %v7807, 12
  %v7891 = vpop.permute.xlu0 %7890
  %7892 = vrot.lane.b32.xlu0 %v7808, 12
  %v7893 = vpop.permute.xlu0 %7892
  %7894 = vrot.lane.b32.xlu0 %v7809, 12
  %v7895 = vpop.permute.xlu0 %7894
  %7896 = vrot.lane.b32.xlu0 %v7810, 12
  %v7897 = vpop.permute.xlu0 %7896
  %7898 = vrot.lane.b32.xlu0 %v7811, 12
  %v7899 = vpop.permute.xlu0 %7898
  %7900 = vrot.lane.b32.xlu0 %v7812, 12
  %v7901 = vpop.permute.xlu0 %7900
  %7902 = vrot.lane.b32.xlu0 %v7813, 12
  %v7903 = vpop.permute.xlu0 %7902
  %7904 = vrot.lane.b32.xlu0 %v7814, 12
  %v7905 = vpop.permute.xlu0 %7904
  %7906 = vrot.lane.b32.xlu0 %v7815, 12
  %v7907 = vpop.permute.xlu0 %7906
  %7908 = vrot.lane.b32.xlu0 %v7816, 12
  %v7909 = vpop.permute.xlu0 %7908
  %7910 = vrot.lane.b32.xlu0 %v7817, 12
  %v7911 = vpop.permute.xlu0 %7910
  %7912 = vrot.lane.b32.xlu0 %v7818, 12
  %v7913 = vpop.permute.xlu0 %7912
  %7914 = vrot.lane.b32.xlu0 %v7819, 12
  %v7915 = vpop.permute.xlu0 %7914
  %7916 = vrot.lane.b32.xlu0 %v7820, 12
  %v7917 = vpop.permute.xlu0 %7916
  %7918 = vrot.lane.b32.xlu0 %v7821, 12
  %v7919 = vpop.permute.xlu0 %7918
  %7920 = vrot.lane.b32.xlu0 %v7822, 12
  %v7921 = vpop.permute.xlu0 %7920
  %7922 = vrot.lane.b32.xlu0 %v7823, 12
  %v7923 = vpop.permute.xlu0 %7922
  %7924 = vrot.lane.b32.xlu0 %v7824, 12
  %v7925 = vpop.permute.xlu0 %7924
  %7926 = vrot.lane.b32.xlu0 %v7825, 12
  %v7927 = vpop.permute.xlu0 %7926
  %7928 = vrot.lane.b32.xlu0 %v7826, 12
  %v7929 = vpop.permute.xlu0 %7928
  %7930 = vrot.lane.b32.xlu0 %v7827, 12
  %v7931 = vpop.permute.xlu0 %7930
  %7932 = vrot.lane.b32.xlu0 %v7828, 12
  %v7933 = vpop.permute.xlu0 %7932
  %7934 = vrot.lane.b32.xlu0 %v7829, 12
  %v7935 = vpop.permute.xlu0 %7934
  %7936 = vrot.lane.b32.xlu0 %v7830, 12
  %v7937 = vpop.permute.xlu0 %7936
  %7938 = vrot.lane.b32.xlu0 %v7831, 12
  %v7939 = vpop.permute.xlu0 %7938
  %7940 = vrot.lane.b32.xlu0 %v7832, 12
  %v7941 = vpop.permute.xlu0 %7940
  %7942 = vrot.lane.b32.xlu0 %v7833, 12
  %v7943 = vpop.permute.xlu0 %7942
  %7944 = vrot.lane.b32.xlu0 %v7834, 12
  %v7945 = vpop.permute.xlu0 %7944
  %7946 = vrot.lane.b32.xlu0 %v7835, 12
  %v7947 = vpop.permute.xlu0 %7946
  %7948 = vrot.lane.b32.xlu0 %v7836, 12
  %v7949 = vpop.permute.xlu0 %7948
  %7950 = vrot.lane.b32.xlu0 %v7837, 12
  %v7951 = vpop.permute.xlu0 %7950
  %7952 = vrot.lane.b32.xlu0 %v7838, 12
  %v7953 = vpop.permute.xlu0 %7952
  %7954 = vrot.lane.b32.xlu0 %v7839, 12
  %v7955 = vpop.permute.xlu0 %7954
  %7956 = vrot.lane.b32.xlu0 %v7840, 12
  %v7957 = vpop.permute.xlu0 %7956
  %7958 = vrot.lane.b32.xlu0 %v7841, 12
  %v7959 = vpop.permute.xlu0 %7958
  %7960 = vrot.lane.b32.xlu0 %v7842, 12
  %v7961 = vpop.permute.xlu0 %7960
  %7962 = vrot.lane.b32.xlu0 %v7843, 12
  %v7963 = vpop.permute.xlu0 %7962
  %7964 = vrot.lane.b32.xlu0 %v7844, 12
  %v7965 = vpop.permute.xlu0 %7964
  %7966 = vrot.lane.b32.xlu0 %v7845, 12
  %v7967 = vpop.permute.xlu0 %7966
  %7968 = vrot.lane.b32.xlu0 %v7846, 12
  %v7969 = vpop.permute.xlu0 %7968
  %7970 = vrot.lane.b32.xlu0 %v7847, 12
  %v7971 = vpop.permute.xlu0 %7970
  %7972 = vrot.lane.b32.xlu0 %v7848, 12
  %v7973 = vpop.permute.xlu0 %7972
  %7974 = vrot.lane.b32.xlu0 %v7849, 12
  %v7975 = vpop.permute.xlu0 %7974
  %7976 = vrot.lane.b32.xlu0 %v7850, 12
  %v7977 = vpop.permute.xlu0 %7976
  %7978 = vrot.lane.b32.xlu0 %v7851, 12
  %v7979 = vpop.permute.xlu0 %7978
  %8044 = vst.msk [vmem:[#allocation5] sm:$0xf] %vm2252, %v7853
  %8045 = vst.msk [vmem:[#allocation5 + $0x4] sm:$0xf] %vm2252, %v7855
  %8046 = vst.msk [vmem:[#allocation5 + $0x8] sm:$0xf] %vm2252, %v7857
  %8047 = vst.msk [vmem:[#allocation5 + $0xc] sm:$0xf] %vm2252, %v7859
  %8048 = vst.msk [vmem:[#allocation5 + $0x10] sm:$0xf] %vm2252, %v7861
  %8049 = vst.msk [vmem:[#allocation5 + $0x14] sm:$0xf] %vm2252, %v7863
  %8050 = vst.msk [vmem:[#allocation5 + $0x18] sm:$0xf] %vm2252, %v7865
  %8051 = vst.msk [vmem:[#allocation5 + $0x1c] sm:$0xf] %vm2252, %v7867
  %8052 = vst.msk [vmem:[#allocation5 + $0x20] sm:$0xf] %vm2252, %v7869
  %8053 = vst.msk [vmem:[#allocation5 + $0x24] sm:$0xf] %vm2252, %v7871
  %8054 = vst.msk [vmem:[#allocation5 + $0x28] sm:$0xf] %vm2252, %v7873
  %8055 = vst.msk [vmem:[#allocation5 + $0x2c] sm:$0xf] %vm2252, %v7875
  %8056 = vst.msk [vmem:[#allocation5 + $0x30] sm:$0xf] %vm2252, %v7877
  %8057 = vst.msk [vmem:[#allocation5 + $0x34] sm:$0xf] %vm2252, %v7879
  %8058 = vst.msk [vmem:[#allocation5 + $0x38] sm:$0xf] %vm2252, %v7881
  %8059 = vst.msk [vmem:[#allocation5 + $0x3c] sm:$0xf] %vm2252, %v7883
  %8060 = vst.msk [vmem:[#allocation5 + $0x40] sm:$0xf] %vm2252, %v7885
  %8061 = vst.msk [vmem:[#allocation5 + $0x44] sm:$0xf] %vm2252, %v7887
  %8062 = vst.msk [vmem:[#allocation5 + $0x48] sm:$0xf] %vm2252, %v7889
  %8063 = vst.msk [vmem:[#allocation5 + $0x4c] sm:$0xf] %vm2252, %v7891
  %8064 = vst.msk [vmem:[#allocation5 + $0x50] sm:$0xf] %vm2252, %v7893
  %8065 = vst.msk [vmem:[#allocation5 + $0x54] sm:$0xf] %vm2252, %v7895
  %8066 = vst.msk [vmem:[#allocation5 + $0x58] sm:$0xf] %vm2252, %v7897
  %8067 = vst.msk [vmem:[#allocation5 + $0x5c] sm:$0xf] %vm2252, %v7899
  %8068 = vst.msk [vmem:[#allocation5 + $0x60] sm:$0xf] %vm2252, %v7901
  %8069 = vst.msk [vmem:[#allocation5 + $0x64] sm:$0xf] %vm2252, %v7903
  %8070 = vst.msk [vmem:[#allocation5 + $0x68] sm:$0xf] %vm2252, %v7905
  %8071 = vst.msk [vmem:[#allocation5 + $0x6c] sm:$0xf] %vm2252, %v7907
  %8072 = vst.msk [vmem:[#allocation5 + $0x70] sm:$0xf] %vm2252, %v7909
  %8073 = vst.msk [vmem:[#allocation5 + $0x74] sm:$0xf] %vm2252, %v7911
  %8074 = vst.msk [vmem:[#allocation5 + $0x78] sm:$0xf] %vm2252, %v7913
  %8075 = vst.msk [vmem:[#allocation5 + $0x7c] sm:$0xf] %vm2252, %v7915
  %8076 = vst.msk [vmem:[#allocation5 + $0x80] sm:$0xf] %vm2252, %v7917
  %8077 = vst.msk [vmem:[#allocation5 + $0x84] sm:$0xf] %vm2252, %v7919
  %8078 = vst.msk [vmem:[#allocation5 + $0x88] sm:$0xf] %vm2252, %v7921
  %8079 = vst.msk [vmem:[#allocation5 + $0x8c] sm:$0xf] %vm2252, %v7923
  %8080 = vst.msk [vmem:[#allocation5 + $0x90] sm:$0xf] %vm2252, %v7925
  %8081 = vst.msk [vmem:[#allocation5 + $0x94] sm:$0xf] %vm2252, %v7927
  %8082 = vst.msk [vmem:[#allocation5 + $0x98] sm:$0xf] %vm2252, %v7929
  %8083 = vst.msk [vmem:[#allocation5 + $0x9c] sm:$0xf] %vm2252, %v7931
  %8084 = vst.msk [vmem:[#allocation5 + $0xa0] sm:$0xf] %vm2252, %v7933
  %8085 = vst.msk [vmem:[#allocation5 + $0xa4] sm:$0xf] %vm2252, %v7935
  %8086 = vst.msk [vmem:[#allocation5 + $0xa8] sm:$0xf] %vm2252, %v7937
  %8087 = vst.msk [vmem:[#allocation5 + $0xac] sm:$0xf] %vm2252, %v7939
  %8088 = vst.msk [vmem:[#allocation5 + $0xb0] sm:$0xf] %vm2252, %v7941
  %8089 = vst.msk [vmem:[#allocation5 + $0xb4] sm:$0xf] %vm2252, %v7943
  %8090 = vst.msk [vmem:[#allocation5 + $0xb8] sm:$0xf] %vm2252, %v7945
  %8091 = vst.msk [vmem:[#allocation5 + $0xbc] sm:$0xf] %vm2252, %v7947
  %8092 = vst.msk [vmem:[#allocation5 + $0xc0] sm:$0xf] %vm2252, %v7949
  %8093 = vst.msk [vmem:[#allocation5 + $0xc4] sm:$0xf] %vm2252, %v7951
  %8094 = vst.msk [vmem:[#allocation5 + $0xc8] sm:$0xf] %vm2252, %v7953
  %8095 = vst.msk [vmem:[#allocation5 + $0xcc] sm:$0xf] %vm2252, %v7955
  %8096 = vst.msk [vmem:[#allocation5 + $0xd0] sm:$0xf] %vm2252, %v7957
  %8097 = vst.msk [vmem:[#allocation5 + $0xd4] sm:$0xf] %vm2252, %v7959
  %8098 = vst.msk [vmem:[#allocation5 + $0xd8] sm:$0xf] %vm2252, %v7961
  %8099 = vst.msk [vmem:[#allocation5 + $0xdc] sm:$0xf] %vm2252, %v7963
  %8100 = vst.msk [vmem:[#allocation5 + $0xe0] sm:$0xf] %vm2252, %v7965
  %8101 = vst.msk [vmem:[#allocation5 + $0xe4] sm:$0xf] %vm2252, %v7967
  %8102 = vst.msk [vmem:[#allocation5 + $0xe8] sm:$0xf] %vm2252, %v7969
  %8103 = vst.msk [vmem:[#allocation5 + $0xec] sm:$0xf] %vm2252, %v7971
  %8104 = vst.msk [vmem:[#allocation5 + $0xf0] sm:$0xf] %vm2252, %v7973
  %8105 = vst.msk [vmem:[#allocation5 + $0xf4] sm:$0xf] %vm2252, %v7975
  %8106 = vst.msk [vmem:[#allocation5 + $0xf8] sm:$0xf] %vm2252, %v7977
  %8107 = vst.msk [vmem:[#allocation5 + $0xfc] sm:$0xf] %vm2252, %v7979
  %v8108 = vld [vmem:[%s6123 + $0x1] sm:$0xff]
  %v8109 = vld [vmem:[%s6123 + $0x9] sm:$0xff]
  %v8110 = vld [vmem:[%s6123 + $0x19] sm:$0xff]
  %v8111 = vld [vmem:[%s6123 + $0x21] sm:$0xff]
  %v8112 = vld [vmem:[%s6123 + $0x31] sm:$0xff]
  %v8113 = vld [vmem:[%s6123 + $0x39] sm:$0xff]
  %v8114 = vld [vmem:[%s6123 + $0x49] sm:$0xff]
  %v8115 = vld [vmem:[%s6123 + $0x51] sm:$0xff]
  %v8116 = vld [vmem:[%s6123 + $0x61] sm:$0xff]
  %v8117 = vld [vmem:[%s6123 + $0x69] sm:$0xff]
  %v8118 = vld [vmem:[%s6123 + $0x79] sm:$0xff]
  %v8119 = vld [vmem:[%s6123 + $0x81] sm:$0xff]
  %v8120 = vld [vmem:[%s6123 + $0x91] sm:$0xff]
  %v8121 = vld [vmem:[%s6123 + $0x99] sm:$0xff]
  %v8122 = vld [vmem:[%s6123 + $0xa9] sm:$0xff]
  %v8123 = vld [vmem:[%s6123 + $0xb1] sm:$0xff]
  %v8124 = vld [vmem:[%s6123 + $0xc1] sm:$0xff]
  %v8125 = vld [vmem:[%s6123 + $0xc9] sm:$0xff]
  %v8126 = vld [vmem:[%s6123 + $0xd9] sm:$0xff]
  %v8127 = vld [vmem:[%s6123 + $0xe1] sm:$0xff]
  %v8128 = vld [vmem:[%s6123 + $0xf1] sm:$0xff]
  %v8129 = vld [vmem:[%s6123 + $0xf9] sm:$0xff]
  %v8130 = vld [vmem:[%s6123 + $0x109] sm:$0xff]
  %v8131 = vld [vmem:[%s6123 + $0x111] sm:$0xff]
  %v8132 = vld [vmem:[%s6123 + $0x121] sm:$0xff]
  %v8133 = vld [vmem:[%s6123 + $0x129] sm:$0xff]
  %v8134 = vld [vmem:[%s6123 + $0x139] sm:$0xff]
  %v8135 = vld [vmem:[%s6123 + $0x141] sm:$0xff]
  %v8136 = vld [vmem:[%s6123 + $0x151] sm:$0xff]
  %v8137 = vld [vmem:[%s6123 + $0x159] sm:$0xff]
  %v8138 = vld [vmem:[%s6123 + $0x169] sm:$0xff]
  %v8139 = vld [vmem:[%s6123 + $0x171] sm:$0xff]
  %v8140 = vld [vmem:[%s6123 + $0x1b1] sm:$0xff]
  %v8141 = vld [vmem:[%s6123 + $0x1b9] sm:$0xff]
  %v8142 = vld [vmem:[%s6123 + $0x1c9] sm:$0xff]
  %v8143 = vld [vmem:[%s6123 + $0x1d1] sm:$0xff]
  %v8144 = vld [vmem:[%s6123 + $0x1e1] sm:$0xff]
  %v8145 = vld [vmem:[%s6123 + $0x1e9] sm:$0xff]
  %v8146 = vld [vmem:[%s6123 + $0x1f9] sm:$0xff]
  %v8147 = vld [vmem:[%s6123 + $0x201] sm:$0xff]
  %v8148 = vld [vmem:[%s6123 + $0x211] sm:$0xff]
  %v8149 = vld [vmem:[%s6123 + $0x219] sm:$0xff]
  %v8150 = vld [vmem:[%s6123 + $0x229] sm:$0xff]
  %v8151 = vld [vmem:[%s6123 + $0x231] sm:$0xff]
  %v8152 = vld [vmem:[%s6123 + $0x241] sm:$0xff]
  %v8153 = vld [vmem:[%s6123 + $0x249] sm:$0xff]
  %v8154 = vld [vmem:[%s6123 + $0x259] sm:$0xff]
  %v8155 = vld [vmem:[%s6123 + $0x261] sm:$0xff]
  %v8156 = vld [vmem:[%s6123 + $0x271] sm:$0xff]
  %v8157 = vld [vmem:[%s6123 + $0x279] sm:$0xff]
  %v8158 = vld [vmem:[%s6123 + $0x289] sm:$0xff]
  %v8159 = vld [vmem:[%s6123 + $0x291] sm:$0xff]
  %v8160 = vld [vmem:[%s6123 + $0x2a1] sm:$0xff]
  %v8161 = vld [vmem:[%s6123 + $0x2a9] sm:$0xff]
  %v8162 = vld [vmem:[%s6123 + $0x2b9] sm:$0xff]
  %v8163 = vld [vmem:[%s6123 + $0x2c1] sm:$0xff]
  %v8164 = vld [vmem:[%s6123 + $0x2d1] sm:$0xff]
  %v8165 = vld [vmem:[%s6123 + $0x2d9] sm:$0xff]
  %v8166 = vld [vmem:[%s6123 + $0x2e9] sm:$0xff]
  %v8167 = vld [vmem:[%s6123 + $0x2f1] sm:$0xff]
  %v8168 = vld [vmem:[%s6123 + $0x301] sm:$0xff]
  %v8169 = vld [vmem:[%s6123 + $0x309] sm:$0xff]
  %v8170 = vld [vmem:[%s6123 + $0x319] sm:$0xff]
  %v8171 = vld [vmem:[%s6123 + $0x321] sm:$0xff]
  %v8172 = vpack.c.bf16 %v8109, %v8108
  %v8173 = vpack.c.bf16 %v8111, %v8110
  %v8174 = vpack.c.bf16 %v8113, %v8112
  %v8175 = vpack.c.bf16 %v8115, %v8114
  %v8176 = vpack.c.bf16 %v8117, %v8116
  %v8177 = vpack.c.bf16 %v8119, %v8118
  %v8178 = vpack.c.bf16 %v8121, %v8120
  %v8179 = vpack.c.bf16 %v8123, %v8122
  %v8180 = vpack.c.bf16 %v8125, %v8124
  %v8181 = vpack.c.bf16 %v8127, %v8126
  %v8182 = vpack.c.bf16 %v8129, %v8128
  %v8183 = vpack.c.bf16 %v8131, %v8130
  %v8184 = vpack.c.bf16 %v8133, %v8132
  %v8185 = vpack.c.bf16 %v8135, %v8134
  %v8186 = vpack.c.bf16 %v8137, %v8136
  %v8187 = vpack.c.bf16 %v8139, %v8138
  %v8188 = vpack.c.bf16 %v8141, %v8140
  %v8189 = vpack.c.bf16 %v8143, %v8142
  %v8190 = vpack.c.bf16 %v8145, %v8144
  %v8191 = vpack.c.bf16 %v8147, %v8146
  %v8192 = vpack.c.bf16 %v8149, %v8148
  %v8193 = vpack.c.bf16 %v8151, %v8150
  %v8194 = vpack.c.bf16 %v8153, %v8152
  %v8195 = vpack.c.bf16 %v8155, %v8154
  %v8196 = vpack.c.bf16 %v8157, %v8156
  %v8197 = vpack.c.bf16 %v8159, %v8158
  %v8198 = vpack.c.bf16 %v8161, %v8160
  %v8199 = vpack.c.bf16 %v8163, %v8162
  %v8200 = vpack.c.bf16 %v8165, %v8164
  %v8201 = vpack.c.bf16 %v8167, %v8166
  %v8202 = vpack.c.bf16 %v8169, %v8168
  %v8203 = vpack.c.bf16 %v8171, %v8170
  %v8236 = vunpack.c.l.b16 %v8172
  %v8237 = vunpack.c.h.b16 %v8172
  %v8238 = vunpack.c.l.b16 %v8173
  %v8239 = vunpack.c.h.b16 %v8173
  %v8240 = vunpack.c.l.b16 %v8174
  %v8241 = vunpack.c.h.b16 %v8174
  %v8242 = vunpack.c.l.b16 %v8175
  %v8243 = vunpack.c.h.b16 %v8175
  %v8244 = vunpack.c.l.b16 %v8176
  %v8245 = vunpack.c.h.b16 %v8176
  %v8246 = vunpack.c.l.b16 %v8177
  %v8247 = vunpack.c.h.b16 %v8177
  %v8248 = vunpack.c.l.b16 %v8178
  %v8249 = vunpack.c.h.b16 %v8178
  %v8250 = vunpack.c.l.b16 %v8179
  %v8251 = vunpack.c.h.b16 %v8179
  %v8252 = vunpack.c.l.b16 %v8180
  %v8253 = vunpack.c.h.b16 %v8180
  %v8254 = vunpack.c.l.b16 %v8181
  %v8255 = vunpack.c.h.b16 %v8181
  %v8256 = vunpack.c.l.b16 %v8182
  %v8257 = vunpack.c.h.b16 %v8182
  %v8258 = vunpack.c.l.b16 %v8183
  %v8259 = vunpack.c.h.b16 %v8183
  %v8260 = vunpack.c.l.b16 %v8184
  %v8261 = vunpack.c.h.b16 %v8184
  %v8262 = vunpack.c.l.b16 %v8185
  %v8263 = vunpack.c.h.b16 %v8185
  %v8264 = vunpack.c.l.b16 %v8186
  %v8265 = vunpack.c.h.b16 %v8186
  %v8266 = vunpack.c.l.b16 %v8187
  %v8267 = vunpack.c.h.b16 %v8187
  %v8268 = vunpack.c.l.b16 %v8188
  %v8269 = vunpack.c.h.b16 %v8188
  %v8270 = vunpack.c.l.b16 %v8189
  %v8271 = vunpack.c.h.b16 %v8189
  %v8272 = vunpack.c.l.b16 %v8190
  %v8273 = vunpack.c.h.b16 %v8190
  %v8274 = vunpack.c.l.b16 %v8191
  %v8275 = vunpack.c.h.b16 %v8191
  %v8276 = vunpack.c.l.b16 %v8192
  %v8277 = vunpack.c.h.b16 %v8192
  %v8278 = vunpack.c.l.b16 %v8193
  %v8279 = vunpack.c.h.b16 %v8193
  %v8280 = vunpack.c.l.b16 %v8194
  %v8281 = vunpack.c.h.b16 %v8194
  %v8282 = vunpack.c.l.b16 %v8195
  %v8283 = vunpack.c.h.b16 %v8195
  %v8284 = vunpack.c.l.b16 %v8196
  %v8285 = vunpack.c.h.b16 %v8196
  %v8286 = vunpack.c.l.b16 %v8197
  %v8287 = vunpack.c.h.b16 %v8197
  %v8288 = vunpack.c.l.b16 %v8198
  %v8289 = vunpack.c.h.b16 %v8198
  %v8290 = vunpack.c.l.b16 %v8199
  %v8291 = vunpack.c.h.b16 %v8199
  %v8292 = vunpack.c.l.b16 %v8200
  %v8293 = vunpack.c.h.b16 %v8200
  %v8294 = vunpack.c.l.b16 %v8201
  %v8295 = vunpack.c.h.b16 %v8201
  %v8296 = vunpack.c.l.b16 %v8202
  %v8297 = vunpack.c.h.b16 %v8202
  %v8298 = vunpack.c.l.b16 %v8203
  %v8299 = vunpack.c.h.b16 %v8203
  %v8300 = vpack.c.b16 %v8236, %v8236
  %v8301 = vpack.c.b16 %v8237, %v8237
  %v8302 = vpack.c.b16 %v8238, %v8238
  %v8303 = vpack.c.b16 %v8239, %v8239
  %v8304 = vpack.c.b16 %v8240, %v8240
  %v8305 = vpack.c.b16 %v8241, %v8241
  %v8306 = vpack.c.b16 %v8242, %v8242
  %v8307 = vpack.c.b16 %v8243, %v8243
  %v8308 = vpack.c.b16 %v8244, %v8244
  %v8309 = vpack.c.b16 %v8245, %v8245
  %v8310 = vpack.c.b16 %v8246, %v8246
  %v8311 = vpack.c.b16 %v8247, %v8247
  %v8312 = vpack.c.b16 %v8248, %v8248
  %v8313 = vpack.c.b16 %v8249, %v8249
  %v8314 = vpack.c.b16 %v8250, %v8250
  %v8315 = vpack.c.b16 %v8251, %v8251
  %v8316 = vpack.c.b16 %v8252, %v8252
  %v8317 = vpack.c.b16 %v8253, %v8253
  %v8318 = vpack.c.b16 %v8254, %v8254
  %v8319 = vpack.c.b16 %v8255, %v8255
  %v8320 = vpack.c.b16 %v8256, %v8256
  %v8321 = vpack.c.b16 %v8257, %v8257
  %v8322 = vpack.c.b16 %v8258, %v8258
  %v8323 = vpack.c.b16 %v8259, %v8259
  %v8324 = vpack.c.b16 %v8260, %v8260
  %v8325 = vpack.c.b16 %v8261, %v8261
  %v8326 = vpack.c.b16 %v8262, %v8262
  %v8327 = vpack.c.b16 %v8263, %v8263
  %v8328 = vpack.c.b16 %v8264, %v8264
  %v8329 = vpack.c.b16 %v8265, %v8265
  %v8330 = vpack.c.b16 %v8266, %v8266
  %v8331 = vpack.c.b16 %v8267, %v8267
  %v8332 = vpack.c.b16 %v8268, %v8268
  %v8333 = vpack.c.b16 %v8269, %v8269
  %v8334 = vpack.c.b16 %v8270, %v8270
  %v8335 = vpack.c.b16 %v8271, %v8271
  %v8336 = vpack.c.b16 %v8272, %v8272
  %v8337 = vpack.c.b16 %v8273, %v8273
  %v8338 = vpack.c.b16 %v8274, %v8274
  %v8339 = vpack.c.b16 %v8275, %v8275
  %v8340 = vpack.c.b16 %v8276, %v8276
  %v8341 = vpack.c.b16 %v8277, %v8277
  %v8342 = vpack.c.b16 %v8278, %v8278
  %v8343 = vpack.c.b16 %v8279, %v8279
  %v8344 = vpack.c.b16 %v8280, %v8280
  %v8345 = vpack.c.b16 %v8281, %v8281
  %v8346 = vpack.c.b16 %v8282, %v8282
  %v8347 = vpack.c.b16 %v8283, %v8283
  %v8348 = vpack.c.b16 %v8284, %v8284
  %v8349 = vpack.c.b16 %v8285, %v8285
  %v8350 = vpack.c.b16 %v8286, %v8286
  %v8351 = vpack.c.b16 %v8287, %v8287
  %v8352 = vpack.c.b16 %v8288, %v8288
  %v8353 = vpack.c.b16 %v8289, %v8289
  %v8354 = vpack.c.b16 %v8290, %v8290
  %v8355 = vpack.c.b16 %v8291, %v8291
  %v8356 = vpack.c.b16 %v8292, %v8292
  %v8357 = vpack.c.b16 %v8293, %v8293
  %v8358 = vpack.c.b16 %v8294, %v8294
  %v8359 = vpack.c.b16 %v8295, %v8295
  %v8360 = vpack.c.b16 %v8296, %v8296
  %v8361 = vpack.c.b16 %v8297, %v8297
  %v8362 = vpack.c.b16 %v8298, %v8298
  %v8363 = vpack.c.b16 %v8299, %v8299
  %8364 = vrot.lane.b32.xlu0 %v8300, 16
  %v8365 = vpop.permute.xlu0 %8364
  %8366 = vrot.lane.b32.xlu0 %v8301, 16
  %v8367 = vpop.permute.xlu0 %8366
  %8368 = vrot.lane.b32.xlu0 %v8302, 16
  %v8369 = vpop.permute.xlu0 %8368
  %8370 = vrot.lane.b32.xlu0 %v8303, 16
  %v8371 = vpop.permute.xlu0 %8370
  %8372 = vrot.lane.b32.xlu0 %v8304, 16
  %v8373 = vpop.permute.xlu0 %8372
  %8374 = vrot.lane.b32.xlu0 %v8305, 16
  %v8375 = vpop.permute.xlu0 %8374
  %8376 = vrot.lane.b32.xlu0 %v8306, 16
  %v8377 = vpop.permute.xlu0 %8376
  %8378 = vrot.lane.b32.xlu0 %v8307, 16
  %v8379 = vpop.permute.xlu0 %8378
  %8380 = vrot.lane.b32.xlu0 %v8308, 16
  %v8381 = vpop.permute.xlu0 %8380
  %8382 = vrot.lane.b32.xlu0 %v8309, 16
  %v8383 = vpop.permute.xlu0 %8382
  %8384 = vrot.lane.b32.xlu0 %v8310, 16
  %v8385 = vpop.permute.xlu0 %8384
  %8386 = vrot.lane.b32.xlu0 %v8311, 16
  %v8387 = vpop.permute.xlu0 %8386
  %8388 = vrot.lane.b32.xlu0 %v8312, 16
  %v8389 = vpop.permute.xlu0 %8388
  %8390 = vrot.lane.b32.xlu0 %v8313, 16
  %v8391 = vpop.permute.xlu0 %8390
  %8392 = vrot.lane.b32.xlu0 %v8314, 16
  %v8393 = vpop.permute.xlu0 %8392
  %8394 = vrot.lane.b32.xlu0 %v8315, 16
  %v8395 = vpop.permute.xlu0 %8394
  %8396 = vrot.lane.b32.xlu0 %v8316, 16
  %v8397 = vpop.permute.xlu0 %8396
  %8398 = vrot.lane.b32.xlu0 %v8317, 16
  %v8399 = vpop.permute.xlu0 %8398
  %8400 = vrot.lane.b32.xlu0 %v8318, 16
  %v8401 = vpop.permute.xlu0 %8400
  %8402 = vrot.lane.b32.xlu0 %v8319, 16
  %v8403 = vpop.permute.xlu0 %8402
  %8404 = vrot.lane.b32.xlu0 %v8320, 16
  %v8405 = vpop.permute.xlu0 %8404
  %8406 = vrot.lane.b32.xlu0 %v8321, 16
  %v8407 = vpop.permute.xlu0 %8406
  %8408 = vrot.lane.b32.xlu0 %v8322, 16
  %v8409 = vpop.permute.xlu0 %8408
  %8410 = vrot.lane.b32.xlu0 %v8323, 16
  %v8411 = vpop.permute.xlu0 %8410
  %8412 = vrot.lane.b32.xlu0 %v8324, 16
  %v8413 = vpop.permute.xlu0 %8412
  %8414 = vrot.lane.b32.xlu0 %v8325, 16
  %v8415 = vpop.permute.xlu0 %8414
  %8416 = vrot.lane.b32.xlu0 %v8326, 16
  %v8417 = vpop.permute.xlu0 %8416
  %8418 = vrot.lane.b32.xlu0 %v8327, 16
  %v8419 = vpop.permute.xlu0 %8418
  %8420 = vrot.lane.b32.xlu0 %v8328, 16
  %v8421 = vpop.permute.xlu0 %8420
  %8422 = vrot.lane.b32.xlu0 %v8329, 16
  %v8423 = vpop.permute.xlu0 %8422
  %8424 = vrot.lane.b32.xlu0 %v8330, 16
  %v8425 = vpop.permute.xlu0 %8424
  %8426 = vrot.lane.b32.xlu0 %v8331, 16
  %v8427 = vpop.permute.xlu0 %8426
  %8428 = vrot.lane.b32.xlu0 %v8332, 16
  %v8429 = vpop.permute.xlu0 %8428
  %8430 = vrot.lane.b32.xlu0 %v8333, 16
  %v8431 = vpop.permute.xlu0 %8430
  %8432 = vrot.lane.b32.xlu0 %v8334, 16
  %v8433 = vpop.permute.xlu0 %8432
  %8434 = vrot.lane.b32.xlu0 %v8335, 16
  %v8435 = vpop.permute.xlu0 %8434
  %8436 = vrot.lane.b32.xlu0 %v8336, 16
  %v8437 = vpop.permute.xlu0 %8436
  %8438 = vrot.lane.b32.xlu0 %v8337, 16
  %v8439 = vpop.permute.xlu0 %8438
  %8440 = vrot.lane.b32.xlu0 %v8338, 16
  %v8441 = vpop.permute.xlu0 %8440
  %8442 = vrot.lane.b32.xlu0 %v8339, 16
  %v8443 = vpop.permute.xlu0 %8442
  %8444 = vrot.lane.b32.xlu0 %v8340, 16
  %v8445 = vpop.permute.xlu0 %8444
  %8446 = vrot.lane.b32.xlu0 %v8341, 16
  %v8447 = vpop.permute.xlu0 %8446
  %8448 = vrot.lane.b32.xlu0 %v8342, 16
  %v8449 = vpop.permute.xlu0 %8448
  %8450 = vrot.lane.b32.xlu0 %v8343, 16
  %v8451 = vpop.permute.xlu0 %8450
  %8452 = vrot.lane.b32.xlu0 %v8344, 16
  %v8453 = vpop.permute.xlu0 %8452
  %8454 = vrot.lane.b32.xlu0 %v8345, 16
  %v8455 = vpop.permute.xlu0 %8454
  %8456 = vrot.lane.b32.xlu0 %v8346, 16
  %v8457 = vpop.permute.xlu0 %8456
  %8458 = vrot.lane.b32.xlu0 %v8347, 16
  %v8459 = vpop.permute.xlu0 %8458
  %8460 = vrot.lane.b32.xlu0 %v8348, 16
  %v8461 = vpop.permute.xlu0 %8460
  %8462 = vrot.lane.b32.xlu0 %v8349, 16
  %v8463 = vpop.permute.xlu0 %8462
  %8464 = vrot.lane.b32.xlu0 %v8350, 16
  %v8465 = vpop.permute.xlu0 %8464
  %8466 = vrot.lane.b32.xlu0 %v8351, 16
  %v8467 = vpop.permute.xlu0 %8466
  %8468 = vrot.lane.b32.xlu0 %v8352, 16
  %v8469 = vpop.permute.xlu0 %8468
  %8470 = vrot.lane.b32.xlu0 %v8353, 16
  %v8471 = vpop.permute.xlu0 %8470
  %8472 = vrot.lane.b32.xlu0 %v8354, 16
  %v8473 = vpop.permute.xlu0 %8472
  %8474 = vrot.lane.b32.xlu0 %v8355, 16
  %v8475 = vpop.permute.xlu0 %8474
  %8476 = vrot.lane.b32.xlu0 %v8356, 16
  %v8477 = vpop.permute.xlu0 %8476
  %8478 = vrot.lane.b32.xlu0 %v8357, 16
  %v8479 = vpop.permute.xlu0 %8478
  %8480 = vrot.lane.b32.xlu0 %v8358, 16
  %v8481 = vpop.permute.xlu0 %8480
  %8482 = vrot.lane.b32.xlu0 %v8359, 16
  %v8483 = vpop.permute.xlu0 %8482
  %8484 = vrot.lane.b32.xlu0 %v8360, 16
  %v8485 = vpop.permute.xlu0 %8484
  %8486 = vrot.lane.b32.xlu0 %v8361, 16
  %v8487 = vpop.permute.xlu0 %8486
  %8488 = vrot.lane.b32.xlu0 %v8362, 16
  %v8489 = vpop.permute.xlu0 %8488
  %8490 = vrot.lane.b32.xlu0 %v8363, 16
  %v8491 = vpop.permute.xlu0 %8490
  %8556 = vst.msk [vmem:[#allocation5] sm:$0xf] %vm2765, %v8365
  %8557 = vst.msk [vmem:[#allocation5 + $0x4] sm:$0xf] %vm2765, %v8367
  %8558 = vst.msk [vmem:[#allocation5 + $0x8] sm:$0xf] %vm2765, %v8369
  %8559 = vst.msk [vmem:[#allocation5 + $0xc] sm:$0xf] %vm2765, %v8371
  %8560 = vst.msk [vmem:[#allocation5 + $0x10] sm:$0xf] %vm2765, %v8373
  %8561 = vst.msk [vmem:[#allocation5 + $0x14] sm:$0xf] %vm2765, %v8375
  %8562 = vst.msk [vmem:[#allocation5 + $0x18] sm:$0xf] %vm2765, %v8377
  %8563 = vst.msk [vmem:[#allocation5 + $0x1c] sm:$0xf] %vm2765, %v8379
  %8564 = vst.msk [vmem:[#allocation5 + $0x20] sm:$0xf] %vm2765, %v8381
  %8565 = vst.msk [vmem:[#allocation5 + $0x24] sm:$0xf] %vm2765, %v8383
  %8566 = vst.msk [vmem:[#allocation5 + $0x28] sm:$0xf] %vm2765, %v8385
  %8567 = vst.msk [vmem:[#allocation5 + $0x2c] sm:$0xf] %vm2765, %v8387
  %8568 = vst.msk [vmem:[#allocation5 + $0x30] sm:$0xf] %vm2765, %v8389
  %8569 = vst.msk [vmem:[#allocation5 + $0x34] sm:$0xf] %vm2765, %v8391
  %8570 = vst.msk [vmem:[#allocation5 + $0x38] sm:$0xf] %vm2765, %v8393
  %8571 = vst.msk [vmem:[#allocation5 + $0x3c] sm:$0xf] %vm2765, %v8395
  %8572 = vst.msk [vmem:[#allocation5 + $0x40] sm:$0xf] %vm2765, %v8397
  %8573 = vst.msk [vmem:[#allocation5 + $0x44] sm:$0xf] %vm2765, %v8399
  %8574 = vst.msk [vmem:[#allocation5 + $0x48] sm:$0xf] %vm2765, %v8401
  %8575 = vst.msk [vmem:[#allocation5 + $0x4c] sm:$0xf] %vm2765, %v8403
  %8576 = vst.msk [vmem:[#allocation5 + $0x50] sm:$0xf] %vm2765, %v8405
  %8577 = vst.msk [vmem:[#allocation5 + $0x54] sm:$0xf] %vm2765, %v8407
  %8578 = vst.msk [vmem:[#allocation5 + $0x58] sm:$0xf] %vm2765, %v8409
  %8579 = vst.msk [vmem:[#allocation5 + $0x5c] sm:$0xf] %vm2765, %v8411
  %8580 = vst.msk [vmem:[#allocation5 + $0x60] sm:$0xf] %vm2765, %v8413
  %8581 = vst.msk [vmem:[#allocation5 + $0x64] sm:$0xf] %vm2765, %v8415
  %8582 = vst.msk [vmem:[#allocation5 + $0x68] sm:$0xf] %vm2765, %v8417
  %8583 = vst.msk [vmem:[#allocation5 + $0x6c] sm:$0xf] %vm2765, %v8419
  %8584 = vst.msk [vmem:[#allocation5 + $0x70] sm:$0xf] %vm2765, %v8421
  %8585 = vst.msk [vmem:[#allocation5 + $0x74] sm:$0xf] %vm2765, %v8423
  %8586 = vst.msk [vmem:[#allocation5 + $0x78] sm:$0xf] %vm2765, %v8425
  %8587 = vst.msk [vmem:[#allocation5 + $0x7c] sm:$0xf] %vm2765, %v8427
  %8588 = vst.msk [vmem:[#allocation5 + $0x80] sm:$0xf] %vm2765, %v8429
  %8589 = vst.msk [vmem:[#allocation5 + $0x84] sm:$0xf] %vm2765, %v8431
  %8590 = vst.msk [vmem:[#allocation5 + $0x88] sm:$0xf] %vm2765, %v8433
  %8591 = vst.msk [vmem:[#allocation5 + $0x8c] sm:$0xf] %vm2765, %v8435
  %8592 = vst.msk [vmem:[#allocation5 + $0x90] sm:$0xf] %vm2765, %v8437
  %8593 = vst.msk [vmem:[#allocation5 + $0x94] sm:$0xf] %vm2765, %v8439
  %8594 = vst.msk [vmem:[#allocation5 + $0x98] sm:$0xf] %vm2765, %v8441
  %8595 = vst.msk [vmem:[#allocation5 + $0x9c] sm:$0xf] %vm2765, %v8443
  %8596 = vst.msk [vmem:[#allocation5 + $0xa0] sm:$0xf] %vm2765, %v8445
  %8597 = vst.msk [vmem:[#allocation5 + $0xa4] sm:$0xf] %vm2765, %v8447
  %8598 = vst.msk [vmem:[#allocation5 + $0xa8] sm:$0xf] %vm2765, %v8449
  %8599 = vst.msk [vmem:[#allocation5 + $0xac] sm:$0xf] %vm2765, %v8451
  %8600 = vst.msk [vmem:[#allocation5 + $0xb0] sm:$0xf] %vm2765, %v8453
  %8601 = vst.msk [vmem:[#allocation5 + $0xb4] sm:$0xf] %vm2765, %v8455
  %8602 = vst.msk [vmem:[#allocation5 + $0xb8] sm:$0xf] %vm2765, %v8457
  %8603 = vst.msk [vmem:[#allocation5 + $0xbc] sm:$0xf] %vm2765, %v8459
  %8604 = vst.msk [vmem:[#allocation5 + $0xc0] sm:$0xf] %vm2765, %v8461
  %8605 = vst.msk [vmem:[#allocation5 + $0xc4] sm:$0xf] %vm2765, %v8463
  %8606 = vst.msk [vmem:[#allocation5 + $0xc8] sm:$0xf] %vm2765, %v8465
  %8607 = vst.msk [vmem:[#allocation5 + $0xcc] sm:$0xf] %vm2765, %v8467
  %8608 = vst.msk [vmem:[#allocation5 + $0xd0] sm:$0xf] %vm2765, %v8469
  %8609 = vst.msk [vmem:[#allocation5 + $0xd4] sm:$0xf] %vm2765, %v8471
  %8610 = vst.msk [vmem:[#allocation5 + $0xd8] sm:$0xf] %vm2765, %v8473
  %8611 = vst.msk [vmem:[#allocation5 + $0xdc] sm:$0xf] %vm2765, %v8475
  %8612 = vst.msk [vmem:[#allocation5 + $0xe0] sm:$0xf] %vm2765, %v8477
  %8613 = vst.msk [vmem:[#allocation5 + $0xe4] sm:$0xf] %vm2765, %v8479
  %8614 = vst.msk [vmem:[#allocation5 + $0xe8] sm:$0xf] %vm2765, %v8481
  %8615 = vst.msk [vmem:[#allocation5 + $0xec] sm:$0xf] %vm2765, %v8483
  %8616 = vst.msk [vmem:[#allocation5 + $0xf0] sm:$0xf] %vm2765, %v8485
  %8617 = vst.msk [vmem:[#allocation5 + $0xf4] sm:$0xf] %vm2765, %v8487
  %8618 = vst.msk [vmem:[#allocation5 + $0xf8] sm:$0xf] %vm2765, %v8489
  %8619 = vst.msk [vmem:[#allocation5 + $0xfc] sm:$0xf] %vm2765, %v8491
  %v8620 = vld [vmem:[%s6123 + $0x2] sm:$0xff]
  %v8621 = vld [vmem:[%s6123 + $0xa] sm:$0xff]
  %v8622 = vld [vmem:[%s6123 + $0x1a] sm:$0xff]
  %v8623 = vld [vmem:[%s6123 + $0x22] sm:$0xff]
  %v8624 = vld [vmem:[%s6123 + $0x32] sm:$0xff]
  %v8625 = vld [vmem:[%s6123 + $0x3a] sm:$0xff]
  %v8626 = vld [vmem:[%s6123 + $0x4a] sm:$0xff]
  %v8627 = vld [vmem:[%s6123 + $0x52] sm:$0xff]
  %v8628 = vld [vmem:[%s6123 + $0x62] sm:$0xff]
  %v8629 = vld [vmem:[%s6123 + $0x6a] sm:$0xff]
  %v8630 = vld [vmem:[%s6123 + $0x7a] sm:$0xff]
  %v8631 = vld [vmem:[%s6123 + $0x82] sm:$0xff]
  %v8632 = vld [vmem:[%s6123 + $0x92] sm:$0xff]
  %v8633 = vld [vmem:[%s6123 + $0x9a] sm:$0xff]
  %v8634 = vld [vmem:[%s6123 + $0xaa] sm:$0xff]
  %v8635 = vld [vmem:[%s6123 + $0xb2] sm:$0xff]
  %v8636 = vld [vmem:[%s6123 + $0xc2] sm:$0xff]
  %v8637 = vld [vmem:[%s6123 + $0xca] sm:$0xff]
  %v8638 = vld [vmem:[%s6123 + $0xda] sm:$0xff]
  %v8639 = vld [vmem:[%s6123 + $0xe2] sm:$0xff]
  %v8640 = vld [vmem:[%s6123 + $0xf2] sm:$0xff]
  %v8641 = vld [vmem:[%s6123 + $0xfa] sm:$0xff]
  %v8642 = vld [vmem:[%s6123 + $0x10a] sm:$0xff]
  %v8643 = vld [vmem:[%s6123 + $0x112] sm:$0xff]
  %v8644 = vld [vmem:[%s6123 + $0x122] sm:$0xff]
  %v8645 = vld [vmem:[%s6123 + $0x12a] sm:$0xff]
  %v8646 = vld [vmem:[%s6123 + $0x13a] sm:$0xff]
  %v8647 = vld [vmem:[%s6123 + $0x142] sm:$0xff]
  %v8648 = vld [vmem:[%s6123 + $0x152] sm:$0xff]
  %v8649 = vld [vmem:[%s6123 + $0x15a] sm:$0xff]
  %v8650 = vld [vmem:[%s6123 + $0x16a] sm:$0xff]
  %v8651 = vld [vmem:[%s6123 + $0x172] sm:$0xff]
  %v8652 = vld [vmem:[%s6123 + $0x1b2] sm:$0xff]
  %v8653 = vld [vmem:[%s6123 + $0x1ba] sm:$0xff]
  %v8654 = vld [vmem:[%s6123 + $0x1ca] sm:$0xff]
  %v8655 = vld [vmem:[%s6123 + $0x1d2] sm:$0xff]
  %v8656 = vld [vmem:[%s6123 + $0x1e2] sm:$0xff]
  %v8657 = vld [vmem:[%s6123 + $0x1ea] sm:$0xff]
  %v8658 = vld [vmem:[%s6123 + $0x1fa] sm:$0xff]
  %v8659 = vld [vmem:[%s6123 + $0x202] sm:$0xff]
  %v8660 = vld [vmem:[%s6123 + $0x212] sm:$0xff]
  %v8661 = vld [vmem:[%s6123 + $0x21a] sm:$0xff]
  %v8662 = vld [vmem:[%s6123 + $0x22a] sm:$0xff]
  %v8663 = vld [vmem:[%s6123 + $0x232] sm:$0xff]
  %v8664 = vld [vmem:[%s6123 + $0x242] sm:$0xff]
  %v8665 = vld [vmem:[%s6123 + $0x24a] sm:$0xff]
  %v8666 = vld [vmem:[%s6123 + $0x25a] sm:$0xff]
  %v8667 = vld [vmem:[%s6123 + $0x262] sm:$0xff]
  %v8668 = vld [vmem:[%s6123 + $0x272] sm:$0xff]
  %v8669 = vld [vmem:[%s6123 + $0x27a] sm:$0xff]
  %v8670 = vld [vmem:[%s6123 + $0x28a] sm:$0xff]
  %v8671 = vld [vmem:[%s6123 + $0x292] sm:$0xff]
  %v8672 = vld [vmem:[%s6123 + $0x2a2] sm:$0xff]
  %v8673 = vld [vmem:[%s6123 + $0x2aa] sm:$0xff]
  %v8674 = vld [vmem:[%s6123 + $0x2ba] sm:$0xff]
  %v8675 = vld [vmem:[%s6123 + $0x2c2] sm:$0xff]
  %v8676 = vld [vmem:[%s6123 + $0x2d2] sm:$0xff]
  %v8677 = vld [vmem:[%s6123 + $0x2da] sm:$0xff]
  %v8678 = vld [vmem:[%s6123 + $0x2ea] sm:$0xff]
  %v8679 = vld [vmem:[%s6123 + $0x2f2] sm:$0xff]
  %v8680 = vld [vmem:[%s6123 + $0x302] sm:$0xff]
  %v8681 = vld [vmem:[%s6123 + $0x30a] sm:$0xff]
  %v8682 = vld [vmem:[%s6123 + $0x31a] sm:$0xff]
  %v8683 = vld [vmem:[%s6123 + $0x322] sm:$0xff]
  %v8684 = vpack.c.bf16 %v8621, %v8620
  %v8685 = vpack.c.bf16 %v8623, %v8622
  %v8686 = vpack.c.bf16 %v8625, %v8624
  %v8687 = vpack.c.bf16 %v8627, %v8626
  %v8688 = vpack.c.bf16 %v8629, %v8628
  %v8689 = vpack.c.bf16 %v8631, %v8630
  %v8690 = vpack.c.bf16 %v8633, %v8632
  %v8691 = vpack.c.bf16 %v8635, %v8634
  %v8692 = vpack.c.bf16 %v8637, %v8636
  %v8693 = vpack.c.bf16 %v8639, %v8638
  %v8694 = vpack.c.bf16 %v8641, %v8640
  %v8695 = vpack.c.bf16 %v8643, %v8642
  %v8696 = vpack.c.bf16 %v8645, %v8644
  %v8697 = vpack.c.bf16 %v8647, %v8646
  %v8698 = vpack.c.bf16 %v8649, %v8648
  %v8699 = vpack.c.bf16 %v8651, %v8650
  %v8700 = vpack.c.bf16 %v8653, %v8652
  %v8701 = vpack.c.bf16 %v8655, %v8654
  %v8702 = vpack.c.bf16 %v8657, %v8656
  %v8703 = vpack.c.bf16 %v8659, %v8658
  %v8704 = vpack.c.bf16 %v8661, %v8660
  %v8705 = vpack.c.bf16 %v8663, %v8662
  %v8706 = vpack.c.bf16 %v8665, %v8664
  %v8707 = vpack.c.bf16 %v8667, %v8666
  %v8708 = vpack.c.bf16 %v8669, %v8668
  %v8709 = vpack.c.bf16 %v8671, %v8670
  %v8710 = vpack.c.bf16 %v8673, %v8672
  %v8711 = vpack.c.bf16 %v8675, %v8674
  %v8712 = vpack.c.bf16 %v8677, %v8676
  %v8713 = vpack.c.bf16 %v8679, %v8678
  %v8714 = vpack.c.bf16 %v8681, %v8680
  %v8715 = vpack.c.bf16 %v8683, %v8682
  %v8748 = vunpack.c.l.b16 %v8684
  %v8749 = vunpack.c.h.b16 %v8684
  %v8750 = vunpack.c.l.b16 %v8685
  %v8751 = vunpack.c.h.b16 %v8685
  %v8752 = vunpack.c.l.b16 %v8686
  %v8753 = vunpack.c.h.b16 %v8686
  %v8754 = vunpack.c.l.b16 %v8687
  %v8755 = vunpack.c.h.b16 %v8687
  %v8756 = vunpack.c.l.b16 %v8688
  %v8757 = vunpack.c.h.b16 %v8688
  %v8758 = vunpack.c.l.b16 %v8689
  %v8759 = vunpack.c.h.b16 %v8689
  %v8760 = vunpack.c.l.b16 %v8690
  %v8761 = vunpack.c.h.b16 %v8690
  %v8762 = vunpack.c.l.b16 %v8691
  %v8763 = vunpack.c.h.b16 %v8691
  %v8764 = vunpack.c.l.b16 %v8692
  %v8765 = vunpack.c.h.b16 %v8692
  %v8766 = vunpack.c.l.b16 %v8693
  %v8767 = vunpack.c.h.b16 %v8693
  %v8768 = vunpack.c.l.b16 %v8694
  %v8769 = vunpack.c.h.b16 %v8694
  %v8770 = vunpack.c.l.b16 %v8695
  %v8771 = vunpack.c.h.b16 %v8695
  %v8772 = vunpack.c.l.b16 %v8696
  %v8773 = vunpack.c.h.b16 %v8696
  %v8774 = vunpack.c.l.b16 %v8697
  %v8775 = vunpack.c.h.b16 %v8697
  %v8776 = vunpack.c.l.b16 %v8698
  %v8777 = vunpack.c.h.b16 %v8698
  %v8778 = vunpack.c.l.b16 %v8699
  %v8779 = vunpack.c.h.b16 %v8699
  %v8780 = vunpack.c.l.b16 %v8700
  %v8781 = vunpack.c.h.b16 %v8700
  %v8782 = vunpack.c.l.b16 %v8701
  %v8783 = vunpack.c.h.b16 %v8701
  %v8784 = vunpack.c.l.b16 %v8702
  %v8785 = vunpack.c.h.b16 %v8702
  %v8786 = vunpack.c.l.b16 %v8703
  %v8787 = vunpack.c.h.b16 %v8703
  %v8788 = vunpack.c.l.b16 %v8704
  %v8789 = vunpack.c.h.b16 %v8704
  %v8790 = vunpack.c.l.b16 %v8705
  %v8791 = vunpack.c.h.b16 %v8705
  %v8792 = vunpack.c.l.b16 %v8706
  %v8793 = vunpack.c.h.b16 %v8706
  %v8794 = vunpack.c.l.b16 %v8707
  %v8795 = vunpack.c.h.b16 %v8707
  %v8796 = vunpack.c.l.b16 %v8708
  %v8797 = vunpack.c.h.b16 %v8708
  %v8798 = vunpack.c.l.b16 %v8709
  %v8799 = vunpack.c.h.b16 %v8709
  %v8800 = vunpack.c.l.b16 %v8710
  %v8801 = vunpack.c.h.b16 %v8710
  %v8802 = vunpack.c.l.b16 %v8711
  %v8803 = vunpack.c.h.b16 %v8711
  %v8804 = vunpack.c.l.b16 %v8712
  %v8805 = vunpack.c.h.b16 %v8712
  %v8806 = vunpack.c.l.b16 %v8713
  %v8807 = vunpack.c.h.b16 %v8713
  %v8808 = vunpack.c.l.b16 %v8714
  %v8809 = vunpack.c.h.b16 %v8714
  %v8810 = vunpack.c.l.b16 %v8715
  %v8811 = vunpack.c.h.b16 %v8715
  %v8812 = vpack.c.b16 %v8748, %v8748
  %v8813 = vpack.c.b16 %v8749, %v8749
  %v8814 = vpack.c.b16 %v8750, %v8750
  %v8815 = vpack.c.b16 %v8751, %v8751
  %v8816 = vpack.c.b16 %v8752, %v8752
  %v8817 = vpack.c.b16 %v8753, %v8753
  %v8818 = vpack.c.b16 %v8754, %v8754
  %v8819 = vpack.c.b16 %v8755, %v8755
  %v8820 = vpack.c.b16 %v8756, %v8756
  %v8821 = vpack.c.b16 %v8757, %v8757
  %v8822 = vpack.c.b16 %v8758, %v8758
  %v8823 = vpack.c.b16 %v8759, %v8759
  %v8824 = vpack.c.b16 %v8760, %v8760
  %v8825 = vpack.c.b16 %v8761, %v8761
  %v8826 = vpack.c.b16 %v8762, %v8762
  %v8827 = vpack.c.b16 %v8763, %v8763
  %v8828 = vpack.c.b16 %v8764, %v8764
  %v8829 = vpack.c.b16 %v8765, %v8765
  %v8830 = vpack.c.b16 %v8766, %v8766
  %v8831 = vpack.c.b16 %v8767, %v8767
  %v8832 = vpack.c.b16 %v8768, %v8768
  %v8833 = vpack.c.b16 %v8769, %v8769
  %v8834 = vpack.c.b16 %v8770, %v8770
  %v8835 = vpack.c.b16 %v8771, %v8771
  %v8836 = vpack.c.b16 %v8772, %v8772
  %v8837 = vpack.c.b16 %v8773, %v8773
  %v8838 = vpack.c.b16 %v8774, %v8774
  %v8839 = vpack.c.b16 %v8775, %v8775
  %v8840 = vpack.c.b16 %v8776, %v8776
  %v8841 = vpack.c.b16 %v8777, %v8777
  %v8842 = vpack.c.b16 %v8778, %v8778
  %v8843 = vpack.c.b16 %v8779, %v8779
  %v8844 = vpack.c.b16 %v8780, %v8780
  %v8845 = vpack.c.b16 %v8781, %v8781
  %v8846 = vpack.c.b16 %v8782, %v8782
  %v8847 = vpack.c.b16 %v8783, %v8783
  %v8848 = vpack.c.b16 %v8784, %v8784
  %v8849 = vpack.c.b16 %v8785, %v8785
  %v8850 = vpack.c.b16 %v8786, %v8786
  %v8851 = vpack.c.b16 %v8787, %v8787
  %v8852 = vpack.c.b16 %v8788, %v8788
  %v8853 = vpack.c.b16 %v8789, %v8789
  %v8854 = vpack.c.b16 %v8790, %v8790
  %v8855 = vpack.c.b16 %v8791, %v8791
  %v8856 = vpack.c.b16 %v8792, %v8792
  %v8857 = vpack.c.b16 %v8793, %v8793
  %v8858 = vpack.c.b16 %v8794, %v8794
  %v8859 = vpack.c.b16 %v8795, %v8795
  %v8860 = vpack.c.b16 %v8796, %v8796
  %v8861 = vpack.c.b16 %v8797, %v8797
  %v8862 = vpack.c.b16 %v8798, %v8798
  %v8863 = vpack.c.b16 %v8799, %v8799
  %v8864 = vpack.c.b16 %v8800, %v8800
  %v8865 = vpack.c.b16 %v8801, %v8801
  %v8866 = vpack.c.b16 %v8802, %v8802
  %v8867 = vpack.c.b16 %v8803, %v8803
  %v8868 = vpack.c.b16 %v8804, %v8804
  %v8869 = vpack.c.b16 %v8805, %v8805
  %v8870 = vpack.c.b16 %v8806, %v8806
  %v8871 = vpack.c.b16 %v8807, %v8807
  %v8872 = vpack.c.b16 %v8808, %v8808
  %v8873 = vpack.c.b16 %v8809, %v8809
  %v8874 = vpack.c.b16 %v8810, %v8810
  %v8875 = vpack.c.b16 %v8811, %v8811
  %8876 = vrot.lane.b32.xlu0 %v8812, 20
  %v8877 = vpop.permute.xlu0 %8876
  %8878 = vrot.lane.b32.xlu0 %v8813, 20
  %v8879 = vpop.permute.xlu0 %8878
  %8880 = vrot.lane.b32.xlu0 %v8814, 20
  %v8881 = vpop.permute.xlu0 %8880
  %8882 = vrot.lane.b32.xlu0 %v8815, 20
  %v8883 = vpop.permute.xlu0 %8882
  %8884 = vrot.lane.b32.xlu0 %v8816, 20
  %v8885 = vpop.permute.xlu0 %8884
  %8886 = vrot.lane.b32.xlu0 %v8817, 20
  %v8887 = vpop.permute.xlu0 %8886
  %8888 = vrot.lane.b32.xlu0 %v8818, 20
  %v8889 = vpop.permute.xlu0 %8888
  %8890 = vrot.lane.b32.xlu0 %v8819, 20
  %v8891 = vpop.permute.xlu0 %8890
  %8892 = vrot.lane.b32.xlu0 %v8820, 20
  %v8893 = vpop.permute.xlu0 %8892
  %8894 = vrot.lane.b32.xlu0 %v8821, 20
  %v8895 = vpop.permute.xlu0 %8894
  %8896 = vrot.lane.b32.xlu0 %v8822, 20
  %v8897 = vpop.permute.xlu0 %8896
  %8898 = vrot.lane.b32.xlu0 %v8823, 20
  %v8899 = vpop.permute.xlu0 %8898
  %8900 = vrot.lane.b32.xlu0 %v8824, 20
  %v8901 = vpop.permute.xlu0 %8900
  %8902 = vrot.lane.b32.xlu0 %v8825, 20
  %v8903 = vpop.permute.xlu0 %8902
  %8904 = vrot.lane.b32.xlu0 %v8826, 20
  %v8905 = vpop.permute.xlu0 %8904
  %8906 = vrot.lane.b32.xlu0 %v8827, 20
  %v8907 = vpop.permute.xlu0 %8906
  %8908 = vrot.lane.b32.xlu0 %v8828, 20
  %v8909 = vpop.permute.xlu0 %8908
  %8910 = vrot.lane.b32.xlu0 %v8829, 20
  %v8911 = vpop.permute.xlu0 %8910
  %8912 = vrot.lane.b32.xlu0 %v8830, 20
  %v8913 = vpop.permute.xlu0 %8912
  %8914 = vrot.lane.b32.xlu0 %v8831, 20
  %v8915 = vpop.permute.xlu0 %8914
  %8916 = vrot.lane.b32.xlu0 %v8832, 20
  %v8917 = vpop.permute.xlu0 %8916
  %8918 = vrot.lane.b32.xlu0 %v8833, 20
  %v8919 = vpop.permute.xlu0 %8918
  %8920 = vrot.lane.b32.xlu0 %v8834, 20
  %v8921 = vpop.permute.xlu0 %8920
  %8922 = vrot.lane.b32.xlu0 %v8835, 20
  %v8923 = vpop.permute.xlu0 %8922
  %8924 = vrot.lane.b32.xlu0 %v8836, 20
  %v8925 = vpop.permute.xlu0 %8924
  %8926 = vrot.lane.b32.xlu0 %v8837, 20
  %v8927 = vpop.permute.xlu0 %8926
  %8928 = vrot.lane.b32.xlu0 %v8838, 20
  %v8929 = vpop.permute.xlu0 %8928
  %8930 = vrot.lane.b32.xlu0 %v8839, 20
  %v8931 = vpop.permute.xlu0 %8930
  %8932 = vrot.lane.b32.xlu0 %v8840, 20
  %v8933 = vpop.permute.xlu0 %8932
  %8934 = vrot.lane.b32.xlu0 %v8841, 20
  %v8935 = vpop.permute.xlu0 %8934
  %8936 = vrot.lane.b32.xlu0 %v8842, 20
  %v8937 = vpop.permute.xlu0 %8936
  %8938 = vrot.lane.b32.xlu0 %v8843, 20
  %v8939 = vpop.permute.xlu0 %8938
  %8940 = vrot.lane.b32.xlu0 %v8844, 20
  %v8941 = vpop.permute.xlu0 %8940
  %8942 = vrot.lane.b32.xlu0 %v8845, 20
  %v8943 = vpop.permute.xlu0 %8942
  %8944 = vrot.lane.b32.xlu0 %v8846, 20
  %v8945 = vpop.permute.xlu0 %8944
  %8946 = vrot.lane.b32.xlu0 %v8847, 20
  %v8947 = vpop.permute.xlu0 %8946
  %8948 = vrot.lane.b32.xlu0 %v8848, 20
  %v8949 = vpop.permute.xlu0 %8948
  %8950 = vrot.lane.b32.xlu0 %v8849, 20
  %v8951 = vpop.permute.xlu0 %8950
  %8952 = vrot.lane.b32.xlu0 %v8850, 20
  %v8953 = vpop.permute.xlu0 %8952
  %8954 = vrot.lane.b32.xlu0 %v8851, 20
  %v8955 = vpop.permute.xlu0 %8954
  %8956 = vrot.lane.b32.xlu0 %v8852, 20
  %v8957 = vpop.permute.xlu0 %8956
  %8958 = vrot.lane.b32.xlu0 %v8853, 20
  %v8959 = vpop.permute.xlu0 %8958
  %8960 = vrot.lane.b32.xlu0 %v8854, 20
  %v8961 = vpop.permute.xlu0 %8960
  %8962 = vrot.lane.b32.xlu0 %v8855, 20
  %v8963 = vpop.permute.xlu0 %8962
  %8964 = vrot.lane.b32.xlu0 %v8856, 20
  %v8965 = vpop.permute.xlu0 %8964
  %8966 = vrot.lane.b32.xlu0 %v8857, 20
  %v8967 = vpop.permute.xlu0 %8966
  %8968 = vrot.lane.b32.xlu0 %v8858, 20
  %v8969 = vpop.permute.xlu0 %8968
  %8970 = vrot.lane.b32.xlu0 %v8859, 20
  %v8971 = vpop.permute.xlu0 %8970
  %8972 = vrot.lane.b32.xlu0 %v8860, 20
  %v8973 = vpop.permute.xlu0 %8972
  %8974 = vrot.lane.b32.xlu0 %v8861, 20
  %v8975 = vpop.permute.xlu0 %8974
  %8976 = vrot.lane.b32.xlu0 %v8862, 20
  %v8977 = vpop.permute.xlu0 %8976
  %8978 = vrot.lane.b32.xlu0 %v8863, 20
  %v8979 = vpop.permute.xlu0 %8978
  %8980 = vrot.lane.b32.xlu0 %v8864, 20
  %v8981 = vpop.permute.xlu0 %8980
  %8982 = vrot.lane.b32.xlu0 %v8865, 20
  %v8983 = vpop.permute.xlu0 %8982
  %8984 = vrot.lane.b32.xlu0 %v8866, 20
  %v8985 = vpop.permute.xlu0 %8984
  %8986 = vrot.lane.b32.xlu0 %v8867, 20
  %v8987 = vpop.permute.xlu0 %8986
  %8988 = vrot.lane.b32.xlu0 %v8868, 20
  %v8989 = vpop.permute.xlu0 %8988
  %8990 = vrot.lane.b32.xlu0 %v8869, 20
  %v8991 = vpop.permute.xlu0 %8990
  %8992 = vrot.lane.b32.xlu0 %v8870, 20
  %v8993 = vpop.permute.xlu0 %8992
  %8994 = vrot.lane.b32.xlu0 %v8871, 20
  %v8995 = vpop.permute.xlu0 %8994
  %8996 = vrot.lane.b32.xlu0 %v8872, 20
  %v8997 = vpop.permute.xlu0 %8996
  %8998 = vrot.lane.b32.xlu0 %v8873, 20
  %v8999 = vpop.permute.xlu0 %8998
  %9000 = vrot.lane.b32.xlu0 %v8874, 20
  %v9001 = vpop.permute.xlu0 %9000
  %9002 = vrot.lane.b32.xlu0 %v8875, 20
  %v9003 = vpop.permute.xlu0 %9002
  %9068 = vst.msk [vmem:[#allocation5] sm:$0xf] %vm3278, %v8877
  %9069 = vst.msk [vmem:[#allocation5 + $0x4] sm:$0xf] %vm3278, %v8879
  %9070 = vst.msk [vmem:[#allocation5 + $0x8] sm:$0xf] %vm3278, %v8881
  %9071 = vst.msk [vmem:[#allocation5 + $0xc] sm:$0xf] %vm3278, %v8883
  %9072 = vst.msk [vmem:[#allocation5 + $0x10] sm:$0xf] %vm3278, %v8885
  %9073 = vst.msk [vmem:[#allocation5 + $0x14] sm:$0xf] %vm3278, %v8887
  %9074 = vst.msk [vmem:[#allocation5 + $0x18] sm:$0xf] %vm3278, %v8889
  %9075 = vst.msk [vmem:[#allocation5 + $0x1c] sm:$0xf] %vm3278, %v8891
  %9076 = vst.msk [vmem:[#allocation5 + $0x20] sm:$0xf] %vm3278, %v8893
  %9077 = vst.msk [vmem:[#allocation5 + $0x24] sm:$0xf] %vm3278, %v8895
  %9078 = vst.msk [vmem:[#allocation5 + $0x28] sm:$0xf] %vm3278, %v8897
  %9079 = vst.msk [vmem:[#allocation5 + $0x2c] sm:$0xf] %vm3278, %v8899
  %9080 = vst.msk [vmem:[#allocation5 + $0x30] sm:$0xf] %vm3278, %v8901
  %9081 = vst.msk [vmem:[#allocation5 + $0x34] sm:$0xf] %vm3278, %v8903
  %9082 = vst.msk [vmem:[#allocation5 + $0x38] sm:$0xf] %vm3278, %v8905
  %9083 = vst.msk [vmem:[#allocation5 + $0x3c] sm:$0xf] %vm3278, %v8907
  %9084 = vst.msk [vmem:[#allocation5 + $0x40] sm:$0xf] %vm3278, %v8909
  %9085 = vst.msk [vmem:[#allocation5 + $0x44] sm:$0xf] %vm3278, %v8911
  %9086 = vst.msk [vmem:[#allocation5 + $0x48] sm:$0xf] %vm3278, %v8913
  %9087 = vst.msk [vmem:[#allocation5 + $0x4c] sm:$0xf] %vm3278, %v8915
  %9088 = vst.msk [vmem:[#allocation5 + $0x50] sm:$0xf] %vm3278, %v8917
  %9089 = vst.msk [vmem:[#allocation5 + $0x54] sm:$0xf] %vm3278, %v8919
  %9090 = vst.msk [vmem:[#allocation5 + $0x58] sm:$0xf] %vm3278, %v8921
  %9091 = vst.msk [vmem:[#allocation5 + $0x5c] sm:$0xf] %vm3278, %v8923
  %9092 = vst.msk [vmem:[#allocation5 + $0x60] sm:$0xf] %vm3278, %v8925
  %9093 = vst.msk [vmem:[#allocation5 + $0x64] sm:$0xf] %vm3278, %v8927
  %9094 = vst.msk [vmem:[#allocation5 + $0x68] sm:$0xf] %vm3278, %v8929
  %9095 = vst.msk [vmem:[#allocation5 + $0x6c] sm:$0xf] %vm3278, %v8931
  %9096 = vst.msk [vmem:[#allocation5 + $0x70] sm:$0xf] %vm3278, %v8933
  %9097 = vst.msk [vmem:[#allocation5 + $0x74] sm:$0xf] %vm3278, %v8935
  %9098 = vst.msk [vmem:[#allocation5 + $0x78] sm:$0xf] %vm3278, %v8937
  %9099 = vst.msk [vmem:[#allocation5 + $0x7c] sm:$0xf] %vm3278, %v8939
  %9100 = vst.msk [vmem:[#allocation5 + $0x80] sm:$0xf] %vm3278, %v8941
  %9101 = vst.msk [vmem:[#allocation5 + $0x84] sm:$0xf] %vm3278, %v8943
  %9102 = vst.msk [vmem:[#allocation5 + $0x88] sm:$0xf] %vm3278, %v8945
  %9103 = vst.msk [vmem:[#allocation5 + $0x8c] sm:$0xf] %vm3278, %v8947
  %9104 = vst.msk [vmem:[#allocation5 + $0x90] sm:$0xf] %vm3278, %v8949
  %9105 = vst.msk [vmem:[#allocation5 + $0x94] sm:$0xf] %vm3278, %v8951
  %9106 = vst.msk [vmem:[#allocation5 + $0x98] sm:$0xf] %vm3278, %v8953
  %9107 = vst.msk [vmem:[#allocation5 + $0x9c] sm:$0xf] %vm3278, %v8955
  %9108 = vst.msk [vmem:[#allocation5 + $0xa0] sm:$0xf] %vm3278, %v8957
  %9109 = vst.msk [vmem:[#allocation5 + $0xa4] sm:$0xf] %vm3278, %v8959
  %9110 = vst.msk [vmem:[#allocation5 + $0xa8] sm:$0xf] %vm3278, %v8961
  %9111 = vst.msk [vmem:[#allocation5 + $0xac] sm:$0xf] %vm3278, %v8963
  %9112 = vst.msk [vmem:[#allocation5 + $0xb0] sm:$0xf] %vm3278, %v8965
  %9113 = vst.msk [vmem:[#allocation5 + $0xb4] sm:$0xf] %vm3278, %v8967
  %9114 = vst.msk [vmem:[#allocation5 + $0xb8] sm:$0xf] %vm3278, %v8969
  %9115 = vst.msk [vmem:[#allocation5 + $0xbc] sm:$0xf] %vm3278, %v8971
  %9116 = vst.msk [vmem:[#allocation5 + $0xc0] sm:$0xf] %vm3278, %v8973
  %9117 = vst.msk [vmem:[#allocation5 + $0xc4] sm:$0xf] %vm3278, %v8975
  %9118 = vst.msk [vmem:[#allocation5 + $0xc8] sm:$0xf] %vm3278, %v8977
  %9119 = vst.msk [vmem:[#allocation5 + $0xcc] sm:$0xf] %vm3278, %v8979
  %9120 = vst.msk [vmem:[#allocation5 + $0xd0] sm:$0xf] %vm3278, %v8981
  %9121 = vst.msk [vmem:[#allocation5 + $0xd4] sm:$0xf] %vm3278, %v8983
  %9122 = vst.msk [vmem:[#allocation5 + $0xd8] sm:$0xf] %vm3278, %v8985
  %9123 = vst.msk [vmem:[#allocation5 + $0xdc] sm:$0xf] %vm3278, %v8987
  %9124 = vst.msk [vmem:[#allocation5 + $0xe0] sm:$0xf] %vm3278, %v8989
  %9125 = vst.msk [vmem:[#allocation5 + $0xe4] sm:$0xf] %vm3278, %v8991
  %9126 = vst.msk [vmem:[#allocation5 + $0xe8] sm:$0xf] %vm3278, %v8993
  %9127 = vst.msk [vmem:[#allocation5 + $0xec] sm:$0xf] %vm3278, %v8995
  %9128 = vst.msk [vmem:[#allocation5 + $0xf0] sm:$0xf] %vm3278, %v8997
  %9129 = vst.msk [vmem:[#allocation5 + $0xf4] sm:$0xf] %vm3278, %v8999
  %9130 = vst.msk [vmem:[#allocation5 + $0xf8] sm:$0xf] %vm3278, %v9001
  %9131 = vst.msk [vmem:[#allocation5 + $0xfc] sm:$0xf] %vm3278, %v9003
  %s9132 = scalar_lea.vmem [#allocation3], 48
  %v9133 = vld [vmem:[%s9132] sm:$0xff]
  %v9134 = vld [vmem:[%s9132 + $0x8] sm:$0xff]
  %v9135 = vld [vmem:[%s9132 + $0x18] sm:$0xff]
  %v9136 = vld [vmem:[%s9132 + $0x20] sm:$0xff]
  %v9137 = vld [vmem:[%s9132 + $0x30] sm:$0xff]
  %v9138 = vld [vmem:[%s9132 + $0x38] sm:$0xff]
  %v9139 = vld [vmem:[%s9132 + $0x48] sm:$0xff]
  %v9140 = vld [vmem:[%s9132 + $0x50] sm:$0xff]
  %v9141 = vld [vmem:[%s9132 + $0x60] sm:$0xff]
  %v9142 = vld [vmem:[%s9132 + $0x68] sm:$0xff]
  %v9143 = vld [vmem:[%s9132 + $0x78] sm:$0xff]
  %v9144 = vld [vmem:[%s9132 + $0x80] sm:$0xff]
  %v9145 = vld [vmem:[%s9132 + $0x90] sm:$0xff]
  %v9146 = vld [vmem:[%s9132 + $0x98] sm:$0xff]
  %v9147 = vld [vmem:[%s9132 + $0xa8] sm:$0xff]
  %v9148 = vld [vmem:[%s9132 + $0xb0] sm:$0xff]
  %v9149 = vld [vmem:[%s9132 + $0xc0] sm:$0xff]
  %v9150 = vld [vmem:[%s9132 + $0xc8] sm:$0xff]
  %v9151 = vld [vmem:[%s9132 + $0xd8] sm:$0xff]
  %v9152 = vld [vmem:[%s9132 + $0xe0] sm:$0xff]
  %v9153 = vld [vmem:[%s9132 + $0xf0] sm:$0xff]
  %v9154 = vld [vmem:[%s9132 + $0xf8] sm:$0xff]
  %v9155 = vld [vmem:[%s9132 + $0x108] sm:$0xff]
  %v9156 = vld [vmem:[%s9132 + $0x110] sm:$0xff]
  %v9157 = vld [vmem:[%s9132 + $0x120] sm:$0xff]
  %v9158 = vld [vmem:[%s9132 + $0x128] sm:$0xff]
  %v9159 = vld [vmem:[%s9132 + $0x138] sm:$0xff]
  %v9160 = vld [vmem:[%s9132 + $0x140] sm:$0xff]
  %v9161 = vld [vmem:[%s9132 + $0x150] sm:$0xff]
  %v9162 = vld [vmem:[%s9132 + $0x158] sm:$0xff]
  %v9163 = vld [vmem:[%s9132 + $0x168] sm:$0xff]
  %v9164 = vld [vmem:[%s9132 + $0x170] sm:$0xff]
  %v9165 = vld [vmem:[%s9132 + $0x1b0] sm:$0xff]
  %v9166 = vld [vmem:[%s9132 + $0x1b8] sm:$0xff]
  %v9167 = vld [vmem:[%s9132 + $0x1c8] sm:$0xff]
  %v9168 = vld [vmem:[%s9132 + $0x1d0] sm:$0xff]
  %v9169 = vld [vmem:[%s9132 + $0x1e0] sm:$0xff]
  %v9170 = vld [vmem:[%s9132 + $0x1e8] sm:$0xff]
  %v9171 = vld [vmem:[%s9132 + $0x1f8] sm:$0xff]
  %v9172 = vld [vmem:[%s9132 + $0x200] sm:$0xff]
  %v9173 = vld [vmem:[%s9132 + $0x210] sm:$0xff]
  %v9174 = vld [vmem:[%s9132 + $0x218] sm:$0xff]
  %v9175 = vld [vmem:[%s9132 + $0x228] sm:$0xff]
  %v9176 = vld [vmem:[%s9132 + $0x230] sm:$0xff]
  %v9177 = vld [vmem:[%s9132 + $0x240] sm:$0xff]
  %v9178 = vld [vmem:[%s9132 + $0x248] sm:$0xff]
  %v9179 = vld [vmem:[%s9132 + $0x258] sm:$0xff]
  %v9180 = vld [vmem:[%s9132 + $0x260] sm:$0xff]
  %v9181 = vld [vmem:[%s9132 + $0x270] sm:$0xff]
  %v9182 = vld [vmem:[%s9132 + $0x278] sm:$0xff]
  %v9183 = vld [vmem:[%s9132 + $0x288] sm:$0xff]
  %v9184 = vld [vmem:[%s9132 + $0x290] sm:$0xff]
  %v9185 = vld [vmem:[%s9132 + $0x2a0] sm:$0xff]
  %v9186 = vld [vmem:[%s9132 + $0x2a8] sm:$0xff]
  %v9187 = vld [vmem:[%s9132 + $0x2b8] sm:$0xff]
  %v9188 = vld [vmem:[%s9132 + $0x2c0] sm:$0xff]
  %v9189 = vld [vmem:[%s9132 + $0x2d0] sm:$0xff]
  %v9190 = vld [vmem:[%s9132 + $0x2d8] sm:$0xff]
  %v9191 = vld [vmem:[%s9132 + $0x2e8] sm:$0xff]
  %v9192 = vld [vmem:[%s9132 + $0x2f0] sm:$0xff]
  %v9193 = vld [vmem:[%s9132 + $0x300] sm:$0xff]
  %v9194 = vld [vmem:[%s9132 + $0x308] sm:$0xff]
  %v9195 = vld [vmem:[%s9132 + $0x318] sm:$0xff]
  %v9196 = vld [vmem:[%s9132 + $0x320] sm:$0xff]
  %v9197 = vpack.c.bf16 %v9134, %v9133
  %v9198 = vpack.c.bf16 %v9136, %v9135
  %v9199 = vpack.c.bf16 %v9138, %v9137
  %v9200 = vpack.c.bf16 %v9140, %v9139
  %v9201 = vpack.c.bf16 %v9142, %v9141
  %v9202 = vpack.c.bf16 %v9144, %v9143
  %v9203 = vpack.c.bf16 %v9146, %v9145
  %v9204 = vpack.c.bf16 %v9148, %v9147
  %v9205 = vpack.c.bf16 %v9150, %v9149
  %v9206 = vpack.c.bf16 %v9152, %v9151
  %v9207 = vpack.c.bf16 %v9154, %v9153
  %v9208 = vpack.c.bf16 %v9156, %v9155
  %v9209 = vpack.c.bf16 %v9158, %v9157
  %v9210 = vpack.c.bf16 %v9160, %v9159
  %v9211 = vpack.c.bf16 %v9162, %v9161
  %v9212 = vpack.c.bf16 %v9164, %v9163
  %v9213 = vpack.c.bf16 %v9166, %v9165
  %v9214 = vpack.c.bf16 %v9168, %v9167
  %v9215 = vpack.c.bf16 %v9170, %v9169
  %v9216 = vpack.c.bf16 %v9172, %v9171
  %v9217 = vpack.c.bf16 %v9174, %v9173
  %v9218 = vpack.c.bf16 %v9176, %v9175
  %v9219 = vpack.c.bf16 %v9178, %v9177
  %v9220 = vpack.c.bf16 %v9180, %v9179
  %v9221 = vpack.c.bf16 %v9182, %v9181
  %v9222 = vpack.c.bf16 %v9184, %v9183
  %v9223 = vpack.c.bf16 %v9186, %v9185
  %v9224 = vpack.c.bf16 %v9188, %v9187
  %v9225 = vpack.c.bf16 %v9190, %v9189
  %v9226 = vpack.c.bf16 %v9192, %v9191
  %v9227 = vpack.c.bf16 %v9194, %v9193
  %v9228 = vpack.c.bf16 %v9196, %v9195
  %v9261 = vunpack.c.l.b16 %v9197
  %v9262 = vunpack.c.h.b16 %v9197
  %v9263 = vunpack.c.l.b16 %v9198
  %v9264 = vunpack.c.h.b16 %v9198
  %v9265 = vunpack.c.l.b16 %v9199
  %v9266 = vunpack.c.h.b16 %v9199
  %v9267 = vunpack.c.l.b16 %v9200
  %v9268 = vunpack.c.h.b16 %v9200
  %v9269 = vunpack.c.l.b16 %v9201
  %v9270 = vunpack.c.h.b16 %v9201
  %v9271 = vunpack.c.l.b16 %v9202
  %v9272 = vunpack.c.h.b16 %v9202
  %v9273 = vunpack.c.l.b16 %v9203
  %v9274 = vunpack.c.h.b16 %v9203
  %v9275 = vunpack.c.l.b16 %v9204
  %v9276 = vunpack.c.h.b16 %v9204
  %v9277 = vunpack.c.l.b16 %v9205
  %v9278 = vunpack.c.h.b16 %v9205
  %v9279 = vunpack.c.l.b16 %v9206
  %v9280 = vunpack.c.h.b16 %v9206
  %v9281 = vunpack.c.l.b16 %v9207
  %v9282 = vunpack.c.h.b16 %v9207
  %v9283 = vunpack.c.l.b16 %v9208
  %v9284 = vunpack.c.h.b16 %v9208
  %v9285 = vunpack.c.l.b16 %v9209
  %v9286 = vunpack.c.h.b16 %v9209
  %v9287 = vunpack.c.l.b16 %v9210
  %v9288 = vunpack.c.h.b16 %v9210
  %v9289 = vunpack.c.l.b16 %v9211
  %v9290 = vunpack.c.h.b16 %v9211
  %v9291 = vunpack.c.l.b16 %v9212
  %v9292 = vunpack.c.h.b16 %v9212
  %v9293 = vunpack.c.l.b16 %v9213
  %v9294 = vunpack.c.h.b16 %v9213
  %v9295 = vunpack.c.l.b16 %v9214
  %v9296 = vunpack.c.h.b16 %v9214
  %v9297 = vunpack.c.l.b16 %v9215
  %v9298 = vunpack.c.h.b16 %v9215
  %v9299 = vunpack.c.l.b16 %v9216
  %v9300 = vunpack.c.h.b16 %v9216
  %v9301 = vunpack.c.l.b16 %v9217
  %v9302 = vunpack.c.h.b16 %v9217
  %v9303 = vunpack.c.l.b16 %v9218
  %v9304 = vunpack.c.h.b16 %v9218
  %v9305 = vunpack.c.l.b16 %v9219
  %v9306 = vunpack.c.h.b16 %v9219
  %v9307 = vunpack.c.l.b16 %v9220
  %v9308 = vunpack.c.h.b16 %v9220
  %v9309 = vunpack.c.l.b16 %v9221
  %v9310 = vunpack.c.h.b16 %v9221
  %v9311 = vunpack.c.l.b16 %v9222
  %v9312 = vunpack.c.h.b16 %v9222
  %v9313 = vunpack.c.l.b16 %v9223
  %v9314 = vunpack.c.h.b16 %v9223
  %v9315 = vunpack.c.l.b16 %v9224
  %v9316 = vunpack.c.h.b16 %v9224
  %v9317 = vunpack.c.l.b16 %v9225
  %v9318 = vunpack.c.h.b16 %v9225
  %v9319 = vunpack.c.l.b16 %v9226
  %v9320 = vunpack.c.h.b16 %v9226
  %v9321 = vunpack.c.l.b16 %v9227
  %v9322 = vunpack.c.h.b16 %v9227
  %v9323 = vunpack.c.l.b16 %v9228
  %v9324 = vunpack.c.h.b16 %v9228
  %v9325 = vpack.c.b16 %v9261, %v9261
  %v9326 = vpack.c.b16 %v9262, %v9262
  %v9327 = vpack.c.b16 %v9263, %v9263
  %v9328 = vpack.c.b16 %v9264, %v9264
  %v9329 = vpack.c.b16 %v9265, %v9265
  %v9330 = vpack.c.b16 %v9266, %v9266
  %v9331 = vpack.c.b16 %v9267, %v9267
  %v9332 = vpack.c.b16 %v9268, %v9268
  %v9333 = vpack.c.b16 %v9269, %v9269
  %v9334 = vpack.c.b16 %v9270, %v9270
  %v9335 = vpack.c.b16 %v9271, %v9271
  %v9336 = vpack.c.b16 %v9272, %v9272
  %v9337 = vpack.c.b16 %v9273, %v9273
  %v9338 = vpack.c.b16 %v9274, %v9274
  %v9339 = vpack.c.b16 %v9275, %v9275
  %v9340 = vpack.c.b16 %v9276, %v9276
  %v9341 = vpack.c.b16 %v9277, %v9277
  %v9342 = vpack.c.b16 %v9278, %v9278
  %v9343 = vpack.c.b16 %v9279, %v9279
  %v9344 = vpack.c.b16 %v9280, %v9280
  %v9345 = vpack.c.b16 %v9281, %v9281
  %v9346 = vpack.c.b16 %v9282, %v9282
  %v9347 = vpack.c.b16 %v9283, %v9283
  %v9348 = vpack.c.b16 %v9284, %v9284
  %v9349 = vpack.c.b16 %v9285, %v9285
  %v9350 = vpack.c.b16 %v9286, %v9286
  %v9351 = vpack.c.b16 %v9287, %v9287
  %v9352 = vpack.c.b16 %v9288, %v9288
  %v9353 = vpack.c.b16 %v9289, %v9289
  %v9354 = vpack.c.b16 %v9290, %v9290
  %v9355 = vpack.c.b16 %v9291, %v9291
  %v9356 = vpack.c.b16 %v9292, %v9292
  %v9357 = vpack.c.b16 %v9293, %v9293
  %v9358 = vpack.c.b16 %v9294, %v9294
  %v9359 = vpack.c.b16 %v9295, %v9295
  %v9360 = vpack.c.b16 %v9296, %v9296
  %v9361 = vpack.c.b16 %v9297, %v9297
  %v9362 = vpack.c.b16 %v9298, %v9298
  %v9363 = vpack.c.b16 %v9299, %v9299
  %v9364 = vpack.c.b16 %v9300, %v9300
  %v9365 = vpack.c.b16 %v9301, %v9301
  %v9366 = vpack.c.b16 %v9302, %v9302
  %v9367 = vpack.c.b16 %v9303, %v9303
  %v9368 = vpack.c.b16 %v9304, %v9304
  %v9369 = vpack.c.b16 %v9305, %v9305
  %v9370 = vpack.c.b16 %v9306, %v9306
  %v9371 = vpack.c.b16 %v9307, %v9307
  %v9372 = vpack.c.b16 %v9308, %v9308
  %v9373 = vpack.c.b16 %v9309, %v9309
  %v9374 = vpack.c.b16 %v9310, %v9310
  %v9375 = vpack.c.b16 %v9311, %v9311
  %v9376 = vpack.c.b16 %v9312, %v9312
  %v9377 = vpack.c.b16 %v9313, %v9313
  %v9378 = vpack.c.b16 %v9314, %v9314
  %v9379 = vpack.c.b16 %v9315, %v9315
  %v9380 = vpack.c.b16 %v9316, %v9316
  %v9381 = vpack.c.b16 %v9317, %v9317
  %v9382 = vpack.c.b16 %v9318, %v9318
  %v9383 = vpack.c.b16 %v9319, %v9319
  %v9384 = vpack.c.b16 %v9320, %v9320
  %v9385 = vpack.c.b16 %v9321, %v9321
  %v9386 = vpack.c.b16 %v9322, %v9322
  %v9387 = vpack.c.b16 %v9323, %v9323
  %v9388 = vpack.c.b16 %v9324, %v9324
  %9389 = vrot.lane.b32.xlu0 %v9325, 24
  %v9390 = vpop.permute.xlu0 %9389
  %9391 = vrot.lane.b32.xlu0 %v9326, 24
  %v9392 = vpop.permute.xlu0 %9391
  %9393 = vrot.lane.b32.xlu0 %v9327, 24
  %v9394 = vpop.permute.xlu0 %9393
  %9395 = vrot.lane.b32.xlu0 %v9328, 24
  %v9396 = vpop.permute.xlu0 %9395
  %9397 = vrot.lane.b32.xlu0 %v9329, 24
  %v9398 = vpop.permute.xlu0 %9397
  %9399 = vrot.lane.b32.xlu0 %v9330, 24
  %v9400 = vpop.permute.xlu0 %9399
  %9401 = vrot.lane.b32.xlu0 %v9331, 24
  %v9402 = vpop.permute.xlu0 %9401
  %9403 = vrot.lane.b32.xlu0 %v9332, 24
  %v9404 = vpop.permute.xlu0 %9403
  %9405 = vrot.lane.b32.xlu0 %v9333, 24
  %v9406 = vpop.permute.xlu0 %9405
  %9407 = vrot.lane.b32.xlu0 %v9334, 24
  %v9408 = vpop.permute.xlu0 %9407
  %9409 = vrot.lane.b32.xlu0 %v9335, 24
  %v9410 = vpop.permute.xlu0 %9409
  %9411 = vrot.lane.b32.xlu0 %v9336, 24
  %v9412 = vpop.permute.xlu0 %9411
  %9413 = vrot.lane.b32.xlu0 %v9337, 24
  %v9414 = vpop.permute.xlu0 %9413
  %9415 = vrot.lane.b32.xlu0 %v9338, 24
  %v9416 = vpop.permute.xlu0 %9415
  %9417 = vrot.lane.b32.xlu0 %v9339, 24
  %v9418 = vpop.permute.xlu0 %9417
  %9419 = vrot.lane.b32.xlu0 %v9340, 24
  %v9420 = vpop.permute.xlu0 %9419
  %9421 = vrot.lane.b32.xlu0 %v9341, 24
  %v9422 = vpop.permute.xlu0 %9421
  %9423 = vrot.lane.b32.xlu0 %v9342, 24
  %v9424 = vpop.permute.xlu0 %9423
  %9425 = vrot.lane.b32.xlu0 %v9343, 24
  %v9426 = vpop.permute.xlu0 %9425
  %9427 = vrot.lane.b32.xlu0 %v9344, 24
  %v9428 = vpop.permute.xlu0 %9427
  %9429 = vrot.lane.b32.xlu0 %v9345, 24
  %v9430 = vpop.permute.xlu0 %9429
  %9431 = vrot.lane.b32.xlu0 %v9346, 24
  %v9432 = vpop.permute.xlu0 %9431
  %9433 = vrot.lane.b32.xlu0 %v9347, 24
  %v9434 = vpop.permute.xlu0 %9433
  %9435 = vrot.lane.b32.xlu0 %v9348, 24
  %v9436 = vpop.permute.xlu0 %9435
  %9437 = vrot.lane.b32.xlu0 %v9349, 24
  %v9438 = vpop.permute.xlu0 %9437
  %9439 = vrot.lane.b32.xlu0 %v9350, 24
  %v9440 = vpop.permute.xlu0 %9439
  %9441 = vrot.lane.b32.xlu0 %v9351, 24
  %v9442 = vpop.permute.xlu0 %9441
  %9443 = vrot.lane.b32.xlu0 %v9352, 24
  %v9444 = vpop.permute.xlu0 %9443
  %9445 = vrot.lane.b32.xlu0 %v9353, 24
  %v9446 = vpop.permute.xlu0 %9445
  %9447 = vrot.lane.b32.xlu0 %v9354, 24
  %v9448 = vpop.permute.xlu0 %9447
  %9449 = vrot.lane.b32.xlu0 %v9355, 24
  %v9450 = vpop.permute.xlu0 %9449
  %9451 = vrot.lane.b32.xlu0 %v9356, 24
  %v9452 = vpop.permute.xlu0 %9451
  %9453 = vrot.lane.b32.xlu0 %v9357, 24
  %v9454 = vpop.permute.xlu0 %9453
  %9455 = vrot.lane.b32.xlu0 %v9358, 24
  %v9456 = vpop.permute.xlu0 %9455
  %9457 = vrot.lane.b32.xlu0 %v9359, 24
  %v9458 = vpop.permute.xlu0 %9457
  %9459 = vrot.lane.b32.xlu0 %v9360, 24
  %v9460 = vpop.permute.xlu0 %9459
  %9461 = vrot.lane.b32.xlu0 %v9361, 24
  %v9462 = vpop.permute.xlu0 %9461
  %9463 = vrot.lane.b32.xlu0 %v9362, 24
  %v9464 = vpop.permute.xlu0 %9463
  %9465 = vrot.lane.b32.xlu0 %v9363, 24
  %v9466 = vpop.permute.xlu0 %9465
  %9467 = vrot.lane.b32.xlu0 %v9364, 24
  %v9468 = vpop.permute.xlu0 %9467
  %9469 = vrot.lane.b32.xlu0 %v9365, 24
  %v9470 = vpop.permute.xlu0 %9469
  %9471 = vrot.lane.b32.xlu0 %v9366, 24
  %v9472 = vpop.permute.xlu0 %9471
  %9473 = vrot.lane.b32.xlu0 %v9367, 24
  %v9474 = vpop.permute.xlu0 %9473
  %9475 = vrot.lane.b32.xlu0 %v9368, 24
  %v9476 = vpop.permute.xlu0 %9475
  %9477 = vrot.lane.b32.xlu0 %v9369, 24
  %v9478 = vpop.permute.xlu0 %9477
  %9479 = vrot.lane.b32.xlu0 %v9370, 24
  %v9480 = vpop.permute.xlu0 %9479
  %9481 = vrot.lane.b32.xlu0 %v9371, 24
  %v9482 = vpop.permute.xlu0 %9481
  %9483 = vrot.lane.b32.xlu0 %v9372, 24
  %v9484 = vpop.permute.xlu0 %9483
  %9485 = vrot.lane.b32.xlu0 %v9373, 24
  %v9486 = vpop.permute.xlu0 %9485
  %9487 = vrot.lane.b32.xlu0 %v9374, 24
  %v9488 = vpop.permute.xlu0 %9487
  %9489 = vrot.lane.b32.xlu0 %v9375, 24
  %v9490 = vpop.permute.xlu0 %9489
  %9491 = vrot.lane.b32.xlu0 %v9376, 24
  %v9492 = vpop.permute.xlu0 %9491
  %9493 = vrot.lane.b32.xlu0 %v9377, 24
  %v9494 = vpop.permute.xlu0 %9493
  %9495 = vrot.lane.b32.xlu0 %v9378, 24
  %v9496 = vpop.permute.xlu0 %9495
  %9497 = vrot.lane.b32.xlu0 %v9379, 24
  %v9498 = vpop.permute.xlu0 %9497
  %9499 = vrot.lane.b32.xlu0 %v9380, 24
  %v9500 = vpop.permute.xlu0 %9499
  %9501 = vrot.lane.b32.xlu0 %v9381, 24
  %v9502 = vpop.permute.xlu0 %9501
  %9503 = vrot.lane.b32.xlu0 %v9382, 24
  %v9504 = vpop.permute.xlu0 %9503
  %9505 = vrot.lane.b32.xlu0 %v9383, 24
  %v9506 = vpop.permute.xlu0 %9505
  %9507 = vrot.lane.b32.xlu0 %v9384, 24
  %v9508 = vpop.permute.xlu0 %9507
  %9509 = vrot.lane.b32.xlu0 %v9385, 24
  %v9510 = vpop.permute.xlu0 %9509
  %9511 = vrot.lane.b32.xlu0 %v9386, 24
  %v9512 = vpop.permute.xlu0 %9511
  %9513 = vrot.lane.b32.xlu0 %v9387, 24
  %v9514 = vpop.permute.xlu0 %9513
  %9515 = vrot.lane.b32.xlu0 %v9388, 24
  %v9516 = vpop.permute.xlu0 %9515
  %9581 = vst.msk [vmem:[#allocation5] sm:$0xf] %vm3792, %v9390
  %9582 = vst.msk [vmem:[#allocation5 + $0x4] sm:$0xf] %vm3792, %v9392
  %9583 = vst.msk [vmem:[#allocation5 + $0x8] sm:$0xf] %vm3792, %v9394
  %9584 = vst.msk [vmem:[#allocation5 + $0xc] sm:$0xf] %vm3792, %v9396
  %9585 = vst.msk [vmem:[#allocation5 + $0x10] sm:$0xf] %vm3792, %v9398
  %9586 = vst.msk [vmem:[#allocation5 + $0x14] sm:$0xf] %vm3792, %v9400
  %9587 = vst.msk [vmem:[#allocation5 + $0x18] sm:$0xf] %vm3792, %v9402
  %9588 = vst.msk [vmem:[#allocation5 + $0x1c] sm:$0xf] %vm3792, %v9404
  %9589 = vst.msk [vmem:[#allocation5 + $0x20] sm:$0xf] %vm3792, %v9406
  %9590 = vst.msk [vmem:[#allocation5 + $0x24] sm:$0xf] %vm3792, %v9408
  %9591 = vst.msk [vmem:[#allocation5 + $0x28] sm:$0xf] %vm3792, %v9410
  %9592 = vst.msk [vmem:[#allocation5 + $0x2c] sm:$0xf] %vm3792, %v9412
  %9593 = vst.msk [vmem:[#allocation5 + $0x30] sm:$0xf] %vm3792, %v9414
  %9594 = vst.msk [vmem:[#allocation5 + $0x34] sm:$0xf] %vm3792, %v9416
  %9595 = vst.msk [vmem:[#allocation5 + $0x38] sm:$0xf] %vm3792, %v9418
  %9596 = vst.msk [vmem:[#allocation5 + $0x3c] sm:$0xf] %vm3792, %v9420
  %9597 = vst.msk [vmem:[#allocation5 + $0x40] sm:$0xf] %vm3792, %v9422
  %9598 = vst.msk [vmem:[#allocation5 + $0x44] sm:$0xf] %vm3792, %v9424
  %9599 = vst.msk [vmem:[#allocation5 + $0x48] sm:$0xf] %vm3792, %v9426
  %9600 = vst.msk [vmem:[#allocation5 + $0x4c] sm:$0xf] %vm3792, %v9428
  %9601 = vst.msk [vmem:[#allocation5 + $0x50] sm:$0xf] %vm3792, %v9430
  %9602 = vst.msk [vmem:[#allocation5 + $0x54] sm:$0xf] %vm3792, %v9432
  %9603 = vst.msk [vmem:[#allocation5 + $0x58] sm:$0xf] %vm3792, %v9434
  %9604 = vst.msk [vmem:[#allocation5 + $0x5c] sm:$0xf] %vm3792, %v9436
  %9605 = vst.msk [vmem:[#allocation5 + $0x60] sm:$0xf] %vm3792, %v9438
  %9606 = vst.msk [vmem:[#allocation5 + $0x64] sm:$0xf] %vm3792, %v9440
  %9607 = vst.msk [vmem:[#allocation5 + $0x68] sm:$0xf] %vm3792, %v9442
  %9608 = vst.msk [vmem:[#allocation5 + $0x6c] sm:$0xf] %vm3792, %v9444
  %9609 = vst.msk [vmem:[#allocation5 + $0x70] sm:$0xf] %vm3792, %v9446
  %9610 = vst.msk [vmem:[#allocation5 + $0x74] sm:$0xf] %vm3792, %v9448
  %9611 = vst.msk [vmem:[#allocation5 + $0x78] sm:$0xf] %vm3792, %v9450
  %9612 = vst.msk [vmem:[#allocation5 + $0x7c] sm:$0xf] %vm3792, %v9452
  %9613 = vst.msk [vmem:[#allocation5 + $0x80] sm:$0xf] %vm3792, %v9454
  %9614 = vst.msk [vmem:[#allocation5 + $0x84] sm:$0xf] %vm3792, %v9456
  %9615 = vst.msk [vmem:[#allocation5 + $0x88] sm:$0xf] %vm3792, %v9458
  %9616 = vst.msk [vmem:[#allocation5 + $0x8c] sm:$0xf] %vm3792, %v9460
  %9617 = vst.msk [vmem:[#allocation5 + $0x90] sm:$0xf] %vm3792, %v9462
  %9618 = vst.msk [vmem:[#allocation5 + $0x94] sm:$0xf] %vm3792, %v9464
  %9619 = vst.msk [vmem:[#allocation5 + $0x98] sm:$0xf] %vm3792, %v9466
  %9620 = vst.msk [vmem:[#allocation5 + $0x9c] sm:$0xf] %vm3792, %v9468
  %9621 = vst.msk [vmem:[#allocation5 + $0xa0] sm:$0xf] %vm3792, %v9470
  %9622 = vst.msk [vmem:[#allocation5 + $0xa4] sm:$0xf] %vm3792, %v9472
  %9623 = vst.msk [vmem:[#allocation5 + $0xa8] sm:$0xf] %vm3792, %v9474
  %9624 = vst.msk [vmem:[#allocation5 + $0xac] sm:$0xf] %vm3792, %v9476
  %9625 = vst.msk [vmem:[#allocation5 + $0xb0] sm:$0xf] %vm3792, %v9478
  %9626 = vst.msk [vmem:[#allocation5 + $0xb4] sm:$0xf] %vm3792, %v9480
  %9627 = vst.msk [vmem:[#allocation5 + $0xb8] sm:$0xf] %vm3792, %v9482
  %9628 = vst.msk [vmem:[#allocation5 + $0xbc] sm:$0xf] %vm3792, %v9484
  %9629 = vst.msk [vmem:[#allocation5 + $0xc0] sm:$0xf] %vm3792, %v9486
  %9630 = vst.msk [vmem:[#allocation5 + $0xc4] sm:$0xf] %vm3792, %v9488
  %9631 = vst.msk [vmem:[#allocation5 + $0xc8] sm:$0xf] %vm3792, %v9490
  %9632 = vst.msk [vmem:[#allocation5 + $0xcc] sm:$0xf] %vm3792, %v9492
  %9633 = vst.msk [vmem:[#allocation5 + $0xd0] sm:$0xf] %vm3792, %v9494
  %9634 = vst.msk [vmem:[#allocation5 + $0xd4] sm:$0xf] %vm3792, %v9496
  %9635 = vst.msk [vmem:[#allocation5 + $0xd8] sm:$0xf] %vm3792, %v9498
  %9636 = vst.msk [vmem:[#allocation5 + $0xdc] sm:$0xf] %vm3792, %v9500
  %9637 = vst.msk [vmem:[#allocation5 + $0xe0] sm:$0xf] %vm3792, %v9502
  %9638 = vst.msk [vmem:[#allocation5 + $0xe4] sm:$0xf] %vm3792, %v9504
  %9639 = vst.msk [vmem:[#allocation5 + $0xe8] sm:$0xf] %vm3792, %v9506
  %9640 = vst.msk [vmem:[#allocation5 + $0xec] sm:$0xf] %vm3792, %v9508
  %9641 = vst.msk [vmem:[#allocation5 + $0xf0] sm:$0xf] %vm3792, %v9510
  %9642 = vst.msk [vmem:[#allocation5 + $0xf4] sm:$0xf] %vm3792, %v9512
  %9643 = vst.msk [vmem:[#allocation5 + $0xf8] sm:$0xf] %vm3792, %v9514
  %9644 = vst.msk [vmem:[#allocation5 + $0xfc] sm:$0xf] %vm3792, %v9516
  %v9645 = vld [vmem:[%s9132 + $0x1] sm:$0xff]
  %v9646 = vld [vmem:[%s9132 + $0x9] sm:$0xff]
  %v9647 = vld [vmem:[%s9132 + $0x19] sm:$0xff]
  %v9648 = vld [vmem:[%s9132 + $0x21] sm:$0xff]
  %v9649 = vld [vmem:[%s9132 + $0x31] sm:$0xff]
  %v9650 = vld [vmem:[%s9132 + $0x39] sm:$0xff]
  %v9651 = vld [vmem:[%s9132 + $0x49] sm:$0xff]
  %v9652 = vld [vmem:[%s9132 + $0x51] sm:$0xff]
  %v9653 = vld [vmem:[%s9132 + $0x61] sm:$0xff]
  %v9654 = vld [vmem:[%s9132 + $0x69] sm:$0xff]
  %v9655 = vld [vmem:[%s9132 + $0x79] sm:$0xff]
  %v9656 = vld [vmem:[%s9132 + $0x81] sm:$0xff]
  %v9657 = vld [vmem:[%s9132 + $0x91] sm:$0xff]
  %v9658 = vld [vmem:[%s9132 + $0x99] sm:$0xff]
  %v9659 = vld [vmem:[%s9132 + $0xa9] sm:$0xff]
  %v9660 = vld [vmem:[%s9132 + $0xb1] sm:$0xff]
  %v9661 = vld [vmem:[%s9132 + $0xc1] sm:$0xff]
  %v9662 = vld [vmem:[%s9132 + $0xc9] sm:$0xff]
  %v9663 = vld [vmem:[%s9132 + $0xd9] sm:$0xff]
  %v9664 = vld [vmem:[%s9132 + $0xe1] sm:$0xff]
  %v9665 = vld [vmem:[%s9132 + $0xf1] sm:$0xff]
  %v9666 = vld [vmem:[%s9132 + $0xf9] sm:$0xff]
  %v9667 = vld [vmem:[%s9132 + $0x109] sm:$0xff]
  %v9668 = vld [vmem:[%s9132 + $0x111] sm:$0xff]
  %v9669 = vld [vmem:[%s9132 + $0x121] sm:$0xff]
  %v9670 = vld [vmem:[%s9132 + $0x129] sm:$0xff]
  %v9671 = vld [vmem:[%s9132 + $0x139] sm:$0xff]
  %v9672 = vld [vmem:[%s9132 + $0x141] sm:$0xff]
  %v9673 = vld [vmem:[%s9132 + $0x151] sm:$0xff]
  %v9674 = vld [vmem:[%s9132 + $0x159] sm:$0xff]
  %v9675 = vld [vmem:[%s9132 + $0x169] sm:$0xff]
  %v9676 = vld [vmem:[%s9132 + $0x171] sm:$0xff]
  %v9677 = vld [vmem:[%s9132 + $0x1b1] sm:$0xff]
  %v9678 = vld [vmem:[%s9132 + $0x1b9] sm:$0xff]
  %v9679 = vld [vmem:[%s9132 + $0x1c9] sm:$0xff]
  %v9680 = vld [vmem:[%s9132 + $0x1d1] sm:$0xff]
  %v9681 = vld [vmem:[%s9132 + $0x1e1] sm:$0xff]
  %v9682 = vld [vmem:[%s9132 + $0x1e9] sm:$0xff]
  %v9683 = vld [vmem:[%s9132 + $0x1f9] sm:$0xff]
  %v9684 = vld [vmem:[%s9132 + $0x201] sm:$0xff]
  %v9685 = vld [vmem:[%s9132 + $0x211] sm:$0xff]
  %v9686 = vld [vmem:[%s9132 + $0x219] sm:$0xff]
  %v9687 = vld [vmem:[%s9132 + $0x229] sm:$0xff]
  %v9688 = vld [vmem:[%s9132 + $0x231] sm:$0xff]
  %v9689 = vld [vmem:[%s9132 + $0x241] sm:$0xff]
  %v9690 = vld [vmem:[%s9132 + $0x249] sm:$0xff]
  %v9691 = vld [vmem:[%s9132 + $0x259] sm:$0xff]
  %v9692 = vld [vmem:[%s9132 + $0x261] sm:$0xff]
  %v9693 = vld [vmem:[%s9132 + $0x271] sm:$0xff]
  %v9694 = vld [vmem:[%s9132 + $0x279] sm:$0xff]
  %v9695 = vld [vmem:[%s9132 + $0x289] sm:$0xff]
  %v9696 = vld [vmem:[%s9132 + $0x291] sm:$0xff]
  %v9697 = vld [vmem:[%s9132 + $0x2a1] sm:$0xff]
  %v9698 = vld [vmem:[%s9132 + $0x2a9] sm:$0xff]
  %v9699 = vld [vmem:[%s9132 + $0x2b9] sm:$0xff]
  %v9700 = vld [vmem:[%s9132 + $0x2c1] sm:$0xff]
  %v9701 = vld [vmem:[%s9132 + $0x2d1] sm:$0xff]
  %v9702 = vld [vmem:[%s9132 + $0x2d9] sm:$0xff]
  %v9703 = vld [vmem:[%s9132 + $0x2e9] sm:$0xff]
  %v9704 = vld [vmem:[%s9132 + $0x2f1] sm:$0xff]
  %v9705 = vld [vmem:[%s9132 + $0x301] sm:$0xff]
  %v9706 = vld [vmem:[%s9132 + $0x309] sm:$0xff]
  %v9707 = vld [vmem:[%s9132 + $0x319] sm:$0xff]
  %v9708 = vld [vmem:[%s9132 + $0x321] sm:$0xff]
  %v9709 = vpack.c.bf16 %v9646, %v9645
  %v9710 = vpack.c.bf16 %v9648, %v9647
  %v9711 = vpack.c.bf16 %v9650, %v9649
  %v9712 = vpack.c.bf16 %v9652, %v9651
  %v9713 = vpack.c.bf16 %v9654, %v9653
  %v9714 = vpack.c.bf16 %v9656, %v9655
  %v9715 = vpack.c.bf16 %v9658, %v9657
  %v9716 = vpack.c.bf16 %v9660, %v9659
  %v9717 = vpack.c.bf16 %v9662, %v9661
  %v9718 = vpack.c.bf16 %v9664, %v9663
  %v9719 = vpack.c.bf16 %v9666, %v9665
  %v9720 = vpack.c.bf16 %v9668, %v9667
  %v9721 = vpack.c.bf16 %v9670, %v9669
  %v9722 = vpack.c.bf16 %v9672, %v9671
  %v9723 = vpack.c.bf16 %v9674, %v9673
  %v9724 = vpack.c.bf16 %v9676, %v9675
  %v9725 = vpack.c.bf16 %v9678, %v9677
  %v9726 = vpack.c.bf16 %v9680, %v9679
  %v9727 = vpack.c.bf16 %v9682, %v9681
  %v9728 = vpack.c.bf16 %v9684, %v9683
  %v9729 = vpack.c.bf16 %v9686, %v9685
  %v9730 = vpack.c.bf16 %v9688, %v9687
  %v9731 = vpack.c.bf16 %v9690, %v9689
  %v9732 = vpack.c.bf16 %v9692, %v9691
  %v9733 = vpack.c.bf16 %v9694, %v9693
  %v9734 = vpack.c.bf16 %v9696, %v9695
  %v9735 = vpack.c.bf16 %v9698, %v9697
  %v9736 = vpack.c.bf16 %v9700, %v9699
  %v9737 = vpack.c.bf16 %v9702, %v9701
  %v9738 = vpack.c.bf16 %v9704, %v9703
  %v9739 = vpack.c.bf16 %v9706, %v9705
  %v9740 = vpack.c.bf16 %v9708, %v9707
  %v9773 = vunpack.c.l.b16 %v9709
  %v9774 = vunpack.c.h.b16 %v9709
  %v9775 = vunpack.c.l.b16 %v9710
  %v9776 = vunpack.c.h.b16 %v9710
  %v9777 = vunpack.c.l.b16 %v9711
  %v9778 = vunpack.c.h.b16 %v9711
  %v9779 = vunpack.c.l.b16 %v9712
  %v9780 = vunpack.c.h.b16 %v9712
  %v9781 = vunpack.c.l.b16 %v9713
  %v9782 = vunpack.c.h.b16 %v9713
  %v9783 = vunpack.c.l.b16 %v9714
  %v9784 = vunpack.c.h.b16 %v9714
  %v9785 = vunpack.c.l.b16 %v9715
  %v9786 = vunpack.c.h.b16 %v9715
  %v9787 = vunpack.c.l.b16 %v9716
  %v9788 = vunpack.c.h.b16 %v9716
  %v9789 = vunpack.c.l.b16 %v9717
  %v9790 = vunpack.c.h.b16 %v9717
  %v9791 = vunpack.c.l.b16 %v9718
  %v9792 = vunpack.c.h.b16 %v9718
  %v9793 = vunpack.c.l.b16 %v9719
  %v9794 = vunpack.c.h.b16 %v9719
  %v9795 = vunpack.c.l.b16 %v9720
  %v9796 = vunpack.c.h.b16 %v9720
  %v9797 = vunpack.c.l.b16 %v9721
  %v9798 = vunpack.c.h.b16 %v9721
  %v9799 = vunpack.c.l.b16 %v9722
  %v9800 = vunpack.c.h.b16 %v9722
  %v9801 = vunpack.c.l.b16 %v9723
  %v9802 = vunpack.c.h.b16 %v9723
  %v9803 = vunpack.c.l.b16 %v9724
  %v9804 = vunpack.c.h.b16 %v9724
  %v9805 = vunpack.c.l.b16 %v9725
  %v9806 = vunpack.c.h.b16 %v9725
  %v9807 = vunpack.c.l.b16 %v9726
  %v9808 = vunpack.c.h.b16 %v9726
  %v9809 = vunpack.c.l.b16 %v9727
  %v9810 = vunpack.c.h.b16 %v9727
  %v9811 = vunpack.c.l.b16 %v9728
  %v9812 = vunpack.c.h.b16 %v9728
  %v9813 = vunpack.c.l.b16 %v9729
  %v9814 = vunpack.c.h.b16 %v9729
  %v9815 = vunpack.c.l.b16 %v9730
  %v9816 = vunpack.c.h.b16 %v9730
  %v9817 = vunpack.c.l.b16 %v9731
  %v9818 = vunpack.c.h.b16 %v9731
  %v9819 = vunpack.c.l.b16 %v9732
  %v9820 = vunpack.c.h.b16 %v9732
  %v9821 = vunpack.c.l.b16 %v9733
  %v9822 = vunpack.c.h.b16 %v9733
  %v9823 = vunpack.c.l.b16 %v9734
  %v9824 = vunpack.c.h.b16 %v9734
  %v9825 = vunpack.c.l.b16 %v9735
  %v9826 = vunpack.c.h.b16 %v9735
  %v9827 = vunpack.c.l.b16 %v9736
  %v9828 = vunpack.c.h.b16 %v9736
  %v9829 = vunpack.c.l.b16 %v9737
  %v9830 = vunpack.c.h.b16 %v9737
  %v9831 = vunpack.c.l.b16 %v9738
  %v9832 = vunpack.c.h.b16 %v9738
  %v9833 = vunpack.c.l.b16 %v9739
  %v9834 = vunpack.c.h.b16 %v9739
  %v9835 = vunpack.c.l.b16 %v9740
  %v9836 = vunpack.c.h.b16 %v9740
  %v9837 = vpack.c.b16 %v9773, %v9773
  %v9838 = vpack.c.b16 %v9774, %v9774
  %v9839 = vpack.c.b16 %v9775, %v9775
  %v9840 = vpack.c.b16 %v9776, %v9776
  %v9841 = vpack.c.b16 %v9777, %v9777
  %v9842 = vpack.c.b16 %v9778, %v9778
  %v9843 = vpack.c.b16 %v9779, %v9779
  %v9844 = vpack.c.b16 %v9780, %v9780
  %v9845 = vpack.c.b16 %v9781, %v9781
  %v9846 = vpack.c.b16 %v9782, %v9782
  %v9847 = vpack.c.b16 %v9783, %v9783
  %v9848 = vpack.c.b16 %v9784, %v9784
  %v9849 = vpack.c.b16 %v9785, %v9785
  %v9850 = vpack.c.b16 %v9786, %v9786
  %v9851 = vpack.c.b16 %v9787, %v9787
  %v9852 = vpack.c.b16 %v9788, %v9788
  %v9853 = vpack.c.b16 %v9789, %v9789
  %v9854 = vpack.c.b16 %v9790, %v9790
  %v9855 = vpack.c.b16 %v9791, %v9791
  %v9856 = vpack.c.b16 %v9792, %v9792
  %v9857 = vpack.c.b16 %v9793, %v9793
  %v9858 = vpack.c.b16 %v9794, %v9794
  %v9859 = vpack.c.b16 %v9795, %v9795
  %v9860 = vpack.c.b16 %v9796, %v9796
  %v9861 = vpack.c.b16 %v9797, %v9797
  %v9862 = vpack.c.b16 %v9798, %v9798
  %v9863 = vpack.c.b16 %v9799, %v9799
  %v9864 = vpack.c.b16 %v9800, %v9800
  %v9865 = vpack.c.b16 %v9801, %v9801
  %v9866 = vpack.c.b16 %v9802, %v9802
  %v9867 = vpack.c.b16 %v9803, %v9803
  %v9868 = vpack.c.b16 %v9804, %v9804
  %v9869 = vpack.c.b16 %v9805, %v9805
  %v9870 = vpack.c.b16 %v9806, %v9806
  %v9871 = vpack.c.b16 %v9807, %v9807
  %v9872 = vpack.c.b16 %v9808, %v9808
  %v9873 = vpack.c.b16 %v9809, %v9809
  %v9874 = vpack.c.b16 %v9810, %v9810
  %v9875 = vpack.c.b16 %v9811, %v9811
  %v9876 = vpack.c.b16 %v9812, %v9812
  %v9877 = vpack.c.b16 %v9813, %v9813
  %v9878 = vpack.c.b16 %v9814, %v9814
  %v9879 = vpack.c.b16 %v9815, %v9815
  %v9880 = vpack.c.b16 %v9816, %v9816
  %v9881 = vpack.c.b16 %v9817, %v9817
  %v9882 = vpack.c.b16 %v9818, %v9818
  %v9883 = vpack.c.b16 %v9819, %v9819
  %v9884 = vpack.c.b16 %v9820, %v9820
  %v9885 = vpack.c.b16 %v9821, %v9821
  %v9886 = vpack.c.b16 %v9822, %v9822
  %v9887 = vpack.c.b16 %v9823, %v9823
  %v9888 = vpack.c.b16 %v9824, %v9824
  %v9889 = vpack.c.b16 %v9825, %v9825
  %v9890 = vpack.c.b16 %v9826, %v9826
  %v9891 = vpack.c.b16 %v9827, %v9827
  %v9892 = vpack.c.b16 %v9828, %v9828
  %v9893 = vpack.c.b16 %v9829, %v9829
  %v9894 = vpack.c.b16 %v9830, %v9830
  %v9895 = vpack.c.b16 %v9831, %v9831
  %v9896 = vpack.c.b16 %v9832, %v9832
  %v9897 = vpack.c.b16 %v9833, %v9833
  %v9898 = vpack.c.b16 %v9834, %v9834
  %v9899 = vpack.c.b16 %v9835, %v9835
  %v9900 = vpack.c.b16 %v9836, %v9836
  %9901 = vrot.lane.b32.xlu0 %v9837, 28
  %v9902 = vpop.permute.xlu0 %9901
  %9903 = vrot.lane.b32.xlu0 %v9838, 28
  %v9904 = vpop.permute.xlu0 %9903
  %9905 = vrot.lane.b32.xlu0 %v9839, 28
  %v9906 = vpop.permute.xlu0 %9905
  %9907 = vrot.lane.b32.xlu0 %v9840, 28
  %v9908 = vpop.permute.xlu0 %9907
  %9909 = vrot.lane.b32.xlu0 %v9841, 28
  %v9910 = vpop.permute.xlu0 %9909
  %9911 = vrot.lane.b32.xlu0 %v9842, 28
  %v9912 = vpop.permute.xlu0 %9911
  %9913 = vrot.lane.b32.xlu0 %v9843, 28
  %v9914 = vpop.permute.xlu0 %9913
  %9915 = vrot.lane.b32.xlu0 %v9844, 28
  %v9916 = vpop.permute.xlu0 %9915
  %9917 = vrot.lane.b32.xlu0 %v9845, 28
  %v9918 = vpop.permute.xlu0 %9917
  %9919 = vrot.lane.b32.xlu0 %v9846, 28
  %v9920 = vpop.permute.xlu0 %9919
  %9921 = vrot.lane.b32.xlu0 %v9847, 28
  %v9922 = vpop.permute.xlu0 %9921
  %9923 = vrot.lane.b32.xlu0 %v9848, 28
  %v9924 = vpop.permute.xlu0 %9923
  %9925 = vrot.lane.b32.xlu0 %v9849, 28
  %v9926 = vpop.permute.xlu0 %9925
  %9927 = vrot.lane.b32.xlu0 %v9850, 28
  %v9928 = vpop.permute.xlu0 %9927
  %9929 = vrot.lane.b32.xlu0 %v9851, 28
  %v9930 = vpop.permute.xlu0 %9929
  %9931 = vrot.lane.b32.xlu0 %v9852, 28
  %v9932 = vpop.permute.xlu0 %9931
  %9933 = vrot.lane.b32.xlu0 %v9853, 28
  %v9934 = vpop.permute.xlu0 %9933
  %9935 = vrot.lane.b32.xlu0 %v9854, 28
  %v9936 = vpop.permute.xlu0 %9935
  %9937 = vrot.lane.b32.xlu0 %v9855, 28
  %v9938 = vpop.permute.xlu0 %9937
  %9939 = vrot.lane.b32.xlu0 %v9856, 28
  %v9940 = vpop.permute.xlu0 %9939
  %9941 = vrot.lane.b32.xlu0 %v9857, 28
  %v9942 = vpop.permute.xlu0 %9941
  %9943 = vrot.lane.b32.xlu0 %v9858, 28
  %v9944 = vpop.permute.xlu0 %9943
  %9945 = vrot.lane.b32.xlu0 %v9859, 28
  %v9946 = vpop.permute.xlu0 %9945
  %9947 = vrot.lane.b32.xlu0 %v9860, 28
  %v9948 = vpop.permute.xlu0 %9947
  %9949 = vrot.lane.b32.xlu0 %v9861, 28
  %v9950 = vpop.permute.xlu0 %9949
  %9951 = vrot.lane.b32.xlu0 %v9862, 28
  %v9952 = vpop.permute.xlu0 %9951
  %9953 = vrot.lane.b32.xlu0 %v9863, 28
  %v9954 = vpop.permute.xlu0 %9953
  %9955 = vrot.lane.b32.xlu0 %v9864, 28
  %v9956 = vpop.permute.xlu0 %9955
  %9957 = vrot.lane.b32.xlu0 %v9865, 28
  %v9958 = vpop.permute.xlu0 %9957
  %9959 = vrot.lane.b32.xlu0 %v9866, 28
  %v9960 = vpop.permute.xlu0 %9959
  %9961 = vrot.lane.b32.xlu0 %v9867, 28
  %v9962 = vpop.permute.xlu0 %9961
  %9963 = vrot.lane.b32.xlu0 %v9868, 28
  %v9964 = vpop.permute.xlu0 %9963
  %9965 = vrot.lane.b32.xlu0 %v9869, 28
  %v9966 = vpop.permute.xlu0 %9965
  %9967 = vrot.lane.b32.xlu0 %v9870, 28
  %v9968 = vpop.permute.xlu0 %9967
  %9969 = vrot.lane.b32.xlu0 %v9871, 28
  %v9970 = vpop.permute.xlu0 %9969
  %9971 = vrot.lane.b32.xlu0 %v9872, 28
  %v9972 = vpop.permute.xlu0 %9971
  %9973 = vrot.lane.b32.xlu0 %v9873, 28
  %v9974 = vpop.permute.xlu0 %9973
  %9975 = vrot.lane.b32.xlu0 %v9874, 28
  %v9976 = vpop.permute.xlu0 %9975
  %9977 = vrot.lane.b32.xlu0 %v9875, 28
  %v9978 = vpop.permute.xlu0 %9977
  %9979 = vrot.lane.b32.xlu0 %v9876, 28
  %v9980 = vpop.permute.xlu0 %9979
  %9981 = vrot.lane.b32.xlu0 %v9877, 28
  %v9982 = vpop.permute.xlu0 %9981
  %9983 = vrot.lane.b32.xlu0 %v9878, 28
  %v9984 = vpop.permute.xlu0 %9983
  %9985 = vrot.lane.b32.xlu0 %v9879, 28
  %v9986 = vpop.permute.xlu0 %9985
  %9987 = vrot.lane.b32.xlu0 %v9880, 28
  %v9988 = vpop.permute.xlu0 %9987
  %9989 = vrot.lane.b32.xlu0 %v9881, 28
  %v9990 = vpop.permute.xlu0 %9989
  %9991 = vrot.lane.b32.xlu0 %v9882, 28
  %v9992 = vpop.permute.xlu0 %9991
  %9993 = vrot.lane.b32.xlu0 %v9883, 28
  %v9994 = vpop.permute.xlu0 %9993
  %9995 = vrot.lane.b32.xlu0 %v9884, 28
  %v9996 = vpop.permute.xlu0 %9995
  %9997 = vrot.lane.b32.xlu0 %v9885, 28
  %v9998 = vpop.permute.xlu0 %9997
  %9999 = vrot.lane.b32.xlu0 %v9886, 28
  %v10000 = vpop.permute.xlu0 %9999
  %10001 = vrot.lane.b32.xlu0 %v9887, 28
  %v10002 = vpop.permute.xlu0 %10001
  %10003 = vrot.lane.b32.xlu0 %v9888, 28
  %v10004 = vpop.permute.xlu0 %10003
  %10005 = vrot.lane.b32.xlu0 %v9889, 28
  %v10006 = vpop.permute.xlu0 %10005
  %10007 = vrot.lane.b32.xlu0 %v9890, 28
  %v10008 = vpop.permute.xlu0 %10007
  %10009 = vrot.lane.b32.xlu0 %v9891, 28
  %v10010 = vpop.permute.xlu0 %10009
  %10011 = vrot.lane.b32.xlu0 %v9892, 28
  %v10012 = vpop.permute.xlu0 %10011
  %10013 = vrot.lane.b32.xlu0 %v9893, 28
  %v10014 = vpop.permute.xlu0 %10013
  %10015 = vrot.lane.b32.xlu0 %v9894, 28
  %v10016 = vpop.permute.xlu0 %10015
  %10017 = vrot.lane.b32.xlu0 %v9895, 28
  %v10018 = vpop.permute.xlu0 %10017
  %10019 = vrot.lane.b32.xlu0 %v9896, 28
  %v10020 = vpop.permute.xlu0 %10019
  %10021 = vrot.lane.b32.xlu0 %v9897, 28
  %v10022 = vpop.permute.xlu0 %10021
  %10023 = vrot.lane.b32.xlu0 %v9898, 28
  %v10024 = vpop.permute.xlu0 %10023
  %10025 = vrot.lane.b32.xlu0 %v9899, 28
  %v10026 = vpop.permute.xlu0 %10025
  %10027 = vrot.lane.b32.xlu0 %v9900, 28
  %v10028 = vpop.permute.xlu0 %10027
  %10093 = vst.msk [vmem:[#allocation5] sm:$0xf] %vm4305, %v9902
  %10094 = vst.msk [vmem:[#allocation5 + $0x4] sm:$0xf] %vm4305, %v9904
  %10095 = vst.msk [vmem:[#allocation5 + $0x8] sm:$0xf] %vm4305, %v9906
  %10096 = vst.msk [vmem:[#allocation5 + $0xc] sm:$0xf] %vm4305, %v9908
  %10097 = vst.msk [vmem:[#allocation5 + $0x10] sm:$0xf] %vm4305, %v9910
  %10098 = vst.msk [vmem:[#allocation5 + $0x14] sm:$0xf] %vm4305, %v9912
  %10099 = vst.msk [vmem:[#allocation5 + $0x18] sm:$0xf] %vm4305, %v9914
  %10100 = vst.msk [vmem:[#allocation5 + $0x1c] sm:$0xf] %vm4305, %v9916
  %10101 = vst.msk [vmem:[#allocation5 + $0x20] sm:$0xf] %vm4305, %v9918
  %10102 = vst.msk [vmem:[#allocation5 + $0x24] sm:$0xf] %vm4305, %v9920
  %10103 = vst.msk [vmem:[#allocation5 + $0x28] sm:$0xf] %vm4305, %v9922
  %10104 = vst.msk [vmem:[#allocation5 + $0x2c] sm:$0xf] %vm4305, %v9924
  %10105 = vst.msk [vmem:[#allocation5 + $0x30] sm:$0xf] %vm4305, %v9926
  %10106 = vst.msk [vmem:[#allocation5 + $0x34] sm:$0xf] %vm4305, %v9928
  %10107 = vst.msk [vmem:[#allocation5 + $0x38] sm:$0xf] %vm4305, %v9930
  %10108 = vst.msk [vmem:[#allocation5 + $0x3c] sm:$0xf] %vm4305, %v9932
  %10109 = vst.msk [vmem:[#allocation5 + $0x40] sm:$0xf] %vm4305, %v9934
  %10110 = vst.msk [vmem:[#allocation5 + $0x44] sm:$0xf] %vm4305, %v9936
  %10111 = vst.msk [vmem:[#allocation5 + $0x48] sm:$0xf] %vm4305, %v9938
  %10112 = vst.msk [vmem:[#allocation5 + $0x4c] sm:$0xf] %vm4305, %v9940
  %10113 = vst.msk [vmem:[#allocation5 + $0x50] sm:$0xf] %vm4305, %v9942
  %10114 = vst.msk [vmem:[#allocation5 + $0x54] sm:$0xf] %vm4305, %v9944
  %10115 = vst.msk [vmem:[#allocation5 + $0x58] sm:$0xf] %vm4305, %v9946
  %10116 = vst.msk [vmem:[#allocation5 + $0x5c] sm:$0xf] %vm4305, %v9948
  %10117 = vst.msk [vmem:[#allocation5 + $0x60] sm:$0xf] %vm4305, %v9950
  %10118 = vst.msk [vmem:[#allocation5 + $0x64] sm:$0xf] %vm4305, %v9952
  %10119 = vst.msk [vmem:[#allocation5 + $0x68] sm:$0xf] %vm4305, %v9954
  %10120 = vst.msk [vmem:[#allocation5 + $0x6c] sm:$0xf] %vm4305, %v9956
  %10121 = vst.msk [vmem:[#allocation5 + $0x70] sm:$0xf] %vm4305, %v9958
  %10122 = vst.msk [vmem:[#allocation5 + $0x74] sm:$0xf] %vm4305, %v9960
  %10123 = vst.msk [vmem:[#allocation5 + $0x78] sm:$0xf] %vm4305, %v9962
  %10124 = vst.msk [vmem:[#allocation5 + $0x7c] sm:$0xf] %vm4305, %v9964
  %10125 = vst.msk [vmem:[#allocation5 + $0x80] sm:$0xf] %vm4305, %v9966
  %10126 = vst.msk [vmem:[#allocation5 + $0x84] sm:$0xf] %vm4305, %v9968
  %10127 = vst.msk [vmem:[#allocation5 + $0x88] sm:$0xf] %vm4305, %v9970
  %10128 = vst.msk [vmem:[#allocation5 + $0x8c] sm:$0xf] %vm4305, %v9972
  %10129 = vst.msk [vmem:[#allocation5 + $0x90] sm:$0xf] %vm4305, %v9974
  %10130 = vst.msk [vmem:[#allocation5 + $0x94] sm:$0xf] %vm4305, %v9976
  %10131 = vst.msk [vmem:[#allocation5 + $0x98] sm:$0xf] %vm4305, %v9978
  %10132 = vst.msk [vmem:[#allocation5 + $0x9c] sm:$0xf] %vm4305, %v9980
  %10133 = vst.msk [vmem:[#allocation5 + $0xa0] sm:$0xf] %vm4305, %v9982
  %10134 = vst.msk [vmem:[#allocation5 + $0xa4] sm:$0xf] %vm4305, %v9984
  %10135 = vst.msk [vmem:[#allocation5 + $0xa8] sm:$0xf] %vm4305, %v9986
  %10136 = vst.msk [vmem:[#allocation5 + $0xac] sm:$0xf] %vm4305, %v9988
  %10137 = vst.msk [vmem:[#allocation5 + $0xb0] sm:$0xf] %vm4305, %v9990
  %10138 = vst.msk [vmem:[#allocation5 + $0xb4] sm:$0xf] %vm4305, %v9992
  %10139 = vst.msk [vmem:[#allocation5 + $0xb8] sm:$0xf] %vm4305, %v9994
  %10140 = vst.msk [vmem:[#allocation5 + $0xbc] sm:$0xf] %vm4305, %v9996
  %10141 = vst.msk [vmem:[#allocation5 + $0xc0] sm:$0xf] %vm4305, %v9998
  %10142 = vst.msk [vmem:[#allocation5 + $0xc4] sm:$0xf] %vm4305, %v10000
  %10143 = vst.msk [vmem:[#allocation5 + $0xc8] sm:$0xf] %vm4305, %v10002
  %10144 = vst.msk [vmem:[#allocation5 + $0xcc] sm:$0xf] %vm4305, %v10004
  %10145 = vst.msk [vmem:[#allocation5 + $0xd0] sm:$0xf] %vm4305, %v10006
  %10146 = vst.msk [vmem:[#allocation5 + $0xd4] sm:$0xf] %vm4305, %v10008
  %10147 = vst.msk [vmem:[#allocation5 + $0xd8] sm:$0xf] %vm4305, %v10010
  %10148 = vst.msk [vmem:[#allocation5 + $0xdc] sm:$0xf] %vm4305, %v10012
  %10149 = vst.msk [vmem:[#allocation5 + $0xe0] sm:$0xf] %vm4305, %v10014
  %10150 = vst.msk [vmem:[#allocation5 + $0xe4] sm:$0xf] %vm4305, %v10016
  %10151 = vst.msk [vmem:[#allocation5 + $0xe8] sm:$0xf] %vm4305, %v10018
  %10152 = vst.msk [vmem:[#allocation5 + $0xec] sm:$0xf] %vm4305, %v10020
  %10153 = vst.msk [vmem:[#allocation5 + $0xf0] sm:$0xf] %vm4305, %v10022
  %10154 = vst.msk [vmem:[#allocation5 + $0xf4] sm:$0xf] %vm4305, %v10024
  %10155 = vst.msk [vmem:[#allocation5 + $0xf8] sm:$0xf] %vm4305, %v10026
  %10156 = vst.msk [vmem:[#allocation5 + $0xfc] sm:$0xf] %vm4305, %v10028
  %v10157 = vld [vmem:[%s9132 + $0x2] sm:$0xff]
  %v10158 = vld [vmem:[%s9132 + $0xa] sm:$0xff]
  %v10159 = vld [vmem:[%s9132 + $0x1a] sm:$0xff]
  %v10160 = vld [vmem:[%s9132 + $0x22] sm:$0xff]
  %v10161 = vld [vmem:[%s9132 + $0x32] sm:$0xff]
  %v10162 = vld [vmem:[%s9132 + $0x3a] sm:$0xff]
  %v10163 = vld [vmem:[%s9132 + $0x4a] sm:$0xff]
  %v10164 = vld [vmem:[%s9132 + $0x52] sm:$0xff]
  %v10165 = vld [vmem:[%s9132 + $0x62] sm:$0xff]
  %v10166 = vld [vmem:[%s9132 + $0x6a] sm:$0xff]
  %v10167 = vld [vmem:[%s9132 + $0x7a] sm:$0xff]
  %v10168 = vld [vmem:[%s9132 + $0x82] sm:$0xff]
  %v10169 = vld [vmem:[%s9132 + $0x92] sm:$0xff]
  %v10170 = vld [vmem:[%s9132 + $0x9a] sm:$0xff]
  %v10171 = vld [vmem:[%s9132 + $0xaa] sm:$0xff]
  %v10172 = vld [vmem:[%s9132 + $0xb2] sm:$0xff]
  %v10173 = vld [vmem:[%s9132 + $0xc2] sm:$0xff]
  %v10174 = vld [vmem:[%s9132 + $0xca] sm:$0xff]
  %v10175 = vld [vmem:[%s9132 + $0xda] sm:$0xff]
  %v10176 = vld [vmem:[%s9132 + $0xe2] sm:$0xff]
  %v10177 = vld [vmem:[%s9132 + $0xf2] sm:$0xff]
  %v10178 = vld [vmem:[%s9132 + $0xfa] sm:$0xff]
  %v10179 = vld [vmem:[%s9132 + $0x10a] sm:$0xff]
  %v10180 = vld [vmem:[%s9132 + $0x112] sm:$0xff]
  %v10181 = vld [vmem:[%s9132 + $0x122] sm:$0xff]
  %v10182 = vld [vmem:[%s9132 + $0x12a] sm:$0xff]
  %v10183 = vld [vmem:[%s9132 + $0x13a] sm:$0xff]
  %v10184 = vld [vmem:[%s9132 + $0x142] sm:$0xff]
  %v10185 = vld [vmem:[%s9132 + $0x152] sm:$0xff]
  %v10186 = vld [vmem:[%s9132 + $0x15a] sm:$0xff]
  %v10187 = vld [vmem:[%s9132 + $0x16a] sm:$0xff]
  %v10188 = vld [vmem:[%s9132 + $0x172] sm:$0xff]
  %v10189 = vld [vmem:[%s9132 + $0x1b2] sm:$0xff]
  %v10190 = vld [vmem:[%s9132 + $0x1ba] sm:$0xff]
  %v10191 = vld [vmem:[%s9132 + $0x1ca] sm:$0xff]
  %v10192 = vld [vmem:[%s9132 + $0x1d2] sm:$0xff]
  %v10193 = vld [vmem:[%s9132 + $0x1e2] sm:$0xff]
  %v10194 = vld [vmem:[%s9132 + $0x1ea] sm:$0xff]
  %v10195 = vld [vmem:[%s9132 + $0x1fa] sm:$0xff]
  %v10196 = vld [vmem:[%s9132 + $0x202] sm:$0xff]
  %v10197 = vld [vmem:[%s9132 + $0x212] sm:$0xff]
  %v10198 = vld [vmem:[%s9132 + $0x21a] sm:$0xff]
  %v10199 = vld [vmem:[%s9132 + $0x22a] sm:$0xff]
  %v10200 = vld [vmem:[%s9132 + $0x232] sm:$0xff]
  %v10201 = vld [vmem:[%s9132 + $0x242] sm:$0xff]
  %v10202 = vld [vmem:[%s9132 + $0x24a] sm:$0xff]
  %v10203 = vld [vmem:[%s9132 + $0x25a] sm:$0xff]
  %v10204 = vld [vmem:[%s9132 + $0x262] sm:$0xff]
  %v10205 = vld [vmem:[%s9132 + $0x272] sm:$0xff]
  %v10206 = vld [vmem:[%s9132 + $0x27a] sm:$0xff]
  %v10207 = vld [vmem:[%s9132 + $0x28a] sm:$0xff]
  %v10208 = vld [vmem:[%s9132 + $0x292] sm:$0xff]
  %v10209 = vld [vmem:[%s9132 + $0x2a2] sm:$0xff]
  %v10210 = vld [vmem:[%s9132 + $0x2aa] sm:$0xff]
  %v10211 = vld [vmem:[%s9132 + $0x2ba] sm:$0xff]
  %v10212 = vld [vmem:[%s9132 + $0x2c2] sm:$0xff]
  %v10213 = vld [vmem:[%s9132 + $0x2d2] sm:$0xff]
  %v10214 = vld [vmem:[%s9132 + $0x2da] sm:$0xff]
  %v10215 = vld [vmem:[%s9132 + $0x2ea] sm:$0xff]
  %v10216 = vld [vmem:[%s9132 + $0x2f2] sm:$0xff]
  %v10217 = vld [vmem:[%s9132 + $0x302] sm:$0xff]
  %v10218 = vld [vmem:[%s9132 + $0x30a] sm:$0xff]
  %v10219 = vld [vmem:[%s9132 + $0x31a] sm:$0xff]
  %v10220 = vld [vmem:[%s9132 + $0x322] sm:$0xff]
  %v10221 = vpack.c.bf16 %v10158, %v10157
  %v10222 = vpack.c.bf16 %v10160, %v10159
  %v10223 = vpack.c.bf16 %v10162, %v10161
  %v10224 = vpack.c.bf16 %v10164, %v10163
  %v10225 = vpack.c.bf16 %v10166, %v10165
  %v10226 = vpack.c.bf16 %v10168, %v10167
  %v10227 = vpack.c.bf16 %v10170, %v10169
  %v10228 = vpack.c.bf16 %v10172, %v10171
  %v10229 = vpack.c.bf16 %v10174, %v10173
  %v10230 = vpack.c.bf16 %v10176, %v10175
  %v10231 = vpack.c.bf16 %v10178, %v10177
  %v10232 = vpack.c.bf16 %v10180, %v10179
  %v10233 = vpack.c.bf16 %v10182, %v10181
  %v10234 = vpack.c.bf16 %v10184, %v10183
  %v10235 = vpack.c.bf16 %v10186, %v10185
  %v10236 = vpack.c.bf16 %v10188, %v10187
  %v10237 = vpack.c.bf16 %v10190, %v10189
  %v10238 = vpack.c.bf16 %v10192, %v10191
  %v10239 = vpack.c.bf16 %v10194, %v10193
  %v10240 = vpack.c.bf16 %v10196, %v10195
  %v10241 = vpack.c.bf16 %v10198, %v10197
  %v10242 = vpack.c.bf16 %v10200, %v10199
  %v10243 = vpack.c.bf16 %v10202, %v10201
  %v10244 = vpack.c.bf16 %v10204, %v10203
  %v10245 = vpack.c.bf16 %v10206, %v10205
  %v10246 = vpack.c.bf16 %v10208, %v10207
  %v10247 = vpack.c.bf16 %v10210, %v10209
  %v10248 = vpack.c.bf16 %v10212, %v10211
  %v10249 = vpack.c.bf16 %v10214, %v10213
  %v10250 = vpack.c.bf16 %v10216, %v10215
  %v10251 = vpack.c.bf16 %v10218, %v10217
  %v10252 = vpack.c.bf16 %v10220, %v10219
  %v10285 = vunpack.c.l.b16 %v10221
  %v10286 = vunpack.c.h.b16 %v10221
  %v10287 = vunpack.c.l.b16 %v10222
  %v10288 = vunpack.c.h.b16 %v10222
  %v10289 = vunpack.c.l.b16 %v10223
  %v10290 = vunpack.c.h.b16 %v10223
  %v10291 = vunpack.c.l.b16 %v10224
  %v10292 = vunpack.c.h.b16 %v10224
  %v10293 = vunpack.c.l.b16 %v10225
  %v10294 = vunpack.c.h.b16 %v10225
  %v10295 = vunpack.c.l.b16 %v10226
  %v10296 = vunpack.c.h.b16 %v10226
  %v10297 = vunpack.c.l.b16 %v10227
  %v10298 = vunpack.c.h.b16 %v10227
  %v10299 = vunpack.c.l.b16 %v10228
  %v10300 = vunpack.c.h.b16 %v10228
  %v10301 = vunpack.c.l.b16 %v10229
  %v10302 = vunpack.c.h.b16 %v10229
  %v10303 = vunpack.c.l.b16 %v10230
  %v10304 = vunpack.c.h.b16 %v10230
  %v10305 = vunpack.c.l.b16 %v10231
  %v10306 = vunpack.c.h.b16 %v10231
  %v10307 = vunpack.c.l.b16 %v10232
  %v10308 = vunpack.c.h.b16 %v10232
  %v10309 = vunpack.c.l.b16 %v10233
  %v10310 = vunpack.c.h.b16 %v10233
  %v10311 = vunpack.c.l.b16 %v10234
  %v10312 = vunpack.c.h.b16 %v10234
  %v10313 = vunpack.c.l.b16 %v10235
  %v10314 = vunpack.c.h.b16 %v10235
  %v10315 = vunpack.c.l.b16 %v10236
  %v10316 = vunpack.c.h.b16 %v10236
  %v10317 = vunpack.c.l.b16 %v10237
  %v10318 = vunpack.c.h.b16 %v10237
  %v10319 = vunpack.c.l.b16 %v10238
  %v10320 = vunpack.c.h.b16 %v10238
  %v10321 = vunpack.c.l.b16 %v10239
  %v10322 = vunpack.c.h.b16 %v10239
  %v10323 = vunpack.c.l.b16 %v10240
  %v10324 = vunpack.c.h.b16 %v10240
  %v10325 = vunpack.c.l.b16 %v10241
  %v10326 = vunpack.c.h.b16 %v10241
  %v10327 = vunpack.c.l.b16 %v10242
  %v10328 = vunpack.c.h.b16 %v10242
  %v10329 = vunpack.c.l.b16 %v10243
  %v10330 = vunpack.c.h.b16 %v10243
  %v10331 = vunpack.c.l.b16 %v10244
  %v10332 = vunpack.c.h.b16 %v10244
  %v10333 = vunpack.c.l.b16 %v10245
  %v10334 = vunpack.c.h.b16 %v10245
  %v10335 = vunpack.c.l.b16 %v10246
  %v10336 = vunpack.c.h.b16 %v10246
  %v10337 = vunpack.c.l.b16 %v10247
  %v10338 = vunpack.c.h.b16 %v10247
  %v10339 = vunpack.c.l.b16 %v10248
  %v10340 = vunpack.c.h.b16 %v10248
  %v10341 = vunpack.c.l.b16 %v10249
  %v10342 = vunpack.c.h.b16 %v10249
  %v10343 = vunpack.c.l.b16 %v10250
  %v10344 = vunpack.c.h.b16 %v10250
  %v10345 = vunpack.c.l.b16 %v10251
  %v10346 = vunpack.c.h.b16 %v10251
  %v10347 = vunpack.c.l.b16 %v10252
  %v10348 = vunpack.c.h.b16 %v10252
  %v10349 = vpack.c.b16 %v10285, %v10285
  %v10350 = vpack.c.b16 %v10286, %v10286
  %v10351 = vpack.c.b16 %v10287, %v10287
  %v10352 = vpack.c.b16 %v10288, %v10288
  %v10353 = vpack.c.b16 %v10289, %v10289
  %v10354 = vpack.c.b16 %v10290, %v10290
  %v10355 = vpack.c.b16 %v10291, %v10291
  %v10356 = vpack.c.b16 %v10292, %v10292
  %v10357 = vpack.c.b16 %v10293, %v10293
  %v10358 = vpack.c.b16 %v10294, %v10294
  %v10359 = vpack.c.b16 %v10295, %v10295
  %v10360 = vpack.c.b16 %v10296, %v10296
  %v10361 = vpack.c.b16 %v10297, %v10297
  %v10362 = vpack.c.b16 %v10298, %v10298
  %v10363 = vpack.c.b16 %v10299, %v10299
  %v10364 = vpack.c.b16 %v10300, %v10300
  %v10365 = vpack.c.b16 %v10301, %v10301
  %v10366 = vpack.c.b16 %v10302, %v10302
  %v10367 = vpack.c.b16 %v10303, %v10303
  %v10368 = vpack.c.b16 %v10304, %v10304
  %v10369 = vpack.c.b16 %v10305, %v10305
  %v10370 = vpack.c.b16 %v10306, %v10306
  %v10371 = vpack.c.b16 %v10307, %v10307
  %v10372 = vpack.c.b16 %v10308, %v10308
  %v10373 = vpack.c.b16 %v10309, %v10309
  %v10374 = vpack.c.b16 %v10310, %v10310
  %v10375 = vpack.c.b16 %v10311, %v10311
  %v10376 = vpack.c.b16 %v10312, %v10312
  %v10377 = vpack.c.b16 %v10313, %v10313
  %v10378 = vpack.c.b16 %v10314, %v10314
  %v10379 = vpack.c.b16 %v10315, %v10315
  %v10380 = vpack.c.b16 %v10316, %v10316
  %v10381 = vpack.c.b16 %v10317, %v10317
  %v10382 = vpack.c.b16 %v10318, %v10318
  %v10383 = vpack.c.b16 %v10319, %v10319
  %v10384 = vpack.c.b16 %v10320, %v10320
  %v10385 = vpack.c.b16 %v10321, %v10321
  %v10386 = vpack.c.b16 %v10322, %v10322
  %v10387 = vpack.c.b16 %v10323, %v10323
  %v10388 = vpack.c.b16 %v10324, %v10324
  %v10389 = vpack.c.b16 %v10325, %v10325
  %v10390 = vpack.c.b16 %v10326, %v10326
  %v10391 = vpack.c.b16 %v10327, %v10327
  %v10392 = vpack.c.b16 %v10328, %v10328
  %v10393 = vpack.c.b16 %v10329, %v10329
  %v10394 = vpack.c.b16 %v10330, %v10330
  %v10395 = vpack.c.b16 %v10331, %v10331
  %v10396 = vpack.c.b16 %v10332, %v10332
  %v10397 = vpack.c.b16 %v10333, %v10333
  %v10398 = vpack.c.b16 %v10334, %v10334
  %v10399 = vpack.c.b16 %v10335, %v10335
  %v10400 = vpack.c.b16 %v10336, %v10336
  %v10401 = vpack.c.b16 %v10337, %v10337
  %v10402 = vpack.c.b16 %v10338, %v10338
  %v10403 = vpack.c.b16 %v10339, %v10339
  %v10404 = vpack.c.b16 %v10340, %v10340
  %v10405 = vpack.c.b16 %v10341, %v10341
  %v10406 = vpack.c.b16 %v10342, %v10342
  %v10407 = vpack.c.b16 %v10343, %v10343
  %v10408 = vpack.c.b16 %v10344, %v10344
  %v10409 = vpack.c.b16 %v10345, %v10345
  %v10410 = vpack.c.b16 %v10346, %v10346
  %v10411 = vpack.c.b16 %v10347, %v10347
  %v10412 = vpack.c.b16 %v10348, %v10348
  %10413 = vrot.lane.b32.xlu0 %v10349, 32
  %v10414 = vpop.permute.xlu0 %10413
  %10415 = vrot.lane.b32.xlu0 %v10350, 32
  %v10416 = vpop.permute.xlu0 %10415
  %10417 = vrot.lane.b32.xlu0 %v10351, 32
  %v10418 = vpop.permute.xlu0 %10417
  %10419 = vrot.lane.b32.xlu0 %v10352, 32
  %v10420 = vpop.permute.xlu0 %10419
  %10421 = vrot.lane.b32.xlu0 %v10353, 32
  %v10422 = vpop.permute.xlu0 %10421
  %10423 = vrot.lane.b32.xlu0 %v10354, 32
  %v10424 = vpop.permute.xlu0 %10423
  %10425 = vrot.lane.b32.xlu0 %v10355, 32
  %v10426 = vpop.permute.xlu0 %10425
  %10427 = vrot.lane.b32.xlu0 %v10356, 32
  %v10428 = vpop.permute.xlu0 %10427
  %10429 = vrot.lane.b32.xlu0 %v10357, 32
  %v10430 = vpop.permute.xlu0 %10429
  %10431 = vrot.lane.b32.xlu0 %v10358, 32
  %v10432 = vpop.permute.xlu0 %10431
  %10433 = vrot.lane.b32.xlu0 %v10359, 32
  %v10434 = vpop.permute.xlu0 %10433
  %10435 = vrot.lane.b32.xlu0 %v10360, 32
  %v10436 = vpop.permute.xlu0 %10435
  %10437 = vrot.lane.b32.xlu0 %v10361, 32
  %v10438 = vpop.permute.xlu0 %10437
  %10439 = vrot.lane.b32.xlu0 %v10362, 32
  %v10440 = vpop.permute.xlu0 %10439
  %10441 = vrot.lane.b32.xlu0 %v10363, 32
  %v10442 = vpop.permute.xlu0 %10441
  %10443 = vrot.lane.b32.xlu0 %v10364, 32
  %v10444 = vpop.permute.xlu0 %10443
  %10445 = vrot.lane.b32.xlu0 %v10365, 32
  %v10446 = vpop.permute.xlu0 %10445
  %10447 = vrot.lane.b32.xlu0 %v10366, 32
  %v10448 = vpop.permute.xlu0 %10447
  %10449 = vrot.lane.b32.xlu0 %v10367, 32
  %v10450 = vpop.permute.xlu0 %10449
  %10451 = vrot.lane.b32.xlu0 %v10368, 32
  %v10452 = vpop.permute.xlu0 %10451
  %10453 = vrot.lane.b32.xlu0 %v10369, 32
  %v10454 = vpop.permute.xlu0 %10453
  %10455 = vrot.lane.b32.xlu0 %v10370, 32
  %v10456 = vpop.permute.xlu0 %10455
  %10457 = vrot.lane.b32.xlu0 %v10371, 32
  %v10458 = vpop.permute.xlu0 %10457
  %10459 = vrot.lane.b32.xlu0 %v10372, 32
  %v10460 = vpop.permute.xlu0 %10459
  %10461 = vrot.lane.b32.xlu0 %v10373, 32
  %v10462 = vpop.permute.xlu0 %10461
  %10463 = vrot.lane.b32.xlu0 %v10374, 32
  %v10464 = vpop.permute.xlu0 %10463
  %10465 = vrot.lane.b32.xlu0 %v10375, 32
  %v10466 = vpop.permute.xlu0 %10465
  %10467 = vrot.lane.b32.xlu0 %v10376, 32
  %v10468 = vpop.permute.xlu0 %10467
  %10469 = vrot.lane.b32.xlu0 %v10377, 32
  %v10470 = vpop.permute.xlu0 %10469
  %10471 = vrot.lane.b32.xlu0 %v10378, 32
  %v10472 = vpop.permute.xlu0 %10471
  %10473 = vrot.lane.b32.xlu0 %v10379, 32
  %v10474 = vpop.permute.xlu0 %10473
  %10475 = vrot.lane.b32.xlu0 %v10380, 32
  %v10476 = vpop.permute.xlu0 %10475
  %10477 = vrot.lane.b32.xlu0 %v10381, 32
  %v10478 = vpop.permute.xlu0 %10477
  %10479 = vrot.lane.b32.xlu0 %v10382, 32
  %v10480 = vpop.permute.xlu0 %10479
  %10481 = vrot.lane.b32.xlu0 %v10383, 32
  %v10482 = vpop.permute.xlu0 %10481
  %10483 = vrot.lane.b32.xlu0 %v10384, 32
  %v10484 = vpop.permute.xlu0 %10483
  %10485 = vrot.lane.b32.xlu0 %v10385, 32
  %v10486 = vpop.permute.xlu0 %10485
  %10487 = vrot.lane.b32.xlu0 %v10386, 32
  %v10488 = vpop.permute.xlu0 %10487
  %10489 = vrot.lane.b32.xlu0 %v10387, 32
  %v10490 = vpop.permute.xlu0 %10489
  %10491 = vrot.lane.b32.xlu0 %v10388, 32
  %v10492 = vpop.permute.xlu0 %10491
  %10493 = vrot.lane.b32.xlu0 %v10389, 32
  %v10494 = vpop.permute.xlu0 %10493
  %10495 = vrot.lane.b32.xlu0 %v10390, 32
  %v10496 = vpop.permute.xlu0 %10495
  %10497 = vrot.lane.b32.xlu0 %v10391, 32
  %v10498 = vpop.permute.xlu0 %10497
  %10499 = vrot.lane.b32.xlu0 %v10392, 32
  %v10500 = vpop.permute.xlu0 %10499
  %10501 = vrot.lane.b32.xlu0 %v10393, 32
  %v10502 = vpop.permute.xlu0 %10501
  %10503 = vrot.lane.b32.xlu0 %v10394, 32
  %v10504 = vpop.permute.xlu0 %10503
  %10505 = vrot.lane.b32.xlu0 %v10395, 32
  %v10506 = vpop.permute.xlu0 %10505
  %10507 = vrot.lane.b32.xlu0 %v10396, 32
  %v10508 = vpop.permute.xlu0 %10507
  %10509 = vrot.lane.b32.xlu0 %v10397, 32
  %v10510 = vpop.permute.xlu0 %10509
  %10511 = vrot.lane.b32.xlu0 %v10398, 32
  %v10512 = vpop.permute.xlu0 %10511
  %10513 = vrot.lane.b32.xlu0 %v10399, 32
  %v10514 = vpop.permute.xlu0 %10513
  %10515 = vrot.lane.b32.xlu0 %v10400, 32
  %v10516 = vpop.permute.xlu0 %10515
  %10517 = vrot.lane.b32.xlu0 %v10401, 32
  %v10518 = vpop.permute.xlu0 %10517
  %10519 = vrot.lane.b32.xlu0 %v10402, 32
  %v10520 = vpop.permute.xlu0 %10519
  %10521 = vrot.lane.b32.xlu0 %v10403, 32
  %v10522 = vpop.permute.xlu0 %10521
  %10523 = vrot.lane.b32.xlu0 %v10404, 32
  %v10524 = vpop.permute.xlu0 %10523
  %10525 = vrot.lane.b32.xlu0 %v10405, 32
  %v10526 = vpop.permute.xlu0 %10525
  %10527 = vrot.lane.b32.xlu0 %v10406, 32
  %v10528 = vpop.permute.xlu0 %10527
  %10529 = vrot.lane.b32.xlu0 %v10407, 32
  %v10530 = vpop.permute.xlu0 %10529
  %10531 = vrot.lane.b32.xlu0 %v10408, 32
  %v10532 = vpop.permute.xlu0 %10531
  %10533 = vrot.lane.b32.xlu0 %v10409, 32
  %v10534 = vpop.permute.xlu0 %10533
  %10535 = vrot.lane.b32.xlu0 %v10410, 32
  %v10536 = vpop.permute.xlu0 %10535
  %10537 = vrot.lane.b32.xlu0 %v10411, 32
  %v10538 = vpop.permute.xlu0 %10537
  %10539 = vrot.lane.b32.xlu0 %v10412, 32
  %v10540 = vpop.permute.xlu0 %10539
  %10605 = vst.msk [vmem:[#allocation5] sm:$0xf] %vm4818, %v10414
  %10606 = vst.msk [vmem:[#allocation5 + $0x4] sm:$0xf] %vm4818, %v10416
  %10607 = vst.msk [vmem:[#allocation5 + $0x8] sm:$0xf] %vm4818, %v10418
  %10608 = vst.msk [vmem:[#allocation5 + $0xc] sm:$0xf] %vm4818, %v10420
  %10609 = vst.msk [vmem:[#allocation5 + $0x10] sm:$0xf] %vm4818, %v10422
  %10610 = vst.msk [vmem:[#allocation5 + $0x14] sm:$0xf] %vm4818, %v10424
  %10611 = vst.msk [vmem:[#allocation5 + $0x18] sm:$0xf] %vm4818, %v10426
  %10612 = vst.msk [vmem:[#allocation5 + $0x1c] sm:$0xf] %vm4818, %v10428
  %10613 = vst.msk [vmem:[#allocation5 + $0x20] sm:$0xf] %vm4818, %v10430
  %10614 = vst.msk [vmem:[#allocation5 + $0x24] sm:$0xf] %vm4818, %v10432
  %10615 = vst.msk [vmem:[#allocation5 + $0x28] sm:$0xf] %vm4818, %v10434
  %10616 = vst.msk [vmem:[#allocation5 + $0x2c] sm:$0xf] %vm4818, %v10436
  %10617 = vst.msk [vmem:[#allocation5 + $0x30] sm:$0xf] %vm4818, %v10438
  %10618 = vst.msk [vmem:[#allocation5 + $0x34] sm:$0xf] %vm4818, %v10440
  %10619 = vst.msk [vmem:[#allocation5 + $0x38] sm:$0xf] %vm4818, %v10442
  %10620 = vst.msk [vmem:[#allocation5 + $0x3c] sm:$0xf] %vm4818, %v10444
  %10621 = vst.msk [vmem:[#allocation5 + $0x40] sm:$0xf] %vm4818, %v10446
  %10622 = vst.msk [vmem:[#allocation5 + $0x44] sm:$0xf] %vm4818, %v10448
  %10623 = vst.msk [vmem:[#allocation5 + $0x48] sm:$0xf] %vm4818, %v10450
  %10624 = vst.msk [vmem:[#allocation5 + $0x4c] sm:$0xf] %vm4818, %v10452
  %10625 = vst.msk [vmem:[#allocation5 + $0x50] sm:$0xf] %vm4818, %v10454
  %10626 = vst.msk [vmem:[#allocation5 + $0x54] sm:$0xf] %vm4818, %v10456
  %10627 = vst.msk [vmem:[#allocation5 + $0x58] sm:$0xf] %vm4818, %v10458
  %10628 = vst.msk [vmem:[#allocation5 + $0x5c] sm:$0xf] %vm4818, %v10460
  %10629 = vst.msk [vmem:[#allocation5 + $0x60] sm:$0xf] %vm4818, %v10462
  %10630 = vst.msk [vmem:[#allocation5 + $0x64] sm:$0xf] %vm4818, %v10464
  %10631 = vst.msk [vmem:[#allocation5 + $0x68] sm:$0xf] %vm4818, %v10466
  %10632 = vst.msk [vmem:[#allocation5 + $0x6c] sm:$0xf] %vm4818, %v10468
  %10633 = vst.msk [vmem:[#allocation5 + $0x70] sm:$0xf] %vm4818, %v10470
  %10634 = vst.msk [vmem:[#allocation5 + $0x74] sm:$0xf] %vm4818, %v10472
  %10635 = vst.msk [vmem:[#allocation5 + $0x78] sm:$0xf] %vm4818, %v10474
  %10636 = vst.msk [vmem:[#allocation5 + $0x7c] sm:$0xf] %vm4818, %v10476
  %10637 = vst.msk [vmem:[#allocation5 + $0x80] sm:$0xf] %vm4818, %v10478
  %10638 = vst.msk [vmem:[#allocation5 + $0x84] sm:$0xf] %vm4818, %v10480
  %10639 = vst.msk [vmem:[#allocation5 + $0x88] sm:$0xf] %vm4818, %v10482
  %10640 = vst.msk [vmem:[#allocation5 + $0x8c] sm:$0xf] %vm4818, %v10484
  %10641 = vst.msk [vmem:[#allocation5 + $0x90] sm:$0xf] %vm4818, %v10486
  %10642 = vst.msk [vmem:[#allocation5 + $0x94] sm:$0xf] %vm4818, %v10488
  %10643 = vst.msk [vmem:[#allocation5 + $0x98] sm:$0xf] %vm4818, %v10490
  %10644 = vst.msk [vmem:[#allocation5 + $0x9c] sm:$0xf] %vm4818, %v10492
  %10645 = vst.msk [vmem:[#allocation5 + $0xa0] sm:$0xf] %vm4818, %v10494
  %10646 = vst.msk [vmem:[#allocation5 + $0xa4] sm:$0xf] %vm4818, %v10496
  %10647 = vst.msk [vmem:[#allocation5 + $0xa8] sm:$0xf] %vm4818, %v10498
  %10648 = vst.msk [vmem:[#allocation5 + $0xac] sm:$0xf] %vm4818, %v10500
  %10649 = vst.msk [vmem:[#allocation5 + $0xb0] sm:$0xf] %vm4818, %v10502
  %10650 = vst.msk [vmem:[#allocation5 + $0xb4] sm:$0xf] %vm4818, %v10504
  %10651 = vst.msk [vmem:[#allocation5 + $0xb8] sm:$0xf] %vm4818, %v10506
  %10652 = vst.msk [vmem:[#allocation5 + $0xbc] sm:$0xf] %vm4818, %v10508
  %10653 = vst.msk [vmem:[#allocation5 + $0xc0] sm:$0xf] %vm4818, %v10510
  %10654 = vst.msk [vmem:[#allocation5 + $0xc4] sm:$0xf] %vm4818, %v10512
  %10655 = vst.msk [vmem:[#allocation5 + $0xc8] sm:$0xf] %vm4818, %v10514
  %10656 = vst.msk [vmem:[#allocation5 + $0xcc] sm:$0xf] %vm4818, %v10516
  %10657 = vst.msk [vmem:[#allocation5 + $0xd0] sm:$0xf] %vm4818, %v10518
  %10658 = vst.msk [vmem:[#allocation5 + $0xd4] sm:$0xf] %vm4818, %v10520
  %10659 = vst.msk [vmem:[#allocation5 + $0xd8] sm:$0xf] %vm4818, %v10522
  %10660 = vst.msk [vmem:[#allocation5 + $0xdc] sm:$0xf] %vm4818, %v10524
  %10661 = vst.msk [vmem:[#allocation5 + $0xe0] sm:$0xf] %vm4818, %v10526
  %10662 = vst.msk [vmem:[#allocation5 + $0xe4] sm:$0xf] %vm4818, %v10528
  %10663 = vst.msk [vmem:[#allocation5 + $0xe8] sm:$0xf] %vm4818, %v10530
  %10664 = vst.msk [vmem:[#allocation5 + $0xec] sm:$0xf] %vm4818, %v10532
  %10665 = vst.msk [vmem:[#allocation5 + $0xf0] sm:$0xf] %vm4818, %v10534
  %10666 = vst.msk [vmem:[#allocation5 + $0xf4] sm:$0xf] %vm4818, %v10536
  %10667 = vst.msk [vmem:[#allocation5 + $0xf8] sm:$0xf] %vm4818, %v10538
  %10668 = vst.msk [vmem:[#allocation5 + $0xfc] sm:$0xf] %vm4818, %v10540
  %v10669 = vld [vmem:[#allocation5] sm:$0xf]
  %v10670 = vld [vmem:[#allocation5 + $0x4] sm:$0xf]
  %v10671 = vld [vmem:[#allocation5 + $0x8] sm:$0xf]
  %v10672 = vld [vmem:[#allocation5 + $0xc] sm:$0xf]
  %v10673 = vld [vmem:[#allocation5 + $0x10] sm:$0xf]
  %v10674 = vld [vmem:[#allocation5 + $0x14] sm:$0xf]
  %v10675 = vld [vmem:[#allocation5 + $0x18] sm:$0xf]
  %v10676 = vld [vmem:[#allocation5 + $0x1c] sm:$0xf]
  %v10677 = vld [vmem:[#allocation5 + $0x20] sm:$0xf]
  %v10678 = vld [vmem:[#allocation5 + $0x24] sm:$0xf]
  %v10679 = vld [vmem:[#allocation5 + $0x28] sm:$0xf]
  %v10680 = vld [vmem:[#allocation5 + $0x2c] sm:$0xf]
  %v10681 = vld [vmem:[#allocation5 + $0x30] sm:$0xf]
  %v10682 = vld [vmem:[#allocation5 + $0x34] sm:$0xf]
  %v10683 = vld [vmem:[#allocation5 + $0x38] sm:$0xf]
  %v10684 = vld [vmem:[#allocation5 + $0x3c] sm:$0xf]
  %v10685 = vld [vmem:[#allocation5 + $0x40] sm:$0xf]
  %v10686 = vld [vmem:[#allocation5 + $0x44] sm:$0xf]
  %v10687 = vld [vmem:[#allocation5 + $0x48] sm:$0xf]
  %v10688 = vld [vmem:[#allocation5 + $0x4c] sm:$0xf]
  %v10689 = vld [vmem:[#allocation5 + $0x50] sm:$0xf]
  %v10690 = vld [vmem:[#allocation5 + $0x54] sm:$0xf]
  %v10691 = vld [vmem:[#allocation5 + $0x58] sm:$0xf]
  %v10692 = vld [vmem:[#allocation5 + $0x5c] sm:$0xf]
  %v10693 = vld [vmem:[#allocation5 + $0x60] sm:$0xf]
  %v10694 = vld [vmem:[#allocation5 + $0x64] sm:$0xf]
  %v10695 = vld [vmem:[#allocation5 + $0x68] sm:$0xf]
  %v10696 = vld [vmem:[#allocation5 + $0x6c] sm:$0xf]
  %v10697 = vld [vmem:[#allocation5 + $0x70] sm:$0xf]
  %v10698 = vld [vmem:[#allocation5 + $0x74] sm:$0xf]
  %v10699 = vld [vmem:[#allocation5 + $0x78] sm:$0xf]
  %v10700 = vld [vmem:[#allocation5 + $0x7c] sm:$0xf]
  %v10701 = vld [vmem:[#allocation5 + $0x80] sm:$0xf]
  %v10702 = vld [vmem:[#allocation5 + $0x84] sm:$0xf]
  %v10703 = vld [vmem:[#allocation5 + $0x88] sm:$0xf]
  %v10704 = vld [vmem:[#allocation5 + $0x8c] sm:$0xf]
  %v10705 = vld [vmem:[#allocation5 + $0x90] sm:$0xf]
  %v10706 = vld [vmem:[#allocation5 + $0x94] sm:$0xf]
  %v10707 = vld [vmem:[#allocation5 + $0x98] sm:$0xf]
  %v10708 = vld [vmem:[#allocation5 + $0x9c] sm:$0xf]
  %v10709 = vld [vmem:[#allocation5 + $0xa0] sm:$0xf]
  %v10710 = vld [vmem:[#allocation5 + $0xa4] sm:$0xf]
  %v10711 = vld [vmem:[#allocation5 + $0xa8] sm:$0xf]
  %v10712 = vld [vmem:[#allocation5 + $0xac] sm:$0xf]
  %v10713 = vld [vmem:[#allocation5 + $0xb0] sm:$0xf]
  %v10714 = vld [vmem:[#allocation5 + $0xb4] sm:$0xf]
  %v10715 = vld [vmem:[#allocation5 + $0xb8] sm:$0xf]
  %v10716 = vld [vmem:[#allocation5 + $0xbc] sm:$0xf]
  %v10717 = vld [vmem:[#allocation5 + $0xc0] sm:$0xf]
  %v10718 = vld [vmem:[#allocation5 + $0xc4] sm:$0xf]
  %v10719 = vld [vmem:[#allocation5 + $0xc8] sm:$0xf]
  %v10720 = vld [vmem:[#allocation5 + $0xcc] sm:$0xf]
  %v10721 = vld [vmem:[#allocation5 + $0xd0] sm:$0xf]
  %v10722 = vld [vmem:[#allocation5 + $0xd4] sm:$0xf]
  %v10723 = vld [vmem:[#allocation5 + $0xd8] sm:$0xf]
  %v10724 = vld [vmem:[#allocation5 + $0xdc] sm:$0xf]
  %v10725 = vld [vmem:[#allocation5 + $0xe0] sm:$0xf]
  %v10726 = vld [vmem:[#allocation5 + $0xe4] sm:$0xf]
  %v10727 = vld [vmem:[#allocation5 + $0xe8] sm:$0xf]
  %v10728 = vld [vmem:[#allocation5 + $0xec] sm:$0xf]
  %v10729 = vld [vmem:[#allocation5 + $0xf0] sm:$0xf]
  %v10730 = vld [vmem:[#allocation5 + $0xf4] sm:$0xf]
  %v10731 = vld [vmem:[#allocation5 + $0xf8] sm:$0xf]
  %v10732 = vld [vmem:[#allocation5 + $0xfc] sm:$0xf]
  %v10733 = vld [vmem:[%s4] sm:$0xf]
  %v10734 = vld [vmem:[%s4 + $0x4] sm:$0xf]
  %v10735 = vld [vmem:[%s4 + $0x8] sm:$0xf]
  %v10736 = vld [vmem:[%s4 + $0xc] sm:$0xf]
  %v10737 = vld [vmem:[%s4 + $0x10] sm:$0x3]
  %v10802 = vunpack.c.l.b16 %v10669
  %v10803 = vunpack.c.l.b16 %v10670
  %v10804 = vunpack.c.l.b16 %v10671
  %v10805 = vunpack.c.l.b16 %v10672
  %v10806 = vunpack.c.l.b16 %v10673
  %v10807 = vunpack.c.l.b16 %v10674
  %v10808 = vunpack.c.l.b16 %v10675
  %v10809 = vunpack.c.l.b16 %v10676
  %v10810 = vunpack.c.l.b16 %v10677
  %v10811 = vunpack.c.l.b16 %v10678
  %v10812 = vunpack.c.l.b16 %v10679
  %v10813 = vunpack.c.l.b16 %v10680
  %v10814 = vunpack.c.l.b16 %v10681
  %v10815 = vunpack.c.l.b16 %v10682
  %v10816 = vunpack.c.l.b16 %v10683
  %v10817 = vunpack.c.l.b16 %v10684
  %v10818 = vunpack.c.l.b16 %v10685
  %v10819 = vunpack.c.l.b16 %v10686
  %v10820 = vunpack.c.l.b16 %v10687
  %v10821 = vunpack.c.l.b16 %v10688
  %v10822 = vunpack.c.l.b16 %v10689
  %v10823 = vunpack.c.l.b16 %v10690
  %v10824 = vunpack.c.l.b16 %v10691
  %v10825 = vunpack.c.l.b16 %v10692
  %v10826 = vunpack.c.l.b16 %v10693
  %v10827 = vunpack.c.l.b16 %v10694
  %v10828 = vunpack.c.l.b16 %v10695
  %v10829 = vunpack.c.l.b16 %v10696
  %v10830 = vunpack.c.l.b16 %v10697
  %v10831 = vunpack.c.l.b16 %v10698
  %v10832 = vunpack.c.l.b16 %v10699
  %v10833 = vunpack.c.l.b16 %v10700
  %v10834 = vunpack.c.l.b16 %v10701
  %v10835 = vunpack.c.l.b16 %v10702
  %v10836 = vunpack.c.l.b16 %v10703
  %v10837 = vunpack.c.l.b16 %v10704
  %v10838 = vunpack.c.l.b16 %v10705
  %v10839 = vunpack.c.l.b16 %v10706
  %v10840 = vunpack.c.l.b16 %v10707
  %v10841 = vunpack.c.l.b16 %v10708
  %v10842 = vunpack.c.l.b16 %v10709
  %v10843 = vunpack.c.l.b16 %v10710
  %v10844 = vunpack.c.l.b16 %v10711
  %v10845 = vunpack.c.l.b16 %v10712
  %v10846 = vunpack.c.l.b16 %v10713
  %v10847 = vunpack.c.l.b16 %v10714
  %v10848 = vunpack.c.l.b16 %v10715
  %v10849 = vunpack.c.l.b16 %v10716
  %v10850 = vunpack.c.l.b16 %v10717
  %v10851 = vunpack.c.l.b16 %v10718
  %v10852 = vunpack.c.l.b16 %v10719
  %v10853 = vunpack.c.l.b16 %v10720
  %v10854 = vunpack.c.l.b16 %v10721
  %v10855 = vunpack.c.l.b16 %v10722
  %v10856 = vunpack.c.l.b16 %v10723
  %v10857 = vunpack.c.l.b16 %v10724
  %v10858 = vunpack.c.l.b16 %v10725
  %v10859 = vunpack.c.l.b16 %v10726
  %v10860 = vunpack.c.l.b16 %v10727
  %v10861 = vunpack.c.l.b16 %v10728
  %v10862 = vunpack.c.l.b16 %v10729
  %v10863 = vunpack.c.l.b16 %v10730
  %v10864 = vunpack.c.l.b16 %v10731
  %v10865 = vunpack.c.l.b16 %v10732
  %v10866 = vpack.c.b16 %v10803, %v10802
  %v10867 = vpack.c.b16 %v10805, %v10804
  %v10868 = vpack.c.b16 %v10807, %v10806
  %v10869 = vpack.c.b16 %v10809, %v10808
  %v10870 = vpack.c.b16 %v10811, %v10810
  %v10871 = vpack.c.b16 %v10813, %v10812
  %v10872 = vpack.c.b16 %v10815, %v10814
  %v10873 = vpack.c.b16 %v10817, %v10816
  %v10874 = vpack.c.b16 %v10819, %v10818
  %v10875 = vpack.c.b16 %v10821, %v10820
  %v10876 = vpack.c.b16 %v10823, %v10822
  %v10877 = vpack.c.b16 %v10825, %v10824
  %v10878 = vpack.c.b16 %v10827, %v10826
  %v10879 = vpack.c.b16 %v10829, %v10828
  %v10880 = vpack.c.b16 %v10831, %v10830
  %v10881 = vpack.c.b16 %v10833, %v10832
  %v10882 = vpack.c.b16 %v10835, %v10834
  %v10883 = vpack.c.b16 %v10837, %v10836
  %v10884 = vpack.c.b16 %v10839, %v10838
  %v10885 = vpack.c.b16 %v10841, %v10840
  %v10886 = vpack.c.b16 %v10843, %v10842
  %v10887 = vpack.c.b16 %v10845, %v10844
  %v10888 = vpack.c.b16 %v10847, %v10846
  %v10889 = vpack.c.b16 %v10849, %v10848
  %v10890 = vpack.c.b16 %v10851, %v10850
  %v10891 = vpack.c.b16 %v10853, %v10852
  %v10892 = vpack.c.b16 %v10855, %v10854
  %v10893 = vpack.c.b16 %v10857, %v10856
  %v10894 = vpack.c.b16 %v10859, %v10858
  %v10895 = vpack.c.b16 %v10861, %v10860
  %v10896 = vpack.c.b16 %v10863, %v10862
  %v10897 = vpack.c.b16 %v10865, %v10864
  %v10903 = vunpack.c.l.b16 %v10733
  %v10904 = vunpack.c.l.b16 %v10734
  %v10905 = vunpack.c.l.b16 %v10735
  %v10906 = vunpack.c.l.b16 %v10736
  %v10907 = vunpack.c.l.b16 %v10737
  %v10908 = vpack.c.b16 %v10904, %v10903
  %v10909 = vpack.c.b16 %v10906, %v10905
  %v10910 = vpack.c.b16 %v10907, %v10907
  %v10914 = vsel %vm5127, %v10866, 0
  %v10917 = vsel %vm5127, %v10867, 0
  %v10920 = vsel %vm5127, %v10868, 0
  %v10923 = vsel %vm5127, %v10869, 0
  %v10926 = vsel %vm5127, %v10870, 0
  %v10929 = vsel %vm5127, %v10871, 0
  %v10932 = vsel %vm5127, %v10872, 0
  %v10935 = vsel %vm5127, %v10873, 0
  %v10938 = vsel %vm5127, %v10874, 0
  %v10941 = vsel %vm5127, %v10875, 0
  %v10944 = vsel %vm5127, %v10876, 0
  %v10947 = vsel %vm5127, %v10877, 0
  %v10950 = vsel %vm5127, %v10878, 0
  %v10953 = vsel %vm5127, %v10879, 0
  %v10956 = vsel %vm5127, %v10880, 0
  %v10959 = vsel %vm5127, %v10881, 0
  %v10962 = vsel %vm5127, %v10882, 0
  %v10965 = vsel %vm5127, %v10883, 0
  %v10968 = vsel %vm5127, %v10884, 0
  %v10971 = vsel %vm5127, %v10885, 0
  %v10974 = vsel %vm5127, %v10886, 0
  %v10977 = vsel %vm5127, %v10887, 0
  %v10980 = vsel %vm5127, %v10888, 0
  %v10983 = vsel %vm5127, %v10889, 0
  %v10986 = vsel %vm5127, %v10890, 0
  %v10989 = vsel %vm5127, %v10891, 0
  %v10992 = vsel %vm5127, %v10892, 0
  %v10995 = vsel %vm5127, %v10893, 0
  %v10998 = vsel %vm5127, %v10894, 0
  %v11001 = vsel %vm5127, %v10895, 0
  %v11004 = vsel %vm5127, %v10896, 0
  %v11007 = vsel %vm5127, %v10897, 0
  %v11010 = vsel %vm5224, %v10910, 0
  %11012 = vmatprep.subr.bf16.mxu0 0
  %11013 = vmatpush1.bf16.msra.mxu0 0
  %11014 = vmatprep.subr.bf16.mxu0 0
  %11015 = vmatpush1.bf16.msra.mxu0 0
  %11016 = vmatprep.subr.bf16.mxu0 0
  %11017 = vmatpush1.bf16.msra.mxu0 0
  %11018 = vmatprep.subr.bf16.mxu0 0
  %11019 = vmatpush1.bf16.msra.mxu0 0
  %11020 = vmatprep.subr.bf16.mxu0 0
  %11021 = vmatpush1.bf16.msra.mxu0 0
  %11022 = vmatprep.subr.bf16.mxu0 0
  %11023 = vmatpush1.bf16.msra.mxu0 %v11010
  %11024 = vmatprep.subr.bf16.mxu0 0
  %11025 = vmatpush1.bf16.msra.mxu0 %v10909
  %11026 = vmatprep.subr.bf16.mxu0 0
  %11027 = vmatpush1.bf16.msra.mxu0 %v10908
  %11028 = vmatprep.subr.bf16.mxu0 0
  %11029 = vmatpush2.bf16.msra.mxu0 0
  %11030 = vmatprep.subr.bf16.mxu0 0
  %11031 = vmatpush2.bf16.msra.mxu0 0
  %11032 = vmatprep.subr.bf16.mxu0 0
  %11033 = vmatpush2.bf16.msra.mxu0 0
  %11034 = vmatprep.subr.bf16.mxu0 0
  %11035 = vmatpush2.bf16.msra.mxu0 0
  %11036 = vmatprep.subr.bf16.mxu0 0
  %11037 = vmatpush2.bf16.msra.mxu0 0
  %11038 = vmatprep.subr.bf16.mxu0 0
  %11039 = vmatpush2.bf16.msra.mxu0 0
  %11040 = vmatprep.subr.bf16.mxu0 0
  %11041 = vmatpush2.bf16.msra.mxu0 0
  %11042 = vmatprep.subr.bf16.mxu0 0
  %11043 = vmatpush2.bf16.msra.mxu0 0
  %11044 = vmatprep.mubr.bf16.mxu0 0
  %11045 = vmatmul.mubr.bf16.gmra.mxu0 %v10914
  %v11046 = vpop.f32.mrf.mxu0
  %v11047 = vadd.f32 0.0, %v11046
  %v11048 = vpop.f32.mrf.mxu0
  %v11049 = vpop.f32.mrf.mxu0
  %v11050 = vadd.f32 0.0, %v11049
  %v11051 = vpop.f32.mrf.mxu0
  %11052 = vmatprep.mubr.bf16.mxu0 0
  %11053 = vmatmul.mubr.bf16.gmra.mxu0 %v10917
  %v11054 = vpop.f32.mrf.mxu0
  %v11055 = vadd.f32 0.0, %v11054
  %v11056 = vpop.f32.mrf.mxu0
  %v11057 = vpop.f32.mrf.mxu0
  %v11058 = vadd.f32 0.0, %v11057
  %v11059 = vpop.f32.mrf.mxu0
  %11060 = vmatprep.mubr.bf16.mxu0 0
  %11061 = vmatmul.mubr.bf16.gmra.mxu0 %v10920
  %v11062 = vpop.f32.mrf.mxu0
  %v11063 = vadd.f32 0.0, %v11062
  %v11064 = vpop.f32.mrf.mxu0
  %v11065 = vpop.f32.mrf.mxu0
  %v11066 = vadd.f32 0.0, %v11065
  %v11067 = vpop.f32.mrf.mxu0
  %11068 = vmatprep.mubr.bf16.mxu0 0
  %11069 = vmatmul.mubr.bf16.gmra.mxu0 %v10923
  %v11070 = vpop.f32.mrf.mxu0
  %v11071 = vadd.f32 0.0, %v11070
  %v11072 = vpop.f32.mrf.mxu0
  %v11073 = vpop.f32.mrf.mxu0
  %v11074 = vadd.f32 0.0, %v11073
  %v11075 = vpop.f32.mrf.mxu0
  %11076 = vmatprep.mubr.bf16.mxu0 0
  %11077 = vmatmul.mubr.bf16.gmra.mxu0 %v10926
  %v11078 = vpop.f32.mrf.mxu0
  %v11079 = vadd.f32 0.0, %v11078
  %v11080 = vpop.f32.mrf.mxu0
  %v11081 = vpop.f32.mrf.mxu0
  %v11082 = vadd.f32 0.0, %v11081
  %v11083 = vpop.f32.mrf.mxu0
  %11084 = vmatprep.mubr.bf16.mxu0 0
  %11085 = vmatmul.mubr.bf16.gmra.mxu0 %v10929
  %v11086 = vpop.f32.mrf.mxu0
  %v11087 = vadd.f32 0.0, %v11086
  %v11088 = vpop.f32.mrf.mxu0
  %v11089 = vpop.f32.mrf.mxu0
  %v11090 = vadd.f32 0.0, %v11089
  %v11091 = vpop.f32.mrf.mxu0
  %11092 = vmatprep.mubr.bf16.mxu0 0
  %11093 = vmatmul.mubr.bf16.gmra.mxu0 %v10932
  %v11094 = vpop.f32.mrf.mxu0
  %v11095 = vadd.f32 0.0, %v11094
  %v11096 = vpop.f32.mrf.mxu0
  %v11097 = vpop.f32.mrf.mxu0
  %v11098 = vadd.f32 0.0, %v11097
  %v11099 = vpop.f32.mrf.mxu0
  %11100 = vmatprep.mubr.bf16.mxu0 0
  %11101 = vmatmul.mubr.bf16.gmra.mxu0 %v10935
  %v11102 = vpop.f32.mrf.mxu0
  %v11103 = vadd.f32 0.0, %v11102
  %v11104 = vpop.f32.mrf.mxu0
  %v11105 = vpop.f32.mrf.mxu0
  %v11106 = vadd.f32 0.0, %v11105
  %v11107 = vpop.f32.mrf.mxu0
  %11108 = vmatprep.mubr.bf16.mxu0 0
  %11109 = vmatmul.mubr.bf16.gmra.mxu0 %v10938
  %v11110 = vpop.f32.mrf.mxu0
  %v11111 = vadd.f32 0.0, %v11110
  %v11112 = vpop.f32.mrf.mxu0
  %v11113 = vpop.f32.mrf.mxu0
  %v11114 = vadd.f32 0.0, %v11113
  %v11115 = vpop.f32.mrf.mxu0
  %11116 = vmatprep.mubr.bf16.mxu0 0
  %11117 = vmatmul.mubr.bf16.gmra.mxu0 %v10941
  %v11118 = vpop.f32.mrf.mxu0
  %v11119 = vadd.f32 0.0, %v11118
  %v11120 = vpop.f32.mrf.mxu0
  %v11121 = vpop.f32.mrf.mxu0
  %v11122 = vadd.f32 0.0, %v11121
  %v11123 = vpop.f32.mrf.mxu0
  %11124 = vmatprep.mubr.bf16.mxu0 0
  %11125 = vmatmul.mubr.bf16.gmra.mxu0 %v10944
  %v11126 = vpop.f32.mrf.mxu0
  %v11127 = vadd.f32 0.0, %v11126
  %v11128 = vpop.f32.mrf.mxu0
  %v11129 = vpop.f32.mrf.mxu0
  %v11130 = vadd.f32 0.0, %v11129
  %v11131 = vpop.f32.mrf.mxu0
  %11132 = vmatprep.mubr.bf16.mxu0 0
  %11133 = vmatmul.mubr.bf16.gmra.mxu0 %v10947
  %v11134 = vpop.f32.mrf.mxu0
  %v11135 = vadd.f32 0.0, %v11134
  %v11136 = vpop.f32.mrf.mxu0
  %v11137 = vpop.f32.mrf.mxu0
  %v11138 = vadd.f32 0.0, %v11137
  %v11139 = vpop.f32.mrf.mxu0
  %11140 = vmatprep.mubr.bf16.mxu0 0
  %11141 = vmatmul.mubr.bf16.gmra.mxu0 %v10950
  %v11142 = vpop.f32.mrf.mxu0
  %v11143 = vadd.f32 0.0, %v11142
  %v11144 = vpop.f32.mrf.mxu0
  %v11145 = vpop.f32.mrf.mxu0
  %v11146 = vadd.f32 0.0, %v11145
  %v11147 = vpop.f32.mrf.mxu0
  %11148 = vmatprep.mubr.bf16.mxu0 0
  %11149 = vmatmul.mubr.bf16.gmra.mxu0 %v10953
  %v11150 = vpop.f32.mrf.mxu0
  %v11151 = vadd.f32 0.0, %v11150
  %v11152 = vpop.f32.mrf.mxu0
  %v11153 = vpop.f32.mrf.mxu0
  %v11154 = vadd.f32 0.0, %v11153
  %v11155 = vpop.f32.mrf.mxu0
  %11156 = vmatprep.mubr.bf16.mxu0 0
  %11157 = vmatmul.mubr.bf16.gmra.mxu0 %v10956
  %v11158 = vpop.f32.mrf.mxu0
  %v11159 = vadd.f32 0.0, %v11158
  %v11160 = vpop.f32.mrf.mxu0
  %v11161 = vpop.f32.mrf.mxu0
  %v11162 = vadd.f32 0.0, %v11161
  %v11163 = vpop.f32.mrf.mxu0
  %11164 = vmatprep.mubr.bf16.mxu0 0
  %11165 = vmatmul.mubr.bf16.gmra.mxu0 %v10959
  %v11166 = vpop.f32.mrf.mxu0
  %v11167 = vadd.f32 0.0, %v11166
  %v11168 = vpop.f32.mrf.mxu0
  %v11169 = vpop.f32.mrf.mxu0
  %v11170 = vadd.f32 0.0, %v11169
  %v11171 = vpop.f32.mrf.mxu0
  %11172 = vmatprep.mubr.bf16.mxu0 0
  %11173 = vmatmul.mubr.bf16.gmra.mxu0 %v10962
  %v11174 = vpop.f32.mrf.mxu0
  %v11175 = vadd.f32 0.0, %v11174
  %v11176 = vpop.f32.mrf.mxu0
  %v11177 = vpop.f32.mrf.mxu0
  %v11178 = vadd.f32 0.0, %v11177
  %v11179 = vpop.f32.mrf.mxu0
  %11180 = vmatprep.mubr.bf16.mxu0 0
  %11181 = vmatmul.mubr.bf16.gmra.mxu0 %v10965
  %v11182 = vpop.f32.mrf.mxu0
  %v11183 = vadd.f32 0.0, %v11182
  %v11184 = vpop.f32.mrf.mxu0
  %v11185 = vpop.f32.mrf.mxu0
  %v11186 = vadd.f32 0.0, %v11185
  %v11187 = vpop.f32.mrf.mxu0
  %11188 = vmatprep.mubr.bf16.mxu0 0
  %11189 = vmatmul.mubr.bf16.gmra.mxu0 %v10968
  %v11190 = vpop.f32.mrf.mxu0
  %v11191 = vadd.f32 0.0, %v11190
  %v11192 = vpop.f32.mrf.mxu0
  %v11193 = vpop.f32.mrf.mxu0
  %v11194 = vadd.f32 0.0, %v11193
  %v11195 = vpop.f32.mrf.mxu0
  %11196 = vmatprep.mubr.bf16.mxu0 0
  %11197 = vmatmul.mubr.bf16.gmra.mxu0 %v10971
  %v11198 = vpop.f32.mrf.mxu0
  %v11199 = vadd.f32 0.0, %v11198
  %v11200 = vpop.f32.mrf.mxu0
  %v11201 = vpop.f32.mrf.mxu0
  %v11202 = vadd.f32 0.0, %v11201
  %v11203 = vpop.f32.mrf.mxu0
  %11204 = vmatprep.mubr.bf16.mxu0 0
  %11205 = vmatmul.mubr.bf16.gmra.mxu0 %v10974
  %v11206 = vpop.f32.mrf.mxu0
  %v11207 = vadd.f32 0.0, %v11206
  %v11208 = vpop.f32.mrf.mxu0
  %v11209 = vpop.f32.mrf.mxu0
  %v11210 = vadd.f32 0.0, %v11209
  %v11211 = vpop.f32.mrf.mxu0
  %11212 = vmatprep.mubr.bf16.mxu0 0
  %11213 = vmatmul.mubr.bf16.gmra.mxu0 %v10977
  %v11214 = vpop.f32.mrf.mxu0
  %v11215 = vadd.f32 0.0, %v11214
  %v11216 = vpop.f32.mrf.mxu0
  %v11217 = vpop.f32.mrf.mxu0
  %v11218 = vadd.f32 0.0, %v11217
  %v11219 = vpop.f32.mrf.mxu0
  %11220 = vmatprep.mubr.bf16.mxu0 0
  %11221 = vmatmul.mubr.bf16.gmra.mxu0 %v10980
  %v11222 = vpop.f32.mrf.mxu0
  %v11223 = vadd.f32 0.0, %v11222
  %v11224 = vpop.f32.mrf.mxu0
  %v11225 = vpop.f32.mrf.mxu0
  %v11226 = vadd.f32 0.0, %v11225
  %v11227 = vpop.f32.mrf.mxu0
  %11228 = vmatprep.mubr.bf16.mxu0 0
  %11229 = vmatmul.mubr.bf16.gmra.mxu0 %v10983
  %v11230 = vpop.f32.mrf.mxu0
  %v11231 = vadd.f32 0.0, %v11230
  %v11232 = vpop.f32.mrf.mxu0
  %v11233 = vpop.f32.mrf.mxu0
  %v11234 = vadd.f32 0.0, %v11233
  %v11235 = vpop.f32.mrf.mxu0
  %11236 = vmatprep.mubr.bf16.mxu0 0
  %11237 = vmatmul.mubr.bf16.gmra.mxu0 %v10986
  %v11238 = vpop.f32.mrf.mxu0
  %v11239 = vadd.f32 0.0, %v11238
  %v11240 = vpop.f32.mrf.mxu0
  %v11241 = vpop.f32.mrf.mxu0
  %v11242 = vadd.f32 0.0, %v11241
  %v11243 = vpop.f32.mrf.mxu0
  %11244 = vmatprep.mubr.bf16.mxu0 0
  %11245 = vmatmul.mubr.bf16.gmra.mxu0 %v10989
  %v11246 = vpop.f32.mrf.mxu0
  %v11247 = vadd.f32 0.0, %v11246
  %v11248 = vpop.f32.mrf.mxu0
  %v11249 = vpop.f32.mrf.mxu0
  %v11250 = vadd.f32 0.0, %v11249
  %v11251 = vpop.f32.mrf.mxu0
  %11252 = vmatprep.mubr.bf16.mxu0 0
  %11253 = vmatmul.mubr.bf16.gmra.mxu0 %v10992
  %v11254 = vpop.f32.mrf.mxu0
  %v11255 = vadd.f32 0.0, %v11254
  %v11256 = vpop.f32.mrf.mxu0
  %v11257 = vpop.f32.mrf.mxu0
  %v11258 = vadd.f32 0.0, %v11257
  %v11259 = vpop.f32.mrf.mxu0
  %11260 = vmatprep.mubr.bf16.mxu0 0
  %11261 = vmatmul.mubr.bf16.gmra.mxu0 %v10995
  %v11262 = vpop.f32.mrf.mxu0
  %v11263 = vadd.f32 0.0, %v11262
  %v11264 = vpop.f32.mrf.mxu0
  %v11265 = vpop.f32.mrf.mxu0
  %v11266 = vadd.f32 0.0, %v11265
  %v11267 = vpop.f32.mrf.mxu0
  %11268 = vmatprep.mubr.bf16.mxu0 0
  %11269 = vmatmul.mubr.bf16.gmra.mxu0 %v10998
  %v11270 = vpop.f32.mrf.mxu0
  %v11271 = vadd.f32 0.0, %v11270
  %v11272 = vpop.f32.mrf.mxu0
  %v11273 = vpop.f32.mrf.mxu0
  %v11274 = vadd.f32 0.0, %v11273
  %v11275 = vpop.f32.mrf.mxu0
  %11276 = vmatprep.mubr.bf16.mxu0 0
  %11277 = vmatmul.mubr.bf16.gmra.mxu0 %v11001
  %v11278 = vpop.f32.mrf.mxu0
  %v11279 = vadd.f32 0.0, %v11278
  %v11280 = vpop.f32.mrf.mxu0
  %v11281 = vpop.f32.mrf.mxu0
  %v11282 = vadd.f32 0.0, %v11281
  %v11283 = vpop.f32.mrf.mxu0
  %11284 = vmatprep.mubr.bf16.mxu0 0
  %11285 = vmatmul.mubr.bf16.gmra.mxu0 %v11004
  %v11286 = vpop.f32.mrf.mxu0
  %v11287 = vadd.f32 0.0, %v11286
  %v11288 = vpop.f32.mrf.mxu0
  %v11289 = vpop.f32.mrf.mxu0
  %v11290 = vadd.f32 0.0, %v11289
  %v11291 = vpop.f32.mrf.mxu0
  %11292 = vmatprep.mubr.bf16.mxu0 0
  %11293 = vmatmul.mubr.bf16.gmra.mxu0 %v11007
  %v11294 = vpop.f32.mrf.mxu0
  %v11295 = vadd.f32 0.0, %v11294
  %v11296 = vpop.f32.mrf.mxu0
  %v11297 = vpop.f32.mrf.mxu0
  %v11298 = vadd.f32 0.0, %v11297
  %v11299 = vpop.f32.mrf.mxu0
  %11300 = vdwg.mxu0
  %v11301 = vld [vmem:[%s5] sm:$0x1]
  %v11302 = vld [vmem:[%s6] sm:$0x1]
  %v11303 = vsel %vm27, %v11047, 0.0
  %v11304 = vsel %vm27, %v11050, 0.0
  %v11305 = vadd.f32 %v11303, %v11304
  %v11306 = vsel %vm27, %v11055, 0.0
  %v11307 = vadd.f32 %v11305, %v11306
  %v11308 = vsel %vm27, %v11058, 0.0
  %v11309 = vadd.f32 %v11307, %v11308
  %v11310 = vsel %vm27, %v11063, 0.0
  %v11311 = vadd.f32 %v11309, %v11310
  %v11312 = vsel %vm27, %v11066, 0.0
  %v11313 = vadd.f32 %v11311, %v11312
  %v11314 = vsel %vm27, %v11071, 0.0
  %v11315 = vadd.f32 %v11313, %v11314
  %v11316 = vsel %vm27, %v11074, 0.0
  %v11317 = vadd.f32 %v11315, %v11316
  %v11318 = vsel %vm27, %v11079, 0.0
  %v11319 = vadd.f32 %v11317, %v11318
  %v11320 = vsel %vm27, %v11082, 0.0
  %v11321 = vadd.f32 %v11319, %v11320
  %v11322 = vsel %vm27, %v11087, 0.0
  %v11323 = vadd.f32 %v11321, %v11322
  %v11324 = vsel %vm27, %v11090, 0.0
  %v11325 = vadd.f32 %v11323, %v11324
  %v11326 = vsel %vm27, %v11095, 0.0
  %v11327 = vadd.f32 %v11325, %v11326
  %v11328 = vsel %vm27, %v11098, 0.0
  %v11329 = vadd.f32 %v11327, %v11328
  %v11330 = vsel %vm27, %v11103, 0.0
  %v11331 = vadd.f32 %v11329, %v11330
  %v11332 = vsel %vm27, %v11106, 0.0
  %v11333 = vadd.f32 %v11331, %v11332
  %v11334 = vsel %vm27, %v11111, 0.0
  %v11335 = vadd.f32 %v11333, %v11334
  %v11336 = vsel %vm27, %v11114, 0.0
  %v11337 = vadd.f32 %v11335, %v11336
  %v11338 = vsel %vm27, %v11119, 0.0
  %v11339 = vadd.f32 %v11337, %v11338
  %v11340 = vsel %vm27, %v11122, 0.0
  %v11341 = vadd.f32 %v11339, %v11340
  %v11342 = vsel %vm27, %v11127, 0.0
  %v11343 = vadd.f32 %v11341, %v11342
  %v11344 = vsel %vm27, %v11130, 0.0
  %v11345 = vadd.f32 %v11343, %v11344
  %v11346 = vsel %vm27, %v11135, 0.0
  %v11347 = vadd.f32 %v11345, %v11346
  %v11348 = vsel %vm27, %v11138, 0.0
  %v11349 = vadd.f32 %v11347, %v11348
  %v11350 = vsel %vm27, %v11143, 0.0
  %v11351 = vadd.f32 %v11349, %v11350
  %v11352 = vsel %vm27, %v11146, 0.0
  %v11353 = vadd.f32 %v11351, %v11352
  %v11354 = vsel %vm27, %v11151, 0.0
  %v11355 = vadd.f32 %v11353, %v11354
  %v11356 = vsel %vm27, %v11154, 0.0
  %v11357 = vadd.f32 %v11355, %v11356
  %v11358 = vsel %vm27, %v11159, 0.0
  %v11359 = vadd.f32 %v11357, %v11358
  %v11360 = vsel %vm27, %v11162, 0.0
  %v11361 = vadd.f32 %v11359, %v11360
  %v11362 = vsel %vm27, %v11167, 0.0
  %v11363 = vadd.f32 %v11361, %v11362
  %v11364 = vsel %vm27, %v11170, 0.0
  %v11365 = vadd.f32 %v11363, %v11364
  %v11366 = vsel %vm27, %v11175, 0.0
  %v11367 = vadd.f32 %v11365, %v11366
  %v11368 = vsel %vm27, %v11178, 0.0
  %v11369 = vadd.f32 %v11367, %v11368
  %v11370 = vsel %vm27, %v11183, 0.0
  %v11371 = vadd.f32 %v11369, %v11370
  %v11372 = vsel %vm27, %v11186, 0.0
  %v11373 = vadd.f32 %v11371, %v11372
  %v11374 = vsel %vm27, %v11191, 0.0
  %v11375 = vadd.f32 %v11373, %v11374
  %v11376 = vsel %vm27, %v11194, 0.0
  %v11377 = vadd.f32 %v11375, %v11376
  %v11378 = vsel %vm27, %v11199, 0.0
  %v11379 = vadd.f32 %v11377, %v11378
  %v11380 = vsel %vm27, %v11202, 0.0
  %v11381 = vadd.f32 %v11379, %v11380
  %v11382 = vsel %vm27, %v11207, 0.0
  %v11383 = vadd.f32 %v11381, %v11382
  %v11384 = vsel %vm27, %v11210, 0.0
  %v11385 = vadd.f32 %v11383, %v11384
  %v11386 = vsel %vm27, %v11215, 0.0
  %v11387 = vadd.f32 %v11385, %v11386
  %v11388 = vsel %vm27, %v11218, 0.0
  %v11389 = vadd.f32 %v11387, %v11388
  %v11390 = vsel %vm27, %v11223, 0.0
  %v11391 = vadd.f32 %v11389, %v11390
  %v11392 = vsel %vm27, %v11226, 0.0
  %v11393 = vadd.f32 %v11391, %v11392
  %v11394 = vsel %vm27, %v11231, 0.0
  %v11395 = vadd.f32 %v11393, %v11394
  %v11396 = vsel %vm27, %v11234, 0.0
  %v11397 = vadd.f32 %v11395, %v11396
  %v11398 = vsel %vm27, %v11239, 0.0
  %v11399 = vadd.f32 %v11397, %v11398
  %v11400 = vsel %vm27, %v11242, 0.0
  %v11401 = vadd.f32 %v11399, %v11400
  %v11402 = vsel %vm27, %v11247, 0.0
  %v11403 = vadd.f32 %v11401, %v11402
  %v11404 = vsel %vm27, %v11250, 0.0
  %v11405 = vadd.f32 %v11403, %v11404
  %v11406 = vsel %vm27, %v11255, 0.0
  %v11407 = vadd.f32 %v11405, %v11406
  %v11408 = vsel %vm27, %v11258, 0.0
  %v11409 = vadd.f32 %v11407, %v11408
  %v11410 = vsel %vm27, %v11263, 0.0
  %v11411 = vadd.f32 %v11409, %v11410
  %v11412 = vsel %vm27, %v11266, 0.0
  %v11413 = vadd.f32 %v11411, %v11412
  %v11414 = vsel %vm27, %v11271, 0.0
  %v11415 = vadd.f32 %v11413, %v11414
  %v11416 = vsel %vm27, %v11274, 0.0
  %v11417 = vadd.f32 %v11415, %v11416
  %v11418 = vsel %vm27, %v11279, 0.0
  %v11419 = vadd.f32 %v11417, %v11418
  %v11420 = vsel %vm27, %v11282, 0.0
  %v11421 = vadd.f32 %v11419, %v11420
  %v11422 = vsel %vm27, %v11287, 0.0
  %v11423 = vadd.f32 %v11421, %v11422
  %v11424 = vsel %vm27, %v11290, 0.0
  %v11425 = vadd.f32 %v11423, %v11424
  %v11426 = vsel %vm27, %v11295, 0.0
  %v11427 = vadd.f32 %v11425, %v11426
  %v11428 = vsel %vm27, %v11298, 0.0
  %v11429 = vadd.f32 %v11427, %v11428
  %v11430 = vrot.slane %v11429, 4
  %v11431 = vadd.f32 %v11429, %v11430
  %v11432 = vrot.slane %v11431, 2
  %v11433 = vadd.f32 %v11431, %v11432
  %v11434 = vrot.slane %v11433, 1
  %v11435 = vadd.f32 %v11433, %v11434
  %v11436 = vmul.f32 %v11435, 0.001953125
  %v11437 = vmul.f32 %v11047, %v11047
  %v11438 = vmul.f32 %v11050, %v11050
  %v11439 = vmul.f32 %v11055, %v11055
  %v11440 = vmul.f32 %v11058, %v11058
  %v11441 = vmul.f32 %v11063, %v11063
  %v11442 = vmul.f32 %v11066, %v11066
  %v11443 = vmul.f32 %v11071, %v11071
  %v11444 = vmul.f32 %v11074, %v11074
  %v11445 = vmul.f32 %v11079, %v11079
  %v11446 = vmul.f32 %v11082, %v11082
  %v11447 = vmul.f32 %v11087, %v11087
  %v11448 = vmul.f32 %v11090, %v11090
  %v11449 = vmul.f32 %v11095, %v11095
  %v11450 = vmul.f32 %v11098, %v11098
  %v11451 = vmul.f32 %v11103, %v11103
  %v11452 = vmul.f32 %v11106, %v11106
  %v11453 = vmul.f32 %v11111, %v11111
  %v11454 = vmul.f32 %v11114, %v11114
  %v11455 = vmul.f32 %v11119, %v11119
  %v11456 = vmul.f32 %v11122, %v11122
  %v11457 = vmul.f32 %v11127, %v11127
  %v11458 = vmul.f32 %v11130, %v11130
  %v11459 = vmul.f32 %v11135, %v11135
  %v11460 = vmul.f32 %v11138, %v11138
  %v11461 = vmul.f32 %v11143, %v11143
  %v11462 = vmul.f32 %v11146, %v11146
  %v11463 = vmul.f32 %v11151, %v11151
  %v11464 = vmul.f32 %v11154, %v11154
  %v11465 = vmul.f32 %v11159, %v11159
  %v11466 = vmul.f32 %v11162, %v11162
  %v11467 = vmul.f32 %v11167, %v11167
  %v11468 = vmul.f32 %v11170, %v11170
  %v11469 = vmul.f32 %v11175, %v11175
  %v11470 = vmul.f32 %v11178, %v11178
  %v11471 = vmul.f32 %v11183, %v11183
  %v11472 = vmul.f32 %v11186, %v11186
  %v11473 = vmul.f32 %v11191, %v11191
  %v11474 = vmul.f32 %v11194, %v11194
  %v11475 = vmul.f32 %v11199, %v11199
  %v11476 = vmul.f32 %v11202, %v11202
  %v11477 = vmul.f32 %v11207, %v11207
  %v11478 = vmul.f32 %v11210, %v11210
  %v11479 = vmul.f32 %v11215, %v11215
  %v11480 = vmul.f32 %v11218, %v11218
  %v11481 = vmul.f32 %v11223, %v11223
  %v11482 = vmul.f32 %v11226, %v11226
  %v11483 = vmul.f32 %v11231, %v11231
  %v11484 = vmul.f32 %v11234, %v11234
  %v11485 = vmul.f32 %v11239, %v11239
  %v11486 = vmul.f32 %v11242, %v11242
  %v11487 = vmul.f32 %v11247, %v11247
  %v11488 = vmul.f32 %v11250, %v11250
  %v11489 = vmul.f32 %v11255, %v11255
  %v11490 = vmul.f32 %v11258, %v11258
  %v11491 = vmul.f32 %v11263, %v11263
  %v11492 = vmul.f32 %v11266, %v11266
  %v11493 = vmul.f32 %v11271, %v11271
  %v11494 = vmul.f32 %v11274, %v11274
  %v11495 = vmul.f32 %v11279, %v11279
  %v11496 = vmul.f32 %v11282, %v11282
  %v11497 = vmul.f32 %v11287, %v11287
  %v11498 = vmul.f32 %v11290, %v11290
  %v11499 = vmul.f32 %v11295, %v11295
  %v11500 = vmul.f32 %v11298, %v11298
  %v11501 = vsel %vm27, %v11437, 0.0
  %v11502 = vsel %vm27, %v11438, 0.0
  %v11503 = vadd.f32 %v11501, %v11502
  %v11504 = vsel %vm27, %v11439, 0.0
  %v11505 = vadd.f32 %v11503, %v11504
  %v11506 = vsel %vm27, %v11440, 0.0
  %v11507 = vadd.f32 %v11505, %v11506
  %v11508 = vsel %vm27, %v11441, 0.0
  %v11509 = vadd.f32 %v11507, %v11508
  %v11510 = vsel %vm27, %v11442, 0.0
  %v11511 = vadd.f32 %v11509, %v11510
  %v11512 = vsel %vm27, %v11443, 0.0
  %v11513 = vadd.f32 %v11511, %v11512
  %v11514 = vsel %vm27, %v11444, 0.0
  %v11515 = vadd.f32 %v11513, %v11514
  %v11516 = vsel %vm27, %v11445, 0.0
  %v11517 = vadd.f32 %v11515, %v11516
  %v11518 = vsel %vm27, %v11446, 0.0
  %v11519 = vadd.f32 %v11517, %v11518
  %v11520 = vsel %vm27, %v11447, 0.0
  %v11521 = vadd.f32 %v11519, %v11520
  %v11522 = vsel %vm27, %v11448, 0.0
  %v11523 = vadd.f32 %v11521, %v11522
  %v11524 = vsel %vm27, %v11449, 0.0
  %v11525 = vadd.f32 %v11523, %v11524
  %v11526 = vsel %vm27, %v11450, 0.0
  %v11527 = vadd.f32 %v11525, %v11526
  %v11528 = vsel %vm27, %v11451, 0.0
  %v11529 = vadd.f32 %v11527, %v11528
  %v11530 = vsel %vm27, %v11452, 0.0
  %v11531 = vadd.f32 %v11529, %v11530
  %v11532 = vsel %vm27, %v11453, 0.0
  %v11533 = vadd.f32 %v11531, %v11532
  %v11534 = vsel %vm27, %v11454, 0.0
  %v11535 = vadd.f32 %v11533, %v11534
  %v11536 = vsel %vm27, %v11455, 0.0
  %v11537 = vadd.f32 %v11535, %v11536
  %v11538 = vsel %vm27, %v11456, 0.0
  %v11539 = vadd.f32 %v11537, %v11538
  %v11540 = vsel %vm27, %v11457, 0.0
  %v11541 = vadd.f32 %v11539, %v11540
  %v11542 = vsel %vm27, %v11458, 0.0
  %v11543 = vadd.f32 %v11541, %v11542
  %v11544 = vsel %vm27, %v11459, 0.0
  %v11545 = vadd.f32 %v11543, %v11544
  %v11546 = vsel %vm27, %v11460, 0.0
  %v11547 = vadd.f32 %v11545, %v11546
  %v11548 = vsel %vm27, %v11461, 0.0
  %v11549 = vadd.f32 %v11547, %v11548
  %v11550 = vsel %vm27, %v11462, 0.0
  %v11551 = vadd.f32 %v11549, %v11550
  %v11552 = vsel %vm27, %v11463, 0.0
  %v11553 = vadd.f32 %v11551, %v11552
  %v11554 = vsel %vm27, %v11464, 0.0
  %v11555 = vadd.f32 %v11553, %v11554
  %v11556 = vsel %vm27, %v11465, 0.0
  %v11557 = vadd.f32 %v11555, %v11556
  %v11558 = vsel %vm27, %v11466, 0.0
  %v11559 = vadd.f32 %v11557, %v11558
  %v11560 = vsel %vm27, %v11467, 0.0
  %v11561 = vadd.f32 %v11559, %v11560
  %v11562 = vsel %vm27, %v11468, 0.0
  %v11563 = vadd.f32 %v11561, %v11562
  %v11564 = vsel %vm27, %v11469, 0.0
  %v11565 = vadd.f32 %v11563, %v11564
  %v11566 = vsel %vm27, %v11470, 0.0
  %v11567 = vadd.f32 %v11565, %v11566
  %v11568 = vsel %vm27, %v11471, 0.0
  %v11569 = vadd.f32 %v11567, %v11568
  %v11570 = vsel %vm27, %v11472, 0.0
  %v11571 = vadd.f32 %v11569, %v11570
  %v11572 = vsel %vm27, %v11473, 0.0
  %v11573 = vadd.f32 %v11571, %v11572
  %v11574 = vsel %vm27, %v11474, 0.0
  %v11575 = vadd.f32 %v11573, %v11574
  %v11576 = vsel %vm27, %v11475, 0.0
  %v11577 = vadd.f32 %v11575, %v11576
  %v11578 = vsel %vm27, %v11476, 0.0
  %v11579 = vadd.f32 %v11577, %v11578
  %v11580 = vsel %vm27, %v11477, 0.0
  %v11581 = vadd.f32 %v11579, %v11580
  %v11582 = vsel %vm27, %v11478, 0.0
  %v11583 = vadd.f32 %v11581, %v11582
  %v11584 = vsel %vm27, %v11479, 0.0
  %v11585 = vadd.f32 %v11583, %v11584
  %v11586 = vsel %vm27, %v11480, 0.0
  %v11587 = vadd.f32 %v11585, %v11586
  %v11588 = vsel %vm27, %v11481, 0.0
  %v11589 = vadd.f32 %v11587, %v11588
  %v11590 = vsel %vm27, %v11482, 0.0
  %v11591 = vadd.f32 %v11589, %v11590
  %v11592 = vsel %vm27, %v11483, 0.0
  %v11593 = vadd.f32 %v11591, %v11592
  %v11594 = vsel %vm27, %v11484, 0.0
  %v11595 = vadd.f32 %v11593, %v11594
  %v11596 = vsel %vm27, %v11485, 0.0
  %v11597 = vadd.f32 %v11595, %v11596
  %v11598 = vsel %vm27, %v11486, 0.0
  %v11599 = vadd.f32 %v11597, %v11598
  %v11600 = vsel %vm27, %v11487, 0.0
  %v11601 = vadd.f32 %v11599, %v11600
  %v11602 = vsel %vm27, %v11488, 0.0
  %v11603 = vadd.f32 %v11601, %v11602
  %v11604 = vsel %vm27, %v11489, 0.0
  %v11605 = vadd.f32 %v11603, %v11604
  %v11606 = vsel %vm27, %v11490, 0.0
  %v11607 = vadd.f32 %v11605, %v11606
  %v11608 = vsel %vm27, %v11491, 0.0
  %v11609 = vadd.f32 %v11607, %v11608
  %v11610 = vsel %vm27, %v11492, 0.0
  %v11611 = vadd.f32 %v11609, %v11610
  %v11612 = vsel %vm27, %v11493, 0.0
  %v11613 = vadd.f32 %v11611, %v11612
  %v11614 = vsel %vm27, %v11494, 0.0
  %v11615 = vadd.f32 %v11613, %v11614
  %v11616 = vsel %vm27, %v11495, 0.0
  %v11617 = vadd.f32 %v11615, %v11616
  %v11618 = vsel %vm27, %v11496, 0.0
  %v11619 = vadd.f32 %v11617, %v11618
  %v11620 = vsel %vm27, %v11497, 0.0
  %v11621 = vadd.f32 %v11619, %v11620
  %v11622 = vsel %vm27, %v11498, 0.0
  %v11623 = vadd.f32 %v11621, %v11622
  %v11624 = vsel %vm27, %v11499, 0.0
  %v11625 = vadd.f32 %v11623, %v11624
  %v11626 = vsel %vm27, %v11500, 0.0
  %v11627 = vadd.f32 %v11625, %v11626
  %v11628 = vrot.slane %v11627, 4
  %v11629 = vadd.f32 %v11627, %v11628
  %v11630 = vrot.slane %v11629, 2
  %v11631 = vadd.f32 %v11629, %v11630
  %v11632 = vrot.slane %v11631, 1
  %v11633 = vadd.f32 %v11631, %v11632
  %v11634 = vmul.f32 %v11633, 0.001953125
  %v11635 = vmul.f32 %v11436, %v11436
  %v11636 = vsub.f32 %v11634, %v11635
  %v11637 = vmax.f32 %v11636, 0.0
  %v11638 = vsub.f32 %v11047, %v11436
  %v11639 = vsub.f32 %v11050, %v11436
  %v11640 = vsub.f32 %v11055, %v11436
  %v11641 = vsub.f32 %v11058, %v11436
  %v11642 = vsub.f32 %v11063, %v11436
  %v11643 = vsub.f32 %v11066, %v11436
  %v11644 = vsub.f32 %v11071, %v11436
  %v11645 = vsub.f32 %v11074, %v11436
  %v11646 = vsub.f32 %v11079, %v11436
  %v11647 = vsub.f32 %v11082, %v11436
  %v11648 = vsub.f32 %v11087, %v11436
  %v11649 = vsub.f32 %v11090, %v11436
  %v11650 = vsub.f32 %v11095, %v11436
  %v11651 = vsub.f32 %v11098, %v11436
  %v11652 = vsub.f32 %v11103, %v11436
  %v11653 = vsub.f32 %v11106, %v11436
  %v11654 = vsub.f32 %v11111, %v11436
  %v11655 = vsub.f32 %v11114, %v11436
  %v11656 = vsub.f32 %v11119, %v11436
  %v11657 = vsub.f32 %v11122, %v11436
  %v11658 = vsub.f32 %v11127, %v11436
  %v11659 = vsub.f32 %v11130, %v11436
  %v11660 = vsub.f32 %v11135, %v11436
  %v11661 = vsub.f32 %v11138, %v11436
  %v11662 = vsub.f32 %v11143, %v11436
  %v11663 = vsub.f32 %v11146, %v11436
  %v11664 = vsub.f32 %v11151, %v11436
  %v11665 = vsub.f32 %v11154, %v11436
  %v11666 = vsub.f32 %v11159, %v11436
  %v11667 = vsub.f32 %v11162, %v11436
  %v11668 = vsub.f32 %v11167, %v11436
  %v11669 = vsub.f32 %v11170, %v11436
  %v11670 = vsub.f32 %v11175, %v11436
  %v11671 = vsub.f32 %v11178, %v11436
  %v11672 = vsub.f32 %v11183, %v11436
  %v11673 = vsub.f32 %v11186, %v11436
  %v11674 = vsub.f32 %v11191, %v11436
  %v11675 = vsub.f32 %v11194, %v11436
  %v11676 = vsub.f32 %v11199, %v11436
  %v11677 = vsub.f32 %v11202, %v11436
  %v11678 = vsub.f32 %v11207, %v11436
  %v11679 = vsub.f32 %v11210, %v11436
  %v11680 = vsub.f32 %v11215, %v11436
  %v11681 = vsub.f32 %v11218, %v11436
  %v11682 = vsub.f32 %v11223, %v11436
  %v11683 = vsub.f32 %v11226, %v11436
  %v11684 = vsub.f32 %v11231, %v11436
  %v11685 = vsub.f32 %v11234, %v11436
  %v11686 = vsub.f32 %v11239, %v11436
  %v11687 = vsub.f32 %v11242, %v11436
  %v11688 = vsub.f32 %v11247, %v11436
  %v11689 = vsub.f32 %v11250, %v11436
  %v11690 = vsub.f32 %v11255, %v11436
  %v11691 = vsub.f32 %v11258, %v11436
  %v11692 = vsub.f32 %v11263, %v11436
  %v11693 = vsub.f32 %v11266, %v11436
  %v11694 = vsub.f32 %v11271, %v11436
  %v11695 = vsub.f32 %v11274, %v11436
  %v11696 = vsub.f32 %v11279, %v11436
  %v11697 = vsub.f32 %v11282, %v11436
  %v11698 = vsub.f32 %v11287, %v11436
  %v11699 = vsub.f32 %v11290, %v11436
  %v11700 = vsub.f32 %v11295, %v11436
  %v11701 = vsub.f32 %v11298, %v11436
  %v11702 = vadd.f32 %v11637, 1e-05
  %v11703 = vrsqrt.pop %v11702
  %v11704 = vmul.f32 %v11703, %v11301
  %v11705 = vlaneseq
  %v11706 = vshrl.u32 %v11705, 7
  %v11707 = vsub.s32 0, %v11706
  %v11708 = vrot.slane %v11704, %v11707
  %v11709 = vmul.f32 %v11638, %v11708
  %v11710 = vmul.f32 %v11639, %v11708
  %v11711 = vmul.f32 %v11640, %v11708
  %v11712 = vmul.f32 %v11641, %v11708
  %v11713 = vmul.f32 %v11642, %v11708
  %v11714 = vmul.f32 %v11643, %v11708
  %v11715 = vmul.f32 %v11644, %v11708
  %v11716 = vmul.f32 %v11645, %v11708
  %v11717 = vmul.f32 %v11646, %v11708
  %v11718 = vmul.f32 %v11647, %v11708
  %v11719 = vmul.f32 %v11648, %v11708
  %v11720 = vmul.f32 %v11649, %v11708
  %v11721 = vmul.f32 %v11650, %v11708
  %v11722 = vmul.f32 %v11651, %v11708
  %v11723 = vmul.f32 %v11652, %v11708
  %v11724 = vmul.f32 %v11653, %v11708
  %v11725 = vmul.f32 %v11654, %v11708
  %v11726 = vmul.f32 %v11655, %v11708
  %v11727 = vmul.f32 %v11656, %v11708
  %v11728 = vmul.f32 %v11657, %v11708
  %v11729 = vmul.f32 %v11658, %v11708
  %v11730 = vmul.f32 %v11659, %v11708
  %v11731 = vmul.f32 %v11660, %v11708
  %v11732 = vmul.f32 %v11661, %v11708
  %v11733 = vmul.f32 %v11662, %v11708
  %v11734 = vmul.f32 %v11663, %v11708
  %v11735 = vmul.f32 %v11664, %v11708
  %v11736 = vmul.f32 %v11665, %v11708
  %v11737 = vmul.f32 %v11666, %v11708
  %v11738 = vmul.f32 %v11667, %v11708
  %v11739 = vmul.f32 %v11668, %v11708
  %v11740 = vmul.f32 %v11669, %v11708
  %v11741 = vmul.f32 %v11670, %v11708
  %v11742 = vmul.f32 %v11671, %v11708
  %v11743 = vmul.f32 %v11672, %v11708
  %v11744 = vmul.f32 %v11673, %v11708
  %v11745 = vmul.f32 %v11674, %v11708
  %v11746 = vmul.f32 %v11675, %v11708
  %v11747 = vmul.f32 %v11676, %v11708
  %v11748 = vmul.f32 %v11677, %v11708
  %v11749 = vmul.f32 %v11678, %v11708
  %v11750 = vmul.f32 %v11679, %v11708
  %v11751 = vmul.f32 %v11680, %v11708
  %v11752 = vmul.f32 %v11681, %v11708
  %v11753 = vmul.f32 %v11682, %v11708
  %v11754 = vmul.f32 %v11683, %v11708
  %v11755 = vmul.f32 %v11684, %v11708
  %v11756 = vmul.f32 %v11685, %v11708
  %v11757 = vmul.f32 %v11686, %v11708
  %v11758 = vmul.f32 %v11687, %v11708
  %v11759 = vmul.f32 %v11688, %v11708
  %v11760 = vmul.f32 %v11689, %v11708
  %v11761 = vmul.f32 %v11690, %v11708
  %v11762 = vmul.f32 %v11691, %v11708
  %v11763 = vmul.f32 %v11692, %v11708
  %v11764 = vmul.f32 %v11693, %v11708
  %v11765 = vmul.f32 %v11694, %v11708
  %v11766 = vmul.f32 %v11695, %v11708
  %v11767 = vmul.f32 %v11696, %v11708
  %v11768 = vmul.f32 %v11697, %v11708
  %v11769 = vmul.f32 %v11698, %v11708
  %v11770 = vmul.f32 %v11699, %v11708
  %v11771 = vmul.f32 %v11700, %v11708
  %v11772 = vmul.f32 %v11701, %v11708
  %v11774 = vlaneseq
  %v11775 = vshrl.u32 %v11774, 7
  %v11776 = vsub.s32 0, %v11775
  %v11777 = vrot.slane %v11302, %v11776
  %v11779 = vadd.f32 %v11709, %v11777
  %v11780 = vadd.f32 %v11710, %v11777
  %v11781 = vadd.f32 %v11711, %v11777
  %v11782 = vadd.f32 %v11712, %v11777
  %v11783 = vadd.f32 %v11713, %v11777
  %v11784 = vadd.f32 %v11714, %v11777
  %v11785 = vadd.f32 %v11715, %v11777
  %v11786 = vadd.f32 %v11716, %v11777
  %v11787 = vadd.f32 %v11717, %v11777
  %v11788 = vadd.f32 %v11718, %v11777
  %v11789 = vadd.f32 %v11719, %v11777
  %v11790 = vadd.f32 %v11720, %v11777
  %v11791 = vadd.f32 %v11721, %v11777
  %v11792 = vadd.f32 %v11722, %v11777
  %v11793 = vadd.f32 %v11723, %v11777
  %v11794 = vadd.f32 %v11724, %v11777
  %v11795 = vadd.f32 %v11725, %v11777
  %v11796 = vadd.f32 %v11726, %v11777
  %v11797 = vadd.f32 %v11727, %v11777
  %v11798 = vadd.f32 %v11728, %v11777
  %v11799 = vadd.f32 %v11729, %v11777
  %v11800 = vadd.f32 %v11730, %v11777
  %v11801 = vadd.f32 %v11731, %v11777
  %v11802 = vadd.f32 %v11732, %v11777
  %v11803 = vadd.f32 %v11733, %v11777
  %v11804 = vadd.f32 %v11734, %v11777
  %v11805 = vadd.f32 %v11735, %v11777
  %v11806 = vadd.f32 %v11736, %v11777
  %v11807 = vadd.f32 %v11737, %v11777
  %v11808 = vadd.f32 %v11738, %v11777
  %v11809 = vadd.f32 %v11739, %v11777
  %v11810 = vadd.f32 %v11740, %v11777
  %v11811 = vadd.f32 %v11741, %v11777
  %v11812 = vadd.f32 %v11742, %v11777
  %v11813 = vadd.f32 %v11743, %v11777
  %v11814 = vadd.f32 %v11744, %v11777
  %v11815 = vadd.f32 %v11745, %v11777
  %v11816 = vadd.f32 %v11746, %v11777
  %v11817 = vadd.f32 %v11747, %v11777
  %v11818 = vadd.f32 %v11748, %v11777
  %v11819 = vadd.f32 %v11749, %v11777
  %v11820 = vadd.f32 %v11750, %v11777
  %v11821 = vadd.f32 %v11751, %v11777
  %v11822 = vadd.f32 %v11752, %v11777
  %v11823 = vadd.f32 %v11753, %v11777
  %v11824 = vadd.f32 %v11754, %v11777
  %v11825 = vadd.f32 %v11755, %v11777
  %v11826 = vadd.f32 %v11756, %v11777
  %v11827 = vadd.f32 %v11757, %v11777
  %v11828 = vadd.f32 %v11758, %v11777
  %v11829 = vadd.f32 %v11759, %v11777
  %v11830 = vadd.f32 %v11760, %v11777
  %v11831 = vadd.f32 %v11761, %v11777
  %v11832 = vadd.f32 %v11762, %v11777
  %v11833 = vadd.f32 %v11763, %v11777
  %v11834 = vadd.f32 %v11764, %v11777
  %v11835 = vadd.f32 %v11765, %v11777
  %v11836 = vadd.f32 %v11766, %v11777
  %v11837 = vadd.f32 %v11767, %v11777
  %v11838 = vadd.f32 %v11768, %v11777
  %v11839 = vadd.f32 %v11769, %v11777
  %v11840 = vadd.f32 %v11770, %v11777
  %v11841 = vadd.f32 %v11771, %v11777
  %v11842 = vadd.f32 %v11772, %v11777
  %v11843 = vld [vmem:[%s0] sm:$0xf]
  %v11844 = vld [vmem:[%s0 + $0x4] sm:$0xf]
  %v11845 = vld [vmem:[%s0 + $0x8] sm:$0xf]
  %v11846 = vld [vmem:[%s0 + $0xc] sm:$0xf]
  %v11847 = vld [vmem:[%s0 + $0x10] sm:$0xf]
  %v11848 = vld [vmem:[%s0 + $0x14] sm:$0xf]
  %v11849 = vld [vmem:[%s0 + $0x18] sm:$0xf]
  %v11850 = vld [vmem:[%s0 + $0x1c] sm:$0xf]
  %v11851 = vld [vmem:[%s0 + $0x20] sm:$0xf]
  %v11852 = vld [vmem:[%s0 + $0x24] sm:$0xf]
  %v11853 = vld [vmem:[%s0 + $0x28] sm:$0xf]
  %v11854 = vld [vmem:[%s0 + $0x2c] sm:$0xf]
  %v11855 = vld [vmem:[%s0 + $0x30] sm:$0xf]
  %v11856 = vld [vmem:[%s0 + $0x34] sm:$0xf]
  %v11857 = vld [vmem:[%s0 + $0x38] sm:$0xf]
  %v11858 = vld [vmem:[%s0 + $0x3c] sm:$0xf]
  %v11859 = vld [vmem:[%s0 + $0x40] sm:$0xf]
  %v11860 = vld [vmem:[%s0 + $0x44] sm:$0xf]
  %v11861 = vld [vmem:[%s0 + $0x48] sm:$0xf]
  %v11862 = vld [vmem:[%s0 + $0x4c] sm:$0xf]
  %v11863 = vld [vmem:[%s0 + $0x50] sm:$0xf]
  %v11864 = vld [vmem:[%s0 + $0x54] sm:$0xf]
  %v11865 = vld [vmem:[%s0 + $0x58] sm:$0xf]
  %v11866 = vld [vmem:[%s0 + $0x5c] sm:$0xf]
  %v11867 = vld [vmem:[%s0 + $0x60] sm:$0xf]
  %v11868 = vld [vmem:[%s0 + $0x64] sm:$0xf]
  %v11869 = vld [vmem:[%s0 + $0x68] sm:$0xf]
  %v11870 = vld [vmem:[%s0 + $0x6c] sm:$0xf]
  %v11871 = vld [vmem:[%s0 + $0x70] sm:$0xf]
  %v11872 = vld [vmem:[%s0 + $0x74] sm:$0xf]
  %v11873 = vld [vmem:[%s0 + $0x78] sm:$0xf]
  %v11874 = vld [vmem:[%s0 + $0x7c] sm:$0xf]
  %v11875 = vld [vmem:[%s0 + $0x80] sm:$0xf]
  %v11876 = vld [vmem:[%s0 + $0x84] sm:$0xf]
  %v11877 = vld [vmem:[%s0 + $0x88] sm:$0xf]
  %v11878 = vld [vmem:[%s0 + $0x8c] sm:$0xf]
  %v11879 = vld [vmem:[%s0 + $0x90] sm:$0xf]
  %v11880 = vld [vmem:[%s0 + $0x94] sm:$0xf]
  %v11881 = vld [vmem:[%s0 + $0x98] sm:$0xf]
  %v11882 = vld [vmem:[%s0 + $0x9c] sm:$0xf]
  %v11883 = vld [vmem:[%s0 + $0xa0] sm:$0xf]
  %v11884 = vld [vmem:[%s0 + $0xa4] sm:$0xf]
  %v11885 = vld [vmem:[%s0 + $0xa8] sm:$0xf]
  %v11886 = vld [vmem:[%s0 + $0xac] sm:$0xf]
  %v11887 = vld [vmem:[%s0 + $0xb0] sm:$0xf]
  %v11888 = vld [vmem:[%s0 + $0xb4] sm:$0xf]
  %v11889 = vld [vmem:[%s0 + $0xb8] sm:$0xf]
  %v11890 = vld [vmem:[%s0 + $0xbc] sm:$0xf]
  %v11891 = vld [vmem:[%s0 + $0xc0] sm:$0xf]
  %v11892 = vld [vmem:[%s0 + $0xc4] sm:$0xf]
  %v11893 = vld [vmem:[%s0 + $0xc8] sm:$0xf]
  %v11894 = vld [vmem:[%s0 + $0xcc] sm:$0xf]
  %v11895 = vld [vmem:[%s0 + $0xd0] sm:$0xf]
  %v11896 = vld [vmem:[%s0 + $0xd4] sm:$0xf]
  %v11897 = vld [vmem:[%s0 + $0xd8] sm:$0xf]
  %v11898 = vld [vmem:[%s0 + $0xdc] sm:$0xf]
  %v11899 = vld [vmem:[%s0 + $0xe0] sm:$0xf]
  %v11900 = vld [vmem:[%s0 + $0xe4] sm:$0xf]
  %v11901 = vld [vmem:[%s0 + $0xe8] sm:$0xf]
  %v11902 = vld [vmem:[%s0 + $0xec] sm:$0xf]
  %v11903 = vld [vmem:[%s0 + $0xf0] sm:$0xf]
  %v11904 = vld [vmem:[%s0 + $0xf4] sm:$0xf]
  %v11905 = vld [vmem:[%s0 + $0xf8] sm:$0xf]
  %v11906 = vld [vmem:[%s0 + $0xfc] sm:$0xf]
  %v11907 = vunpack.c.l.bf16 %v11843
  %v11908 = vunpack.c.l.bf16 %v11844
  %v11909 = vunpack.c.l.bf16 %v11845
  %v11910 = vunpack.c.l.bf16 %v11846
  %v11911 = vunpack.c.l.bf16 %v11847
  %v11912 = vunpack.c.l.bf16 %v11848
  %v11913 = vunpack.c.l.bf16 %v11849
  %v11914 = vunpack.c.l.bf16 %v11850
  %v11915 = vunpack.c.l.bf16 %v11851
  %v11916 = vunpack.c.l.bf16 %v11852
  %v11917 = vunpack.c.l.bf16 %v11853
  %v11918 = vunpack.c.l.bf16 %v11854
  %v11919 = vunpack.c.l.bf16 %v11855
  %v11920 = vunpack.c.l.bf16 %v11856
  %v11921 = vunpack.c.l.bf16 %v11857
  %v11922 = vunpack.c.l.bf16 %v11858
  %v11923 = vunpack.c.l.bf16 %v11859
  %v11924 = vunpack.c.l.bf16 %v11860
  %v11925 = vunpack.c.l.bf16 %v11861
  %v11926 = vunpack.c.l.bf16 %v11862
  %v11927 = vunpack.c.l.bf16 %v11863
  %v11928 = vunpack.c.l.bf16 %v11864
  %v11929 = vunpack.c.l.bf16 %v11865
  %v11930 = vunpack.c.l.bf16 %v11866
  %v11931 = vunpack.c.l.bf16 %v11867
  %v11932 = vunpack.c.l.bf16 %v11868
  %v11933 = vunpack.c.l.bf16 %v11869
  %v11934 = vunpack.c.l.bf16 %v11870
  %v11935 = vunpack.c.l.bf16 %v11871
  %v11936 = vunpack.c.l.bf16 %v11872
  %v11937 = vunpack.c.l.bf16 %v11873
  %v11938 = vunpack.c.l.bf16 %v11874
  %v11939 = vunpack.c.l.bf16 %v11875
  %v11940 = vunpack.c.l.bf16 %v11876
  %v11941 = vunpack.c.l.bf16 %v11877
  %v11942 = vunpack.c.l.bf16 %v11878
  %v11943 = vunpack.c.l.bf16 %v11879
  %v11944 = vunpack.c.l.bf16 %v11880
  %v11945 = vunpack.c.l.bf16 %v11881
  %v11946 = vunpack.c.l.bf16 %v11882
  %v11947 = vunpack.c.l.bf16 %v11883
  %v11948 = vunpack.c.l.bf16 %v11884
  %v11949 = vunpack.c.l.bf16 %v11885
  %v11950 = vunpack.c.l.bf16 %v11886
  %v11951 = vunpack.c.l.bf16 %v11887
  %v11952 = vunpack.c.l.bf16 %v11888
  %v11953 = vunpack.c.l.bf16 %v11889
  %v11954 = vunpack.c.l.bf16 %v11890
  %v11955 = vunpack.c.l.bf16 %v11891
  %v11956 = vunpack.c.l.bf16 %v11892
  %v11957 = vunpack.c.l.bf16 %v11893
  %v11958 = vunpack.c.l.bf16 %v11894
  %v11959 = vunpack.c.l.bf16 %v11895
  %v11960 = vunpack.c.l.bf16 %v11896
  %v11961 = vunpack.c.l.bf16 %v11897
  %v11962 = vunpack.c.l.bf16 %v11898
  %v11963 = vunpack.c.l.bf16 %v11899
  %v11964 = vunpack.c.l.bf16 %v11900
  %v11965 = vunpack.c.l.bf16 %v11901
  %v11966 = vunpack.c.l.bf16 %v11902
  %v11967 = vunpack.c.l.bf16 %v11903
  %v11968 = vunpack.c.l.bf16 %v11904
  %v11969 = vunpack.c.l.bf16 %v11905
  %v11970 = vunpack.c.l.bf16 %v11906
  %v11971 = vadd.f32 %v11779, %v11907
  %v11972 = vadd.f32 %v11780, %v11908
  %v11973 = vadd.f32 %v11781, %v11909
  %v11974 = vadd.f32 %v11782, %v11910
  %v11975 = vadd.f32 %v11783, %v11911
  %v11976 = vadd.f32 %v11784, %v11912
  %v11977 = vadd.f32 %v11785, %v11913
  %v11978 = vadd.f32 %v11786, %v11914
  %v11979 = vadd.f32 %v11787, %v11915
  %v11980 = vadd.f32 %v11788, %v11916
  %v11981 = vadd.f32 %v11789, %v11917
  %v11982 = vadd.f32 %v11790, %v11918
  %v11983 = vadd.f32 %v11791, %v11919
  %v11984 = vadd.f32 %v11792, %v11920
  %v11985 = vadd.f32 %v11793, %v11921
  %v11986 = vadd.f32 %v11794, %v11922
  %v11987 = vadd.f32 %v11795, %v11923
  %v11988 = vadd.f32 %v11796, %v11924
  %v11989 = vadd.f32 %v11797, %v11925
  %v11990 = vadd.f32 %v11798, %v11926
  %v11991 = vadd.f32 %v11799, %v11927
  %v11992 = vadd.f32 %v11800, %v11928
  %v11993 = vadd.f32 %v11801, %v11929
  %v11994 = vadd.f32 %v11802, %v11930
  %v11995 = vadd.f32 %v11803, %v11931
  %v11996 = vadd.f32 %v11804, %v11932
  %v11997 = vadd.f32 %v11805, %v11933
  %v11998 = vadd.f32 %v11806, %v11934
  %v11999 = vadd.f32 %v11807, %v11935
  %v12000 = vadd.f32 %v11808, %v11936
  %v12001 = vadd.f32 %v11809, %v11937
  %v12002 = vadd.f32 %v11810, %v11938
  %v12003 = vadd.f32 %v11811, %v11939
  %v12004 = vadd.f32 %v11812, %v11940
  %v12005 = vadd.f32 %v11813, %v11941
  %v12006 = vadd.f32 %v11814, %v11942
  %v12007 = vadd.f32 %v11815, %v11943
  %v12008 = vadd.f32 %v11816, %v11944
  %v12009 = vadd.f32 %v11817, %v11945
  %v12010 = vadd.f32 %v11818, %v11946
  %v12011 = vadd.f32 %v11819, %v11947
  %v12012 = vadd.f32 %v11820, %v11948
  %v12013 = vadd.f32 %v11821, %v11949
  %v12014 = vadd.f32 %v11822, %v11950
  %v12015 = vadd.f32 %v11823, %v11951
  %v12016 = vadd.f32 %v11824, %v11952
  %v12017 = vadd.f32 %v11825, %v11953
  %v12018 = vadd.f32 %v11826, %v11954
  %v12019 = vadd.f32 %v11827, %v11955
  %v12020 = vadd.f32 %v11828, %v11956
  %v12021 = vadd.f32 %v11829, %v11957
  %v12022 = vadd.f32 %v11830, %v11958
  %v12023 = vadd.f32 %v11831, %v11959
  %v12024 = vadd.f32 %v11832, %v11960
  %v12025 = vadd.f32 %v11833, %v11961
  %v12026 = vadd.f32 %v11834, %v11962
  %v12027 = vadd.f32 %v11835, %v11963
  %v12028 = vadd.f32 %v11836, %v11964
  %v12029 = vadd.f32 %v11837, %v11965
  %v12030 = vadd.f32 %v11838, %v11966
  %v12031 = vadd.f32 %v11839, %v11967
  %v12032 = vadd.f32 %v11840, %v11968
  %v12033 = vadd.f32 %v11841, %v11969
  %v12034 = vadd.f32 %v11842, %v11970
  %v12035 = vmax.f32 %v11971, 0.0
  %v12036 = vmax.f32 %v11972, 0.0
  %v12037 = vmax.f32 %v11973, 0.0
  %v12038 = vmax.f32 %v11974, 0.0
  %v12039 = vmax.f32 %v11975, 0.0
  %v12040 = vmax.f32 %v11976, 0.0
  %v12041 = vmax.f32 %v11977, 0.0
  %v12042 = vmax.f32 %v11978, 0.0
  %v12043 = vmax.f32 %v11979, 0.0
  %v12044 = vmax.f32 %v11980, 0.0
  %v12045 = vmax.f32 %v11981, 0.0
  %v12046 = vmax.f32 %v11982, 0.0
  %v12047 = vmax.f32 %v11983, 0.0
  %v12048 = vmax.f32 %v11984, 0.0
  %v12049 = vmax.f32 %v11985, 0.0
  %v12050 = vmax.f32 %v11986, 0.0
  %v12051 = vmax.f32 %v11987, 0.0
  %v12052 = vmax.f32 %v11988, 0.0
  %v12053 = vmax.f32 %v11989, 0.0
  %v12054 = vmax.f32 %v11990, 0.0
  %v12055 = vmax.f32 %v11991, 0.0
  %v12056 = vmax.f32 %v11992, 0.0
  %v12057 = vmax.f32 %v11993, 0.0
  %v12058 = vmax.f32 %v11994, 0.0
  %v12059 = vmax.f32 %v11995, 0.0
  %v12060 = vmax.f32 %v11996, 0.0
  %v12061 = vmax.f32 %v11997, 0.0
  %v12062 = vmax.f32 %v11998, 0.0
  %v12063 = vmax.f32 %v11999, 0.0
  %v12064 = vmax.f32 %v12000, 0.0
  %v12065 = vmax.f32 %v12001, 0.0
  %v12066 = vmax.f32 %v12002, 0.0
  %v12067 = vmax.f32 %v12003, 0.0
  %v12068 = vmax.f32 %v12004, 0.0
  %v12069 = vmax.f32 %v12005, 0.0
  %v12070 = vmax.f32 %v12006, 0.0
  %v12071 = vmax.f32 %v12007, 0.0
  %v12072 = vmax.f32 %v12008, 0.0
  %v12073 = vmax.f32 %v12009, 0.0
  %v12074 = vmax.f32 %v12010, 0.0
  %v12075 = vmax.f32 %v12011, 0.0
  %v12076 = vmax.f32 %v12012, 0.0
  %v12077 = vmax.f32 %v12013, 0.0
  %v12078 = vmax.f32 %v12014, 0.0
  %v12079 = vmax.f32 %v12015, 0.0
  %v12080 = vmax.f32 %v12016, 0.0
  %v12081 = vmax.f32 %v12017, 0.0
  %v12082 = vmax.f32 %v12018, 0.0
  %v12083 = vmax.f32 %v12019, 0.0
  %v12084 = vmax.f32 %v12020, 0.0
  %v12085 = vmax.f32 %v12021, 0.0
  %v12086 = vmax.f32 %v12022, 0.0
  %v12087 = vmax.f32 %v12023, 0.0
  %v12088 = vmax.f32 %v12024, 0.0
  %v12089 = vmax.f32 %v12025, 0.0
  %v12090 = vmax.f32 %v12026, 0.0
  %v12091 = vmax.f32 %v12027, 0.0
  %v12092 = vmax.f32 %v12028, 0.0
  %v12093 = vmax.f32 %v12029, 0.0
  %v12094 = vmax.f32 %v12030, 0.0
  %v12095 = vmax.f32 %v12031, 0.0
  %v12096 = vmax.f32 %v12032, 0.0
  %v12097 = vmax.f32 %v12033, 0.0
  %v12098 = vmax.f32 %v12034, 0.0
  %12099 = vst.msk [vmem:[%s7] sm:$0xff] %vm27, %v12035
  %12100 = vst.msk [vmem:[%s7 + $0x8] sm:$0xff] %vm27, %v12036
  %12101 = vst.msk [vmem:[%s7 + $0x10] sm:$0xff] %vm27, %v12037
  %12102 = vst.msk [vmem:[%s7 + $0x18] sm:$0xff] %vm27, %v12038
  %12103 = vst.msk [vmem:[%s7 + $0x20] sm:$0xff] %vm27, %v12039
  %12104 = vst.msk [vmem:[%s7 + $0x28] sm:$0xff] %vm27, %v12040
  %12105 = vst.msk [vmem:[%s7 + $0x30] sm:$0xff] %vm27, %v12041
  %12106 = vst.msk [vmem:[%s7 + $0x38] sm:$0xff] %vm27, %v12042
  %12107 = vst.msk [vmem:[%s7 + $0x40] sm:$0xff] %vm27, %v12043
  %12108 = vst.msk [vmem:[%s7 + $0x48] sm:$0xff] %vm27, %v12044
  %12109 = vst.msk [vmem:[%s7 + $0x50] sm:$0xff] %vm27, %v12045
  %12110 = vst.msk [vmem:[%s7 + $0x58] sm:$0xff] %vm27, %v12046
  %12111 = vst.msk [vmem:[%s7 + $0x60] sm:$0xff] %vm27, %v12047
  %12112 = vst.msk [vmem:[%s7 + $0x68] sm:$0xff] %vm27, %v12048
  %12113 = vst.msk [vmem:[%s7 + $0x70] sm:$0xff] %vm27, %v12049
  %12114 = vst.msk [vmem:[%s7 + $0x78] sm:$0xff] %vm27, %v12050
  %12115 = vst.msk [vmem:[%s7 + $0x80] sm:$0xff] %vm27, %v12051
  %12116 = vst.msk [vmem:[%s7 + $0x88] sm:$0xff] %vm27, %v12052
  %12117 = vst.msk [vmem:[%s7 + $0x90] sm:$0xff] %vm27, %v12053
  %12118 = vst.msk [vmem:[%s7 + $0x98] sm:$0xff] %vm27, %v12054
  %12119 = vst.msk [vmem:[%s7 + $0xa0] sm:$0xff] %vm27, %v12055
  %12120 = vst.msk [vmem:[%s7 + $0xa8] sm:$0xff] %vm27, %v12056
  %12121 = vst.msk [vmem:[%s7 + $0xb0] sm:$0xff] %vm27, %v12057
  %12122 = vst.msk [vmem:[%s7 + $0xb8] sm:$0xff] %vm27, %v12058
  %12123 = vst.msk [vmem:[%s7 + $0xc0] sm:$0xff] %vm27, %v12059
  %12124 = vst.msk [vmem:[%s7 + $0xc8] sm:$0xff] %vm27, %v12060
  %12125 = vst.msk [vmem:[%s7 + $0xd0] sm:$0xff] %vm27, %v12061
  %12126 = vst.msk [vmem:[%s7 + $0xd8] sm:$0xff] %vm27, %v12062
  %12127 = vst.msk [vmem:[%s7 + $0xe0] sm:$0xff] %vm27, %v12063
  %12128 = vst.msk [vmem:[%s7 + $0xe8] sm:$0xff] %vm27, %v12064
  %12129 = vst.msk [vmem:[%s7 + $0xf0] sm:$0xff] %vm27, %v12065
  %12130 = vst.msk [vmem:[%s7 + $0xf8] sm:$0xff] %vm27, %v12066
  %12131 = vst.msk [vmem:[%s7 + $0x100] sm:$0xff] %vm27, %v12067
  %12132 = vst.msk [vmem:[%s7 + $0x108] sm:$0xff] %vm27, %v12068
  %12133 = vst.msk [vmem:[%s7 + $0x110] sm:$0xff] %vm27, %v12069
  %12134 = vst.msk [vmem:[%s7 + $0x118] sm:$0xff] %vm27, %v12070
  %12135 = vst.msk [vmem:[%s7 + $0x120] sm:$0xff] %vm27, %v12071
  %12136 = vst.msk [vmem:[%s7 + $0x128] sm:$0xff] %vm27, %v12072
  %12137 = vst.msk [vmem:[%s7 + $0x130] sm:$0xff] %vm27, %v12073
  %12138 = vst.msk [vmem:[%s7 + $0x138] sm:$0xff] %vm27, %v12074
  %12139 = vst.msk [vmem:[%s7 + $0x140] sm:$0xff] %vm27, %v12075
  %12140 = vst.msk [vmem:[%s7 + $0x148] sm:$0xff] %vm27, %v12076
  %12141 = vst.msk [vmem:[%s7 + $0x150] sm:$0xff] %vm27, %v12077
  %12142 = vst.msk [vmem:[%s7 + $0x158] sm:$0xff] %vm27, %v12078
  %12143 = vst.msk [vmem:[%s7 + $0x160] sm:$0xff] %vm27, %v12079
  %12144 = vst.msk [vmem:[%s7 + $0x168] sm:$0xff] %vm27, %v12080
  %12145 = vst.msk [vmem:[%s7 + $0x170] sm:$0xff] %vm27, %v12081
  %12146 = vst.msk [vmem:[%s7 + $0x178] sm:$0xff] %vm27, %v12082
  %12147 = vst.msk [vmem:[%s7 + $0x180] sm:$0xff] %vm27, %v12083
  %12148 = vst.msk [vmem:[%s7 + $0x188] sm:$0xff] %vm27, %v12084
  %12149 = vst.msk [vmem:[%s7 + $0x190] sm:$0xff] %vm27, %v12085
  %12150 = vst.msk [vmem:[%s7 + $0x198] sm:$0xff] %vm27, %v12086
  %12151 = vst.msk [vmem:[%s7 + $0x1a0] sm:$0xff] %vm27, %v12087
  %12152 = vst.msk [vmem:[%s7 + $0x1a8] sm:$0xff] %vm27, %v12088
  %12153 = vst.msk [vmem:[%s7 + $0x1b0] sm:$0xff] %vm27, %v12089
  %12154 = vst.msk [vmem:[%s7 + $0x1b8] sm:$0xff] %vm27, %v12090
  %12155 = vst.msk [vmem:[%s7 + $0x1c0] sm:$0xff] %vm27, %v12091
  %12156 = vst.msk [vmem:[%s7 + $0x1c8] sm:$0xff] %vm27, %v12092
  %12157 = vst.msk [vmem:[%s7 + $0x1d0] sm:$0xff] %vm27, %v12093
  %12158 = vst.msk [vmem:[%s7 + $0x1d8] sm:$0xff] %vm27, %v12094
  %12159 = vst.msk [vmem:[%s7 + $0x1e0] sm:$0xff] %vm27, %v12095
  %12160 = vst.msk [vmem:[%s7 + $0x1e8] sm:$0xff] %vm27, %v12096
  %12161 = vst.msk [vmem:[%s7 + $0x1f0] sm:$0xff] %vm27, %v12097
  %12162 = vst.msk [vmem:[%s7 + $0x1f8] sm:$0xff] %vm27, %v12098
  // Predicated region
  $region30: #{tpu_custom_call.1} parent=0 // pred_check
    _
  $region31: #{tpu_custom_call.1} parent=0 // pred_check_branch
    %12164 = sbr.rel (0) target = $region33
  $region32: #{tpu_custom_call.1} parent=0 // pred_region
    _
  $region33: #{tpu_custom_call.1} parent=0 // pred_fallthru
    _
  // Predicated region
  $region34: #{tpu_custom_call.1} parent=0 // pred_check
    _
  $region35: #{tpu_custom_call.1} parent=0 // pred_check_branch
    %12166 = sbr.rel (0) target = $region37
  $region36: #{tpu_custom_call.1} parent=0 // pred_region
    _
  $region37: #{tpu_custom_call.1} parent=0 // pred_fallthru
    _

</llo_original>
